<compile_context>
chip_gen: v7x
topology: tpu7x:2x2x1
jax: 0.10.0
libtpu: 0.0.40
codegen_flags: <defaults>
</compile_context>

<pallas_src>
import math

import jax
import jax.numpy as jnp
from jax.experimental import pallas as pl
from jax.experimental.pallas import tpu as pltpu

# ---- hyper-parameters (n_layers / nhead / dim_ff fixed by the module) -------
N_LAYERS = 12
N_HEAD = 12
DIM_FF = 2048
DIM_MODEL = 96              # dim_out (must be divisible by nhead=12)
HEAD_DIM = DIM_MODEL // N_HEAD
MAX_LENGTH = 16
VOCAB_SIZE = 64
EOS_ID = 2                  # stands in for tokenizer.token_to_id('[EOS]')
LN_EPS = 1e-5
NEG_INF = -1e9


def _layer_norm(v, g, b):
    mu = jnp.mean(v, axis=-1, keepdims=True)
    var = jnp.mean((v - mu) ** 2, axis=-1, keepdims=True)
    return (v - mu) * jax.lax.rsqrt(var + LN_EPS) * g + b


# --------------------- fused 12-layer transformer kernel ---------------------
def transformer_stack(x, sent_len, params):
    """x: (B, L, D) f32 -> (B, L, D) f32 with the final LayerNorm applied."""
    B, L, D = x.shape
    BL = B * L
    lp = params['layers']
    F = lp['w1'].shape[-1]
    scale = 1.0 / math.sqrt(HEAD_DIM)

    def kernel(sl_ref,                         # SMEM (B,) int32 sentence lengths
               x0_ref,                         # (BL, D) layer-0 input (read once)
               lnf_g_ref, lnf_b_ref,           # final LayerNorm params
               ln1_g_ref, ln1_b_ref,
               wqkv_ref, bqkv_ref, wo_ref, bo_ref,
               ln2_g_ref, ln2_b_ref,
               w1_ref, b1_ref, w2_ref, b2_ref,
               out_ref,                        # (BL, D) written at the last layer
               x_sc):                          # VMEM residual slab (persists)
        layer = pl.program_id(0)

        @pl.when(layer == 0)
        def _():
            x_sc[...] = x0_ref[...]

        xr = x_sc[...]                                       # (BL, D) f32

        # ---- additive attention bias (BL, BL) built in-kernel ----------------
        row = jax.lax.broadcasted_iota(jnp.int32, (BL, BL), 0)
        col = jax.lax.broadcasted_iota(jnp.int32, (BL, BL), 1)
        bias = jnp.full((BL, BL), NEG_INF, jnp.float32)      # cross-sequence: masked
        for b in range(B):
            sl = sl_ref[b]
            i = row - b * L
            j = col - b * L
            in_blk = (i >= 0) & (i < L) & (j >= 0) & (j < L)
            # TODO(synk): TransformerRadford source not provided; mask semantics
            # kept identical to the previous translation: additive -1e9 where the
            # torch mask (triu(ones,1).T restricted to [:sl,:sl]) is True.
            masked = (i > j) & (i < sl) & (j < sl)
            bias = jnp.where(in_blk, jnp.where(masked, NEG_INF, 0.0), bias)

        # ---- pre-LN multi-head self-attention (fused QKV, batch fused) -------
        h = _layer_norm(xr, ln1_g_ref[0], ln1_b_ref[0])
        qkv = jnp.dot(h.astype(jnp.bfloat16), wqkv_ref[0],
                      preferred_element_type=jnp.float32) + bqkv_ref[0]
        q = qkv[:, :D].astype(jnp.bfloat16)
        k = qkv[:, D:2 * D].astype(jnp.bfloat16)
        v = qkv[:, 2 * D:].astype(jnp.bfloat16)

        ctx = []
        for hd in range(N_HEAD):
            cs = slice(hd * HEAD_DIM, (hd + 1) * HEAD_DIM)
            s = jax.lax.dot_general(q[:, cs], k[:, cs], (((1,), (1,)), ((), ())),
                                    preferred_element_type=jnp.float32)
            s = s * scale + bias
            s = s - jnp.max(s, axis=-1, keepdims=True)
            p = jnp.exp(s)
            p = p * pl.reciprocal(jnp.sum(p, axis=-1, keepdims=True), approx=True)
            ctx.append(jnp.dot(p.astype(jnp.bfloat16), v[:, cs],
                               preferred_element_type=jnp.float32))
        ctx = jnp.concatenate(ctx, axis=-1)                  # (BL, D)
        attn = jnp.dot(ctx.astype(jnp.bfloat16), wo_ref[0],
                       preferred_element_type=jnp.float32) + bo_ref[0]
        xr = xr + attn

        # ---- pre-LN MLP -------------------------------------------------------
        h2 = _layer_norm(xr, ln2_g_ref[0], ln2_b_ref[0])
        f = jnp.dot(h2.astype(jnp.bfloat16), w1_ref[0],
                    preferred_element_type=jnp.float32) + b1_ref[0]
        # TODO(synk): tanh-GELU assumed (TransformerRadford source not provided).
        f = 0.5 * f * (1.0 + jnp.tanh(0.7978845608028654 * (f + 0.044715 * f * f * f)))
        f = jnp.dot(f.astype(jnp.bfloat16), w2_ref[0],
                    preferred_element_type=jnp.float32) + b2_ref[0]
        xr = xr + f

        x_sc[...] = xr                                       # carry to next layer

        @pl.when(layer == N_LAYERS - 1)
        def _():
            # fused final-LayerNorm epilogue (row-wise, so applying it before the
            # EOS-row gather matches the original gather-then-LN order).
            out_ref[...] = _layer_norm(xr, lnf_g_ref[...], lnf_b_ref[...])

    const = lambda shape: pl.BlockSpec(shape, lambda l, s: (0,) * len(shape))
    per_layer = lambda shape: pl.BlockSpec((1,) + shape, lambda l, s: (l, 0, 0))

    out = pl.pallas_call(
        kernel,
        out_shape=jax.ShapeDtypeStruct((BL, D), jnp.float32),
        grid_spec=pltpu.PrefetchScalarGridSpec(
            num_scalar_prefetch=1,
            grid=(N_LAYERS,),
            in_specs=[
                const((BL, D)),            # x0 (fetched once, constant block)
                const((1, D)),             # final LN gamma
                const((1, D)),             # final LN beta
                per_layer((1, D)),         # ln1 gamma
                per_layer((1, D)),         # ln1 beta
                per_layer((D, 3 * D)),     # fused Wqkv (bf16)
                per_layer((1, 3 * D)),     # fused bqkv
                per_layer((D, D)),         # Wo (bf16)
                per_layer((1, D)),         # bo
                per_layer((1, D)),         # ln2 gamma
                per_layer((1, D)),         # ln2 beta
                per_layer((D, F)),         # W1 (bf16)
                per_layer((1, F)),         # b1
                per_layer((F, D)),         # W2 (bf16)
                per_layer((1, D)),         # b2
            ],
            out_specs=pl.BlockSpec((BL, D), lambda l, s: (0, 0)),
            scratch_shapes=[pltpu.VMEM((BL, D), jnp.float32)],
        ),
        compiler_params=pltpu.CompilerParams(
            dimension_semantics=("arbitrary",)),
    )(sent_len, x.reshape(BL, D),
      params['ln_g'], params['ln_b'],
      lp['ln1_g'], lp['ln1_b'], lp['wqkv'], lp['bqkv'], lp['wo'], lp['bo'],
      lp['ln2_g'], lp['ln2_b'], lp['w1'], lp['b1'], lp['w2'], lp['b2'])
    return out.reshape(B, L, D)


# ----------------------------- parameters ------------------------------------
def xavier_uniform(key, shape):
    limit = math.sqrt(6.0 / (shape[0] + shape[1]))
    return jax.random.uniform(key, shape, jnp.float32, -limit, limit)


def sinusoidal_pos_encoding(max_length, dim_model):
    pos = jnp.arange(max_length, dtype=jnp.float32)[:, None]
    div = jnp.exp(jnp.arange(0, dim_model, 2, dtype=jnp.float32)
                  * (-math.log(10000.0) / dim_model))
    pe = jnp.zeros((max_length, dim_model), jnp.float32)
    pe = pe.at[:, 0::2].set(jnp.sin(pos * div))
    pe = pe.at[:, 1::2].set(jnp.cos(pos * div))
    return pe[None]                                      # (1, L, D)


def init_params(key):
    keys = jax.random.split(key, 1 + N_LAYERS)
    params = {}
    params['embedding'] = 0.02 * jax.random.normal(
        keys[0], (VOCAB_SIZE, DIM_MODEL), jnp.float32)
    params['pos_enc'] = sinusoidal_pos_encoding(MAX_LENGTH, DIM_MODEL)

    layers = []
    for l in range(N_LAYERS):
        lk = jax.random.split(keys[1 + l], 6)
        wq = xavier_uniform(lk[0], (DIM_MODEL, DIM_MODEL))
        wk = xavier_uniform(lk[1], (DIM_MODEL, DIM_MODEL))
        wv = xavier_uniform(lk[2], (DIM_MODEL, DIM_MODEL))
        layers.append(dict(
            ln1_g=jnp.ones((1, DIM_MODEL), jnp.float32),
            ln1_b=jnp.zeros((1, DIM_MODEL), jnp.float32),
            wqkv=jnp.concatenate([wq, wk, wv], axis=1).astype(jnp.bfloat16),
            bqkv=jnp.zeros((1, 3 * DIM_MODEL), jnp.float32),
            wo=xavier_uniform(lk[3], (DIM_MODEL, DIM_MODEL)).astype(jnp.bfloat16),
            bo=jnp.zeros((1, DIM_MODEL), jnp.float32),
            ln2_g=jnp.ones((1, DIM_MODEL), jnp.float32),
            ln2_b=jnp.zeros((1, DIM_MODEL), jnp.float32),
            w1=xavier_uniform(lk[4], (DIM_MODEL, DIM_FF)).astype(jnp.bfloat16),
            b1=jnp.zeros((1, DIM_FF), jnp.float32),
            w2=xavier_uniform(lk[5], (DIM_FF, DIM_MODEL)).astype(jnp.bfloat16),
            b2=jnp.zeros((1, DIM_MODEL), jnp.float32),
        ))
    # stack per-layer params so the kernel can stream them along the layer grid
    params['layers'] = jax.tree_util.tree_map(lambda *xs: jnp.stack(xs), *layers)
    params['ln_g'] = jnp.ones((1, DIM_MODEL), jnp.float32)
    params['ln_b'] = jnp.zeros((1, DIM_MODEL), jnp.float32)
    return params


# ----------------------------- forward pass -----------------------------------
@jax.jit
def gpt_large_forward(tokens, params):
    B, L = tokens.shape

    sent_len = jnp.sum((tokens != 0).astype(jnp.int32), axis=1)   # (B,)
    eos_idx = jnp.argmax(tokens == EOS_ID, axis=1)                # one EOS per row

    # token embedding + positional encoding
    x = jnp.take(params['embedding'], tokens, axis=0)             # (B, L, D)
    x = x + params['pos_enc']

    # 12 transformer layers + final LayerNorm in one fused Pallas kernel
    x = transformer_stack(x, sent_len, params)                    # (B, L, D)

    # x[eos_mask]: exactly one EOS per sequence here -> (B, D) gather
    return x[jnp.arange(B), eos_idx]


# ----------------------------- main --------------------------------------------
if __name__ == "__main__":
    key = jax.random.PRNGKey(0)
    pkey, tkey = jax.random.split(key)
    params = init_params(pkey)

    B = 2
    lengths = jnp.array([10, 7], dtype=jnp.int32)
    tok = jax.random.randint(tkey, (B, MAX_LENGTH), 3, VOCAB_SIZE, dtype=jnp.int32)
    pos = jnp.arange(MAX_LENGTH, dtype=jnp.int32)[None, :]
    tok = jnp.where(pos < lengths[:, None], tok, 0)              # pad with 0
    tok = jnp.where(pos == lengths[:, None] - 1, EOS_ID, tok)    # one EOS per row

    out = gpt_large_forward(tok, params)
    out = jax.block_until_ready(out)
    assert out.shape == (B, DIM_MODEL) and out.dtype == jnp.float32
    print("KERNEL_OK")
</pallas_src>

<mosaic_0001>
module attributes {stable_mosaic.version = 11 : i64} {
  func.func @kernel(%arg0: i32, %arg1: memref<2xi32, #tpu.memory_space<smem>>, %arg2: memref<32x96xf32, #tpu.memory_space<vmem>>, %arg3: memref<1x96xf32, #tpu.memory_space<vmem>>, %arg4: memref<1x96xf32, #tpu.memory_space<vmem>>, %arg5: memref<1x1x96xf32, #tpu.memory_space<vmem>>, %arg6: memref<1x1x96xf32, #tpu.memory_space<vmem>>, %arg7: memref<1x96x288xbf16, #tpu.memory_space<vmem>>, %arg8: memref<1x1x288xf32, #tpu.memory_space<vmem>>, %arg9: memref<1x96x96xbf16, #tpu.memory_space<vmem>>, %arg10: memref<1x1x96xf32, #tpu.memory_space<vmem>>, %arg11: memref<1x1x96xf32, #tpu.memory_space<vmem>>, %arg12: memref<1x1x96xf32, #tpu.memory_space<vmem>>, %arg13: memref<1x96x2048xbf16, #tpu.memory_space<vmem>>, %arg14: memref<1x1x2048xf32, #tpu.memory_space<vmem>>, %arg15: memref<1x2048x96xbf16, #tpu.memory_space<vmem>>, %arg16: memref<1x1x96xf32, #tpu.memory_space<vmem>>, %arg17: memref<32x96xf32, #tpu.memory_space<vmem>>, %arg18: memref<32x96xf32, #tpu.memory_space<vmem>>) attributes {dimension_semantics = [#tpu.dimension_semantics<arbitrary>], iteration_bounds = array<i64: 12>, scalar_prefetch = 1 : i64, scratch_operands = 1 : i64, tpu.core_type = #tpu.core_type<tc>, window_params = [{pipeline_mode = #tpu.pipeline_mode<synchronous>, transform_indices = @transform_0, window_bounds = array<i64: 32, 96>}, {pipeline_mode = #tpu.pipeline_mode<synchronous>, transform_indices = @transform_1, window_bounds = array<i64: 1, 96>}, {pipeline_mode = #tpu.pipeline_mode<synchronous>, transform_indices = @transform_2, window_bounds = array<i64: 1, 96>}, {transform_indices = @transform_3, window_bounds = array<i64: 1, 1, 96>}, {transform_indices = @transform_4, window_bounds = array<i64: 1, 1, 96>}, {transform_indices = @transform_5, window_bounds = array<i64: 1, 96, 288>}, {transform_indices = @transform_6, window_bounds = array<i64: 1, 1, 288>}, {transform_indices = @transform_7, window_bounds = array<i64: 1, 96, 96>}, {transform_indices = @transform_8, window_bounds = array<i64: 1, 1, 96>}, {transform_indices = @transform_9, window_bounds = array<i64: 1, 1, 96>}, {transform_indices = @transform_10, window_bounds = array<i64: 1, 1, 96>}, {transform_indices = @transform_11, window_bounds = array<i64: 1, 96, 2048>}, {transform_indices = @transform_12, window_bounds = array<i64: 1, 1, 2048>}, {transform_indices = @transform_13, window_bounds = array<i64: 1, 2048, 96>}, {transform_indices = @transform_14, window_bounds = array<i64: 1, 1, 96>}, {pipeline_mode = #tpu.pipeline_mode<synchronous>, transform_indices = @transform_15, window_bounds = array<i64: 32, 96>}]} {
    %c0_i32 = arith.constant 0 : i32
    %0 = arith.cmpi eq, %arg0, %c0_i32 : i32
    %1 = arith.extui %0 : i1 to i32
    %c0_i32_0 = arith.constant 0 : i32
    %2 = arith.cmpi ne, %1, %c0_i32_0 : i32
    scf.if %2 {
      %c0_135 = arith.constant 0 : index
      %c0_136 = arith.constant 0 : index
      %399 = vector.load %arg2[%c0_135, %c0_136] : memref<32x96xf32, #tpu.memory_space<vmem>>, vector<32x96xf32>
      %c0_137 = arith.constant 0 : index
      %c0_138 = arith.constant 0 : index
      %400 = vector.load %arg18[%c0_137, %c0_138] : memref<32x96xf32, #tpu.memory_space<vmem>>, vector<32x96xf32>
      tpu.vector_store %arg18[%c0_137, %c0_138], %399 {strides = array<i32>} : memref<32x96xf32, #tpu.memory_space<vmem>>, vector<32x96xf32>,
    } else {
    }
    %c0 = arith.constant 0 : index
    %c0_1 = arith.constant 0 : index
    %3 = vector.load %arg18[%c0, %c0_1] : memref<32x96xf32, #tpu.memory_space<vmem>>, vector<32x96xf32>
    %4 = tpu.iota {dimensions = array<i32: 0>} : vector<32x32xi32>
    %5 = tpu.iota {dimensions = array<i32: 1>} : vector<32x32xi32>
    %cst = arith.constant -1.000000e+09 : f32
    %6 = vector.broadcast %cst : f32 to vector<32x32xf32>
    %c0_2 = arith.constant 0 : index
    %7 = memref.load %arg1[%c0_2] : memref<2xi32, #tpu.memory_space<smem>>
    %c0_i32_3 = arith.constant 0 : i32
    %8 = vector.broadcast %c0_i32_3 : i32 to vector<32x32xi32>
    %9 = arith.subi %4, %8 : vector<32x32xi32>
    %c0_i32_4 = arith.constant 0 : i32
    %10 = vector.broadcast %c0_i32_4 : i32 to vector<32x32xi32>
    %11 = arith.subi %5, %10 : vector<32x32xi32>
    %c0_i32_5 = arith.constant 0 : i32
    %12 = vector.broadcast %c0_i32_5 : i32 to vector<32x32xi32>
    %13 = arith.cmpi sge, %9, %12 : vector<32x32xi32>
    %c16_i32 = arith.constant 16 : i32
    %14 = vector.broadcast %c16_i32 : i32 to vector<32x32xi32>
    %15 = arith.cmpi slt, %9, %14 : vector<32x32xi32>
    %16 = arith.andi %13, %15 : vector<32x32xi1>
    %c0_i32_6 = arith.constant 0 : i32
    %17 = vector.broadcast %c0_i32_6 : i32 to vector<32x32xi32>
    %18 = arith.cmpi sge, %11, %17 : vector<32x32xi32>
    %19 = arith.andi %16, %18 : vector<32x32xi1>
    %c16_i32_7 = arith.constant 16 : i32
    %20 = vector.broadcast %c16_i32_7 : i32 to vector<32x32xi32>
    %21 = arith.cmpi slt, %11, %20 : vector<32x32xi32>
    %22 = arith.andi %19, %21 : vector<32x32xi1>
    %23 = arith.cmpi sgt, %9, %11 : vector<32x32xi32>
    %24 = vector.broadcast %7 : i32 to vector<32x32xi32>
    %25 = arith.cmpi slt, %9, %24 : vector<32x32xi32>
    %26 = arith.andi %23, %25 : vector<32x32xi1>
    %27 = vector.broadcast %7 : i32 to vector<32x32xi32>
    %28 = arith.cmpi slt, %11, %27 : vector<32x32xi32>
    %29 = arith.andi %26, %28 : vector<32x32xi1>
    %cst_8 = arith.constant -1.000000e+09 : f32
    %cst_9 = arith.constant 0.000000e+00 : f32
    %30 = vector.broadcast %cst_8 : f32 to vector<32x32xf32>
    %31 = vector.broadcast %cst_9 : f32 to vector<32x32xf32>
    %32 = arith.select %29, %30, %31 : vector<32x32xi1>, vector<32x32xf32>
    %33 = arith.select %22, %32, %6 : vector<32x32xi1>, vector<32x32xf32>
    %c1 = arith.constant 1 : index
    %34 = memref.load %arg1[%c1] : memref<2xi32, #tpu.memory_space<smem>>
    %c16_i32_10 = arith.constant 16 : i32
    %35 = vector.broadcast %c16_i32_10 : i32 to vector<32x32xi32>
    %36 = arith.subi %4, %35 : vector<32x32xi32>
    %c16_i32_11 = arith.constant 16 : i32
    %37 = vector.broadcast %c16_i32_11 : i32 to vector<32x32xi32>
    %38 = arith.subi %5, %37 : vector<32x32xi32>
    %c0_i32_12 = arith.constant 0 : i32
    %39 = vector.broadcast %c0_i32_12 : i32 to vector<32x32xi32>
    %40 = arith.cmpi sge, %36, %39 : vector<32x32xi32>
    %c16_i32_13 = arith.constant 16 : i32
    %41 = vector.broadcast %c16_i32_13 : i32 to vector<32x32xi32>
    %42 = arith.cmpi slt, %36, %41 : vector<32x32xi32>
    %43 = arith.andi %40, %42 : vector<32x32xi1>
    %c0_i32_14 = arith.constant 0 : i32
    %44 = vector.broadcast %c0_i32_14 : i32 to vector<32x32xi32>
    %45 = arith.cmpi sge, %38, %44 : vector<32x32xi32>
    %46 = arith.andi %43, %45 : vector<32x32xi1>
    %c16_i32_15 = arith.constant 16 : i32
    %47 = vector.broadcast %c16_i32_15 : i32 to vector<32x32xi32>
    %48 = arith.cmpi slt, %38, %47 : vector<32x32xi32>
    %49 = arith.andi %46, %48 : vector<32x32xi1>
    %50 = arith.cmpi sgt, %36, %38 : vector<32x32xi32>
    %51 = vector.broadcast %34 : i32 to vector<32x32xi32>
    %52 = arith.cmpi slt, %36, %51 : vector<32x32xi32>
    %53 = arith.andi %50, %52 : vector<32x32xi1>
    %54 = vector.broadcast %34 : i32 to vector<32x32xi32>
    %55 = arith.cmpi slt, %38, %54 : vector<32x32xi32>
    %56 = arith.andi %53, %55 : vector<32x32xi1>
    %cst_16 = arith.constant -1.000000e+09 : f32
    %cst_17 = arith.constant 0.000000e+00 : f32
    %57 = vector.broadcast %cst_16 : f32 to vector<32x32xf32>
    %58 = vector.broadcast %cst_17 : f32 to vector<32x32xf32>
    %59 = arith.select %56, %57, %58 : vector<32x32xi1>, vector<32x32xf32>
    %60 = arith.select %49, %59, %33 : vector<32x32xi1>, vector<32x32xf32>
    %c0_18 = arith.constant 0 : index
    %c0_19 = arith.constant 0 : index
    %c0_20 = arith.constant 0 : index
    %61 = vector.load %arg5[%c0_18, %c0_19, %c0_20] : memref<1x1x96xf32, #tpu.memory_space<vmem>>, vector<1x1x96xf32>
    %62 = vector.shape_cast %61 : vector<1x1x96xf32> to vector<1x96xf32>
    %c0_21 = arith.constant 0 : index
    %c0_22 = arith.constant 0 : index
    %c0_23 = arith.constant 0 : index
    %63 = vector.load %arg6[%c0_21, %c0_22, %c0_23] : memref<1x1x96xf32, #tpu.memory_space<vmem>>, vector<1x1x96xf32>
    %64 = vector.shape_cast %63 : vector<1x1x96xf32> to vector<1x96xf32>
    %cst_24 = arith.constant dense<0.000000e+00> : vector<32xf32>
    %65 = vector.multi_reduction <add>, %3, %cst_24 [1] : vector<32x96xf32> to vector<32xf32>
    %66 = vector.shape_cast %65 : vector<32xf32> to vector<32x1xf32>
    %cst_25 = arith.constant 9.600000e+01 : f32
    %67 = vector.broadcast %cst_25 : f32 to vector<32x1xf32>
    %68 = arith.divf %66, %67 : vector<32x1xf32>
    %69 = vector.broadcast %68 : vector<32x1xf32> to vector<32x96xf32>
    %70 = arith.subf %3, %69 : vector<32x96xf32>
    %71 = arith.mulf %70, %70 : vector<32x96xf32>
    %cst_26 = arith.constant dense<0.000000e+00> : vector<32xf32>
    %72 = vector.multi_reduction <add>, %71, %cst_26 [1] : vector<32x96xf32> to vector<32xf32>
    %73 = vector.shape_cast %72 : vector<32xf32> to vector<32x1xf32>
    %cst_27 = arith.constant 9.600000e+01 : f32
    %74 = vector.broadcast %cst_27 : f32 to vector<32x1xf32>
    %75 = arith.divf %73, %74 : vector<32x1xf32>
    %76 = vector.broadcast %68 : vector<32x1xf32> to vector<32x96xf32>
    %77 = arith.subf %3, %76 : vector<32x96xf32>
    %cst_28 = arith.constant 9.99999974E-6 : f32
    %78 = vector.broadcast %cst_28 : f32 to vector<32x1xf32>
    %79 = arith.addf %75, %78 : vector<32x1xf32>
    %80 = math.rsqrt %79 : vector<32x1xf32>
    %81 = vector.broadcast %80 : vector<32x1xf32> to vector<32x96xf32>
    %82 = arith.mulf %77, %81 : vector<32x96xf32>
    %83 = vector.broadcast %62 : vector<1x96xf32> to vector<32x96xf32>
    %84 = arith.mulf %82, %83 : vector<32x96xf32>
    %85 = vector.broadcast %64 : vector<1x96xf32> to vector<32x96xf32>
    %86 = arith.addf %84, %85 : vector<32x96xf32>
    %87 = arith.truncf %86 : vector<32x96xf32> to vector<32x96xbf16>
    %c0_29 = arith.constant 0 : index
    %c0_30 = arith.constant 0 : index
    %c0_31 = arith.constant 0 : index
    %88 = vector.load %arg7[%c0_29, %c0_30, %c0_31] : memref<1x96x288xbf16, #tpu.memory_space<vmem>>, vector<1x96x288xbf16>
    %89 = vector.shape_cast %88 : vector<1x96x288xbf16> to vector<96x288xbf16>
    %cst_32 = arith.constant dense<0.000000e+00> : vector<32x288xf32>
    %90 = tpu.matmul %87, %89, %cst_32 {dimension_numbers = #tpu.dot_dimension_numbers<[1], [0], [0], [1], [0, 0, 1, 1], [], []>} : vector<32x96xbf16>, vector<96x288xbf16>, vector<32x288xf32> -> vector<32x288xf32>
    %c0_33 = arith.constant 0 : index
    %c0_34 = arith.constant 0 : index
    %c0_35 = arith.constant 0 : index
    %91 = vector.load %arg8[%c0_33, %c0_34, %c0_35] : memref<1x1x288xf32, #tpu.memory_space<vmem>>, vector<1x1x288xf32>
    %92 = vector.shape_cast %91 : vector<1x1x288xf32> to vector<1x288xf32>
    %93 = vector.broadcast %92 : vector<1x288xf32> to vector<32x288xf32>
    %94 = arith.addf %90, %93 : vector<32x288xf32>
    %95 = vector.extract_strided_slice %94 {offsets = [0, 0], sizes = [32, 96], strides = [1, 1]} : vector<32x288xf32> to vector<32x96xf32>
    %96 = arith.truncf %95 : vector<32x96xf32> to vector<32x96xbf16>
    %97 = vector.extract_strided_slice %94 {offsets = [0, 96], sizes = [32, 96], strides = [1, 1]} : vector<32x288xf32> to vector<32x96xf32>
    %98 = arith.truncf %97 : vector<32x96xf32> to vector<32x96xbf16>
    %99 = vector.extract_strided_slice %94 {offsets = [0, 192], sizes = [32, 96], strides = [1, 1]} : vector<32x288xf32> to vector<32x96xf32>
    %100 = arith.truncf %99 : vector<32x96xf32> to vector<32x96xbf16>
    %101 = vector.extract_strided_slice %96 {offsets = [0, 0], sizes = [32, 8], strides = [1, 1]} : vector<32x96xbf16> to vector<32x8xbf16>
    %102 = vector.extract_strided_slice %98 {offsets = [0, 0], sizes = [32, 8], strides = [1, 1]} : vector<32x96xbf16> to vector<32x8xbf16>
    %cst_36 = arith.constant dense<0.000000e+00> : vector<32x32xf32>
    %103 = tpu.matmul %101, %102, %cst_36 {dimension_numbers = #tpu.dot_dimension_numbers<[1], [1], [0], [0], [0, 0, 1, 0], [], []>} : vector<32x8xbf16>, vector<32x8xbf16>, vector<32x32xf32> -> vector<32x32xf32>
    %cst_37 = arith.constant 0.353553385 : f32
    %104 = vector.broadcast %cst_37 : f32 to vector<32x32xf32>
    %105 = arith.mulf %103, %104 : vector<32x32xf32>
    %106 = arith.addf %105, %60 : vector<32x32xf32>
    %cst_38 = arith.constant dense<0xFF800000> : vector<32xf32>
    %107 = vector.multi_reduction <maximumf>, %106, %cst_38 [1] : vector<32x32xf32> to vector<32xf32>
    %108 = vector.shape_cast %107 : vector<32xf32> to vector<32x1xf32>
    %109 = vector.broadcast %108 : vector<32x1xf32> to vector<32x32xf32>
    %110 = arith.subf %106, %109 : vector<32x32xf32>
    %111 = math.exp %110 : vector<32x32xf32>
    %cst_39 = arith.constant dense<0.000000e+00> : vector<32xf32>
    %112 = vector.multi_reduction <add>, %111, %cst_39 [1] : vector<32x32xf32> to vector<32xf32>
    %113 = vector.shape_cast %112 : vector<32xf32> to vector<32x1xf32>
    %114 = tpu.reciprocal %113 {approx = true} : vector<32x1xf32> -> vector<32x1xf32>
    %115 = vector.broadcast %114 : vector<32x1xf32> to vector<32x32xf32>
    %116 = arith.mulf %111, %115 : vector<32x32xf32>
    %117 = arith.truncf %116 : vector<32x32xf32> to vector<32x32xbf16>
    %118 = vector.extract_strided_slice %100 {offsets = [0, 0], sizes = [32, 8], strides = [1, 1]} : vector<32x96xbf16> to vector<32x8xbf16>
    %cst_40 = arith.constant dense<0.000000e+00> : vector<32x8xf32>
    %119 = tpu.matmul %117, %118, %cst_40 {dimension_numbers = #tpu.dot_dimension_numbers<[1], [0], [0], [1], [0, 0, 1, 1], [], []>} : vector<32x32xbf16>, vector<32x8xbf16>, vector<32x8xf32> -> vector<32x8xf32>
    %120 = vector.extract_strided_slice %96 {offsets = [0, 8], sizes = [32, 8], strides = [1, 1]} : vector<32x96xbf16> to vector<32x8xbf16>
    %121 = vector.extract_strided_slice %98 {offsets = [0, 8], sizes = [32, 8], strides = [1, 1]} : vector<32x96xbf16> to vector<32x8xbf16>
    %cst_41 = arith.constant dense<0.000000e+00> : vector<32x32xf32>
    %122 = tpu.matmul %120, %121, %cst_41 {dimension_numbers = #tpu.dot_dimension_numbers<[1], [1], [0], [0], [0, 0, 1, 0], [], []>} : vector<32x8xbf16>, vector<32x8xbf16>, vector<32x32xf32> -> vector<32x32xf32>
    %cst_42 = arith.constant 0.353553385 : f32
    %123 = vector.broadcast %cst_42 : f32 to vector<32x32xf32>
    %124 = arith.mulf %122, %123 : vector<32x32xf32>
    %125 = arith.addf %124, %60 : vector<32x32xf32>
    %cst_43 = arith.constant dense<0xFF800000> : vector<32xf32>
    %126 = vector.multi_reduction <maximumf>, %125, %cst_43 [1] : vector<32x32xf32> to vector<32xf32>
    %127 = vector.shape_cast %126 : vector<32xf32> to vector<32x1xf32>
    %128 = vector.broadcast %127 : vector<32x1xf32> to vector<32x32xf32>
    %129 = arith.subf %125, %128 : vector<32x32xf32>
    %130 = math.exp %129 : vector<32x32xf32>
    %cst_44 = arith.constant dense<0.000000e+00> : vector<32xf32>
    %131 = vector.multi_reduction <add>, %130, %cst_44 [1] : vector<32x32xf32> to vector<32xf32>
    %132 = vector.shape_cast %131 : vector<32xf32> to vector<32x1xf32>
    %133 = tpu.reciprocal %132 {approx = true} : vector<32x1xf32> -> vector<32x1xf32>
    %134 = vector.broadcast %133 : vector<32x1xf32> to vector<32x32xf32>
    %135 = arith.mulf %130, %134 : vector<32x32xf32>
    %136 = arith.truncf %135 : vector<32x32xf32> to vector<32x32xbf16>
    %137 = vector.extract_strided_slice %100 {offsets = [0, 8], sizes = [32, 8], strides = [1, 1]} : vector<32x96xbf16> to vector<32x8xbf16>
    %cst_45 = arith.constant dense<0.000000e+00> : vector<32x8xf32>
    %138 = tpu.matmul %136, %137, %cst_45 {dimension_numbers = #tpu.dot_dimension_numbers<[1], [0], [0], [1], [0, 0, 1, 1], [], []>} : vector<32x32xbf16>, vector<32x8xbf16>, vector<32x8xf32> -> vector<32x8xf32>
    %139 = vector.extract_strided_slice %96 {offsets = [0, 16], sizes = [32, 8], strides = [1, 1]} : vector<32x96xbf16> to vector<32x8xbf16>
    %140 = vector.extract_strided_slice %98 {offsets = [0, 16], sizes = [32, 8], strides = [1, 1]} : vector<32x96xbf16> to vector<32x8xbf16>
    %cst_46 = arith.constant dense<0.000000e+00> : vector<32x32xf32>
    %141 = tpu.matmul %139, %140, %cst_46 {dimension_numbers = #tpu.dot_dimension_numbers<[1], [1], [0], [0], [0, 0, 1, 0], [], []>} : vector<32x8xbf16>, vector<32x8xbf16>, vector<32x32xf32> -> vector<32x32xf32>
    %cst_47 = arith.constant 0.353553385 : f32
    %142 = vector.broadcast %cst_47 : f32 to vector<32x32xf32>
    %143 = arith.mulf %141, %142 : vector<32x32xf32>
    %144 = arith.addf %143, %60 : vector<32x32xf32>
    %cst_48 = arith.constant dense<0xFF800000> : vector<32xf32>
    %145 = vector.multi_reduction <maximumf>, %144, %cst_48 [1] : vector<32x32xf32> to vector<32xf32>
    %146 = vector.shape_cast %145 : vector<32xf32> to vector<32x1xf32>
    %147 = vector.broadcast %146 : vector<32x1xf32> to vector<32x32xf32>
    %148 = arith.subf %144, %147 : vector<32x32xf32>
    %149 = math.exp %148 : vector<32x32xf32>
    %cst_49 = arith.constant dense<0.000000e+00> : vector<32xf32>
    %150 = vector.multi_reduction <add>, %149, %cst_49 [1] : vector<32x32xf32> to vector<32xf32>
    %151 = vector.shape_cast %150 : vector<32xf32> to vector<32x1xf32>
    %152 = tpu.reciprocal %151 {approx = true} : vector<32x1xf32> -> vector<32x1xf32>
    %153 = vector.broadcast %152 : vector<32x1xf32> to vector<32x32xf32>
    %154 = arith.mulf %149, %153 : vector<32x32xf32>
    %155 = arith.truncf %154 : vector<32x32xf32> to vector<32x32xbf16>
    %156 = vector.extract_strided_slice %100 {offsets = [0, 16], sizes = [32, 8], strides = [1, 1]} : vector<32x96xbf16> to vector<32x8xbf16>
    %cst_50 = arith.constant dense<0.000000e+00> : vector<32x8xf32>
    %157 = tpu.matmul %155, %156, %cst_50 {dimension_numbers = #tpu.dot_dimension_numbers<[1], [0], [0], [1], [0, 0, 1, 1], [], []>} : vector<32x32xbf16>, vector<32x8xbf16>, vector<32x8xf32> -> vector<32x8xf32>
    %158 = vector.extract_strided_slice %96 {offsets = [0, 24], sizes = [32, 8], strides = [1, 1]} : vector<32x96xbf16> to vector<32x8xbf16>
    %159 = vector.extract_strided_slice %98 {offsets = [0, 24], sizes = [32, 8], strides = [1, 1]} : vector<32x96xbf16> to vector<32x8xbf16>
    %cst_51 = arith.constant dense<0.000000e+00> : vector<32x32xf32>
    %160 = tpu.matmul %158, %159, %cst_51 {dimension_numbers = #tpu.dot_dimension_numbers<[1], [1], [0], [0], [0, 0, 1, 0], [], []>} : vector<32x8xbf16>, vector<32x8xbf16>, vector<32x32xf32> -> vector<32x32xf32>
    %cst_52 = arith.constant 0.353553385 : f32
    %161 = vector.broadcast %cst_52 : f32 to vector<32x32xf32>
    %162 = arith.mulf %160, %161 : vector<32x32xf32>
    %163 = arith.addf %162, %60 : vector<32x32xf32>
    %cst_53 = arith.constant dense<0xFF800000> : vector<32xf32>
    %164 = vector.multi_reduction <maximumf>, %163, %cst_53 [1] : vector<32x32xf32> to vector<32xf32>
    %165 = vector.shape_cast %164 : vector<32xf32> to vector<32x1xf32>
    %166 = vector.broadcast %165 : vector<32x1xf32> to vector<32x32xf32>
    %167 = arith.subf %163, %166 : vector<32x32xf32>
    %168 = math.exp %167 : vector<32x32xf32>
    %cst_54 = arith.constant dense<0.000000e+00> : vector<32xf32>
    %169 = vector.multi_reduction <add>, %168, %cst_54 [1] : vector<32x32xf32> to vector<32xf32>
    %170 = vector.shape_cast %169 : vector<32xf32> to vector<32x1xf32>
    %171 = tpu.reciprocal %170 {approx = true} : vector<32x1xf32> -> vector<32x1xf32>
    %172 = vector.broadcast %171 : vector<32x1xf32> to vector<32x32xf32>
    %173 = arith.mulf %168, %172 : vector<32x32xf32>
    %174 = arith.truncf %173 : vector<32x32xf32> to vector<32x32xbf16>
    %175 = vector.extract_strided_slice %100 {offsets = [0, 24], sizes = [32, 8], strides = [1, 1]} : vector<32x96xbf16> to vector<32x8xbf16>
    %cst_55 = arith.constant dense<0.000000e+00> : vector<32x8xf32>
    %176 = tpu.matmul %174, %175, %cst_55 {dimension_numbers = #tpu.dot_dimension_numbers<[1], [0], [0], [1], [0, 0, 1, 1], [], []>} : vector<32x32xbf16>, vector<32x8xbf16>, vector<32x8xf32> -> vector<32x8xf32>
    %177 = vector.extract_strided_slice %96 {offsets = [0, 32], sizes = [32, 8], strides = [1, 1]} : vector<32x96xbf16> to vector<32x8xbf16>
    %178 = vector.extract_strided_slice %98 {offsets = [0, 32], sizes = [32, 8], strides = [1, 1]} : vector<32x96xbf16> to vector<32x8xbf16>
    %cst_56 = arith.constant dense<0.000000e+00> : vector<32x32xf32>
    %179 = tpu.matmul %177, %178, %cst_56 {dimension_numbers = #tpu.dot_dimension_numbers<[1], [1], [0], [0], [0, 0, 1, 0], [], []>} : vector<32x8xbf16>, vector<32x8xbf16>, vector<32x32xf32> -> vector<32x32xf32>
    %cst_57 = arith.constant 0.353553385 : f32
    %180 = vector.broadcast %cst_57 : f32 to vector<32x32xf32>
    %181 = arith.mulf %179, %180 : vector<32x32xf32>
    %182 = arith.addf %181, %60 : vector<32x32xf32>
    %cst_58 = arith.constant dense<0xFF800000> : vector<32xf32>
    %183 = vector.multi_reduction <maximumf>, %182, %cst_58 [1] : vector<32x32xf32> to vector<32xf32>
    %184 = vector.shape_cast %183 : vector<32xf32> to vector<32x1xf32>
    %185 = vector.broadcast %184 : vector<32x1xf32> to vector<32x32xf32>
    %186 = arith.subf %182, %185 : vector<32x32xf32>
    %187 = math.exp %186 : vector<32x32xf32>
    %cst_59 = arith.constant dense<0.000000e+00> : vector<32xf32>
    %188 = vector.multi_reduction <add>, %187, %cst_59 [1] : vector<32x32xf32> to vector<32xf32>
    %189 = vector.shape_cast %188 : vector<32xf32> to vector<32x1xf32>
    %190 = tpu.reciprocal %189 {approx = true} : vector<32x1xf32> -> vector<32x1xf32>
    %191 = vector.broadcast %190 : vector<32x1xf32> to vector<32x32xf32>
    %192 = arith.mulf %187, %191 : vector<32x32xf32>
    %193 = arith.truncf %192 : vector<32x32xf32> to vector<32x32xbf16>
    %194 = vector.extract_strided_slice %100 {offsets = [0, 32], sizes = [32, 8], strides = [1, 1]} : vector<32x96xbf16> to vector<32x8xbf16>
    %cst_60 = arith.constant dense<0.000000e+00> : vector<32x8xf32>
    %195 = tpu.matmul %193, %194, %cst_60 {dimension_numbers = #tpu.dot_dimension_numbers<[1], [0], [0], [1], [0, 0, 1, 1], [], []>} : vector<32x32xbf16>, vector<32x8xbf16>, vector<32x8xf32> -> vector<32x8xf32>
    %196 = vector.extract_strided_slice %96 {offsets = [0, 40], sizes = [32, 8], strides = [1, 1]} : vector<32x96xbf16> to vector<32x8xbf16>
    %197 = vector.extract_strided_slice %98 {offsets = [0, 40], sizes = [32, 8], strides = [1, 1]} : vector<32x96xbf16> to vector<32x8xbf16>
    %cst_61 = arith.constant dense<0.000000e+00> : vector<32x32xf32>
    %198 = tpu.matmul %196, %197, %cst_61 {dimension_numbers = #tpu.dot_dimension_numbers<[1], [1], [0], [0], [0, 0, 1, 0], [], []>} : vector<32x8xbf16>, vector<32x8xbf16>, vector<32x32xf32> -> vector<32x32xf32>
    %cst_62 = arith.constant 0.353553385 : f32
    %199 = vector.broadcast %cst_62 : f32 to vector<32x32xf32>
    %200 = arith.mulf %198, %199 : vector<32x32xf32>
    %201 = arith.addf %200, %60 : vector<32x32xf32>
    %cst_63 = arith.constant dense<0xFF800000> : vector<32xf32>
    %202 = vector.multi_reduction <maximumf>, %201, %cst_63 [1] : vector<32x32xf32> to vector<32xf32>
    %203 = vector.shape_cast %202 : vector<32xf32> to vector<32x1xf32>
    %204 = vector.broadcast %203 : vector<32x1xf32> to vector<32x32xf32>
    %205 = arith.subf %201, %204 : vector<32x32xf32>
    %206 = math.exp %205 : vector<32x32xf32>
    %cst_64 = arith.constant dense<0.000000e+00> : vector<32xf32>
    %207 = vector.multi_reduction <add>, %206, %cst_64 [1] : vector<32x32xf32> to vector<32xf32>
    %208 = vector.shape_cast %207 : vector<32xf32> to vector<32x1xf32>
    %209 = tpu.reciprocal %208 {approx = true} : vector<32x1xf32> -> vector<32x1xf32>
    %210 = vector.broadcast %209 : vector<32x1xf32> to vector<32x32xf32>
    %211 = arith.mulf %206, %210 : vector<32x32xf32>
    %212 = arith.truncf %211 : vector<32x32xf32> to vector<32x32xbf16>
    %213 = vector.extract_strided_slice %100 {offsets = [0, 40], sizes = [32, 8], strides = [1, 1]} : vector<32x96xbf16> to vector<32x8xbf16>
    %cst_65 = arith.constant dense<0.000000e+00> : vector<32x8xf32>
    %214 = tpu.matmul %212, %213, %cst_65 {dimension_numbers = #tpu.dot_dimension_numbers<[1], [0], [0], [1], [0, 0, 1, 1], [], []>} : vector<32x32xbf16>, vector<32x8xbf16>, vector<32x8xf32> -> vector<32x8xf32>
    %215 = vector.extract_strided_slice %96 {offsets = [0, 48], sizes = [32, 8], strides = [1, 1]} : vector<32x96xbf16> to vector<32x8xbf16>
    %216 = vector.extract_strided_slice %98 {offsets = [0, 48], sizes = [32, 8], strides = [1, 1]} : vector<32x96xbf16> to vector<32x8xbf16>
    %cst_66 = arith.constant dense<0.000000e+00> : vector<32x32xf32>
    %217 = tpu.matmul %215, %216, %cst_66 {dimension_numbers = #tpu.dot_dimension_numbers<[1], [1], [0], [0], [0, 0, 1, 0], [], []>} : vector<32x8xbf16>, vector<32x8xbf16>, vector<32x32xf32> -> vector<32x32xf32>
    %cst_67 = arith.constant 0.353553385 : f32
    %218 = vector.broadcast %cst_67 : f32 to vector<32x32xf32>
    %219 = arith.mulf %217, %218 : vector<32x32xf32>
    %220 = arith.addf %219, %60 : vector<32x32xf32>
    %cst_68 = arith.constant dense<0xFF800000> : vector<32xf32>
    %221 = vector.multi_reduction <maximumf>, %220, %cst_68 [1] : vector<32x32xf32> to vector<32xf32>
    %222 = vector.shape_cast %221 : vector<32xf32> to vector<32x1xf32>
    %223 = vector.broadcast %222 : vector<32x1xf32> to vector<32x32xf32>
    %224 = arith.subf %220, %223 : vector<32x32xf32>
    %225 = math.exp %224 : vector<32x32xf32>
    %cst_69 = arith.constant dense<0.000000e+00> : vector<32xf32>
    %226 = vector.multi_reduction <add>, %225, %cst_69 [1] : vector<32x32xf32> to vector<32xf32>
    %227 = vector.shape_cast %226 : vector<32xf32> to vector<32x1xf32>
    %228 = tpu.reciprocal %227 {approx = true} : vector<32x1xf32> -> vector<32x1xf32>
    %229 = vector.broadcast %228 : vector<32x1xf32> to vector<32x32xf32>
    %230 = arith.mulf %225, %229 : vector<32x32xf32>
    %231 = arith.truncf %230 : vector<32x32xf32> to vector<32x32xbf16>
    %232 = vector.extract_strided_slice %100 {offsets = [0, 48], sizes = [32, 8], strides = [1, 1]} : vector<32x96xbf16> to vector<32x8xbf16>
    %cst_70 = arith.constant dense<0.000000e+00> : vector<32x8xf32>
    %233 = tpu.matmul %231, %232, %cst_70 {dimension_numbers = #tpu.dot_dimension_numbers<[1], [0], [0], [1], [0, 0, 1, 1], [], []>} : vector<32x32xbf16>, vector<32x8xbf16>, vector<32x8xf32> -> vector<32x8xf32>
    %234 = vector.extract_strided_slice %96 {offsets = [0, 56], sizes = [32, 8], strides = [1, 1]} : vector<32x96xbf16> to vector<32x8xbf16>
    %235 = vector.extract_strided_slice %98 {offsets = [0, 56], sizes = [32, 8], strides = [1, 1]} : vector<32x96xbf16> to vector<32x8xbf16>
    %cst_71 = arith.constant dense<0.000000e+00> : vector<32x32xf32>
    %236 = tpu.matmul %234, %235, %cst_71 {dimension_numbers = #tpu.dot_dimension_numbers<[1], [1], [0], [0], [0, 0, 1, 0], [], []>} : vector<32x8xbf16>, vector<32x8xbf16>, vector<32x32xf32> -> vector<32x32xf32>
    %cst_72 = arith.constant 0.353553385 : f32
    %237 = vector.broadcast %cst_72 : f32 to vector<32x32xf32>
    %238 = arith.mulf %236, %237 : vector<32x32xf32>
    %239 = arith.addf %238, %60 : vector<32x32xf32>
    %cst_73 = arith.constant dense<0xFF800000> : vector<32xf32>
    %240 = vector.multi_reduction <maximumf>, %239, %cst_73 [1] : vector<32x32xf32> to vector<32xf32>
    %241 = vector.shape_cast %240 : vector<32xf32> to vector<32x1xf32>
    %242 = vector.broadcast %241 : vector<32x1xf32> to vector<32x32xf32>
    %243 = arith.subf %239, %242 : vector<32x32xf32>
    %244 = math.exp %243 : vector<32x32xf32>
    %cst_74 = arith.constant dense<0.000000e+00> : vector<32xf32>
    %245 = vector.multi_reduction <add>, %244, %cst_74 [1] : vector<32x32xf32> to vector<32xf32>
    %246 = vector.shape_cast %245 : vector<32xf32> to vector<32x1xf32>
    %247 = tpu.reciprocal %246 {approx = true} : vector<32x1xf32> -> vector<32x1xf32>
    %248 = vector.broadcast %247 : vector<32x1xf32> to vector<32x32xf32>
    %249 = arith.mulf %244, %248 : vector<32x32xf32>
    %250 = arith.truncf %249 : vector<32x32xf32> to vector<32x32xbf16>
    %251 = vector.extract_strided_slice %100 {offsets = [0, 56], sizes = [32, 8], strides = [1, 1]} : vector<32x96xbf16> to vector<32x8xbf16>
    %cst_75 = arith.constant dense<0.000000e+00> : vector<32x8xf32>
    %252 = tpu.matmul %250, %251, %cst_75 {dimension_numbers = #tpu.dot_dimension_numbers<[1], [0], [0], [1], [0, 0, 1, 1], [], []>} : vector<32x32xbf16>, vector<32x8xbf16>, vector<32x8xf32> -> vector<32x8xf32>
    %253 = vector.extract_strided_slice %96 {offsets = [0, 64], sizes = [32, 8], strides = [1, 1]} : vector<32x96xbf16> to vector<32x8xbf16>
    %254 = vector.extract_strided_slice %98 {offsets = [0, 64], sizes = [32, 8], strides = [1, 1]} : vector<32x96xbf16> to vector<32x8xbf16>
    %cst_76 = arith.constant dense<0.000000e+00> : vector<32x32xf32>
    %255 = tpu.matmul %253, %254, %cst_76 {dimension_numbers = #tpu.dot_dimension_numbers<[1], [1], [0], [0], [0, 0, 1, 0], [], []>} : vector<32x8xbf16>, vector<32x8xbf16>, vector<32x32xf32> -> vector<32x32xf32>
    %cst_77 = arith.constant 0.353553385 : f32
    %256 = vector.broadcast %cst_77 : f32 to vector<32x32xf32>
    %257 = arith.mulf %255, %256 : vector<32x32xf32>
    %258 = arith.addf %257, %60 : vector<32x32xf32>
    %cst_78 = arith.constant dense<0xFF800000> : vector<32xf32>
    %259 = vector.multi_reduction <maximumf>, %258, %cst_78 [1] : vector<32x32xf32> to vector<32xf32>
    %260 = vector.shape_cast %259 : vector<32xf32> to vector<32x1xf32>
    %261 = vector.broadcast %260 : vector<32x1xf32> to vector<32x32xf32>
    %262 = arith.subf %258, %261 : vector<32x32xf32>
    %263 = math.exp %262 : vector<32x32xf32>
    %cst_79 = arith.constant dense<0.000000e+00> : vector<32xf32>
    %264 = vector.multi_reduction <add>, %263, %cst_79 [1] : vector<32x32xf32> to vector<32xf32>
    %265 = vector.shape_cast %264 : vector<32xf32> to vector<32x1xf32>
    %266 = tpu.reciprocal %265 {approx = true} : vector<32x1xf32> -> vector<32x1xf32>
    %267 = vector.broadcast %266 : vector<32x1xf32> to vector<32x32xf32>
    %268 = arith.mulf %263, %267 : vector<32x32xf32>
    %269 = arith.truncf %268 : vector<32x32xf32> to vector<32x32xbf16>
    %270 = vector.extract_strided_slice %100 {offsets = [0, 64], sizes = [32, 8], strides = [1, 1]} : vector<32x96xbf16> to vector<32x8xbf16>
    %cst_80 = arith.constant dense<0.000000e+00> : vector<32x8xf32>
    %271 = tpu.matmul %269, %270, %cst_80 {dimension_numbers = #tpu.dot_dimension_numbers<[1], [0], [0], [1], [0, 0, 1, 1], [], []>} : vector<32x32xbf16>, vector<32x8xbf16>, vector<32x8xf32> -> vector<32x8xf32>
    %272 = vector.extract_strided_slice %96 {offsets = [0, 72], sizes = [32, 8], strides = [1, 1]} : vector<32x96xbf16> to vector<32x8xbf16>
    %273 = vector.extract_strided_slice %98 {offsets = [0, 72], sizes = [32, 8], strides = [1, 1]} : vector<32x96xbf16> to vector<32x8xbf16>
    %cst_81 = arith.constant dense<0.000000e+00> : vector<32x32xf32>
    %274 = tpu.matmul %272, %273, %cst_81 {dimension_numbers = #tpu.dot_dimension_numbers<[1], [1], [0], [0], [0, 0, 1, 0], [], []>} : vector<32x8xbf16>, vector<32x8xbf16>, vector<32x32xf32> -> vector<32x32xf32>
    %cst_82 = arith.constant 0.353553385 : f32
    %275 = vector.broadcast %cst_82 : f32 to vector<32x32xf32>
    %276 = arith.mulf %274, %275 : vector<32x32xf32>
    %277 = arith.addf %276, %60 : vector<32x32xf32>
    %cst_83 = arith.constant dense<0xFF800000> : vector<32xf32>
    %278 = vector.multi_reduction <maximumf>, %277, %cst_83 [1] : vector<32x32xf32> to vector<32xf32>
    %279 = vector.shape_cast %278 : vector<32xf32> to vector<32x1xf32>
    %280 = vector.broadcast %279 : vector<32x1xf32> to vector<32x32xf32>
    %281 = arith.subf %277, %280 : vector<32x32xf32>
    %282 = math.exp %281 : vector<32x32xf32>
    %cst_84 = arith.constant dense<0.000000e+00> : vector<32xf32>
    %283 = vector.multi_reduction <add>, %282, %cst_84 [1] : vector<32x32xf32> to vector<32xf32>
    %284 = vector.shape_cast %283 : vector<32xf32> to vector<32x1xf32>
    %285 = tpu.reciprocal %284 {approx = true} : vector<32x1xf32> -> vector<32x1xf32>
    %286 = vector.broadcast %285 : vector<32x1xf32> to vector<32x32xf32>
    %287 = arith.mulf %282, %286 : vector<32x32xf32>
    %288 = arith.truncf %287 : vector<32x32xf32> to vector<32x32xbf16>
    %289 = vector.extract_strided_slice %100 {offsets = [0, 72], sizes = [32, 8], strides = [1, 1]} : vector<32x96xbf16> to vector<32x8xbf16>
    %cst_85 = arith.constant dense<0.000000e+00> : vector<32x8xf32>
    %290 = tpu.matmul %288, %289, %cst_85 {dimension_numbers = #tpu.dot_dimension_numbers<[1], [0], [0], [1], [0, 0, 1, 1], [], []>} : vector<32x32xbf16>, vector<32x8xbf16>, vector<32x8xf32> -> vector<32x8xf32>
    %291 = vector.extract_strided_slice %96 {offsets = [0, 80], sizes = [32, 8], strides = [1, 1]} : vector<32x96xbf16> to vector<32x8xbf16>
    %292 = vector.extract_strided_slice %98 {offsets = [0, 80], sizes = [32, 8], strides = [1, 1]} : vector<32x96xbf16> to vector<32x8xbf16>
    %cst_86 = arith.constant dense<0.000000e+00> : vector<32x32xf32>
    %293 = tpu.matmul %291, %292, %cst_86 {dimension_numbers = #tpu.dot_dimension_numbers<[1], [1], [0], [0], [0, 0, 1, 0], [], []>} : vector<32x8xbf16>, vector<32x8xbf16>, vector<32x32xf32> -> vector<32x32xf32>
    %cst_87 = arith.constant 0.353553385 : f32
    %294 = vector.broadcast %cst_87 : f32 to vector<32x32xf32>
    %295 = arith.mulf %293, %294 : vector<32x32xf32>
    %296 = arith.addf %295, %60 : vector<32x32xf32>
    %cst_88 = arith.constant dense<0xFF800000> : vector<32xf32>
    %297 = vector.multi_reduction <maximumf>, %296, %cst_88 [1] : vector<32x32xf32> to vector<32xf32>
    %298 = vector.shape_cast %297 : vector<32xf32> to vector<32x1xf32>
    %299 = vector.broadcast %298 : vector<32x1xf32> to vector<32x32xf32>
    %300 = arith.subf %296, %299 : vector<32x32xf32>
    %301 = math.exp %300 : vector<32x32xf32>
    %cst_89 = arith.constant dense<0.000000e+00> : vector<32xf32>
    %302 = vector.multi_reduction <add>, %301, %cst_89 [1] : vector<32x32xf32> to vector<32xf32>
    %303 = vector.shape_cast %302 : vector<32xf32> to vector<32x1xf32>
    %304 = tpu.reciprocal %303 {approx = true} : vector<32x1xf32> -> vector<32x1xf32>
    %305 = vector.broadcast %304 : vector<32x1xf32> to vector<32x32xf32>
    %306 = arith.mulf %301, %305 : vector<32x32xf32>
    %307 = arith.truncf %306 : vector<32x32xf32> to vector<32x32xbf16>
    %308 = vector.extract_strided_slice %100 {offsets = [0, 80], sizes = [32, 8], strides = [1, 1]} : vector<32x96xbf16> to vector<32x8xbf16>
    %cst_90 = arith.constant dense<0.000000e+00> : vector<32x8xf32>
    %309 = tpu.matmul %307, %308, %cst_90 {dimension_numbers = #tpu.dot_dimension_numbers<[1], [0], [0], [1], [0, 0, 1, 1], [], []>} : vector<32x32xbf16>, vector<32x8xbf16>, vector<32x8xf32> -> vector<32x8xf32>
    %310 = vector.extract_strided_slice %96 {offsets = [0, 88], sizes = [32, 8], strides = [1, 1]} : vector<32x96xbf16> to vector<32x8xbf16>
    %311 = vector.extract_strided_slice %98 {offsets = [0, 88], sizes = [32, 8], strides = [1, 1]} : vector<32x96xbf16> to vector<32x8xbf16>
    %cst_91 = arith.constant dense<0.000000e+00> : vector<32x32xf32>
    %312 = tpu.matmul %310, %311, %cst_91 {dimension_numbers = #tpu.dot_dimension_numbers<[1], [1], [0], [0], [0, 0, 1, 0], [], []>} : vector<32x8xbf16>, vector<32x8xbf16>, vector<32x32xf32> -> vector<32x32xf32>
    %cst_92 = arith.constant 0.353553385 : f32
    %313 = vector.broadcast %cst_92 : f32 to vector<32x32xf32>
    %314 = arith.mulf %312, %313 : vector<32x32xf32>
    %315 = arith.addf %314, %60 : vector<32x32xf32>
    %cst_93 = arith.constant dense<0xFF800000> : vector<32xf32>
    %316 = vector.multi_reduction <maximumf>, %315, %cst_93 [1] : vector<32x32xf32> to vector<32xf32>
    %317 = vector.shape_cast %316 : vector<32xf32> to vector<32x1xf32>
    %318 = vector.broadcast %317 : vector<32x1xf32> to vector<32x32xf32>
    %319 = arith.subf %315, %318 : vector<32x32xf32>
    %320 = math.exp %319 : vector<32x32xf32>
    %cst_94 = arith.constant dense<0.000000e+00> : vector<32xf32>
    %321 = vector.multi_reduction <add>, %320, %cst_94 [1] : vector<32x32xf32> to vector<32xf32>
    %322 = vector.shape_cast %321 : vector<32xf32> to vector<32x1xf32>
    %323 = tpu.reciprocal %322 {approx = true} : vector<32x1xf32> -> vector<32x1xf32>
    %324 = vector.broadcast %323 : vector<32x1xf32> to vector<32x32xf32>
    %325 = arith.mulf %320, %324 : vector<32x32xf32>
    %326 = arith.truncf %325 : vector<32x32xf32> to vector<32x32xbf16>
    %327 = vector.extract_strided_slice %100 {offsets = [0, 88], sizes = [32, 8], strides = [1, 1]} : vector<32x96xbf16> to vector<32x8xbf16>
    %cst_95 = arith.constant dense<0.000000e+00> : vector<32x8xf32>
    %328 = tpu.matmul %326, %327, %cst_95 {dimension_numbers = #tpu.dot_dimension_numbers<[1], [0], [0], [1], [0, 0, 1, 1], [], []>} : vector<32x32xbf16>, vector<32x8xbf16>, vector<32x8xf32> -> vector<32x8xf32>
    %329 = tpu.concatenate %119, %138, %157, %176, %195, %214, %233, %252, %271, %290, %309, %328 in 1 : vector<32x8xf32>, vector<32x8xf32>, vector<32x8xf32>, vector<32x8xf32>, vector<32x8xf32>, vector<32x8xf32>, vector<32x8xf32>, vector<32x8xf32>, vector<32x8xf32>, vector<32x8xf32>, vector<32x8xf32>, vector<32x8xf32> -> vector<32x96xf32>
    %330 = arith.truncf %329 : vector<32x96xf32> to vector<32x96xbf16>
    %c0_96 = arith.constant 0 : index
    %c0_97 = arith.constant 0 : index
    %c0_98 = arith.constant 0 : index
    %331 = vector.load %arg9[%c0_96, %c0_97, %c0_98] : memref<1x96x96xbf16, #tpu.memory_space<vmem>>, vector<1x96x96xbf16>
    %332 = vector.shape_cast %331 : vector<1x96x96xbf16> to vector<96x96xbf16>
    %cst_99 = arith.constant dense<0.000000e+00> : vector<32x96xf32>
    %333 = tpu.matmul %330, %332, %cst_99 {dimension_numbers = #tpu.dot_dimension_numbers<[1], [0], [0], [1], [0, 0, 1, 1], [], []>} : vector<32x96xbf16>, vector<96x96xbf16>, vector<32x96xf32> -> vector<32x96xf32>
    %c0_100 = arith.constant 0 : index
    %c0_101 = arith.constant 0 : index
    %c0_102 = arith.constant 0 : index
    %334 = vector.load %arg10[%c0_100, %c0_101, %c0_102] : memref<1x1x96xf32, #tpu.memory_space<vmem>>, vector<1x1x96xf32>
    %335 = vector.shape_cast %334 : vector<1x1x96xf32> to vector<1x96xf32>
    %336 = vector.broadcast %335 : vector<1x96xf32> to vector<32x96xf32>
    %337 = arith.addf %333, %336 : vector<32x96xf32>
    %338 = arith.addf %3, %337 : vector<32x96xf32>
    %c0_103 = arith.constant 0 : index
    %c0_104 = arith.constant 0 : index
    %c0_105 = arith.constant 0 : index
    %339 = vector.load %arg11[%c0_103, %c0_104, %c0_105] : memref<1x1x96xf32, #tpu.memory_space<vmem>>, vector<1x1x96xf32>
    %340 = vector.shape_cast %339 : vector<1x1x96xf32> to vector<1x96xf32>
    %c0_106 = arith.constant 0 : index
    %c0_107 = arith.constant 0 : index
    %c0_108 = arith.constant 0 : index
    %341 = vector.load %arg12[%c0_106, %c0_107, %c0_108] : memref<1x1x96xf32, #tpu.memory_space<vmem>>, vector<1x1x96xf32>
    %342 = vector.shape_cast %341 : vector<1x1x96xf32> to vector<1x96xf32>
    %cst_109 = arith.constant dense<0.000000e+00> : vector<32xf32>
    %343 = vector.multi_reduction <add>, %338, %cst_109 [1] : vector<32x96xf32> to vector<32xf32>
    %344 = vector.shape_cast %343 : vector<32xf32> to vector<32x1xf32>
    %cst_110 = arith.constant 9.600000e+01 : f32
    %345 = vector.broadcast %cst_110 : f32 to vector<32x1xf32>
    %346 = arith.divf %344, %345 : vector<32x1xf32>
    %347 = vector.broadcast %346 : vector<32x1xf32> to vector<32x96xf32>
    %348 = arith.subf %338, %347 : vector<32x96xf32>
    %349 = arith.mulf %348, %348 : vector<32x96xf32>
    %cst_111 = arith.constant dense<0.000000e+00> : vector<32xf32>
    %350 = vector.multi_reduction <add>, %349, %cst_111 [1] : vector<32x96xf32> to vector<32xf32>
    %351 = vector.shape_cast %350 : vector<32xf32> to vector<32x1xf32>
    %cst_112 = arith.constant 9.600000e+01 : f32
    %352 = vector.broadcast %cst_112 : f32 to vector<32x1xf32>
    %353 = arith.divf %351, %352 : vector<32x1xf32>
    %354 = vector.broadcast %346 : vector<32x1xf32> to vector<32x96xf32>
    %355 = arith.subf %338, %354 : vector<32x96xf32>
    %cst_113 = arith.constant 9.99999974E-6 : f32
    %356 = vector.broadcast %cst_113 : f32 to vector<32x1xf32>
    %357 = arith.addf %353, %356 : vector<32x1xf32>
    %358 = math.rsqrt %357 : vector<32x1xf32>
    %359 = vector.broadcast %358 : vector<32x1xf32> to vector<32x96xf32>
    %360 = arith.mulf %355, %359 : vector<32x96xf32>
    %361 = vector.broadcast %340 : vector<1x96xf32> to vector<32x96xf32>
    %362 = arith.mulf %360, %361 : vector<32x96xf32>
    %363 = vector.broadcast %342 : vector<1x96xf32> to vector<32x96xf32>
    %364 = arith.addf %362, %363 : vector<32x96xf32>
    %365 = arith.truncf %364 : vector<32x96xf32> to vector<32x96xbf16>
    %c0_114 = arith.constant 0 : index
    %c0_115 = arith.constant 0 : index
    %c0_116 = arith.constant 0 : index
    %366 = vector.load %arg13[%c0_114, %c0_115, %c0_116] : memref<1x96x2048xbf16, #tpu.memory_space<vmem>>, vector<1x96x2048xbf16>
    %367 = vector.shape_cast %366 : vector<1x96x2048xbf16> to vector<96x2048xbf16>
    %cst_117 = arith.constant dense<0.000000e+00> : vector<32x2048xf32>
    %368 = tpu.matmul %365, %367, %cst_117 {dimension_numbers = #tpu.dot_dimension_numbers<[1], [0], [0], [1], [0, 0, 1, 1], [], []>} : vector<32x96xbf16>, vector<96x2048xbf16>, vector<32x2048xf32> -> vector<32x2048xf32>
    %c0_118 = arith.constant 0 : index
    %c0_119 = arith.constant 0 : index
    %c0_120 = arith.constant 0 : index
    %369 = vector.load %arg14[%c0_118, %c0_119, %c0_120] : memref<1x1x2048xf32, #tpu.memory_space<vmem>>, vector<1x1x2048xf32>
    %370 = vector.shape_cast %369 : vector<1x1x2048xf32> to vector<1x2048xf32>
    %371 = vector.broadcast %370 : vector<1x2048xf32> to vector<32x2048xf32>
    %372 = arith.addf %368, %371 : vector<32x2048xf32>
    %cst_121 = arith.constant 5.000000e-01 : f32
    %373 = vector.broadcast %cst_121 : f32 to vector<32x2048xf32>
    %374 = arith.mulf %373, %372 : vector<32x2048xf32>
    %cst_122 = arith.constant 4.471500e-02 : f32
    %375 = vector.broadcast %cst_122 : f32 to vector<32x2048xf32>
    %376 = arith.mulf %375, %372 : vector<32x2048xf32>
    %377 = arith.mulf %376, %372 : vector<32x2048xf32>
    %378 = arith.mulf %377, %372 : vector<32x2048xf32>
    %379 = arith.addf %372, %378 : vector<32x2048xf32>
    %cst_123 = arith.constant 0.797884583 : f32
    %380 = vector.broadcast %cst_123 : f32 to vector<32x2048xf32>
    %381 = arith.mulf %380, %379 : vector<32x2048xf32>
    %382 = math.tanh %381 : vector<32x2048xf32>
    %cst_124 = arith.constant 1.000000e+00 : f32
    %383 = vector.broadcast %cst_124 : f32 to vector<32x2048xf32>
    %384 = arith.addf %383, %382 : vector<32x2048xf32>
    %385 = arith.mulf %374, %384 : vector<32x2048xf32>
    %386 = arith.truncf %385 : vector<32x2048xf32> to vector<32x2048xbf16>
    %c0_125 = arith.constant 0 : index
    %c0_126 = arith.constant 0 : index
    %c0_127 = arith.constant 0 : index
    %387 = vector.load %arg15[%c0_125, %c0_126, %c0_127] : memref<1x2048x96xbf16, #tpu.memory_space<vmem>>, vector<1x2048x96xbf16>
    %388 = vector.shape_cast %387 : vector<1x2048x96xbf16> to vector<2048x96xbf16>
    %cst_128 = arith.constant dense<0.000000e+00> : vector<32x96xf32>
    %389 = tpu.matmul %386, %388, %cst_128 {dimension_numbers = #tpu.dot_dimension_numbers<[1], [0], [0], [1], [0, 0, 1, 1], [], []>} : vector<32x2048xbf16>, vector<2048x96xbf16>, vector<32x96xf32> -> vector<32x96xf32>
    %c0_129 = arith.constant 0 : index
    %c0_130 = arith.constant 0 : index
    %c0_131 = arith.constant 0 : index
    %390 = vector.load %arg16[%c0_129, %c0_130, %c0_131] : memref<1x1x96xf32, #tpu.memory_space<vmem>>, vector<1x1x96xf32>
    %391 = vector.shape_cast %390 : vector<1x1x96xf32> to vector<1x96xf32>
    %392 = vector.broadcast %391 : vector<1x96xf32> to vector<32x96xf32>
    %393 = arith.addf %389, %392 : vector<32x96xf32>
    %394 = arith.addf %338, %393 : vector<32x96xf32>
    %c0_132 = arith.constant 0 : index
    %c0_133 = arith.constant 0 : index
    %395 = vector.load %arg18[%c0_132, %c0_133] : memref<32x96xf32, #tpu.memory_space<vmem>>, vector<32x96xf32>
    tpu.vector_store %arg18[%c0_132, %c0_133], %394 {strides = array<i32>} : memref<32x96xf32, #tpu.memory_space<vmem>>, vector<32x96xf32>,
    %c11_i32 = arith.constant 11 : i32
    %396 = arith.cmpi eq, %arg0, %c11_i32 : i32
    %397 = arith.extui %396 : i1 to i32
    %c0_i32_134 = arith.constant 0 : i32
    %398 = arith.cmpi ne, %397, %c0_i32_134 : i32
    scf.if %398 {
      %c0_135 = arith.constant 0 : index
      %c0_136 = arith.constant 0 : index
      %399 = vector.load %arg3[%c0_135, %c0_136] : memref<1x96xf32, #tpu.memory_space<vmem>>, vector<1x96xf32>
      %c0_137 = arith.constant 0 : index
      %c0_138 = arith.constant 0 : index
      %400 = vector.load %arg4[%c0_137, %c0_138] : memref<1x96xf32, #tpu.memory_space<vmem>>, vector<1x96xf32>
      %cst_139 = arith.constant dense<0.000000e+00> : vector<32xf32>
      %401 = vector.multi_reduction <add>, %394, %cst_139 [1] : vector<32x96xf32> to vector<32xf32>
      %402 = vector.shape_cast %401 : vector<32xf32> to vector<32x1xf32>
      %cst_140 = arith.constant 9.600000e+01 : f32
      %403 = vector.broadcast %cst_140 : f32 to vector<32x1xf32>
      %404 = arith.divf %402, %403 : vector<32x1xf32>
      %405 = vector.broadcast %404 : vector<32x1xf32> to vector<32x96xf32>
      %406 = arith.subf %394, %405 : vector<32x96xf32>
      %407 = arith.mulf %406, %406 : vector<32x96xf32>
      %cst_141 = arith.constant dense<0.000000e+00> : vector<32xf32>
      %408 = vector.multi_reduction <add>, %407, %cst_141 [1] : vector<32x96xf32> to vector<32xf32>
      %409 = vector.shape_cast %408 : vector<32xf32> to vector<32x1xf32>
      %cst_142 = arith.constant 9.600000e+01 : f32
      %410 = vector.broadcast %cst_142 : f32 to vector<32x1xf32>
      %411 = arith.divf %409, %410 : vector<32x1xf32>
      %412 = vector.broadcast %404 : vector<32x1xf32> to vector<32x96xf32>
      %413 = arith.subf %394, %412 : vector<32x96xf32>
      %cst_143 = arith.constant 9.99999974E-6 : f32
      %414 = vector.broadcast %cst_143 : f32 to vector<32x1xf32>
      %415 = arith.addf %411, %414 : vector<32x1xf32>
      %416 = math.rsqrt %415 : vector<32x1xf32>
      %417 = vector.broadcast %416 : vector<32x1xf32> to vector<32x96xf32>
      %418 = arith.mulf %413, %417 : vector<32x96xf32>
      %419 = vector.broadcast %399 : vector<1x96xf32> to vector<32x96xf32>
      %420 = arith.mulf %418, %419 : vector<32x96xf32>
      %421 = vector.broadcast %400 : vector<1x96xf32> to vector<32x96xf32>
      %422 = arith.addf %420, %421 : vector<32x96xf32>
      %c0_144 = arith.constant 0 : index
      %c0_145 = arith.constant 0 : index
      %423 = vector.load %arg17[%c0_144, %c0_145] : memref<32x96xf32, #tpu.memory_space<vmem>>, vector<32x96xf32>
      tpu.vector_store %arg17[%c0_144, %c0_145], %422 {strides = array<i32>} : memref<32x96xf32, #tpu.memory_space<vmem>>, vector<32x96xf32>,
    } else {
    }
    return
  }
  func.func @transform_0(%arg0: i32, %arg1: memref<2xi32, #tpu.memory_space<smem>>) -> (i32, i32) {
    %c0_i32 = arith.constant 0 : i32
    %c0_i32_0 = arith.constant 0 : i32
    %c0_i32_1 = arith.constant 0 : i32
    return %c0_i32, %c0_i32_0 : i32, i32
  }
  func.func @transform_1(%arg0: i32, %arg1: memref<2xi32, #tpu.memory_space<smem>>) -> (i32, i32) {
    %c0_i32 = arith.constant 0 : i32
    %c0_i32_0 = arith.constant 0 : i32
    %c0_i32_1 = arith.constant 0 : i32
    return %c0_i32, %c0_i32_0 : i32, i32
  }
  func.func @transform_2(%arg0: i32, %arg1: memref<2xi32, #tpu.memory_space<smem>>) -> (i32, i32) {
    %c0_i32 = arith.constant 0 : i32
    %c0_i32_0 = arith.constant 0 : i32
    %c0_i32_1 = arith.constant 0 : i32
    return %c0_i32, %c0_i32_0 : i32, i32
  }
  func.func @transform_3(%arg0: i32, %arg1: memref<2xi32, #tpu.memory_space<smem>>) -> (i32, i32, i32) {
    %c0_i32 = arith.constant 0 : i32
    %c0_i32_0 = arith.constant 0 : i32
    %c0_i32_1 = arith.constant 0 : i32
    return %arg0, %c0_i32, %c0_i32_0 : i32, i32, i32
  }
  func.func @transform_4(%arg0: i32, %arg1: memref<2xi32, #tpu.memory_space<smem>>) -> (i32, i32, i32) {
    %c0_i32 = arith.constant 0 : i32
    %c0_i32_0 = arith.constant 0 : i32
    %c0_i32_1 = arith.constant 0 : i32
    return %arg0, %c0_i32, %c0_i32_0 : i32, i32, i32
  }
  func.func @transform_5(%arg0: i32, %arg1: memref<2xi32, #tpu.memory_space<smem>>) -> (i32, i32, i32) {
    %c0_i32 = arith.constant 0 : i32
    %c0_i32_0 = arith.constant 0 : i32
    %c0_i32_1 = arith.constant 0 : i32
    return %arg0, %c0_i32, %c0_i32_0 : i32, i32, i32
  }
  func.func @transform_6(%arg0: i32, %arg1: memref<2xi32, #tpu.memory_space<smem>>) -> (i32, i32, i32) {
    %c0_i32 = arith.constant 0 : i32
    %c0_i32_0 = arith.constant 0 : i32
    %c0_i32_1 = arith.constant 0 : i32
    return %arg0, %c0_i32, %c0_i32_0 : i32, i32, i32
  }
  func.func @transform_7(%arg0: i32, %arg1: memref<2xi32, #tpu.memory_space<smem>>) -> (i32, i32, i32) {
    %c0_i32 = arith.constant 0 : i32
    %c0_i32_0 = arith.constant 0 : i32
    %c0_i32_1 = arith.constant 0 : i32
    return %arg0, %c0_i32, %c0_i32_0 : i32, i32, i32
  }
  func.func @transform_8(%arg0: i32, %arg1: memref<2xi32, #tpu.memory_space<smem>>) -> (i32, i32, i32) {
    %c0_i32 = arith.constant 0 : i32
    %c0_i32_0 = arith.constant 0 : i32
    %c0_i32_1 = arith.constant 0 : i32
    return %arg0, %c0_i32, %c0_i32_0 : i32, i32, i32
  }
  func.func @transform_9(%arg0: i32, %arg1: memref<2xi32, #tpu.memory_space<smem>>) -> (i32, i32, i32) {
    %c0_i32 = arith.constant 0 : i32
    %c0_i32_0 = arith.constant 0 : i32
    %c0_i32_1 = arith.constant 0 : i32
    return %arg0, %c0_i32, %c0_i32_0 : i32, i32, i32
  }
  func.func @transform_10(%arg0: i32, %arg1: memref<2xi32, #tpu.memory_space<smem>>) -> (i32, i32, i32) {
    %c0_i32 = arith.constant 0 : i32
    %c0_i32_0 = arith.constant 0 : i32
    %c0_i32_1 = arith.constant 0 : i32
    return %arg0, %c0_i32, %c0_i32_0 : i32, i32, i32
  }
  func.func @transform_11(%arg0: i32, %arg1: memref<2xi32, #tpu.memory_space<smem>>) -> (i32, i32, i32) {
    %c0_i32 = arith.constant 0 : i32
    %c0_i32_0 = arith.constant 0 : i32
    %c0_i32_1 = arith.constant 0 : i32
    return %arg0, %c0_i32, %c0_i32_0 : i32, i32, i32
  }
  func.func @transform_12(%arg0: i32, %arg1: memref<2xi32, #tpu.memory_space<smem>>) -> (i32, i32, i32) {
    %c0_i32 = arith.constant 0 : i32
    %c0_i32_0 = arith.constant 0 : i32
    %c0_i32_1 = arith.constant 0 : i32
    return %arg0, %c0_i32, %c0_i32_0 : i32, i32, i32
  }
  func.func @transform_13(%arg0: i32, %arg1: memref<2xi32, #tpu.memory_space<smem>>) -> (i32, i32, i32) {
    %c0_i32 = arith.constant 0 : i32
    %c0_i32_0 = arith.constant 0 : i32
    %c0_i32_1 = arith.constant 0 : i32
    return %arg0, %c0_i32, %c0_i32_0 : i32, i32, i32
  }
  func.func @transform_14(%arg0: i32, %arg1: memref<2xi32, #tpu.memory_space<smem>>) -> (i32, i32, i32) {
    %c0_i32 = arith.constant 0 : i32
    %c0_i32_0 = arith.constant 0 : i32
    %c0_i32_1 = arith.constant 0 : i32
    return %arg0, %c0_i32, %c0_i32_0 : i32, i32, i32
  }
  func.func @transform_15(%arg0: i32, %arg1: memref<2xi32, #tpu.memory_space<smem>>) -> (i32, i32) {
    %c0_i32 = arith.constant 0 : i32
    %c0_i32_0 = arith.constant 0 : i32
    %c0_i32_1 = arith.constant 0 : i32
    return %c0_i32, %c0_i32_0 : i32, i32
  }
}

</mosaic_0001>

<llo_original>
// kernel: gpt_large_forward.1
$region0: #{gpt_large_forward.1}
  #allocation0 [shape = 'u32[]', space=smem, size = 0x4, offset = 0x4, fixed_abs, tag = 'smem constant byte address 0x4 - core index']
  #allocation1 [shape = 'u32[144,128]{1,0:T(1,128)}', space=vmem, size = 0x12000, scoped, tag = 'internal scratch']
  #allocation2 [shape = 'f32[32,96]{1,0:T(8,128)}', space=vmem, size = 0x4000, scoped, tag = 'scratch operand']
  #allocation3 [shape = 's32[1]{0}', space=sflag, size = 0x4, scoped, tag = 'scoped memory for gpt_large_forward.1']
  #allocation4 [shape = 'u8[512]{0}', space=smem, size = 0x200, scoped, tag = 'prefetched SMEM operand 0']
  %s0 = inlined_call_operand.vmem [shape: s32[2], index: 0, kind: input, shape index: {}]
  %s1 = inlined_call_operand.vmem [shape: f32[32,96], index: 1, kind: input, shape index: {}]
  %s2 = inlined_call_operand.vmem [shape: f32[1,96], index: 2, kind: input, shape index: {}]
  %s3 = inlined_call_operand.vmem [shape: f32[1,96], index: 3, kind: input, shape index: {}]
  %s4 = inlined_call_operand.vmem [shape: f32[12,1,96], index: 4, kind: input, shape index: {}]
  %s5 = inlined_call_operand.vmem [shape: f32[12,1,96], index: 5, kind: input, shape index: {}]
  %s6 = inlined_call_operand.vmem [shape: bf16[12,96,288], index: 6, kind: input, shape index: {}]
  %s7 = inlined_call_operand.vmem [shape: f32[12,1,288], index: 7, kind: input, shape index: {}]
  %s8 = inlined_call_operand.vmem [shape: bf16[12,96,96], index: 8, kind: input, shape index: {}]
  %s9 = inlined_call_operand.vmem [shape: f32[12,1,96], index: 9, kind: input, shape index: {}]
  %s10 = inlined_call_operand.vmem [shape: f32[12,1,96], index: 10, kind: input, shape index: {}]
  %s11 = inlined_call_operand.vmem [shape: f32[12,1,96], index: 11, kind: input, shape index: {}]
  %s12 = inlined_call_operand.vmem [shape: bf16[12,96,2048], index: 12, kind: input, shape index: {}]
  %s13 = inlined_call_operand.vmem [shape: f32[12,1,2048], index: 13, kind: input, shape index: {}]
  %s14 = inlined_call_operand.vmem [shape: bf16[12,2048,96], index: 14, kind: input, shape index: {}]
  %s15 = inlined_call_operand.vmem [shape: f32[12,1,96], index: 15, kind: input, shape index: {}]
  %s16 = inlined_call_operand.vmem [shape: f32[32,96], index: 16, kind: output, shape index: {}]
  %s17 = sld [smem:[#allocation0]]
  $region101: #{gpt_large_forward.1} parent=0
    _
  %s19 = ssub.s32 1, %s17
  %s20 = scalar_select 0, %s19, %s17
  %s21 = sshll.u32 %s0, 4
  %s22 = int_to_ptr.vmem [resolvable:$true] %s21
  %24 = dma.vmem_to_smem %s22, 16, [#allocation4], [#allocation3]
  %25 = dma.done [#allocation3], 16
  %26 = sfence
  loop: start=0, step=1, limit=14
  $region2: #{gpt_large_forward.1} parent=0 // loop_pre_header
    _
  $region3: #{gpt_large_forward.1} parent=0 // loop_header
    %s28 = sphi 0, %s32
    %p29 = scmp.ge.s32.totalorder %s28, 14
    %s36 = sphi 0, %s36
    %s38 = sphi 0, %s36
    %s39 = sphi 0, %s38
    %s53 = sphi 0, %s39
    %s57 = sphi 0, %s57
    %s59 = sphi 0, %s57
    %s60 = sphi 0, %s59
    %s74 = sphi 0, %s60
    %s78 = sphi 0, %s78
    %s80 = sphi 0, %s78
    %s81 = sphi 0, %s80
    %s95 = sphi 0, %s81
    %s101 = sphi 0, %s103
    %s104 = sphi 0, %s101
    %s105 = sphi 0, %s104
    %s121 = sphi 0, %s105
    %s127 = sphi 0, %s129
    %s130 = sphi 0, %s127
    %s131 = sphi 0, %s130
    %s147 = sphi 0, %s131
    %s153 = sphi 0, %s155
    %s156 = sphi 0, %s153
    %s157 = sphi 0, %s156
    %s173 = sphi 0, %s157
    %s179 = sphi 0, %s181
    %s182 = sphi 0, %s179
    %s183 = sphi 0, %s182
    %s199 = sphi 0, %s183
    %s205 = sphi 0, %s207
    %s208 = sphi 0, %s205
    %s209 = sphi 0, %s208
    %s225 = sphi 0, %s209
    %s231 = sphi 0, %s233
    %s234 = sphi 0, %s231
    %s235 = sphi 0, %s234
    %s251 = sphi 0, %s235
    %s257 = sphi 0, %s259
    %s260 = sphi 0, %s257
    %s261 = sphi 0, %s260
    %s277 = sphi 0, %s261
    %s283 = sphi 0, %s285
    %s286 = sphi 0, %s283
    %s287 = sphi 0, %s286
    %s303 = sphi 0, %s287
    %s309 = sphi 0, %s311
    %s312 = sphi 0, %s309
    %s313 = sphi 0, %s312
    %s329 = sphi 0, %s313
    %s335 = sphi 0, %s337
    %s338 = sphi 0, %s335
    %s339 = sphi 0, %s338
    %s355 = sphi 0, %s339
    %s361 = sphi 0, %s363
    %s364 = sphi 0, %s361
    %s365 = sphi 0, %s364
    %s381 = sphi 0, %s365
    %s387 = sphi 0, %s389
    %s390 = sphi 0, %s387
    %s391 = sphi 0, %s390
    %s407 = sphi 0, %s391
    %s411 = sphi 0, %s411
    %s413 = sphi 0, %s411
    %s414 = sphi 0, %s413
    %s428 = sphi 0, %s414
  $region4: #{gpt_large_forward.1} parent=0 // loop_header_branch
    %31 = sbr.rel (%p29) target = $region8
  $region5: #{gpt_large_forward.1} parent=0 // loop_body
    %s33 = ssub.s32 %s28, 1
    %s34 = ssub.s32 %s28, 2
    %s35 = sadd.s32 %s28, 1
    %s37 = sadd.s32 %s36, 1
    %p40 = scmp.eq.s32.totalorder %s28, 11
    %p41 = scmp.ne.s32.totalorder %s36, %s38
    %p42 = scmp.eq.s32.totalorder %s28, 0
    %p43 = por %p41, %p42
    %p44 = scmp.ne.s32.totalorder %s36, %s38
    %p45 = scmp.eq.s32.totalorder %s33, 11
    %p46 = por %p44, %p45
    %p47 = scmp.ne.s32.totalorder %s38, %s39
    %p48 = scmp.eq.s32.totalorder %s33, 0
    %p49 = por %p47, %p48
    %p50 = scmp.ne.s32.totalorder %s38, %s39
    %p51 = scmp.eq.s32.totalorder %s34, 11
    %p52 = por %p50, %p51
    %p54 = scmp.ne.s32.totalorder %s39, %s53
    %p55 = scmp.eq.s32.totalorder %s34, 0
    %p56 = por %p54, %p55
    %s58 = sadd.s32 %s57, 1
    %p61 = scmp.eq.s32.totalorder %s28, 11
    %p62 = scmp.ne.s32.totalorder %s57, %s59
    %p63 = scmp.eq.s32.totalorder %s28, 0
    %p64 = por %p62, %p63
    %p65 = scmp.ne.s32.totalorder %s57, %s59
    %p66 = scmp.eq.s32.totalorder %s33, 11
    %p67 = por %p65, %p66
    %p68 = scmp.ne.s32.totalorder %s59, %s60
    %p69 = scmp.eq.s32.totalorder %s33, 0
    %p70 = por %p68, %p69
    %p71 = scmp.ne.s32.totalorder %s59, %s60
    %p72 = scmp.eq.s32.totalorder %s34, 11
    %p73 = por %p71, %p72
    %p75 = scmp.ne.s32.totalorder %s60, %s74
    %p76 = scmp.eq.s32.totalorder %s34, 0
    %p77 = por %p75, %p76
    %s79 = sadd.s32 %s78, 1
    %p82 = scmp.eq.s32.totalorder %s28, 11
    %p83 = scmp.ne.s32.totalorder %s78, %s80
    %p84 = scmp.eq.s32.totalorder %s28, 0
    %p85 = por %p83, %p84
    %p86 = scmp.ne.s32.totalorder %s78, %s80
    %p87 = scmp.eq.s32.totalorder %s33, 11
    %p88 = por %p86, %p87
    %p89 = scmp.ne.s32.totalorder %s80, %s81
    %p90 = scmp.eq.s32.totalorder %s33, 0
    %p91 = por %p89, %p90
    %p92 = scmp.ne.s32.totalorder %s80, %s81
    %p93 = scmp.eq.s32.totalorder %s34, 11
    %p94 = por %p92, %p93
    %p96 = scmp.ne.s32.totalorder %s81, %s95
    %p97 = scmp.eq.s32.totalorder %s34, 0
    %p98 = por %p96, %p97
    %s99 = ssub.s32 %s28, %s35
    %p100 = scmp.eq.s32.totalorder %s99, 0
    %s102 = sadd.s32 %s101, 1
    %s103 = scalar_select %p100, %s101, %s102
    %p106 = pneg %p100
    %p107 = scmp.eq.s32.totalorder %s28, 11
    %p108 = por %p106, %p107
    %p109 = scmp.ne.s32.totalorder %s101, %s104
    %p110 = scmp.eq.s32.totalorder %s28, 0
    %p111 = por %p109, %p110
    %p112 = scmp.ne.s32.totalorder %s101, %s104
    %p113 = scmp.eq.s32.totalorder %s33, 11
    %p114 = por %p112, %p113
    %p115 = scmp.ne.s32.totalorder %s104, %s105
    %p116 = scmp.eq.s32.totalorder %s33, 0
    %p117 = por %p115, %p116
    %p118 = scmp.ne.s32.totalorder %s104, %s105
    %p119 = scmp.eq.s32.totalorder %s34, 11
    %p120 = por %p118, %p119
    %p122 = scmp.ne.s32.totalorder %s105, %s121
    %p123 = scmp.eq.s32.totalorder %s34, 0
    %p124 = por %p122, %p123
    %s125 = ssub.s32 %s28, %s35
    %p126 = scmp.eq.s32.totalorder %s125, 0
    %s128 = sadd.s32 %s127, 1
    %s129 = scalar_select %p126, %s127, %s128
    %p132 = pneg %p126
    %p133 = scmp.eq.s32.totalorder %s28, 11
    %p134 = por %p132, %p133
    %p135 = scmp.ne.s32.totalorder %s127, %s130
    %p136 = scmp.eq.s32.totalorder %s28, 0
    %p137 = por %p135, %p136
    %p138 = scmp.ne.s32.totalorder %s127, %s130
    %p139 = scmp.eq.s32.totalorder %s33, 11
    %p140 = por %p138, %p139
    %p141 = scmp.ne.s32.totalorder %s130, %s131
    %p142 = scmp.eq.s32.totalorder %s33, 0
    %p143 = por %p141, %p142
    %p144 = scmp.ne.s32.totalorder %s130, %s131
    %p145 = scmp.eq.s32.totalorder %s34, 11
    %p146 = por %p144, %p145
    %p148 = scmp.ne.s32.totalorder %s131, %s147
    %p149 = scmp.eq.s32.totalorder %s34, 0
    %p150 = por %p148, %p149
    %s151 = ssub.s32 %s28, %s35
    %p152 = scmp.eq.s32.totalorder %s151, 0
    %s154 = sadd.s32 %s153, 1
    %s155 = scalar_select %p152, %s153, %s154
    %p158 = pneg %p152
    %p159 = scmp.eq.s32.totalorder %s28, 11
    %p160 = por %p158, %p159
    %p161 = scmp.ne.s32.totalorder %s153, %s156
    %p162 = scmp.eq.s32.totalorder %s28, 0
    %p163 = por %p161, %p162
    %p164 = scmp.ne.s32.totalorder %s153, %s156
    %p165 = scmp.eq.s32.totalorder %s33, 11
    %p166 = por %p164, %p165
    %p167 = scmp.ne.s32.totalorder %s156, %s157
    %p168 = scmp.eq.s32.totalorder %s33, 0
    %p169 = por %p167, %p168
    %p170 = scmp.ne.s32.totalorder %s156, %s157
    %p171 = scmp.eq.s32.totalorder %s34, 11
    %p172 = por %p170, %p171
    %p174 = scmp.ne.s32.totalorder %s157, %s173
    %p175 = scmp.eq.s32.totalorder %s34, 0
    %p176 = por %p174, %p175
    %s177 = ssub.s32 %s28, %s35
    %p178 = scmp.eq.s32.totalorder %s177, 0
    %s180 = sadd.s32 %s179, 1
    %s181 = scalar_select %p178, %s179, %s180
    %p184 = pneg %p178
    %p185 = scmp.eq.s32.totalorder %s28, 11
    %p186 = por %p184, %p185
    %p187 = scmp.ne.s32.totalorder %s179, %s182
    %p188 = scmp.eq.s32.totalorder %s28, 0
    %p189 = por %p187, %p188
    %p190 = scmp.ne.s32.totalorder %s179, %s182
    %p191 = scmp.eq.s32.totalorder %s33, 11
    %p192 = por %p190, %p191
    %p193 = scmp.ne.s32.totalorder %s182, %s183
    %p194 = scmp.eq.s32.totalorder %s33, 0
    %p195 = por %p193, %p194
    %p196 = scmp.ne.s32.totalorder %s182, %s183
    %p197 = scmp.eq.s32.totalorder %s34, 11
    %p198 = por %p196, %p197
    %p200 = scmp.ne.s32.totalorder %s183, %s199
    %p201 = scmp.eq.s32.totalorder %s34, 0
    %p202 = por %p200, %p201
    %s203 = ssub.s32 %s28, %s35
    %p204 = scmp.eq.s32.totalorder %s203, 0
    %s206 = sadd.s32 %s205, 1
    %s207 = scalar_select %p204, %s205, %s206
    %p210 = pneg %p204
    %p211 = scmp.eq.s32.totalorder %s28, 11
    %p212 = por %p210, %p211
    %p213 = scmp.ne.s32.totalorder %s205, %s208
    %p214 = scmp.eq.s32.totalorder %s28, 0
    %p215 = por %p213, %p214
    %p216 = scmp.ne.s32.totalorder %s205, %s208
    %p217 = scmp.eq.s32.totalorder %s33, 11
    %p218 = por %p216, %p217
    %p219 = scmp.ne.s32.totalorder %s208, %s209
    %p220 = scmp.eq.s32.totalorder %s33, 0
    %p221 = por %p219, %p220
    %p222 = scmp.ne.s32.totalorder %s208, %s209
    %p223 = scmp.eq.s32.totalorder %s34, 11
    %p224 = por %p222, %p223
    %p226 = scmp.ne.s32.totalorder %s209, %s225
    %p227 = scmp.eq.s32.totalorder %s34, 0
    %p228 = por %p226, %p227
    %s229 = ssub.s32 %s28, %s35
    %p230 = scmp.eq.s32.totalorder %s229, 0
    %s232 = sadd.s32 %s231, 1
    %s233 = scalar_select %p230, %s231, %s232
    %p236 = pneg %p230
    %p237 = scmp.eq.s32.totalorder %s28, 11
    %p238 = por %p236, %p237
    %p239 = scmp.ne.s32.totalorder %s231, %s234
    %p240 = scmp.eq.s32.totalorder %s28, 0
    %p241 = por %p239, %p240
    %p242 = scmp.ne.s32.totalorder %s231, %s234
    %p243 = scmp.eq.s32.totalorder %s33, 11
    %p244 = por %p242, %p243
    %p245 = scmp.ne.s32.totalorder %s234, %s235
    %p246 = scmp.eq.s32.totalorder %s33, 0
    %p247 = por %p245, %p246
    %p248 = scmp.ne.s32.totalorder %s234, %s235
    %p249 = scmp.eq.s32.totalorder %s34, 11
    %p250 = por %p248, %p249
    %p252 = scmp.ne.s32.totalorder %s235, %s251
    %p253 = scmp.eq.s32.totalorder %s34, 0
    %p254 = por %p252, %p253
    %s255 = ssub.s32 %s28, %s35
    %p256 = scmp.eq.s32.totalorder %s255, 0
    %s258 = sadd.s32 %s257, 1
    %s259 = scalar_select %p256, %s257, %s258
    %p262 = pneg %p256
    %p263 = scmp.eq.s32.totalorder %s28, 11
    %p264 = por %p262, %p263
    %p265 = scmp.ne.s32.totalorder %s257, %s260
    %p266 = scmp.eq.s32.totalorder %s28, 0
    %p267 = por %p265, %p266
    %p268 = scmp.ne.s32.totalorder %s257, %s260
    %p269 = scmp.eq.s32.totalorder %s33, 11
    %p270 = por %p268, %p269
    %p271 = scmp.ne.s32.totalorder %s260, %s261
    %p272 = scmp.eq.s32.totalorder %s33, 0
    %p273 = por %p271, %p272
    %p274 = scmp.ne.s32.totalorder %s260, %s261
    %p275 = scmp.eq.s32.totalorder %s34, 11
    %p276 = por %p274, %p275
    %p278 = scmp.ne.s32.totalorder %s261, %s277
    %p279 = scmp.eq.s32.totalorder %s34, 0
    %p280 = por %p278, %p279
    %s281 = ssub.s32 %s28, %s35
    %p282 = scmp.eq.s32.totalorder %s281, 0
    %s284 = sadd.s32 %s283, 1
    %s285 = scalar_select %p282, %s283, %s284
    %p288 = pneg %p282
    %p289 = scmp.eq.s32.totalorder %s28, 11
    %p290 = por %p288, %p289
    %p291 = scmp.ne.s32.totalorder %s283, %s286
    %p292 = scmp.eq.s32.totalorder %s28, 0
    %p293 = por %p291, %p292
    %p294 = scmp.ne.s32.totalorder %s283, %s286
    %p295 = scmp.eq.s32.totalorder %s33, 11
    %p296 = por %p294, %p295
    %p297 = scmp.ne.s32.totalorder %s286, %s287
    %p298 = scmp.eq.s32.totalorder %s33, 0
    %p299 = por %p297, %p298
    %p300 = scmp.ne.s32.totalorder %s286, %s287
    %p301 = scmp.eq.s32.totalorder %s34, 11
    %p302 = por %p300, %p301
    %p304 = scmp.ne.s32.totalorder %s287, %s303
    %p305 = scmp.eq.s32.totalorder %s34, 0
    %p306 = por %p304, %p305
    %s307 = ssub.s32 %s28, %s35
    %p308 = scmp.eq.s32.totalorder %s307, 0
    %s310 = sadd.s32 %s309, 1
    %s311 = scalar_select %p308, %s309, %s310
    %p314 = pneg %p308
    %p315 = scmp.eq.s32.totalorder %s28, 11
    %p316 = por %p314, %p315
    %p317 = scmp.ne.s32.totalorder %s309, %s312
    %p318 = scmp.eq.s32.totalorder %s28, 0
    %p319 = por %p317, %p318
    %p320 = scmp.ne.s32.totalorder %s309, %s312
    %p321 = scmp.eq.s32.totalorder %s33, 11
    %p322 = por %p320, %p321
    %p323 = scmp.ne.s32.totalorder %s312, %s313
    %p324 = scmp.eq.s32.totalorder %s33, 0
    %p325 = por %p323, %p324
    %p326 = scmp.ne.s32.totalorder %s312, %s313
    %p327 = scmp.eq.s32.totalorder %s34, 11
    %p328 = por %p326, %p327
    %p330 = scmp.ne.s32.totalorder %s313, %s329
    %p331 = scmp.eq.s32.totalorder %s34, 0
    %p332 = por %p330, %p331
    %s333 = ssub.s32 %s28, %s35
    %p334 = scmp.eq.s32.totalorder %s333, 0
    %s336 = sadd.s32 %s335, 1
    %s337 = scalar_select %p334, %s335, %s336
    %p340 = pneg %p334
    %p341 = scmp.eq.s32.totalorder %s28, 11
    %p342 = por %p340, %p341
    %p343 = scmp.ne.s32.totalorder %s335, %s338
    %p344 = scmp.eq.s32.totalorder %s28, 0
    %p345 = por %p343, %p344
    %p346 = scmp.ne.s32.totalorder %s335, %s338
    %p347 = scmp.eq.s32.totalorder %s33, 11
    %p348 = por %p346, %p347
    %p349 = scmp.ne.s32.totalorder %s338, %s339
    %p350 = scmp.eq.s32.totalorder %s33, 0
    %p351 = por %p349, %p350
    %p352 = scmp.ne.s32.totalorder %s338, %s339
    %p353 = scmp.eq.s32.totalorder %s34, 11
    %p354 = por %p352, %p353
    %p356 = scmp.ne.s32.totalorder %s339, %s355
    %p357 = scmp.eq.s32.totalorder %s34, 0
    %p358 = por %p356, %p357
    %s359 = ssub.s32 %s28, %s35
    %p360 = scmp.eq.s32.totalorder %s359, 0
    %s362 = sadd.s32 %s361, 1
    %s363 = scalar_select %p360, %s361, %s362
    %p366 = pneg %p360
    %p367 = scmp.eq.s32.totalorder %s28, 11
    %p368 = por %p366, %p367
    %p369 = scmp.ne.s32.totalorder %s361, %s364
    %p370 = scmp.eq.s32.totalorder %s28, 0
    %p371 = por %p369, %p370
    %p372 = scmp.ne.s32.totalorder %s361, %s364
    %p373 = scmp.eq.s32.totalorder %s33, 11
    %p374 = por %p372, %p373
    %p375 = scmp.ne.s32.totalorder %s364, %s365
    %p376 = scmp.eq.s32.totalorder %s33, 0
    %p377 = por %p375, %p376
    %p378 = scmp.ne.s32.totalorder %s364, %s365
    %p379 = scmp.eq.s32.totalorder %s34, 11
    %p380 = por %p378, %p379
    %p382 = scmp.ne.s32.totalorder %s365, %s381
    %p383 = scmp.eq.s32.totalorder %s34, 0
    %p384 = por %p382, %p383
    %s385 = ssub.s32 %s28, %s35
    %p386 = scmp.eq.s32.totalorder %s385, 0
    %s388 = sadd.s32 %s387, 1
    %s389 = scalar_select %p386, %s387, %s388
    %p392 = pneg %p386
    %p393 = scmp.eq.s32.totalorder %s28, 11
    %p394 = por %p392, %p393
    %p395 = scmp.ne.s32.totalorder %s387, %s390
    %p396 = scmp.eq.s32.totalorder %s28, 0
    %p397 = por %p395, %p396
    %p398 = scmp.ne.s32.totalorder %s387, %s390
    %p399 = scmp.eq.s32.totalorder %s33, 11
    %p400 = por %p398, %p399
    %p401 = scmp.ne.s32.totalorder %s390, %s391
    %p402 = scmp.eq.s32.totalorder %s33, 0
    %p403 = por %p401, %p402
    %p404 = scmp.ne.s32.totalorder %s390, %s391
    %p405 = scmp.eq.s32.totalorder %s34, 11
    %p406 = por %p404, %p405
    %p408 = scmp.ne.s32.totalorder %s391, %s407
    %p409 = scmp.eq.s32.totalorder %s34, 0
    %p410 = por %p408, %p409
    %s412 = sadd.s32 %s411, 1
    %p415 = scmp.eq.s32.totalorder %s28, 11
    %p416 = scmp.ne.s32.totalorder %s411, %s413
    %p417 = scmp.eq.s32.totalorder %s28, 0
    %p418 = por %p416, %p417
    %p419 = scmp.ne.s32.totalorder %s411, %s413
    %p420 = scmp.eq.s32.totalorder %s33, 11
    %p421 = por %p419, %p420
    %p422 = scmp.ne.s32.totalorder %s413, %s414
    %p423 = scmp.eq.s32.totalorder %s33, 0
    %p424 = por %p422, %p423
    %p425 = scmp.ne.s32.totalorder %s413, %s414
    %p426 = scmp.eq.s32.totalorder %s34, 11
    %p427 = por %p425, %p426
    %p429 = scmp.ne.s32.totalorder %s414, %s428
    %p430 = scmp.eq.s32.totalorder %s34, 0
    %p431 = por %p429, %p430
    %p432 = scmp.le.s32.totalorder 1, %s28
    %p433 = scmp.lt.s32.totalorder %s28, 13
    %p434 = pnand %p432, %p433
    %p435 = pneg %p434
    // Predicated region
    $region9: #{gpt_large_forward.1} parent=5 // pred_check
      _
    $region10: #{gpt_large_forward.1} parent=5 // pred_check_branch
      %437 = sbr.rel (%p434) target = $region12
    $region11: #{gpt_large_forward.1} parent=5 // pred_region
      %s438 = ssub.s32 %s28, 1
      // Predicated region
      $region13: #{gpt_large_forward.1} parent=11 // pred_check
        %p439 = pneg %p49
      $region14: #{gpt_large_forward.1} parent=11 // pred_check_branch
        %441 = sbr.rel (%p439) target = $region16
      $region15: #{gpt_large_forward.1} parent=11 // pred_region
        _
      $region16: #{gpt_large_forward.1} parent=11 // pred_fallthru
        _
      // Predicated region
      $region17: #{gpt_large_forward.1} parent=11 // pred_check
        %p442 = pneg %p70
      $region18: #{gpt_large_forward.1} parent=11 // pred_check_branch
        %444 = sbr.rel (%p442) target = $region20
      $region19: #{gpt_large_forward.1} parent=11 // pred_region
        _
      $region20: #{gpt_large_forward.1} parent=11 // pred_fallthru
        _
      // Predicated region
      $region21: #{gpt_large_forward.1} parent=11 // pred_check
        %p445 = pneg %p91
      $region22: #{gpt_large_forward.1} parent=11 // pred_check_branch
        %447 = sbr.rel (%p445) target = $region24
      $region23: #{gpt_large_forward.1} parent=11 // pred_region
        _
      $region24: #{gpt_large_forward.1} parent=11 // pred_fallthru
        _
    $region12: #{gpt_large_forward.1} parent=5 // pred_fallthru
      _
    %p448 = scmp.lt.s32.totalorder %s28, 12
    // Predicated region
    $region25: #{gpt_large_forward.1} parent=5 // pred_check
      %p449 = pneg %p448
    $region26: #{gpt_large_forward.1} parent=5 // pred_check_branch
      %451 = sbr.rel (%p449) target = $region28
    $region27: #{gpt_large_forward.1} parent=5 // pred_region
      // Predicated region
      $region29: #{gpt_large_forward.1} parent=27 // pred_check
        %p452 = pneg %p111
      $region30: #{gpt_large_forward.1} parent=27 // pred_check_branch
        %454 = sbr.rel (%p452) target = $region32
      $region31: #{gpt_large_forward.1} parent=27 // pred_region
        %p455 = scmp.lt.s32.totalorder %s28, 11
        %s456 = scalar_select %p455, %s28, 11
        %s457 = scalar_lea.vmem %s4, %s456
      $region32: #{gpt_large_forward.1} parent=27 // pred_fallthru
        _
      // Predicated region
      $region33: #{gpt_large_forward.1} parent=27 // pred_check
        %p458 = pneg %p137
      $region34: #{gpt_large_forward.1} parent=27 // pred_check_branch
        %460 = sbr.rel (%p458) target = $region36
      $region35: #{gpt_large_forward.1} parent=27 // pred_region
        %p461 = scmp.lt.s32.totalorder %s28, 11
        %s462 = scalar_select %p461, %s28, 11
        %s463 = scalar_lea.vmem %s5, %s462
      $region36: #{gpt_large_forward.1} parent=27 // pred_fallthru
        _
      // Predicated region
      $region37: #{gpt_large_forward.1} parent=27 // pred_check
        %p464 = pneg %p163
      $region38: #{gpt_large_forward.1} parent=27 // pred_check_branch
        %466 = sbr.rel (%p464) target = $region40
      $region39: #{gpt_large_forward.1} parent=27 // pred_region
        %p467 = scmp.lt.s32.totalorder %s28, 11
        %s468 = scalar_select %p467, %s28, 11
        %s469 = smul.addr %s468, 36
        %s470 = smul.addr %s469, 4
        %s471 = scalar_lea.vmem %s6, %s470
      $region40: #{gpt_large_forward.1} parent=27 // pred_fallthru
        _
      // Predicated region
      $region41: #{gpt_large_forward.1} parent=27 // pred_check
        %p472 = pneg %p189
      $region42: #{gpt_large_forward.1} parent=27 // pred_check_branch
        %474 = sbr.rel (%p472) target = $region44
      $region43: #{gpt_large_forward.1} parent=27 // pred_region
        %p475 = scmp.lt.s32.totalorder %s28, 11
        %s476 = scalar_select %p475, %s28, 11
        %s477 = smul.addr %s476, 3
        %s478 = scalar_lea.vmem %s7, %s477
      $region44: #{gpt_large_forward.1} parent=27 // pred_fallthru
        _
      // Predicated region
      $region45: #{gpt_large_forward.1} parent=27 // pred_check
        %p479 = pneg %p215
      $region46: #{gpt_large_forward.1} parent=27 // pred_check_branch
        %481 = sbr.rel (%p479) target = $region48
      $region47: #{gpt_large_forward.1} parent=27 // pred_region
        %p482 = scmp.lt.s32.totalorder %s28, 11
        %s483 = scalar_select %p482, %s28, 11
        %s484 = smul.addr %s483, 12
        %s485 = smul.addr %s484, 4
        %s486 = scalar_lea.vmem %s8, %s485
      $region48: #{gpt_large_forward.1} parent=27 // pred_fallthru
        _
      // Predicated region
      $region49: #{gpt_large_forward.1} parent=27 // pred_check
        %p487 = pneg %p241
      $region50: #{gpt_large_forward.1} parent=27 // pred_check_branch
        %489 = sbr.rel (%p487) target = $region52
      $region51: #{gpt_large_forward.1} parent=27 // pred_region
        %p490 = scmp.lt.s32.totalorder %s28, 11
        %s491 = scalar_select %p490, %s28, 11
        %s492 = scalar_lea.vmem %s9, %s491
      $region52: #{gpt_large_forward.1} parent=27 // pred_fallthru
        _
      // Predicated region
      $region53: #{gpt_large_forward.1} parent=27 // pred_check
        %p493 = pneg %p267
      $region54: #{gpt_large_forward.1} parent=27 // pred_check_branch
        %495 = sbr.rel (%p493) target = $region56
      $region55: #{gpt_large_forward.1} parent=27 // pred_region
        %p496 = scmp.lt.s32.totalorder %s28, 11
        %s497 = scalar_select %p496, %s28, 11
        %s498 = scalar_lea.vmem %s10, %s497
      $region56: #{gpt_large_forward.1} parent=27 // pred_fallthru
        _
      // Predicated region
      $region57: #{gpt_large_forward.1} parent=27 // pred_check
        %p499 = pneg %p293
      $region58: #{gpt_large_forward.1} parent=27 // pred_check_branch
        %501 = sbr.rel (%p499) target = $region60
      $region59: #{gpt_large_forward.1} parent=27 // pred_region
        %p502 = scmp.lt.s32.totalorder %s28, 11
        %s503 = scalar_select %p502, %s28, 11
        %s504 = scalar_lea.vmem %s11, %s503
      $region60: #{gpt_large_forward.1} parent=27 // pred_fallthru
        _
      // Predicated region
      $region61: #{gpt_large_forward.1} parent=27 // pred_check
        %p505 = pneg %p319
      $region62: #{gpt_large_forward.1} parent=27 // pred_check_branch
        %507 = sbr.rel (%p505) target = $region64
      $region63: #{gpt_large_forward.1} parent=27 // pred_region
        %p508 = scmp.lt.s32.totalorder %s28, 11
        %s509 = scalar_select %p508, %s28, 11
        %s510 = smul.addr %s509, 192
        %s511 = smul.addr %s510, 4
        %s512 = scalar_lea.vmem %s12, %s511
      $region64: #{gpt_large_forward.1} parent=27 // pred_fallthru
        _
      // Predicated region
      $region65: #{gpt_large_forward.1} parent=27 // pred_check
        %p513 = pneg %p345
      $region66: #{gpt_large_forward.1} parent=27 // pred_check_branch
        %515 = sbr.rel (%p513) target = $region68
      $region67: #{gpt_large_forward.1} parent=27 // pred_region
        %p516 = scmp.lt.s32.totalorder %s28, 11
        %s517 = scalar_select %p516, %s28, 11
        %s518 = smul.addr %s517, 16
        %s519 = scalar_lea.vmem %s13, %s518
      $region68: #{gpt_large_forward.1} parent=27 // pred_fallthru
        _
      // Predicated region
      $region69: #{gpt_large_forward.1} parent=27 // pred_check
        %p520 = pneg %p371
      $region70: #{gpt_large_forward.1} parent=27 // pred_check_branch
        %522 = sbr.rel (%p520) target = $region72
      $region71: #{gpt_large_forward.1} parent=27 // pred_region
        %p523 = scmp.lt.s32.totalorder %s28, 11
        %s524 = scalar_select %p523, %s28, 11
        %s525 = smul.addr %s524, 256
        %s526 = smul.addr %s525, 4
        %s527 = scalar_lea.vmem %s14, %s526
      $region72: #{gpt_large_forward.1} parent=27 // pred_fallthru
        _
      // Predicated region
      $region73: #{gpt_large_forward.1} parent=27 // pred_check
        %p528 = pneg %p397
      $region74: #{gpt_large_forward.1} parent=27 // pred_check_branch
        %530 = sbr.rel (%p528) target = $region76
      $region75: #{gpt_large_forward.1} parent=27 // pred_region
        %p531 = scmp.lt.s32.totalorder %s28, 11
        %s532 = scalar_select %p531, %s28, 11
        %s533 = scalar_lea.vmem %s15, %s532
      $region76: #{gpt_large_forward.1} parent=27 // pred_fallthru
        _
    $region28: #{gpt_large_forward.1} parent=5 // pred_fallthru
      _
    %p534 = scmp.le.s32.totalorder 1, %s28
    %p535 = scmp.lt.s32.totalorder %s28, 13
    %p536 = pnand %p534, %p535
    %p537 = pneg %p536
    // Predicated region
    $region77: #{gpt_large_forward.1} parent=5 // pred_check
      _
    $region78: #{gpt_large_forward.1} parent=5 // pred_check_branch
      %539 = sbr.rel (%p536) target = $region80
    $region79: #{gpt_large_forward.1} parent=5 // pred_region
      %s540 = ssub.s32 %s28, 1
      %p541 = pneg %p49
      %p542 = pneg %p46
      %p543 = pneg %p70
      %p544 = pneg %p67
      %p545 = pneg %p91
      %p546 = pneg %p88
      %p547 = scmp.lt.s32.totalorder %s33, 11
      %s548 = scalar_select %p547, %s33, 11
      %s549 = scalar_lea.vmem %s4, %s548
      %p550 = pneg %p117
      %p551 = pneg %p114
      %p552 = scmp.lt.s32.totalorder %s33, 11
      %s553 = scalar_select %p552, %s33, 11
      %s554 = scalar_lea.vmem %s5, %s553
      %p555 = pneg %p143
      %p556 = pneg %p140
      %p557 = scmp.lt.s32.totalorder %s33, 11
      %s558 = scalar_select %p557, %s33, 11
      %s559 = smul.addr %s558, 36
      %s560 = smul.addr %s559, 4
      %s561 = scalar_lea.vmem %s6, %s560
      %p562 = pneg %p169
      %p563 = pneg %p166
      %p564 = scmp.lt.s32.totalorder %s33, 11
      %s565 = scalar_select %p564, %s33, 11
      %s566 = smul.addr %s565, 3
      %s567 = scalar_lea.vmem %s7, %s566
      %p568 = pneg %p195
      %p569 = pneg %p192
      %p570 = scmp.lt.s32.totalorder %s33, 11
      %s571 = scalar_select %p570, %s33, 11
      %s572 = smul.addr %s571, 12
      %s573 = smul.addr %s572, 4
      %s574 = scalar_lea.vmem %s8, %s573
      %p575 = pneg %p221
      %p576 = pneg %p218
      %p577 = scmp.lt.s32.totalorder %s33, 11
      %s578 = scalar_select %p577, %s33, 11
      %s579 = scalar_lea.vmem %s9, %s578
      %p580 = pneg %p247
      %p581 = pneg %p244
      %p582 = scmp.lt.s32.totalorder %s33, 11
      %s583 = scalar_select %p582, %s33, 11
      %s584 = scalar_lea.vmem %s10, %s583
      %p585 = pneg %p273
      %p586 = pneg %p270
      %p587 = scmp.lt.s32.totalorder %s33, 11
      %s588 = scalar_select %p587, %s33, 11
      %s589 = scalar_lea.vmem %s11, %s588
      %p590 = pneg %p299
      %p591 = pneg %p296
      %p592 = scmp.lt.s32.totalorder %s33, 11
      %s593 = scalar_select %p592, %s33, 11
      %s594 = smul.addr %s593, 192
      %s595 = smul.addr %s594, 4
      %s596 = scalar_lea.vmem %s12, %s595
      %p597 = pneg %p325
      %p598 = pneg %p322
      %p599 = scmp.lt.s32.totalorder %s33, 11
      %s600 = scalar_select %p599, %s33, 11
      %s601 = smul.addr %s600, 16
      %s602 = scalar_lea.vmem %s13, %s601
      %p603 = pneg %p351
      %p604 = pneg %p348
      %p605 = scmp.lt.s32.totalorder %s33, 11
      %s606 = scalar_select %p605, %s33, 11
      %s607 = smul.addr %s606, 256
      %s608 = smul.addr %s607, 4
      %s609 = scalar_lea.vmem %s14, %s608
      %p610 = pneg %p377
      %p611 = pneg %p374
      %p612 = scmp.lt.s32.totalorder %s33, 11
      %s613 = scalar_select %p612, %s33, 11
      %s614 = scalar_lea.vmem %s15, %s613
      %p615 = pneg %p403
      %p616 = pneg %p400
      %p617 = pneg %p424
      %p618 = pneg %p421
      %p619 = scmp.lt.s32.totalorder %s33, 11
      %s620 = scalar_select %p619, %s33, 11
      %s621 = scalar_lea.vmem %s4, %s620
      %p622 = scmp.lt.s32.totalorder %s33, 11
      %s623 = scalar_select %p622, %s33, 11
      %s624 = scalar_lea.vmem %s5, %s623
      %p625 = scmp.lt.s32.totalorder %s33, 11
      %s626 = scalar_select %p625, %s33, 11
      %s627 = smul.addr %s626, 36
      %s628 = smul.addr %s627, 4
      %s629 = scalar_lea.vmem %s6, %s628
      %p630 = scmp.lt.s32.totalorder %s33, 11
      %s631 = scalar_select %p630, %s33, 11
      %s632 = smul.addr %s631, 3
      %s633 = scalar_lea.vmem %s7, %s632
      %p634 = scmp.lt.s32.totalorder %s33, 11
      %s635 = scalar_select %p634, %s33, 11
      %s636 = smul.addr %s635, 12
      %s637 = smul.addr %s636, 4
      %s638 = scalar_lea.vmem %s8, %s637
      %p639 = scmp.lt.s32.totalorder %s33, 11
      %s640 = scalar_select %p639, %s33, 11
      %s641 = scalar_lea.vmem %s9, %s640
      %p642 = scmp.lt.s32.totalorder %s33, 11
      %s643 = scalar_select %p642, %s33, 11
      %s644 = scalar_lea.vmem %s10, %s643
      %p645 = scmp.lt.s32.totalorder %s33, 11
      %s646 = scalar_select %p645, %s33, 11
      %s647 = scalar_lea.vmem %s11, %s646
      %p648 = scmp.lt.s32.totalorder %s33, 11
      %s649 = scalar_select %p648, %s33, 11
      %s650 = smul.addr %s649, 192
      %s651 = smul.addr %s650, 4
      %s652 = scalar_lea.vmem %s12, %s651
      %p653 = scmp.lt.s32.totalorder %s33, 11
      %s654 = scalar_select %p653, %s33, 11
      %s655 = smul.addr %s654, 16
      %s656 = scalar_lea.vmem %s13, %s655
      %p657 = scmp.lt.s32.totalorder %s33, 11
      %s658 = scalar_select %p657, %s33, 11
      %s659 = smul.addr %s658, 256
      %s660 = smul.addr %s659, 4
      %s661 = scalar_lea.vmem %s14, %s660
      %p662 = scmp.lt.s32.totalorder %s33, 11
      %s663 = scalar_select %p662, %s33, 11
      %s664 = scalar_lea.vmem %s15, %s663
      %p666 = scmp.eq.s32.totalorder %s33, 0
      // Predicated region
      $region81: #{gpt_large_forward.1} parent=79 // pred_check
        %p667 = pneg %p666
      $region82: #{gpt_large_forward.1} parent=79 // pred_check_branch
        %669 = sbr.rel (%p667) target = $region84
      $region83: #{gpt_large_forward.1} parent=79 // pred_region
        %v670 = vld [vmem:[%s1] sm:$0xff]
        %v671 = vld [vmem:[%s1 + $0x8] sm:$0xff]
        %v672 = vld [vmem:[%s1 + $0x10] sm:$0xff]
        %v673 = vld [vmem:[%s1 + $0x18] sm:$0xff]
        %vm674 = vcmask 785408
        %675 = vst.msk [vmem:[#allocation2] sm:$0xff] %vm674, %v670
        %676 = vst.msk [vmem:[#allocation2 + $0x8] sm:$0xff] %vm674, %v671
        %677 = vst.msk [vmem:[#allocation2 + $0x10] sm:$0xff] %vm674, %v672
        %678 = vst.msk [vmem:[#allocation2 + $0x18] sm:$0xff] %vm674, %v673
      $region84: #{gpt_large_forward.1} parent=79 // pred_fallthru
        _
      %v679 = vld [vmem:[#allocation2] sm:$0xff]
      %v680 = vld [vmem:[#allocation2 + $0x8] sm:$0xff]
      %v681 = vld [vmem:[#allocation2 + $0x10] sm:$0xff]
      %v682 = vld [vmem:[#allocation2 + $0x18] sm:$0xff]
      %v683 = vlaneseq
      %v684 = vshrl.u32 %v683, 7
      %v685 = vadd.s32 %v684, 8
      %v686 = vadd.s32 %v684, 16
      %v687 = vadd.s32 %v684, 24
      %v688 = vlaneseq
      %v689 = vand.u32 %v688, 127
      %s690 = sld [smem:[#allocation4]]
      %vm691 = vcmp.ge.s32.totalorder %v684, 0
      %vm692 = vcmp.ge.s32.totalorder %v685, 0
      %vm693 = vcmp.ge.s32.totalorder %v686, 0
      %vm694 = vcmp.ge.s32.totalorder %v687, 0
      %vm695 = vcmp.lt.s32.totalorder %v684, 16
      %vm696 = vcmp.lt.s32.totalorder %v685, 16
      %vm697 = vcmp.lt.s32.totalorder %v686, 16
      %vm698 = vcmp.lt.s32.totalorder %v687, 16
      %vm699 = vmand %vm691, %vm695
      %vm700 = vmand %vm692, %vm696
      %vm701 = vmand %vm693, %vm697
      %vm702 = vmand %vm694, %vm698
      %vm703 = vcmp.ge.s32.totalorder %v689, 0
      %vm704 = vmand %vm699, %vm703
      %vm705 = vmand %vm700, %vm703
      %vm706 = vmand %vm701, %vm703
      %vm707 = vmand %vm702, %vm703
      %vm708 = vcmp.lt.s32.totalorder %v689, 16
      %vm709 = vmand %vm704, %vm708
      %vm710 = vmand %vm705, %vm708
      %vm711 = vmand %vm706, %vm708
      %vm712 = vmand %vm707, %vm708
      %vm713 = vcmp.gt.s32.totalorder %v684, %v689
      %vm714 = vcmp.gt.s32.totalorder %v685, %v689
      %vm715 = vcmp.gt.s32.totalorder %v686, %v689
      %vm716 = vcmp.gt.s32.totalorder %v687, %v689
      %v717 = vstv %s690
      %vm718 = vcmp.lt.s32.totalorder %v684, %v717
      %vm719 = vcmp.lt.s32.totalorder %v685, %v717
      %vm720 = vcmp.lt.s32.totalorder %v686, %v717
      %vm721 = vcmp.lt.s32.totalorder %v687, %v717
      %vm722 = vmand %vm713, %vm718
      %vm723 = vmand %vm714, %vm719
      %vm724 = vmand %vm715, %vm720
      %vm725 = vmand %vm716, %vm721
      %vm726 = vcmp.lt.s32.totalorder %v689, %v717
      %vm727 = vmand %vm722, %vm726
      %vm728 = vmand %vm723, %vm726
      %vm729 = vmand %vm724, %vm726
      %vm730 = vmand %vm725, %vm726
      %v731 = vsel %vm727, -1e+09, 0.0
      %v732 = vsel %vm728, -1e+09, 0.0
      %v733 = vsel %vm729, -1e+09, 0.0
      %v734 = vsel %vm730, -1e+09, 0.0
      %v735 = vsel %vm709, %v731, -1e+09
      %v736 = vsel %vm710, %v732, -1e+09
      %v737 = vsel %vm711, %v733, -1e+09
      %v738 = vsel %vm712, %v734, -1e+09
      %s739 = sld [smem:[#allocation4 + $0x1]]
      %v740 = vsub.s32 %v684, 16
      %v741 = vsub.s32 %v685, 16
      %v742 = vsub.s32 %v687, 16
      %v743 = vsub.s32 %v689, 16
      %vm744 = vcmp.ge.s32.totalorder %v740, 0
      %vm745 = vcmp.ge.s32.totalorder %v741, 0
      %vm746 = vcmp.ge.s32.totalorder %v742, 0
      %vm747 = vcmp.lt.s32.totalorder %v740, 16
      %vm748 = vcmp.lt.s32.totalorder %v741, 16
      %vm749 = vcmp.lt.s32.totalorder %v742, 16
      %vm750 = vmand %vm744, %vm747
      %vm751 = vmand %vm745, %vm748
      %vm752 = vmand %vm746, %vm749
      %vm753 = vcmp.ge.s32.totalorder %v743, 0
      %vm754 = vmand %vm750, %vm753
      %vm755 = vmand %vm751, %vm753
      %vm756 = vmand %vm699, %vm753
      %vm757 = vmand %vm752, %vm753
      %vm758 = vcmp.lt.s32.totalorder %v743, 16
      %vm759 = vmand %vm754, %vm758
      %vm760 = vmand %vm755, %vm758
      %vm761 = vmand %vm756, %vm758
      %vm762 = vmand %vm757, %vm758
      %vm763 = vcmp.gt.s32.totalorder %v740, %v743
      %vm764 = vcmp.gt.s32.totalorder %v741, %v743
      %vm765 = vcmp.gt.s32.totalorder %v684, %v743
      %vm766 = vcmp.gt.s32.totalorder %v742, %v743
      %v767 = vstv %s739
      %vm768 = vcmp.lt.s32.totalorder %v740, %v767
      %vm769 = vcmp.lt.s32.totalorder %v741, %v767
      %vm770 = vcmp.lt.s32.totalorder %v684, %v767
      %vm771 = vcmp.lt.s32.totalorder %v742, %v767
      %vm772 = vmand %vm763, %vm768
      %vm773 = vmand %vm764, %vm769
      %vm774 = vmand %vm765, %vm770
      %vm775 = vmand %vm766, %vm771
      %vm776 = vcmp.lt.s32.totalorder %v743, %v767
      %vm777 = vmand %vm772, %vm776
      %vm778 = vmand %vm773, %vm776
      %vm779 = vmand %vm774, %vm776
      %vm780 = vmand %vm775, %vm776
      %v781 = vsel %vm777, -1e+09, 0.0
      %v782 = vsel %vm778, -1e+09, 0.0
      %v783 = vsel %vm779, -1e+09, 0.0
      %v784 = vsel %vm780, -1e+09, 0.0
      %v785 = vsel %vm759, %v781, %v735
      %v786 = vsel %vm760, %v782, %v736
      %v787 = vsel %vm761, %v783, %v737
      %v788 = vsel %vm762, %v784, %v738
      %v789 = vld [vmem:[%s621] sm:$0x1]
      %v790 = vld [vmem:[%s624] sm:$0x1]
      %vm791 = vcmask 785408
      %v792 = vsel %vm791, %v679, 0.0
      %793 = vadd.xlane.f32.xlu0 %v792
      %v794 = vpop.xlane.xlu0 %793
      %v795 = vsel %vm791, %v680, 0.0
      %796 = vadd.xlane.f32.xlu0 %v795
      %v797 = vpop.xlane.xlu0 %796
      %v798 = vsel %vm791, %v681, 0.0
      %799 = vadd.xlane.f32.xlu0 %v798
      %v800 = vpop.xlane.xlu0 %799
      %v801 = vsel %vm791, %v682, 0.0
      %802 = vadd.xlane.f32.xlu0 %v801
      %v803 = vpop.xlane.xlu0 %802
      %v804 = vrcp.pop 96.0
      %v805 = vmul.f32 %v794, %v804
      %v806 = vmul.f32 %v797, %v804
      %v807 = vmul.f32 %v800, %v804
      %v808 = vmul.f32 %v803, %v804
      %v809 = vsub.f32 %v679, %v805
      %v810 = vsub.f32 %v680, %v806
      %v811 = vsub.f32 %v681, %v807
      %v812 = vsub.f32 %v682, %v808
      %v813 = vmul.f32 %v809, %v809
      %v814 = vmul.f32 %v810, %v810
      %v815 = vmul.f32 %v811, %v811
      %v816 = vmul.f32 %v812, %v812
      %v817 = vsel %vm791, %v813, 0.0
      %818 = vadd.xlane.f32.xlu0 %v817
      %v819 = vpop.xlane.xlu0 %818
      %v820 = vsel %vm791, %v814, 0.0
      %821 = vadd.xlane.f32.xlu0 %v820
      %v822 = vpop.xlane.xlu0 %821
      %v823 = vsel %vm791, %v815, 0.0
      %824 = vadd.xlane.f32.xlu0 %v823
      %v825 = vpop.xlane.xlu0 %824
      %v826 = vsel %vm791, %v816, 0.0
      %827 = vadd.xlane.f32.xlu0 %v826
      %v828 = vpop.xlane.xlu0 %827
      %v829 = vmul.f32 %v819, %v804
      %v830 = vmul.f32 %v822, %v804
      %v831 = vmul.f32 %v825, %v804
      %v832 = vmul.f32 %v828, %v804
      %v833 = vadd.f32 %v829, 1e-05
      %v834 = vadd.f32 %v830, 1e-05
      %v835 = vadd.f32 %v831, 1e-05
      %v836 = vadd.f32 %v832, 1e-05
      %v837 = vrsqrt.pop %v833
      %v838 = vrsqrt.pop %v834
      %v839 = vrsqrt.pop %v835
      %v840 = vrsqrt.pop %v836
      %v841 = vmul.f32 %v809, %v837
      %v842 = vmul.f32 %v810, %v838
      %v843 = vmul.f32 %v811, %v839
      %v844 = vmul.f32 %v812, %v840
      %v846 = vlaneseq
      %v847 = vshrl.u32 %v846, 7
      %v848 = vsub.s32 0, %v847
      %v849 = vrot.slane %v789, %v848
      %v851 = vmul.f32 %v841, %v849
      %v852 = vmul.f32 %v842, %v849
      %v853 = vmul.f32 %v843, %v849
      %v854 = vmul.f32 %v844, %v849
      %v856 = vlaneseq
      %v857 = vshrl.u32 %v856, 7
      %v858 = vsub.s32 0, %v857
      %v859 = vrot.slane %v790, %v858
      %v861 = vadd.f32 %v851, %v859
      %v862 = vadd.f32 %v852, %v859
      %v863 = vadd.f32 %v853, %v859
      %v864 = vadd.f32 %v854, %v859
      %v865 = vpack.c.bf16 %v862, %v861
      %v866 = vpack.c.bf16 %v864, %v863
      %v867 = vld [vmem:[%s629] sm:$0xff]
      %v868 = vld [vmem:[%s629 + $0x8] sm:$0xf]
      %v869 = vld [vmem:[%s629 + $0xc] sm:$0xff]
      %v870 = vld [vmem:[%s629 + $0x14] sm:$0xf]
      %v871 = vld [vmem:[%s629 + $0x18] sm:$0xff]
      %v872 = vld [vmem:[%s629 + $0x20] sm:$0xf]
      %v873 = vld [vmem:[%s629 + $0x24] sm:$0xff]
      %v874 = vld [vmem:[%s629 + $0x2c] sm:$0xf]
      %v875 = vld [vmem:[%s629 + $0x30] sm:$0xff]
      %v876 = vld [vmem:[%s629 + $0x38] sm:$0xf]
      %v877 = vld [vmem:[%s629 + $0x3c] sm:$0xff]
      %v878 = vld [vmem:[%s629 + $0x44] sm:$0xf]
      %v879 = vld [vmem:[%s629 + $0x48] sm:$0xff]
      %v880 = vld [vmem:[%s629 + $0x50] sm:$0xf]
      %v881 = vld [vmem:[%s629 + $0x54] sm:$0xff]
      %v882 = vld [vmem:[%s629 + $0x5c] sm:$0xf]
      %v883 = vld [vmem:[%s629 + $0x60] sm:$0xff]
      %v884 = vld [vmem:[%s629 + $0x68] sm:$0xf]
      %v885 = vld [vmem:[%s629 + $0x6c] sm:$0xff]
      %v886 = vld [vmem:[%s629 + $0x74] sm:$0xf]
      %v887 = vld [vmem:[%s629 + $0x78] sm:$0xff]
      %v888 = vld [vmem:[%s629 + $0x80] sm:$0xf]
      %v889 = vld [vmem:[%s629 + $0x84] sm:$0xff]
      %v890 = vld [vmem:[%s629 + $0x8c] sm:$0xf]
      %v891 = vld [vmem:[%s633] sm:$0x7]
      %v893 = vlaneseq
      %v894 = vshrl.u32 %v893, 7
      %v895 = vsub.s32 0, %v894
      %v896 = vrot.slane %v891, %v895
      %v897 = vlaneseq
      %v898 = vshrl.u32 %v897, 7
      %v899 = vsub.s32 1, %v898
      %v900 = vrot.slane %v891, %v899
      %v901 = vlaneseq
      %v902 = vshrl.u32 %v901, 7
      %v903 = vsub.s32 2, %v902
      %v904 = vrot.slane %v891, %v903
      %v932 = vunpack.c.l.b16 %v867
      %v933 = vunpack.c.h.b16 %v867
      %v934 = vunpack.c.l.b16 %v868
      %v935 = vunpack.c.l.b16 %v869
      %v936 = vunpack.c.h.b16 %v869
      %v937 = vunpack.c.l.b16 %v870
      %v938 = vunpack.c.l.b16 %v871
      %v939 = vunpack.c.h.b16 %v871
      %v940 = vunpack.c.l.b16 %v872
      %v941 = vunpack.c.l.b16 %v873
      %v942 = vunpack.c.h.b16 %v873
      %v943 = vunpack.c.l.b16 %v874
      %v944 = vunpack.c.l.b16 %v875
      %v945 = vunpack.c.h.b16 %v875
      %v946 = vunpack.c.l.b16 %v876
      %v947 = vunpack.c.l.b16 %v877
      %v948 = vunpack.c.h.b16 %v877
      %v949 = vunpack.c.l.b16 %v878
      %v950 = vunpack.c.l.b16 %v879
      %v951 = vunpack.c.h.b16 %v879
      %v952 = vunpack.c.l.b16 %v880
      %v953 = vunpack.c.l.b16 %v881
      %v954 = vunpack.c.h.b16 %v881
      %v955 = vunpack.c.l.b16 %v882
      %v956 = vunpack.c.l.b16 %v883
      %v957 = vunpack.c.h.b16 %v883
      %v958 = vunpack.c.l.b16 %v884
      %v959 = vunpack.c.l.b16 %v885
      %v960 = vunpack.c.h.b16 %v885
      %v961 = vunpack.c.l.b16 %v886
      %v962 = vunpack.c.l.b16 %v887
      %v963 = vunpack.c.h.b16 %v887
      %v964 = vunpack.c.l.b16 %v888
      %v965 = vunpack.c.l.b16 %v889
      %v966 = vunpack.c.h.b16 %v889
      %v967 = vunpack.c.l.b16 %v890
      %v968 = vpack.c.b16 %v935, %v932
      %v969 = vpack.c.b16 %v936, %v933
      %v970 = vpack.c.b16 %v937, %v934
      %v971 = vpack.c.b16 %v941, %v938
      %v972 = vpack.c.b16 %v942, %v939
      %v973 = vpack.c.b16 %v943, %v940
      %v974 = vpack.c.b16 %v947, %v944
      %v975 = vpack.c.b16 %v948, %v945
      %v976 = vpack.c.b16 %v949, %v946
      %v977 = vpack.c.b16 %v953, %v950
      %v978 = vpack.c.b16 %v954, %v951
      %v979 = vpack.c.b16 %v955, %v952
      %v980 = vpack.c.b16 %v959, %v956
      %v981 = vpack.c.b16 %v960, %v957
      %v982 = vpack.c.b16 %v961, %v958
      %v983 = vpack.c.b16 %v965, %v962
      %v984 = vpack.c.b16 %v966, %v963
      %v985 = vpack.c.b16 %v967, %v964
      %v1005 = vsel %vm791, %v865, 0
      %v1008 = vsel %vm791, %v866, 0
      %1010 = vmatprep.subr.bf16.mxu0 %v969
      %1011 = vmatpush1.bf16.msra.mxu0 %v968
      %1012 = vmatprep.subr.bf16.mxu0 %v972
      %1013 = vmatpush1.bf16.msra.mxu0 %v971
      %1014 = vmatprep.subr.bf16.mxu0 %v975
      %1015 = vmatpush1.bf16.msra.mxu0 %v974
      %1016 = vmatprep.subr.bf16.mxu0 %v978
      %1017 = vmatpush1.bf16.msra.mxu0 %v977
      %1018 = vmatprep.subr.bf16.mxu0 %v981
      %1019 = vmatpush1.bf16.msra.mxu0 %v980
      %1020 = vmatprep.subr.bf16.mxu0 %v984
      %1021 = vmatpush1.bf16.msra.mxu0 %v983
      %1022 = vmatprep.subr.bf16.mxu0 0
      %1023 = vmatpush1.bf16.msra.mxu0 0
      %1024 = vmatprep.subr.bf16.mxu0 0
      %1025 = vmatpush1.bf16.msra.mxu0 0
      %1026 = vmatprep.subr.bf16.mxu0 0
      %1027 = vmatpush1.bf16.msra.mxu0 0
      %1028 = vmatprep.subr.bf16.mxu0 0
      %1029 = vmatpush1.bf16.msra.mxu0 0
      %1030 = vmatprep.subr.bf16.mxu0 0
      %1031 = vmatpush1.bf16.msra.mxu0 0
      %1032 = vmatprep.subr.bf16.mxu0 0
      %1033 = vmatpush1.bf16.msra.mxu0 0
      %1034 = vmatprep.subr.bf16.mxu0 0
      %1035 = vmatpush1.bf16.msra.mxu0 0
      %1036 = vmatprep.subr.bf16.mxu0 0
      %1037 = vmatpush1.bf16.msra.mxu0 0
      %1038 = vmatprep.subr.bf16.mxu0 0
      %1039 = vmatpush1.bf16.msra.mxu0 0
      %1040 = vmatprep.subr.bf16.mxu0 0
      %1041 = vmatpush1.bf16.msra.mxu0 0
      %1042 = vmatprep.mubr.bf16.mxu0 0
      %1043 = vmatmul.mubr.bf16.gmra.mrb[0].mxu0 %v1005
      %v1044 = vpop.f32.mrb[0].mxu0
      %v1045 = vadd.f32 %v896, %v1044
      %v1046 = vpop.f32.mrb[0].mxu0
      %v1047 = vadd.f32 %v900, %v1046
      %v1048 = vpop.f32.mrb[0].mxu0
      %v1049 = vadd.f32 %v896, %v1048
      %v1050 = vpop.f32.mrb[0].mxu0
      %v1051 = vadd.f32 %v900, %v1050
      %1052 = vmatprep.mubr.bf16.mxu0 0
      %1053 = vmatmul.mubr.bf16.gmra.mrb[0].mxu0 %v1008
      %v1054 = vpop.f32.mrb[0].mxu0
      %v1055 = vadd.f32 %v896, %v1054
      %v1056 = vpop.f32.mrb[0].mxu0
      %v1057 = vadd.f32 %v900, %v1056
      %v1058 = vpop.f32.mrb[0].mxu0
      %v1059 = vadd.f32 %v896, %v1058
      %v1060 = vpop.f32.mrb[0].mxu0
      %v1061 = vadd.f32 %v900, %v1060
      %1062 = vdwg.mxu0
      %1063 = vmatprep.subr.bf16.mxu0 0
      %1064 = vmatpush1.bf16.msra.mxu0 %v970
      %1065 = vmatprep.subr.bf16.mxu0 0
      %1066 = vmatpush1.bf16.msra.mxu0 %v973
      %1067 = vmatprep.subr.bf16.mxu0 0
      %1068 = vmatpush1.bf16.msra.mxu0 %v976
      %1069 = vmatprep.subr.bf16.mxu0 0
      %1070 = vmatpush1.bf16.msra.mxu0 %v979
      %1071 = vmatprep.subr.bf16.mxu0 0
      %1072 = vmatpush1.bf16.msra.mxu0 %v982
      %1073 = vmatprep.subr.bf16.mxu0 0
      %1074 = vmatpush1.bf16.msra.mxu0 %v985
      %1075 = vmatprep.subr.bf16.mxu0 0
      %1076 = vmatpush1.bf16.msra.mxu0 0
      %1077 = vmatprep.subr.bf16.mxu0 0
      %1078 = vmatpush1.bf16.msra.mxu0 0
      %1079 = vmatprep.subr.bf16.mxu0 0
      %1080 = vmatpush1.bf16.msra.mxu0 0
      %1081 = vmatprep.subr.bf16.mxu0 0
      %1082 = vmatpush1.bf16.msra.mxu0 0
      %1083 = vmatprep.subr.bf16.mxu0 0
      %1084 = vmatpush1.bf16.msra.mxu0 0
      %1085 = vmatprep.subr.bf16.mxu0 0
      %1086 = vmatpush1.bf16.msra.mxu0 0
      %1087 = vmatprep.subr.bf16.mxu0 0
      %1088 = vmatpush1.bf16.msra.mxu0 0
      %1089 = vmatprep.subr.bf16.mxu0 0
      %1090 = vmatpush1.bf16.msra.mxu0 0
      %1091 = vmatprep.subr.bf16.mxu0 0
      %1092 = vmatpush1.bf16.msra.mxu0 0
      %1093 = vmatprep.subr.bf16.mxu0 0
      %1094 = vmatpush1.bf16.msra.mxu0 0
      %1095 = vmatprep.mubr.bf16.mxu0 0
      %1096 = vmatmul.mubr.bf16.gmra.mrb[0].mxu0 %v1005
      %v1097 = vpop.f32.mrb[0].mxu0
      %v1098 = vadd.f32 %v904, %v1097
      %v1099 = vpop.f32.mrb[0].mxu0
      %v1100 = vpop.f32.mrb[0].mxu0
      %v1101 = vadd.f32 %v904, %v1100
      %v1102 = vpop.f32.mrb[0].mxu0
      %1103 = vmatprep.mubr.bf16.mxu0 0
      %1104 = vmatmul.mubr.bf16.gmra.mrb[0].mxu0 %v1008
      %v1105 = vpop.f32.mrb[0].mxu0
      %v1106 = vadd.f32 %v904, %v1105
      %v1107 = vpop.f32.mrb[0].mxu0
      %v1108 = vpop.f32.mrb[0].mxu0
      %v1109 = vadd.f32 %v904, %v1108
      %v1110 = vpop.f32.mrb[0].mxu0
      %1111 = vdwg.mxu0
      %v1112 = vpack.c.bf16 %v1049, %v1045
      %v1113 = vpack.c.bf16 %v1059, %v1055
      %v1114 = vpack.c.bf16 %v1051, %v1047
      %v1115 = vpack.c.bf16 %v1061, %v1057
      %v1116 = vpack.c.bf16 %v1101, %v1098
      %v1117 = vpack.c.bf16 %v1109, %v1106
      %1120 = vrot.lane.b32.xlu0 %v1112, 32
      %v1121 = vpop.permute.xlu0 %1120
      %1122 = vrot.lane.b32.xlu0 %v1113, 32
      %v1123 = vpop.permute.xlu0 %1122
      %vm1124 = vcmask 64512
      %v1126 = vsel %vm1124, %v1112, 0
      %v1129 = vsel %vm1124, %v1113, 0
      %v1132 = vsel %vm1124, %v1121, 0
      %v1135 = vsel %vm1124, %v1123, 0
      %1137 = vmatprep.subr.bf16.mxu0 0
      %1138 = vmatpush1.bf16.xpose.msra.mxu0 %v1132
      %1139 = vmatprep.subr.bf16.mxu0 0
      %1140 = vmatpush1.bf16.xpose.msra.mxu0 %v1135
      %1141 = vmatprep.subr.bf16.mxu0 0
      %1142 = vmatpush1.bf16.xpose.msra.mxu0 0
      %1143 = vmatprep.subr.bf16.mxu0 0
      %1144 = vmatpush1.bf16.xpose.msra.mxu0 0
      %1145 = vmatprep.subr.bf16.mxu0 0
      %1146 = vmatpush1.bf16.xpose.msra.mxu0 0
      %1147 = vmatprep.subr.bf16.mxu0 0
      %1148 = vmatpush1.bf16.xpose.msra.mxu0 0
      %1149 = vmatprep.subr.bf16.mxu0 0
      %1150 = vmatpush1.bf16.xpose.msra.mxu0 0
      %1151 = vmatprep.subr.bf16.mxu0 0
      %1152 = vmatpush1.bf16.xpose.msra.mxu0 0
      %1153 = vmatprep.subr.bf16.mxu0 0
      %1154 = vmatpush1.bf16.xpose.msra.mxu0 0
      %1155 = vmatprep.subr.bf16.mxu0 0
      %1156 = vmatpush1.bf16.xpose.msra.mxu0 0
      %1157 = vmatprep.subr.bf16.mxu0 0
      %1158 = vmatpush1.bf16.xpose.msra.mxu0 0
      %1159 = vmatprep.subr.bf16.mxu0 0
      %1160 = vmatpush1.bf16.xpose.msra.mxu0 0
      %1161 = vmatprep.subr.bf16.mxu0 0
      %1162 = vmatpush1.bf16.xpose.msra.mxu0 0
      %1163 = vmatprep.subr.bf16.mxu0 0
      %1164 = vmatpush1.bf16.xpose.msra.mxu0 0
      %1165 = vmatprep.subr.bf16.mxu0 0
      %1166 = vmatpush1.bf16.xpose.msra.mxu0 0
      %1167 = vmatprep.subr.bf16.mxu0 0
      %1168 = vmatpush1.bf16.xpose.msra.mxu0 0
      %1169 = vmatprep.mubr.bf16.mxu0 0
      %1170 = vmatmul.mubr.bf16.gmra.mrb[0].mxu0 %v1126
      %v1171 = vpop.f32.mrb[0].mxu0
      %v1172 = vadd.f32 0.0, %v1171
      %v1173 = vpop.f32.mrb[0].mxu0
      %v1174 = vpop.f32.mrb[0].mxu0
      %v1175 = vadd.f32 0.0, %v1174
      %v1176 = vpop.f32.mrb[0].mxu0
      %1177 = vmatprep.mubr.bf16.mxu0 0
      %1178 = vmatmul.mubr.bf16.gmra.mrb[0].mxu0 %v1129
      %v1179 = vpop.f32.mrb[0].mxu0
      %v1180 = vadd.f32 0.0, %v1179
      %v1181 = vpop.f32.mrb[0].mxu0
      %v1182 = vpop.f32.mrb[0].mxu0
      %v1183 = vadd.f32 0.0, %v1182
      %v1184 = vpop.f32.mrb[0].mxu0
      %1185 = vdwg.mxu0
      %v1186 = vmul.f32 %v1172, 0.35355338
      %v1187 = vmul.f32 %v1175, 0.35355338
      %v1188 = vmul.f32 %v1180, 0.35355338
      %v1189 = vmul.f32 %v1183, 0.35355338
      %v1190 = vadd.f32 %v1186, %v785
      %v1191 = vadd.f32 %v1187, %v786
      %v1192 = vadd.f32 %v1188, %v787
      %v1193 = vadd.f32 %v1189, %v788
      %vm1194 = vcmask 261120
      %v1195 = vsel %vm1194, %v1190, -inf
      %1196 = vmax.xlane.f32.xlu0 %v1195
      %v1197 = vpop.xlane.xlu0 %1196
      %v1198 = vsel %vm1194, %v1191, -inf
      %1199 = vmax.xlane.f32.xlu0 %v1198
      %v1200 = vpop.xlane.xlu0 %1199
      %v1201 = vsel %vm1194, %v1192, -inf
      %1202 = vmax.xlane.f32.xlu0 %v1201
      %v1203 = vpop.xlane.xlu0 %1202
      %v1204 = vsel %vm1194, %v1193, -inf
      %1205 = vmax.xlane.f32.xlu0 %v1204
      %v1206 = vpop.xlane.xlu0 %1205
      %v1207 = vsub.f32 %v1190, %v1197
      %v1208 = vsub.f32 %v1191, %v1200
      %v1209 = vsub.f32 %v1192, %v1203
      %v1210 = vsub.f32 %v1193, %v1206
      %v1211 = vmul.f32 %v1207, 1.442695
      %v1212 = vpow.pop %v1211
      %v1213 = vmul.f32 %v1208, 1.442695
      %v1214 = vpow.pop %v1213
      %v1215 = vmul.f32 %v1209, 1.442695
      %v1216 = vpow.pop %v1215
      %v1217 = vmul.f32 %v1210, 1.442695
      %v1218 = vpow.pop %v1217
      %v1219 = vsel %vm1194, %v1212, 0.0
      %1220 = vadd.xlane.f32.xlu0 %v1219
      %v1221 = vpop.xlane.xlu0 %1220
      %v1222 = vsel %vm1194, %v1214, 0.0
      %1223 = vadd.xlane.f32.xlu0 %v1222
      %v1224 = vpop.xlane.xlu0 %1223
      %v1225 = vsel %vm1194, %v1216, 0.0
      %1226 = vadd.xlane.f32.xlu0 %v1225
      %v1227 = vpop.xlane.xlu0 %1226
      %v1228 = vsel %vm1194, %v1218, 0.0
      %1229 = vadd.xlane.f32.xlu0 %v1228
      %v1230 = vpop.xlane.xlu0 %1229
      %v1231 = vrcp.pop %v1221
      %v1232 = vrcp.pop %v1224
      %v1233 = vrcp.pop %v1227
      %v1234 = vrcp.pop %v1230
      %v1235 = vmul.f32 %v1212, %v1231
      %v1236 = vmul.f32 %v1214, %v1232
      %v1237 = vmul.f32 %v1216, %v1233
      %v1238 = vmul.f32 %v1218, %v1234
      %v1239 = vpack.c.bf16 %v1236, %v1235
      %v1240 = vpack.c.bf16 %v1238, %v1237
      %1243 = vrot.lane.b32.xlu0 %v1114, 64
      %v1244 = vpop.permute.xlu0 %1243
      %1245 = vrot.lane.b32.xlu0 %v1115, 64
      %v1246 = vpop.permute.xlu0 %1245
      %v1250 = vsel %vm1194, %v1239, 0
      %v1253 = vsel %vm1194, %v1240, 0
      %1255 = vmatprep.subr.bf16.mxu0 0
      %1256 = vmatpush1.bf16.msra.mxu0 %v1244
      %1257 = vmatprep.subr.bf16.mxu0 0
      %1258 = vmatpush1.bf16.msra.mxu0 %v1246
      %1259 = vmatprep.subr.bf16.mxu0 0
      %1260 = vmatpush1.bf16.msra.mxu0 0
      %1261 = vmatprep.subr.bf16.mxu0 0
      %1262 = vmatpush1.bf16.msra.mxu0 0
      %1263 = vmatprep.subr.bf16.mxu0 0
      %1264 = vmatpush1.bf16.msra.mxu0 0
      %1265 = vmatprep.subr.bf16.mxu0 0
      %1266 = vmatpush1.bf16.msra.mxu0 0
      %1267 = vmatprep.subr.bf16.mxu0 0
      %1268 = vmatpush1.bf16.msra.mxu0 0
      %1269 = vmatprep.subr.bf16.mxu0 0
      %1270 = vmatpush1.bf16.msra.mxu0 0
      %1271 = vmatprep.subr.bf16.mxu0 0
      %1272 = vmatpush1.bf16.msra.mxu0 0
      %1273 = vmatprep.subr.bf16.mxu0 0
      %1274 = vmatpush1.bf16.msra.mxu0 0
      %1275 = vmatprep.subr.bf16.mxu0 0
      %1276 = vmatpush1.bf16.msra.mxu0 0
      %1277 = vmatprep.subr.bf16.mxu0 0
      %1278 = vmatpush1.bf16.msra.mxu0 0
      %1279 = vmatprep.subr.bf16.mxu0 0
      %1280 = vmatpush1.bf16.msra.mxu0 0
      %1281 = vmatprep.subr.bf16.mxu0 0
      %1282 = vmatpush1.bf16.msra.mxu0 0
      %1283 = vmatprep.subr.bf16.mxu0 0
      %1284 = vmatpush1.bf16.msra.mxu0 0
      %1285 = vmatprep.subr.bf16.mxu0 0
      %1286 = vmatpush1.bf16.msra.mxu0 0
      %1287 = vmatprep.mubr.bf16.mxu0 0
      %1288 = vmatmul.mubr.bf16.gmra.mrb[0].mxu0 %v1250
      %v1289 = vpop.f32.mrb[0].mxu0
      %v1290 = vadd.f32 0.0, %v1289
      %v1291 = vpop.f32.mrb[0].mxu0
      %v1292 = vpop.f32.mrb[0].mxu0
      %v1293 = vadd.f32 0.0, %v1292
      %v1294 = vpop.f32.mrb[0].mxu0
      %1295 = vmatprep.mubr.bf16.mxu0 0
      %1296 = vmatmul.mubr.bf16.gmra.mrb[0].mxu0 %v1253
      %v1297 = vpop.f32.mrb[0].mxu0
      %v1298 = vadd.f32 0.0, %v1297
      %v1299 = vpop.f32.mrb[0].mxu0
      %v1300 = vpop.f32.mrb[0].mxu0
      %v1301 = vadd.f32 0.0, %v1300
      %v1302 = vpop.f32.mrb[0].mxu0
      %1303 = vdwg.mxu0
      %1304 = vrot.lane.b32.xlu0 %v1112, 120
      %v1305 = vpop.permute.xlu0 %1304
      %1306 = vrot.lane.b32.xlu0 %v1113, 120
      %v1307 = vpop.permute.xlu0 %1306
      %1308 = vrot.lane.b32.xlu0 %v1112, 24
      %v1309 = vpop.permute.xlu0 %1308
      %1310 = vrot.lane.b32.xlu0 %v1113, 24
      %v1311 = vpop.permute.xlu0 %1310
      %v1313 = vsel %vm1124, %v1305, 0
      %v1316 = vsel %vm1124, %v1307, 0
      %v1319 = vsel %vm1124, %v1309, 0
      %v1322 = vsel %vm1124, %v1311, 0
      %1324 = vmatprep.subr.bf16.mxu0 0
      %1325 = vmatpush1.bf16.xpose.msra.mxu0 %v1319
      %1326 = vmatprep.subr.bf16.mxu0 0
      %1327 = vmatpush1.bf16.xpose.msra.mxu0 %v1322
      %1328 = vmatprep.subr.bf16.mxu0 0
      %1329 = vmatpush1.bf16.xpose.msra.mxu0 0
      %1330 = vmatprep.subr.bf16.mxu0 0
      %1331 = vmatpush1.bf16.xpose.msra.mxu0 0
      %1332 = vmatprep.subr.bf16.mxu0 0
      %1333 = vmatpush1.bf16.xpose.msra.mxu0 0
      %1334 = vmatprep.subr.bf16.mxu0 0
      %1335 = vmatpush1.bf16.xpose.msra.mxu0 0
      %1336 = vmatprep.subr.bf16.mxu0 0
      %1337 = vmatpush1.bf16.xpose.msra.mxu0 0
      %1338 = vmatprep.subr.bf16.mxu0 0
      %1339 = vmatpush1.bf16.xpose.msra.mxu0 0
      %1340 = vmatprep.subr.bf16.mxu0 0
      %1341 = vmatpush1.bf16.xpose.msra.mxu0 0
      %1342 = vmatprep.subr.bf16.mxu0 0
      %1343 = vmatpush1.bf16.xpose.msra.mxu0 0
      %1344 = vmatprep.subr.bf16.mxu0 0
      %1345 = vmatpush1.bf16.xpose.msra.mxu0 0
      %1346 = vmatprep.subr.bf16.mxu0 0
      %1347 = vmatpush1.bf16.xpose.msra.mxu0 0
      %1348 = vmatprep.subr.bf16.mxu0 0
      %1349 = vmatpush1.bf16.xpose.msra.mxu0 0
      %1350 = vmatprep.subr.bf16.mxu0 0
      %1351 = vmatpush1.bf16.xpose.msra.mxu0 0
      %1352 = vmatprep.subr.bf16.mxu0 0
      %1353 = vmatpush1.bf16.xpose.msra.mxu0 0
      %1354 = vmatprep.subr.bf16.mxu0 0
      %1355 = vmatpush1.bf16.xpose.msra.mxu0 0
      %1356 = vmatprep.mubr.bf16.mxu0 0
      %1357 = vmatmul.mubr.bf16.gmra.mrb[0].mxu0 %v1313
      %v1358 = vpop.f32.mrb[0].mxu0
      %v1359 = vadd.f32 0.0, %v1358
      %v1360 = vpop.f32.mrb[0].mxu0
      %v1361 = vpop.f32.mrb[0].mxu0
      %v1362 = vadd.f32 0.0, %v1361
      %v1363 = vpop.f32.mrb[0].mxu0
      %1364 = vmatprep.mubr.bf16.mxu0 0
      %1365 = vmatmul.mubr.bf16.gmra.mrb[0].mxu0 %v1316
      %v1366 = vpop.f32.mrb[0].mxu0
      %v1367 = vadd.f32 0.0, %v1366
      %v1368 = vpop.f32.mrb[0].mxu0
      %v1369 = vpop.f32.mrb[0].mxu0
      %v1370 = vadd.f32 0.0, %v1369
      %v1371 = vpop.f32.mrb[0].mxu0
      %1372 = vdwg.mxu0
      %v1373 = vmul.f32 %v1359, 0.35355338
      %v1374 = vmul.f32 %v1362, 0.35355338
      %v1375 = vmul.f32 %v1367, 0.35355338
      %v1376 = vmul.f32 %v1370, 0.35355338
      %v1377 = vadd.f32 %v1373, %v785
      %v1378 = vadd.f32 %v1374, %v786
      %v1379 = vadd.f32 %v1375, %v787
      %v1380 = vadd.f32 %v1376, %v788
      %v1381 = vsel %vm1194, %v1377, -inf
      %1382 = vmax.xlane.f32.xlu0 %v1381
      %v1383 = vpop.xlane.xlu0 %1382
      %v1384 = vsel %vm1194, %v1378, -inf
      %1385 = vmax.xlane.f32.xlu0 %v1384
      %v1386 = vpop.xlane.xlu0 %1385
      %v1387 = vsel %vm1194, %v1379, -inf
      %1388 = vmax.xlane.f32.xlu0 %v1387
      %v1389 = vpop.xlane.xlu0 %1388
      %v1390 = vsel %vm1194, %v1380, -inf
      %1391 = vmax.xlane.f32.xlu0 %v1390
      %v1392 = vpop.xlane.xlu0 %1391
      %v1393 = vsub.f32 %v1377, %v1383
      %v1394 = vsub.f32 %v1378, %v1386
      %v1395 = vsub.f32 %v1379, %v1389
      %v1396 = vsub.f32 %v1380, %v1392
      %v1397 = vmul.f32 %v1393, 1.442695
      %v1398 = vpow.pop %v1397
      %v1399 = vmul.f32 %v1394, 1.442695
      %v1400 = vpow.pop %v1399
      %v1401 = vmul.f32 %v1395, 1.442695
      %v1402 = vpow.pop %v1401
      %v1403 = vmul.f32 %v1396, 1.442695
      %v1404 = vpow.pop %v1403
      %v1405 = vsel %vm1194, %v1398, 0.0
      %1406 = vadd.xlane.f32.xlu0 %v1405
      %v1407 = vpop.xlane.xlu0 %1406
      %v1408 = vsel %vm1194, %v1400, 0.0
      %1409 = vadd.xlane.f32.xlu0 %v1408
      %v1410 = vpop.xlane.xlu0 %1409
      %v1411 = vsel %vm1194, %v1402, 0.0
      %1412 = vadd.xlane.f32.xlu0 %v1411
      %v1413 = vpop.xlane.xlu0 %1412
      %v1414 = vsel %vm1194, %v1404, 0.0
      %1415 = vadd.xlane.f32.xlu0 %v1414
      %v1416 = vpop.xlane.xlu0 %1415
      %v1417 = vrcp.pop %v1407
      %v1418 = vrcp.pop %v1410
      %v1419 = vrcp.pop %v1413
      %v1420 = vrcp.pop %v1416
      %v1421 = vmul.f32 %v1398, %v1417
      %v1422 = vmul.f32 %v1400, %v1418
      %v1423 = vmul.f32 %v1402, %v1419
      %v1424 = vmul.f32 %v1404, %v1420
      %v1425 = vpack.c.bf16 %v1422, %v1421
      %v1426 = vpack.c.bf16 %v1424, %v1423
      %1427 = vrot.lane.b32.xlu0 %v1114, 56
      %v1428 = vpop.permute.xlu0 %1427
      %1429 = vrot.lane.b32.xlu0 %v1115, 56
      %v1430 = vpop.permute.xlu0 %1429
      %v1434 = vsel %vm1194, %v1425, 0
      %v1437 = vsel %vm1194, %v1426, 0
      %1439 = vmatprep.subr.bf16.mxu0 0
      %1440 = vmatpush1.bf16.msra.mxu0 %v1428
      %1441 = vmatprep.subr.bf16.mxu0 0
      %1442 = vmatpush1.bf16.msra.mxu0 %v1430
      %1443 = vmatprep.subr.bf16.mxu0 0
      %1444 = vmatpush1.bf16.msra.mxu0 0
      %1445 = vmatprep.subr.bf16.mxu0 0
      %1446 = vmatpush1.bf16.msra.mxu0 0
      %1447 = vmatprep.subr.bf16.mxu0 0
      %1448 = vmatpush1.bf16.msra.mxu0 0
      %1449 = vmatprep.subr.bf16.mxu0 0
      %1450 = vmatpush1.bf16.msra.mxu0 0
      %1451 = vmatprep.subr.bf16.mxu0 0
      %1452 = vmatpush1.bf16.msra.mxu0 0
      %1453 = vmatprep.subr.bf16.mxu0 0
      %1454 = vmatpush1.bf16.msra.mxu0 0
      %1455 = vmatprep.subr.bf16.mxu0 0
      %1456 = vmatpush1.bf16.msra.mxu0 0
      %1457 = vmatprep.subr.bf16.mxu0 0
      %1458 = vmatpush1.bf16.msra.mxu0 0
      %1459 = vmatprep.subr.bf16.mxu0 0
      %1460 = vmatpush1.bf16.msra.mxu0 0
      %1461 = vmatprep.subr.bf16.mxu0 0
      %1462 = vmatpush1.bf16.msra.mxu0 0
      %1463 = vmatprep.subr.bf16.mxu0 0
      %1464 = vmatpush1.bf16.msra.mxu0 0
      %1465 = vmatprep.subr.bf16.mxu0 0
      %1466 = vmatpush1.bf16.msra.mxu0 0
      %1467 = vmatprep.subr.bf16.mxu0 0
      %1468 = vmatpush1.bf16.msra.mxu0 0
      %1469 = vmatprep.subr.bf16.mxu0 0
      %1470 = vmatpush1.bf16.msra.mxu0 0
      %1471 = vmatprep.mubr.bf16.mxu0 0
      %1472 = vmatmul.mubr.bf16.gmra.mrb[0].mxu0 %v1434
      %v1473 = vpop.f32.mrb[0].mxu0
      %v1474 = vadd.f32 0.0, %v1473
      %v1475 = vpop.f32.mrb[0].mxu0
      %v1476 = vpop.f32.mrb[0].mxu0
      %v1477 = vadd.f32 0.0, %v1476
      %v1478 = vpop.f32.mrb[0].mxu0
      %1479 = vmatprep.mubr.bf16.mxu0 0
      %1480 = vmatmul.mubr.bf16.gmra.mrb[0].mxu0 %v1437
      %v1481 = vpop.f32.mrb[0].mxu0
      %v1482 = vadd.f32 0.0, %v1481
      %v1483 = vpop.f32.mrb[0].mxu0
      %v1484 = vpop.f32.mrb[0].mxu0
      %v1485 = vadd.f32 0.0, %v1484
      %v1486 = vpop.f32.mrb[0].mxu0
      %1487 = vdwg.mxu0
      %1488 = vrot.lane.b32.xlu0 %v1112, 112
      %v1489 = vpop.permute.xlu0 %1488
      %1490 = vrot.lane.b32.xlu0 %v1113, 112
      %v1491 = vpop.permute.xlu0 %1490
      %1492 = vrot.lane.b32.xlu0 %v1112, 16
      %v1493 = vpop.permute.xlu0 %1492
      %1494 = vrot.lane.b32.xlu0 %v1113, 16
      %v1495 = vpop.permute.xlu0 %1494
      %v1497 = vsel %vm1124, %v1489, 0
      %v1500 = vsel %vm1124, %v1491, 0
      %v1503 = vsel %vm1124, %v1493, 0
      %v1506 = vsel %vm1124, %v1495, 0
      %1508 = vmatprep.subr.bf16.mxu0 0
      %1509 = vmatpush1.bf16.xpose.msra.mxu0 %v1503
      %1510 = vmatprep.subr.bf16.mxu0 0
      %1511 = vmatpush1.bf16.xpose.msra.mxu0 %v1506
      %1512 = vmatprep.subr.bf16.mxu0 0
      %1513 = vmatpush1.bf16.xpose.msra.mxu0 0
      %1514 = vmatprep.subr.bf16.mxu0 0
      %1515 = vmatpush1.bf16.xpose.msra.mxu0 0
      %1516 = vmatprep.subr.bf16.mxu0 0
      %1517 = vmatpush1.bf16.xpose.msra.mxu0 0
      %1518 = vmatprep.subr.bf16.mxu0 0
      %1519 = vmatpush1.bf16.xpose.msra.mxu0 0
      %1520 = vmatprep.subr.bf16.mxu0 0
      %1521 = vmatpush1.bf16.xpose.msra.mxu0 0
      %1522 = vmatprep.subr.bf16.mxu0 0
      %1523 = vmatpush1.bf16.xpose.msra.mxu0 0
      %1524 = vmatprep.subr.bf16.mxu0 0
      %1525 = vmatpush1.bf16.xpose.msra.mxu0 0
      %1526 = vmatprep.subr.bf16.mxu0 0
      %1527 = vmatpush1.bf16.xpose.msra.mxu0 0
      %1528 = vmatprep.subr.bf16.mxu0 0
      %1529 = vmatpush1.bf16.xpose.msra.mxu0 0
      %1530 = vmatprep.subr.bf16.mxu0 0
      %1531 = vmatpush1.bf16.xpose.msra.mxu0 0
      %1532 = vmatprep.subr.bf16.mxu0 0
      %1533 = vmatpush1.bf16.xpose.msra.mxu0 0
      %1534 = vmatprep.subr.bf16.mxu0 0
      %1535 = vmatpush1.bf16.xpose.msra.mxu0 0
      %1536 = vmatprep.subr.bf16.mxu0 0
      %1537 = vmatpush1.bf16.xpose.msra.mxu0 0
      %1538 = vmatprep.subr.bf16.mxu0 0
      %1539 = vmatpush1.bf16.xpose.msra.mxu0 0
      %1540 = vmatprep.mubr.bf16.mxu0 0
      %1541 = vmatmul.mubr.bf16.gmra.mrb[0].mxu0 %v1497
      %v1542 = vpop.f32.mrb[0].mxu0
      %v1543 = vadd.f32 0.0, %v1542
      %v1544 = vpop.f32.mrb[0].mxu0
      %v1545 = vpop.f32.mrb[0].mxu0
      %v1546 = vadd.f32 0.0, %v1545
      %v1547 = vpop.f32.mrb[0].mxu0
      %1548 = vmatprep.mubr.bf16.mxu0 0
      %1549 = vmatmul.mubr.bf16.gmra.mrb[0].mxu0 %v1500
      %v1550 = vpop.f32.mrb[0].mxu0
      %v1551 = vadd.f32 0.0, %v1550
      %v1552 = vpop.f32.mrb[0].mxu0
      %v1553 = vpop.f32.mrb[0].mxu0
      %v1554 = vadd.f32 0.0, %v1553
      %v1555 = vpop.f32.mrb[0].mxu0
      %1556 = vdwg.mxu0
      %v1557 = vmul.f32 %v1543, 0.35355338
      %v1558 = vmul.f32 %v1546, 0.35355338
      %v1559 = vmul.f32 %v1551, 0.35355338
      %v1560 = vmul.f32 %v1554, 0.35355338
      %v1561 = vadd.f32 %v1557, %v785
      %v1562 = vadd.f32 %v1558, %v786
      %v1563 = vadd.f32 %v1559, %v787
      %v1564 = vadd.f32 %v1560, %v788
      %v1565 = vsel %vm1194, %v1561, -inf
      %1566 = vmax.xlane.f32.xlu0 %v1565
      %v1567 = vpop.xlane.xlu0 %1566
      %v1568 = vsel %vm1194, %v1562, -inf
      %1569 = vmax.xlane.f32.xlu0 %v1568
      %v1570 = vpop.xlane.xlu0 %1569
      %v1571 = vsel %vm1194, %v1563, -inf
      %1572 = vmax.xlane.f32.xlu0 %v1571
      %v1573 = vpop.xlane.xlu0 %1572
      %v1574 = vsel %vm1194, %v1564, -inf
      %1575 = vmax.xlane.f32.xlu0 %v1574
      %v1576 = vpop.xlane.xlu0 %1575
      %v1577 = vsub.f32 %v1561, %v1567
      %v1578 = vsub.f32 %v1562, %v1570
      %v1579 = vsub.f32 %v1563, %v1573
      %v1580 = vsub.f32 %v1564, %v1576
      %v1581 = vmul.f32 %v1577, 1.442695
      %v1582 = vpow.pop %v1581
      %v1583 = vmul.f32 %v1578, 1.442695
      %v1584 = vpow.pop %v1583
      %v1585 = vmul.f32 %v1579, 1.442695
      %v1586 = vpow.pop %v1585
      %v1587 = vmul.f32 %v1580, 1.442695
      %v1588 = vpow.pop %v1587
      %v1589 = vsel %vm1194, %v1582, 0.0
      %1590 = vadd.xlane.f32.xlu0 %v1589
      %v1591 = vpop.xlane.xlu0 %1590
      %v1592 = vsel %vm1194, %v1584, 0.0
      %1593 = vadd.xlane.f32.xlu0 %v1592
      %v1594 = vpop.xlane.xlu0 %1593
      %v1595 = vsel %vm1194, %v1586, 0.0
      %1596 = vadd.xlane.f32.xlu0 %v1595
      %v1597 = vpop.xlane.xlu0 %1596
      %v1598 = vsel %vm1194, %v1588, 0.0
      %1599 = vadd.xlane.f32.xlu0 %v1598
      %v1600 = vpop.xlane.xlu0 %1599
      %v1601 = vrcp.pop %v1591
      %v1602 = vrcp.pop %v1594
      %v1603 = vrcp.pop %v1597
      %v1604 = vrcp.pop %v1600
      %v1605 = vmul.f32 %v1582, %v1601
      %v1606 = vmul.f32 %v1584, %v1602
      %v1607 = vmul.f32 %v1586, %v1603
      %v1608 = vmul.f32 %v1588, %v1604
      %v1609 = vpack.c.bf16 %v1606, %v1605
      %v1610 = vpack.c.bf16 %v1608, %v1607
      %1611 = vrot.lane.b32.xlu0 %v1114, 48
      %v1612 = vpop.permute.xlu0 %1611
      %1613 = vrot.lane.b32.xlu0 %v1115, 48
      %v1614 = vpop.permute.xlu0 %1613
      %v1618 = vsel %vm1194, %v1609, 0
      %v1621 = vsel %vm1194, %v1610, 0
      %1623 = vmatprep.subr.bf16.mxu0 0
      %1624 = vmatpush1.bf16.msra.mxu0 %v1612
      %1625 = vmatprep.subr.bf16.mxu0 0
      %1626 = vmatpush1.bf16.msra.mxu0 %v1614
      %1627 = vmatprep.subr.bf16.mxu0 0
      %1628 = vmatpush1.bf16.msra.mxu0 0
      %1629 = vmatprep.subr.bf16.mxu0 0
      %1630 = vmatpush1.bf16.msra.mxu0 0
      %1631 = vmatprep.subr.bf16.mxu0 0
      %1632 = vmatpush1.bf16.msra.mxu0 0
      %1633 = vmatprep.subr.bf16.mxu0 0
      %1634 = vmatpush1.bf16.msra.mxu0 0
      %1635 = vmatprep.subr.bf16.mxu0 0
      %1636 = vmatpush1.bf16.msra.mxu0 0
      %1637 = vmatprep.subr.bf16.mxu0 0
      %1638 = vmatpush1.bf16.msra.mxu0 0
      %1639 = vmatprep.subr.bf16.mxu0 0
      %1640 = vmatpush1.bf16.msra.mxu0 0
      %1641 = vmatprep.subr.bf16.mxu0 0
      %1642 = vmatpush1.bf16.msra.mxu0 0
      %1643 = vmatprep.subr.bf16.mxu0 0
      %1644 = vmatpush1.bf16.msra.mxu0 0
      %1645 = vmatprep.subr.bf16.mxu0 0
      %1646 = vmatpush1.bf16.msra.mxu0 0
      %1647 = vmatprep.subr.bf16.mxu0 0
      %1648 = vmatpush1.bf16.msra.mxu0 0
      %1649 = vmatprep.subr.bf16.mxu0 0
      %1650 = vmatpush1.bf16.msra.mxu0 0
      %1651 = vmatprep.subr.bf16.mxu0 0
      %1652 = vmatpush1.bf16.msra.mxu0 0
      %1653 = vmatprep.subr.bf16.mxu0 0
      %1654 = vmatpush1.bf16.msra.mxu0 0
      %1655 = vmatprep.mubr.bf16.mxu0 0
      %1656 = vmatmul.mubr.bf16.gmra.mrb[0].mxu0 %v1618
      %v1657 = vpop.f32.mrb[0].mxu0
      %v1658 = vadd.f32 0.0, %v1657
      %v1659 = vpop.f32.mrb[0].mxu0
      %v1660 = vpop.f32.mrb[0].mxu0
      %v1661 = vadd.f32 0.0, %v1660
      %v1662 = vpop.f32.mrb[0].mxu0
      %1663 = vmatprep.mubr.bf16.mxu0 0
      %1664 = vmatmul.mubr.bf16.gmra.mrb[0].mxu0 %v1621
      %v1665 = vpop.f32.mrb[0].mxu0
      %v1666 = vadd.f32 0.0, %v1665
      %v1667 = vpop.f32.mrb[0].mxu0
      %v1668 = vpop.f32.mrb[0].mxu0
      %v1669 = vadd.f32 0.0, %v1668
      %v1670 = vpop.f32.mrb[0].mxu0
      %1671 = vdwg.mxu0
      %1672 = vrot.lane.b32.xlu0 %v1112, 104
      %v1673 = vpop.permute.xlu0 %1672
      %1674 = vrot.lane.b32.xlu0 %v1113, 104
      %v1675 = vpop.permute.xlu0 %1674
      %1676 = vrot.lane.b32.xlu0 %v1112, 8
      %v1677 = vpop.permute.xlu0 %1676
      %1678 = vrot.lane.b32.xlu0 %v1113, 8
      %v1679 = vpop.permute.xlu0 %1678
      %v1681 = vsel %vm1124, %v1673, 0
      %v1684 = vsel %vm1124, %v1675, 0
      %v1687 = vsel %vm1124, %v1677, 0
      %v1690 = vsel %vm1124, %v1679, 0
      %1692 = vmatprep.subr.bf16.mxu0 0
      %1693 = vmatpush1.bf16.xpose.msra.mxu0 %v1687
      %1694 = vmatprep.subr.bf16.mxu0 0
      %1695 = vmatpush1.bf16.xpose.msra.mxu0 %v1690
      %1696 = vmatprep.subr.bf16.mxu0 0
      %1697 = vmatpush1.bf16.xpose.msra.mxu0 0
      %1698 = vmatprep.subr.bf16.mxu0 0
      %1699 = vmatpush1.bf16.xpose.msra.mxu0 0
      %1700 = vmatprep.subr.bf16.mxu0 0
      %1701 = vmatpush1.bf16.xpose.msra.mxu0 0
      %1702 = vmatprep.subr.bf16.mxu0 0
      %1703 = vmatpush1.bf16.xpose.msra.mxu0 0
      %1704 = vmatprep.subr.bf16.mxu0 0
      %1705 = vmatpush1.bf16.xpose.msra.mxu0 0
      %1706 = vmatprep.subr.bf16.mxu0 0
      %1707 = vmatpush1.bf16.xpose.msra.mxu0 0
      %1708 = vmatprep.subr.bf16.mxu0 0
      %1709 = vmatpush1.bf16.xpose.msra.mxu0 0
      %1710 = vmatprep.subr.bf16.mxu0 0
      %1711 = vmatpush1.bf16.xpose.msra.mxu0 0
      %1712 = vmatprep.subr.bf16.mxu0 0
      %1713 = vmatpush1.bf16.xpose.msra.mxu0 0
      %1714 = vmatprep.subr.bf16.mxu0 0
      %1715 = vmatpush1.bf16.xpose.msra.mxu0 0
      %1716 = vmatprep.subr.bf16.mxu0 0
      %1717 = vmatpush1.bf16.xpose.msra.mxu0 0
      %1718 = vmatprep.subr.bf16.mxu0 0
      %1719 = vmatpush1.bf16.xpose.msra.mxu0 0
      %1720 = vmatprep.subr.bf16.mxu0 0
      %1721 = vmatpush1.bf16.xpose.msra.mxu0 0
      %1722 = vmatprep.subr.bf16.mxu0 0
      %1723 = vmatpush1.bf16.xpose.msra.mxu0 0
      %1724 = vmatprep.mubr.bf16.mxu0 0
      %1725 = vmatmul.mubr.bf16.gmra.mrb[0].mxu0 %v1681
      %v1726 = vpop.f32.mrb[0].mxu0
      %v1727 = vadd.f32 0.0, %v1726
      %v1728 = vpop.f32.mrb[0].mxu0
      %v1729 = vpop.f32.mrb[0].mxu0
      %v1730 = vadd.f32 0.0, %v1729
      %v1731 = vpop.f32.mrb[0].mxu0
      %1732 = vmatprep.mubr.bf16.mxu0 0
      %1733 = vmatmul.mubr.bf16.gmra.mrb[0].mxu0 %v1684
      %v1734 = vpop.f32.mrb[0].mxu0
      %v1735 = vadd.f32 0.0, %v1734
      %v1736 = vpop.f32.mrb[0].mxu0
      %v1737 = vpop.f32.mrb[0].mxu0
      %v1738 = vadd.f32 0.0, %v1737
      %v1739 = vpop.f32.mrb[0].mxu0
      %1740 = vdwg.mxu0
      %v1741 = vmul.f32 %v1727, 0.35355338
      %v1742 = vmul.f32 %v1730, 0.35355338
      %v1743 = vmul.f32 %v1735, 0.35355338
      %v1744 = vmul.f32 %v1738, 0.35355338
      %v1745 = vadd.f32 %v1741, %v785
      %v1746 = vadd.f32 %v1742, %v786
      %v1747 = vadd.f32 %v1743, %v787
      %v1748 = vadd.f32 %v1744, %v788
      %v1749 = vsel %vm1194, %v1745, -inf
      %1750 = vmax.xlane.f32.xlu0 %v1749
      %v1751 = vpop.xlane.xlu0 %1750
      %v1752 = vsel %vm1194, %v1746, -inf
      %1753 = vmax.xlane.f32.xlu0 %v1752
      %v1754 = vpop.xlane.xlu0 %1753
      %v1755 = vsel %vm1194, %v1747, -inf
      %1756 = vmax.xlane.f32.xlu0 %v1755
      %v1757 = vpop.xlane.xlu0 %1756
      %v1758 = vsel %vm1194, %v1748, -inf
      %1759 = vmax.xlane.f32.xlu0 %v1758
      %v1760 = vpop.xlane.xlu0 %1759
      %v1761 = vsub.f32 %v1745, %v1751
      %v1762 = vsub.f32 %v1746, %v1754
      %v1763 = vsub.f32 %v1747, %v1757
      %v1764 = vsub.f32 %v1748, %v1760
      %v1765 = vmul.f32 %v1761, 1.442695
      %v1766 = vpow.pop %v1765
      %v1767 = vmul.f32 %v1762, 1.442695
      %v1768 = vpow.pop %v1767
      %v1769 = vmul.f32 %v1763, 1.442695
      %v1770 = vpow.pop %v1769
      %v1771 = vmul.f32 %v1764, 1.442695
      %v1772 = vpow.pop %v1771
      %v1773 = vsel %vm1194, %v1766, 0.0
      %1774 = vadd.xlane.f32.xlu0 %v1773
      %v1775 = vpop.xlane.xlu0 %1774
      %v1776 = vsel %vm1194, %v1768, 0.0
      %1777 = vadd.xlane.f32.xlu0 %v1776
      %v1778 = vpop.xlane.xlu0 %1777
      %v1779 = vsel %vm1194, %v1770, 0.0
      %1780 = vadd.xlane.f32.xlu0 %v1779
      %v1781 = vpop.xlane.xlu0 %1780
      %v1782 = vsel %vm1194, %v1772, 0.0
      %1783 = vadd.xlane.f32.xlu0 %v1782
      %v1784 = vpop.xlane.xlu0 %1783
      %v1785 = vrcp.pop %v1775
      %v1786 = vrcp.pop %v1778
      %v1787 = vrcp.pop %v1781
      %v1788 = vrcp.pop %v1784
      %v1789 = vmul.f32 %v1766, %v1785
      %v1790 = vmul.f32 %v1768, %v1786
      %v1791 = vmul.f32 %v1770, %v1787
      %v1792 = vmul.f32 %v1772, %v1788
      %v1793 = vpack.c.bf16 %v1790, %v1789
      %v1794 = vpack.c.bf16 %v1792, %v1791
      %1795 = vrot.lane.b32.xlu0 %v1114, 40
      %v1796 = vpop.permute.xlu0 %1795
      %1797 = vrot.lane.b32.xlu0 %v1115, 40
      %v1798 = vpop.permute.xlu0 %1797
      %v1802 = vsel %vm1194, %v1793, 0
      %v1805 = vsel %vm1194, %v1794, 0
      %1807 = vmatprep.subr.bf16.mxu0 0
      %1808 = vmatpush1.bf16.msra.mxu0 %v1796
      %1809 = vmatprep.subr.bf16.mxu0 0
      %1810 = vmatpush1.bf16.msra.mxu0 %v1798
      %1811 = vmatprep.subr.bf16.mxu0 0
      %1812 = vmatpush1.bf16.msra.mxu0 0
      %1813 = vmatprep.subr.bf16.mxu0 0
      %1814 = vmatpush1.bf16.msra.mxu0 0
      %1815 = vmatprep.subr.bf16.mxu0 0
      %1816 = vmatpush1.bf16.msra.mxu0 0
      %1817 = vmatprep.subr.bf16.mxu0 0
      %1818 = vmatpush1.bf16.msra.mxu0 0
      %1819 = vmatprep.subr.bf16.mxu0 0
      %1820 = vmatpush1.bf16.msra.mxu0 0
      %1821 = vmatprep.subr.bf16.mxu0 0
      %1822 = vmatpush1.bf16.msra.mxu0 0
      %1823 = vmatprep.subr.bf16.mxu0 0
      %1824 = vmatpush1.bf16.msra.mxu0 0
      %1825 = vmatprep.subr.bf16.mxu0 0
      %1826 = vmatpush1.bf16.msra.mxu0 0
      %1827 = vmatprep.subr.bf16.mxu0 0
      %1828 = vmatpush1.bf16.msra.mxu0 0
      %1829 = vmatprep.subr.bf16.mxu0 0
      %1830 = vmatpush1.bf16.msra.mxu0 0
      %1831 = vmatprep.subr.bf16.mxu0 0
      %1832 = vmatpush1.bf16.msra.mxu0 0
      %1833 = vmatprep.subr.bf16.mxu0 0
      %1834 = vmatpush1.bf16.msra.mxu0 0
      %1835 = vmatprep.subr.bf16.mxu0 0
      %1836 = vmatpush1.bf16.msra.mxu0 0
      %1837 = vmatprep.subr.bf16.mxu0 0
      %1838 = vmatpush1.bf16.msra.mxu0 0
      %1839 = vmatprep.mubr.bf16.mxu0 0
      %1840 = vmatmul.mubr.bf16.gmra.mrb[0].mxu0 %v1802
      %v1841 = vpop.f32.mrb[0].mxu0
      %v1842 = vadd.f32 0.0, %v1841
      %v1843 = vpop.f32.mrb[0].mxu0
      %v1844 = vpop.f32.mrb[0].mxu0
      %v1845 = vadd.f32 0.0, %v1844
      %v1846 = vpop.f32.mrb[0].mxu0
      %1847 = vmatprep.mubr.bf16.mxu0 0
      %1848 = vmatmul.mubr.bf16.gmra.mrb[0].mxu0 %v1805
      %v1849 = vpop.f32.mrb[0].mxu0
      %v1850 = vadd.f32 0.0, %v1849
      %v1851 = vpop.f32.mrb[0].mxu0
      %v1852 = vpop.f32.mrb[0].mxu0
      %v1853 = vadd.f32 0.0, %v1852
      %v1854 = vpop.f32.mrb[0].mxu0
      %1855 = vdwg.mxu0
      %1856 = vrot.lane.b32.xlu0 %v1112, 96
      %v1857 = vpop.permute.xlu0 %1856
      %1858 = vrot.lane.b32.xlu0 %v1113, 96
      %v1859 = vpop.permute.xlu0 %1858
      %v1861 = vsel %vm1124, %v1857, 0
      %v1864 = vsel %vm1124, %v1859, 0
      %v1867 = vsel %vm1124, %v1114, 0
      %v1870 = vsel %vm1124, %v1115, 0
      %1872 = vmatprep.subr.bf16.mxu0 0
      %1873 = vmatpush1.bf16.xpose.msra.mxu0 %v1867
      %1874 = vmatprep.subr.bf16.mxu0 0
      %1875 = vmatpush1.bf16.xpose.msra.mxu0 %v1870
      %1876 = vmatprep.subr.bf16.mxu0 0
      %1877 = vmatpush1.bf16.xpose.msra.mxu0 0
      %1878 = vmatprep.subr.bf16.mxu0 0
      %1879 = vmatpush1.bf16.xpose.msra.mxu0 0
      %1880 = vmatprep.subr.bf16.mxu0 0
      %1881 = vmatpush1.bf16.xpose.msra.mxu0 0
      %1882 = vmatprep.subr.bf16.mxu0 0
      %1883 = vmatpush1.bf16.xpose.msra.mxu0 0
      %1884 = vmatprep.subr.bf16.mxu0 0
      %1885 = vmatpush1.bf16.xpose.msra.mxu0 0
      %1886 = vmatprep.subr.bf16.mxu0 0
      %1887 = vmatpush1.bf16.xpose.msra.mxu0 0
      %1888 = vmatprep.subr.bf16.mxu0 0
      %1889 = vmatpush1.bf16.xpose.msra.mxu0 0
      %1890 = vmatprep.subr.bf16.mxu0 0
      %1891 = vmatpush1.bf16.xpose.msra.mxu0 0
      %1892 = vmatprep.subr.bf16.mxu0 0
      %1893 = vmatpush1.bf16.xpose.msra.mxu0 0
      %1894 = vmatprep.subr.bf16.mxu0 0
      %1895 = vmatpush1.bf16.xpose.msra.mxu0 0
      %1896 = vmatprep.subr.bf16.mxu0 0
      %1897 = vmatpush1.bf16.xpose.msra.mxu0 0
      %1898 = vmatprep.subr.bf16.mxu0 0
      %1899 = vmatpush1.bf16.xpose.msra.mxu0 0
      %1900 = vmatprep.subr.bf16.mxu0 0
      %1901 = vmatpush1.bf16.xpose.msra.mxu0 0
      %1902 = vmatprep.subr.bf16.mxu0 0
      %1903 = vmatpush1.bf16.xpose.msra.mxu0 0
      %1904 = vmatprep.mubr.bf16.mxu0 0
      %1905 = vmatmul.mubr.bf16.gmra.mrb[0].mxu0 %v1861
      %v1906 = vpop.f32.mrb[0].mxu0
      %v1907 = vadd.f32 0.0, %v1906
      %v1908 = vpop.f32.mrb[0].mxu0
      %v1909 = vpop.f32.mrb[0].mxu0
      %v1910 = vadd.f32 0.0, %v1909
      %v1911 = vpop.f32.mrb[0].mxu0
      %1912 = vmatprep.mubr.bf16.mxu0 0
      %1913 = vmatmul.mubr.bf16.gmra.mrb[0].mxu0 %v1864
      %v1914 = vpop.f32.mrb[0].mxu0
      %v1915 = vadd.f32 0.0, %v1914
      %v1916 = vpop.f32.mrb[0].mxu0
      %v1917 = vpop.f32.mrb[0].mxu0
      %v1918 = vadd.f32 0.0, %v1917
      %v1919 = vpop.f32.mrb[0].mxu0
      %1920 = vdwg.mxu0
      %v1921 = vmul.f32 %v1907, 0.35355338
      %v1922 = vmul.f32 %v1910, 0.35355338
      %v1923 = vmul.f32 %v1915, 0.35355338
      %v1924 = vmul.f32 %v1918, 0.35355338
      %v1925 = vadd.f32 %v1921, %v785
      %v1926 = vadd.f32 %v1922, %v786
      %v1927 = vadd.f32 %v1923, %v787
      %v1928 = vadd.f32 %v1924, %v788
      %v1929 = vsel %vm1194, %v1925, -inf
      %1930 = vmax.xlane.f32.xlu0 %v1929
      %v1931 = vpop.xlane.xlu0 %1930
      %v1932 = vsel %vm1194, %v1926, -inf
      %1933 = vmax.xlane.f32.xlu0 %v1932
      %v1934 = vpop.xlane.xlu0 %1933
      %v1935 = vsel %vm1194, %v1927, -inf
      %1936 = vmax.xlane.f32.xlu0 %v1935
      %v1937 = vpop.xlane.xlu0 %1936
      %v1938 = vsel %vm1194, %v1928, -inf
      %1939 = vmax.xlane.f32.xlu0 %v1938
      %v1940 = vpop.xlane.xlu0 %1939
      %v1941 = vsub.f32 %v1925, %v1931
      %v1942 = vsub.f32 %v1926, %v1934
      %v1943 = vsub.f32 %v1927, %v1937
      %v1944 = vsub.f32 %v1928, %v1940
      %v1945 = vmul.f32 %v1941, 1.442695
      %v1946 = vpow.pop %v1945
      %v1947 = vmul.f32 %v1942, 1.442695
      %v1948 = vpow.pop %v1947
      %v1949 = vmul.f32 %v1943, 1.442695
      %v1950 = vpow.pop %v1949
      %v1951 = vmul.f32 %v1944, 1.442695
      %v1952 = vpow.pop %v1951
      %v1953 = vsel %vm1194, %v1946, 0.0
      %1954 = vadd.xlane.f32.xlu0 %v1953
      %v1955 = vpop.xlane.xlu0 %1954
      %v1956 = vsel %vm1194, %v1948, 0.0
      %1957 = vadd.xlane.f32.xlu0 %v1956
      %v1958 = vpop.xlane.xlu0 %1957
      %v1959 = vsel %vm1194, %v1950, 0.0
      %1960 = vadd.xlane.f32.xlu0 %v1959
      %v1961 = vpop.xlane.xlu0 %1960
      %v1962 = vsel %vm1194, %v1952, 0.0
      %1963 = vadd.xlane.f32.xlu0 %v1962
      %v1964 = vpop.xlane.xlu0 %1963
      %v1965 = vrcp.pop %v1955
      %v1966 = vrcp.pop %v1958
      %v1967 = vrcp.pop %v1961
      %v1968 = vrcp.pop %v1964
      %v1969 = vmul.f32 %v1946, %v1965
      %v1970 = vmul.f32 %v1948, %v1966
      %v1971 = vmul.f32 %v1950, %v1967
      %v1972 = vmul.f32 %v1952, %v1968
      %v1973 = vpack.c.bf16 %v1970, %v1969
      %v1974 = vpack.c.bf16 %v1972, %v1971
      %1975 = vrot.lane.b32.xlu0 %v1114, 32
      %v1976 = vpop.permute.xlu0 %1975
      %1977 = vrot.lane.b32.xlu0 %v1115, 32
      %v1978 = vpop.permute.xlu0 %1977
      %v1982 = vsel %vm1194, %v1973, 0
      %v1985 = vsel %vm1194, %v1974, 0
      %1987 = vmatprep.subr.bf16.mxu0 0
      %1988 = vmatpush1.bf16.msra.mxu0 %v1976
      %1989 = vmatprep.subr.bf16.mxu0 0
      %1990 = vmatpush1.bf16.msra.mxu0 %v1978
      %1991 = vmatprep.subr.bf16.mxu0 0
      %1992 = vmatpush1.bf16.msra.mxu0 0
      %1993 = vmatprep.subr.bf16.mxu0 0
      %1994 = vmatpush1.bf16.msra.mxu0 0
      %1995 = vmatprep.subr.bf16.mxu0 0
      %1996 = vmatpush1.bf16.msra.mxu0 0
      %1997 = vmatprep.subr.bf16.mxu0 0
      %1998 = vmatpush1.bf16.msra.mxu0 0
      %1999 = vmatprep.subr.bf16.mxu0 0
      %2000 = vmatpush1.bf16.msra.mxu0 0
      %2001 = vmatprep.subr.bf16.mxu0 0
      %2002 = vmatpush1.bf16.msra.mxu0 0
      %2003 = vmatprep.subr.bf16.mxu0 0
      %2004 = vmatpush1.bf16.msra.mxu0 0
      %2005 = vmatprep.subr.bf16.mxu0 0
      %2006 = vmatpush1.bf16.msra.mxu0 0
      %2007 = vmatprep.subr.bf16.mxu0 0
      %2008 = vmatpush1.bf16.msra.mxu0 0
      %2009 = vmatprep.subr.bf16.mxu0 0
      %2010 = vmatpush1.bf16.msra.mxu0 0
      %2011 = vmatprep.subr.bf16.mxu0 0
      %2012 = vmatpush1.bf16.msra.mxu0 0
      %2013 = vmatprep.subr.bf16.mxu0 0
      %2014 = vmatpush1.bf16.msra.mxu0 0
      %2015 = vmatprep.subr.bf16.mxu0 0
      %2016 = vmatpush1.bf16.msra.mxu0 0
      %2017 = vmatprep.subr.bf16.mxu0 0
      %2018 = vmatpush1.bf16.msra.mxu0 0
      %2019 = vmatprep.mubr.bf16.mxu0 0
      %2020 = vmatmul.mubr.bf16.gmra.mrb[0].mxu0 %v1982
      %v2021 = vpop.f32.mrb[0].mxu0
      %v2022 = vadd.f32 0.0, %v2021
      %v2023 = vpop.f32.mrb[0].mxu0
      %v2024 = vpop.f32.mrb[0].mxu0
      %v2025 = vadd.f32 0.0, %v2024
      %v2026 = vpop.f32.mrb[0].mxu0
      %2027 = vmatprep.mubr.bf16.mxu0 0
      %2028 = vmatmul.mubr.bf16.gmra.mrb[0].mxu0 %v1985
      %v2029 = vpop.f32.mrb[0].mxu0
      %v2030 = vadd.f32 0.0, %v2029
      %v2031 = vpop.f32.mrb[0].mxu0
      %v2032 = vpop.f32.mrb[0].mxu0
      %v2033 = vadd.f32 0.0, %v2032
      %v2034 = vpop.f32.mrb[0].mxu0
      %2035 = vdwg.mxu0
      %2036 = vrot.lane.b32.xlu0 %v1112, 88
      %v2037 = vpop.permute.xlu0 %2036
      %2038 = vrot.lane.b32.xlu0 %v1113, 88
      %v2039 = vpop.permute.xlu0 %2038
      %2040 = vrot.lane.b32.xlu0 %v1114, 120
      %v2041 = vpop.permute.xlu0 %2040
      %2042 = vrot.lane.b32.xlu0 %v1115, 120
      %v2043 = vpop.permute.xlu0 %2042
      %v2045 = vsel %vm1124, %v2037, 0
      %v2048 = vsel %vm1124, %v2039, 0
      %v2051 = vsel %vm1124, %v2041, 0
      %v2054 = vsel %vm1124, %v2043, 0
      %2056 = vmatprep.subr.bf16.mxu0 0
      %2057 = vmatpush1.bf16.xpose.msra.mxu0 %v2051
      %2058 = vmatprep.subr.bf16.mxu0 0
      %2059 = vmatpush1.bf16.xpose.msra.mxu0 %v2054
      %2060 = vmatprep.subr.bf16.mxu0 0
      %2061 = vmatpush1.bf16.xpose.msra.mxu0 0
      %2062 = vmatprep.subr.bf16.mxu0 0
      %2063 = vmatpush1.bf16.xpose.msra.mxu0 0
      %2064 = vmatprep.subr.bf16.mxu0 0
      %2065 = vmatpush1.bf16.xpose.msra.mxu0 0
      %2066 = vmatprep.subr.bf16.mxu0 0
      %2067 = vmatpush1.bf16.xpose.msra.mxu0 0
      %2068 = vmatprep.subr.bf16.mxu0 0
      %2069 = vmatpush1.bf16.xpose.msra.mxu0 0
      %2070 = vmatprep.subr.bf16.mxu0 0
      %2071 = vmatpush1.bf16.xpose.msra.mxu0 0
      %2072 = vmatprep.subr.bf16.mxu0 0
      %2073 = vmatpush1.bf16.xpose.msra.mxu0 0
      %2074 = vmatprep.subr.bf16.mxu0 0
      %2075 = vmatpush1.bf16.xpose.msra.mxu0 0
      %2076 = vmatprep.subr.bf16.mxu0 0
      %2077 = vmatpush1.bf16.xpose.msra.mxu0 0
      %2078 = vmatprep.subr.bf16.mxu0 0
      %2079 = vmatpush1.bf16.xpose.msra.mxu0 0
      %2080 = vmatprep.subr.bf16.mxu0 0
      %2081 = vmatpush1.bf16.xpose.msra.mxu0 0
      %2082 = vmatprep.subr.bf16.mxu0 0
      %2083 = vmatpush1.bf16.xpose.msra.mxu0 0
      %2084 = vmatprep.subr.bf16.mxu0 0
      %2085 = vmatpush1.bf16.xpose.msra.mxu0 0
      %2086 = vmatprep.subr.bf16.mxu0 0
      %2087 = vmatpush1.bf16.xpose.msra.mxu0 0
      %2088 = vmatprep.mubr.bf16.mxu0 0
      %2089 = vmatmul.mubr.bf16.gmra.mrb[0].mxu0 %v2045
      %v2090 = vpop.f32.mrb[0].mxu0
      %v2091 = vadd.f32 0.0, %v2090
      %v2092 = vpop.f32.mrb[0].mxu0
      %v2093 = vpop.f32.mrb[0].mxu0
      %v2094 = vadd.f32 0.0, %v2093
      %v2095 = vpop.f32.mrb[0].mxu0
      %2096 = vmatprep.mubr.bf16.mxu0 0
      %2097 = vmatmul.mubr.bf16.gmra.mrb[0].mxu0 %v2048
      %v2098 = vpop.f32.mrb[0].mxu0
      %v2099 = vadd.f32 0.0, %v2098
      %v2100 = vpop.f32.mrb[0].mxu0
      %v2101 = vpop.f32.mrb[0].mxu0
      %v2102 = vadd.f32 0.0, %v2101
      %v2103 = vpop.f32.mrb[0].mxu0
      %2104 = vdwg.mxu0
      %v2105 = vmul.f32 %v2091, 0.35355338
      %v2106 = vmul.f32 %v2094, 0.35355338
      %v2107 = vmul.f32 %v2099, 0.35355338
      %v2108 = vmul.f32 %v2102, 0.35355338
      %v2109 = vadd.f32 %v2105, %v785
      %v2110 = vadd.f32 %v2106, %v786
      %v2111 = vadd.f32 %v2107, %v787
      %v2112 = vadd.f32 %v2108, %v788
      %v2113 = vsel %vm1194, %v2109, -inf
      %2114 = vmax.xlane.f32.xlu0 %v2113
      %v2115 = vpop.xlane.xlu0 %2114
      %v2116 = vsel %vm1194, %v2110, -inf
      %2117 = vmax.xlane.f32.xlu0 %v2116
      %v2118 = vpop.xlane.xlu0 %2117
      %v2119 = vsel %vm1194, %v2111, -inf
      %2120 = vmax.xlane.f32.xlu0 %v2119
      %v2121 = vpop.xlane.xlu0 %2120
      %v2122 = vsel %vm1194, %v2112, -inf
      %2123 = vmax.xlane.f32.xlu0 %v2122
      %v2124 = vpop.xlane.xlu0 %2123
      %v2125 = vsub.f32 %v2109, %v2115
      %v2126 = vsub.f32 %v2110, %v2118
      %v2127 = vsub.f32 %v2111, %v2121
      %v2128 = vsub.f32 %v2112, %v2124
      %v2129 = vmul.f32 %v2125, 1.442695
      %v2130 = vpow.pop %v2129
      %v2131 = vmul.f32 %v2126, 1.442695
      %v2132 = vpow.pop %v2131
      %v2133 = vmul.f32 %v2127, 1.442695
      %v2134 = vpow.pop %v2133
      %v2135 = vmul.f32 %v2128, 1.442695
      %v2136 = vpow.pop %v2135
      %v2137 = vsel %vm1194, %v2130, 0.0
      %2138 = vadd.xlane.f32.xlu0 %v2137
      %v2139 = vpop.xlane.xlu0 %2138
      %v2140 = vsel %vm1194, %v2132, 0.0
      %2141 = vadd.xlane.f32.xlu0 %v2140
      %v2142 = vpop.xlane.xlu0 %2141
      %v2143 = vsel %vm1194, %v2134, 0.0
      %2144 = vadd.xlane.f32.xlu0 %v2143
      %v2145 = vpop.xlane.xlu0 %2144
      %v2146 = vsel %vm1194, %v2136, 0.0
      %2147 = vadd.xlane.f32.xlu0 %v2146
      %v2148 = vpop.xlane.xlu0 %2147
      %v2149 = vrcp.pop %v2139
      %v2150 = vrcp.pop %v2142
      %v2151 = vrcp.pop %v2145
      %v2152 = vrcp.pop %v2148
      %v2153 = vmul.f32 %v2130, %v2149
      %v2154 = vmul.f32 %v2132, %v2150
      %v2155 = vmul.f32 %v2134, %v2151
      %v2156 = vmul.f32 %v2136, %v2152
      %v2157 = vpack.c.bf16 %v2154, %v2153
      %v2158 = vpack.c.bf16 %v2156, %v2155
      %2159 = vrot.lane.b32.xlu0 %v1114, 24
      %v2160 = vpop.permute.xlu0 %2159
      %2161 = vrot.lane.b32.xlu0 %v1115, 24
      %v2162 = vpop.permute.xlu0 %2161
      %v2166 = vsel %vm1194, %v2157, 0
      %v2169 = vsel %vm1194, %v2158, 0
      %2171 = vmatprep.subr.bf16.mxu0 0
      %2172 = vmatpush1.bf16.msra.mxu0 %v2160
      %2173 = vmatprep.subr.bf16.mxu0 0
      %2174 = vmatpush1.bf16.msra.mxu0 %v2162
      %2175 = vmatprep.subr.bf16.mxu0 0
      %2176 = vmatpush1.bf16.msra.mxu0 0
      %2177 = vmatprep.subr.bf16.mxu0 0
      %2178 = vmatpush1.bf16.msra.mxu0 0
      %2179 = vmatprep.subr.bf16.mxu0 0
      %2180 = vmatpush1.bf16.msra.mxu0 0
      %2181 = vmatprep.subr.bf16.mxu0 0
      %2182 = vmatpush1.bf16.msra.mxu0 0
      %2183 = vmatprep.subr.bf16.mxu0 0
      %2184 = vmatpush1.bf16.msra.mxu0 0
      %2185 = vmatprep.subr.bf16.mxu0 0
      %2186 = vmatpush1.bf16.msra.mxu0 0
      %2187 = vmatprep.subr.bf16.mxu0 0
      %2188 = vmatpush1.bf16.msra.mxu0 0
      %2189 = vmatprep.subr.bf16.mxu0 0
      %2190 = vmatpush1.bf16.msra.mxu0 0
      %2191 = vmatprep.subr.bf16.mxu0 0
      %2192 = vmatpush1.bf16.msra.mxu0 0
      %2193 = vmatprep.subr.bf16.mxu0 0
      %2194 = vmatpush1.bf16.msra.mxu0 0
      %2195 = vmatprep.subr.bf16.mxu0 0
      %2196 = vmatpush1.bf16.msra.mxu0 0
      %2197 = vmatprep.subr.bf16.mxu0 0
      %2198 = vmatpush1.bf16.msra.mxu0 0
      %2199 = vmatprep.subr.bf16.mxu0 0
      %2200 = vmatpush1.bf16.msra.mxu0 0
      %2201 = vmatprep.subr.bf16.mxu0 0
      %2202 = vmatpush1.bf16.msra.mxu0 0
      %2203 = vmatprep.mubr.bf16.mxu0 0
      %2204 = vmatmul.mubr.bf16.gmra.mrb[0].mxu0 %v2166
      %v2205 = vpop.f32.mrb[0].mxu0
      %v2206 = vadd.f32 0.0, %v2205
      %v2207 = vpop.f32.mrb[0].mxu0
      %v2208 = vpop.f32.mrb[0].mxu0
      %v2209 = vadd.f32 0.0, %v2208
      %v2210 = vpop.f32.mrb[0].mxu0
      %2211 = vmatprep.mubr.bf16.mxu0 0
      %2212 = vmatmul.mubr.bf16.gmra.mrb[0].mxu0 %v2169
      %v2213 = vpop.f32.mrb[0].mxu0
      %v2214 = vadd.f32 0.0, %v2213
      %v2215 = vpop.f32.mrb[0].mxu0
      %v2216 = vpop.f32.mrb[0].mxu0
      %v2217 = vadd.f32 0.0, %v2216
      %v2218 = vpop.f32.mrb[0].mxu0
      %2219 = vdwg.mxu0
      %2220 = vrot.lane.b32.xlu0 %v1112, 80
      %v2221 = vpop.permute.xlu0 %2220
      %2222 = vrot.lane.b32.xlu0 %v1113, 80
      %v2223 = vpop.permute.xlu0 %2222
      %2224 = vrot.lane.b32.xlu0 %v1114, 112
      %v2225 = vpop.permute.xlu0 %2224
      %2226 = vrot.lane.b32.xlu0 %v1115, 112
      %v2227 = vpop.permute.xlu0 %2226
      %v2229 = vsel %vm1124, %v2221, 0
      %v2232 = vsel %vm1124, %v2223, 0
      %v2235 = vsel %vm1124, %v2225, 0
      %v2238 = vsel %vm1124, %v2227, 0
      %2240 = vmatprep.subr.bf16.mxu0 0
      %2241 = vmatpush1.bf16.xpose.msra.mxu0 %v2235
      %2242 = vmatprep.subr.bf16.mxu0 0
      %2243 = vmatpush1.bf16.xpose.msra.mxu0 %v2238
      %2244 = vmatprep.subr.bf16.mxu0 0
      %2245 = vmatpush1.bf16.xpose.msra.mxu0 0
      %2246 = vmatprep.subr.bf16.mxu0 0
      %2247 = vmatpush1.bf16.xpose.msra.mxu0 0
      %2248 = vmatprep.subr.bf16.mxu0 0
      %2249 = vmatpush1.bf16.xpose.msra.mxu0 0
      %2250 = vmatprep.subr.bf16.mxu0 0
      %2251 = vmatpush1.bf16.xpose.msra.mxu0 0
      %2252 = vmatprep.subr.bf16.mxu0 0
      %2253 = vmatpush1.bf16.xpose.msra.mxu0 0
      %2254 = vmatprep.subr.bf16.mxu0 0
      %2255 = vmatpush1.bf16.xpose.msra.mxu0 0
      %2256 = vmatprep.subr.bf16.mxu0 0
      %2257 = vmatpush1.bf16.xpose.msra.mxu0 0
      %2258 = vmatprep.subr.bf16.mxu0 0
      %2259 = vmatpush1.bf16.xpose.msra.mxu0 0
      %2260 = vmatprep.subr.bf16.mxu0 0
      %2261 = vmatpush1.bf16.xpose.msra.mxu0 0
      %2262 = vmatprep.subr.bf16.mxu0 0
      %2263 = vmatpush1.bf16.xpose.msra.mxu0 0
      %2264 = vmatprep.subr.bf16.mxu0 0
      %2265 = vmatpush1.bf16.xpose.msra.mxu0 0
      %2266 = vmatprep.subr.bf16.mxu0 0
      %2267 = vmatpush1.bf16.xpose.msra.mxu0 0
      %2268 = vmatprep.subr.bf16.mxu0 0
      %2269 = vmatpush1.bf16.xpose.msra.mxu0 0
      %2270 = vmatprep.subr.bf16.mxu0 0
      %2271 = vmatpush1.bf16.xpose.msra.mxu0 0
      %2272 = vmatprep.mubr.bf16.mxu0 0
      %2273 = vmatmul.mubr.bf16.gmra.mrb[0].mxu0 %v2229
      %v2274 = vpop.f32.mrb[0].mxu0
      %v2275 = vadd.f32 0.0, %v2274
      %v2276 = vpop.f32.mrb[0].mxu0
      %v2277 = vpop.f32.mrb[0].mxu0
      %v2278 = vadd.f32 0.0, %v2277
      %v2279 = vpop.f32.mrb[0].mxu0
      %2280 = vmatprep.mubr.bf16.mxu0 0
      %2281 = vmatmul.mubr.bf16.gmra.mrb[0].mxu0 %v2232
      %v2282 = vpop.f32.mrb[0].mxu0
      %v2283 = vadd.f32 0.0, %v2282
      %v2284 = vpop.f32.mrb[0].mxu0
      %v2285 = vpop.f32.mrb[0].mxu0
      %v2286 = vadd.f32 0.0, %v2285
      %v2287 = vpop.f32.mrb[0].mxu0
      %2288 = vdwg.mxu0
      %v2289 = vmul.f32 %v2275, 0.35355338
      %v2290 = vmul.f32 %v2278, 0.35355338
      %v2291 = vmul.f32 %v2283, 0.35355338
      %v2292 = vmul.f32 %v2286, 0.35355338
      %v2293 = vadd.f32 %v2289, %v785
      %v2294 = vadd.f32 %v2290, %v786
      %v2295 = vadd.f32 %v2291, %v787
      %v2296 = vadd.f32 %v2292, %v788
      %v2297 = vsel %vm1194, %v2293, -inf
      %2298 = vmax.xlane.f32.xlu0 %v2297
      %v2299 = vpop.xlane.xlu0 %2298
      %v2300 = vsel %vm1194, %v2294, -inf
      %2301 = vmax.xlane.f32.xlu0 %v2300
      %v2302 = vpop.xlane.xlu0 %2301
      %v2303 = vsel %vm1194, %v2295, -inf
      %2304 = vmax.xlane.f32.xlu0 %v2303
      %v2305 = vpop.xlane.xlu0 %2304
      %v2306 = vsel %vm1194, %v2296, -inf
      %2307 = vmax.xlane.f32.xlu0 %v2306
      %v2308 = vpop.xlane.xlu0 %2307
      %v2309 = vsub.f32 %v2293, %v2299
      %v2310 = vsub.f32 %v2294, %v2302
      %v2311 = vsub.f32 %v2295, %v2305
      %v2312 = vsub.f32 %v2296, %v2308
      %v2313 = vmul.f32 %v2309, 1.442695
      %v2314 = vpow.pop %v2313
      %v2315 = vmul.f32 %v2310, 1.442695
      %v2316 = vpow.pop %v2315
      %v2317 = vmul.f32 %v2311, 1.442695
      %v2318 = vpow.pop %v2317
      %v2319 = vmul.f32 %v2312, 1.442695
      %v2320 = vpow.pop %v2319
      %v2321 = vsel %vm1194, %v2314, 0.0
      %2322 = vadd.xlane.f32.xlu0 %v2321
      %v2323 = vpop.xlane.xlu0 %2322
      %v2324 = vsel %vm1194, %v2316, 0.0
      %2325 = vadd.xlane.f32.xlu0 %v2324
      %v2326 = vpop.xlane.xlu0 %2325
      %v2327 = vsel %vm1194, %v2318, 0.0
      %2328 = vadd.xlane.f32.xlu0 %v2327
      %v2329 = vpop.xlane.xlu0 %2328
      %v2330 = vsel %vm1194, %v2320, 0.0
      %2331 = vadd.xlane.f32.xlu0 %v2330
      %v2332 = vpop.xlane.xlu0 %2331
      %v2333 = vrcp.pop %v2323
      %v2334 = vrcp.pop %v2326
      %v2335 = vrcp.pop %v2329
      %v2336 = vrcp.pop %v2332
      %v2337 = vmul.f32 %v2314, %v2333
      %v2338 = vmul.f32 %v2316, %v2334
      %v2339 = vmul.f32 %v2318, %v2335
      %v2340 = vmul.f32 %v2320, %v2336
      %v2341 = vpack.c.bf16 %v2338, %v2337
      %v2342 = vpack.c.bf16 %v2340, %v2339
      %2343 = vrot.lane.b32.xlu0 %v1114, 16
      %v2344 = vpop.permute.xlu0 %2343
      %2345 = vrot.lane.b32.xlu0 %v1115, 16
      %v2346 = vpop.permute.xlu0 %2345
      %v2350 = vsel %vm1194, %v2341, 0
      %v2353 = vsel %vm1194, %v2342, 0
      %2355 = vmatprep.subr.bf16.mxu0 0
      %2356 = vmatpush1.bf16.msra.mxu0 %v2344
      %2357 = vmatprep.subr.bf16.mxu0 0
      %2358 = vmatpush1.bf16.msra.mxu0 %v2346
      %2359 = vmatprep.subr.bf16.mxu0 0
      %2360 = vmatpush1.bf16.msra.mxu0 0
      %2361 = vmatprep.subr.bf16.mxu0 0
      %2362 = vmatpush1.bf16.msra.mxu0 0
      %2363 = vmatprep.subr.bf16.mxu0 0
      %2364 = vmatpush1.bf16.msra.mxu0 0
      %2365 = vmatprep.subr.bf16.mxu0 0
      %2366 = vmatpush1.bf16.msra.mxu0 0
      %2367 = vmatprep.subr.bf16.mxu0 0
      %2368 = vmatpush1.bf16.msra.mxu0 0
      %2369 = vmatprep.subr.bf16.mxu0 0
      %2370 = vmatpush1.bf16.msra.mxu0 0
      %2371 = vmatprep.subr.bf16.mxu0 0
      %2372 = vmatpush1.bf16.msra.mxu0 0
      %2373 = vmatprep.subr.bf16.mxu0 0
      %2374 = vmatpush1.bf16.msra.mxu0 0
      %2375 = vmatprep.subr.bf16.mxu0 0
      %2376 = vmatpush1.bf16.msra.mxu0 0
      %2377 = vmatprep.subr.bf16.mxu0 0
      %2378 = vmatpush1.bf16.msra.mxu0 0
      %2379 = vmatprep.subr.bf16.mxu0 0
      %2380 = vmatpush1.bf16.msra.mxu0 0
      %2381 = vmatprep.subr.bf16.mxu0 0
      %2382 = vmatpush1.bf16.msra.mxu0 0
      %2383 = vmatprep.subr.bf16.mxu0 0
      %2384 = vmatpush1.bf16.msra.mxu0 0
      %2385 = vmatprep.subr.bf16.mxu0 0
      %2386 = vmatpush1.bf16.msra.mxu0 0
      %2387 = vmatprep.mubr.bf16.mxu0 0
      %2388 = vmatmul.mubr.bf16.gmra.mrb[0].mxu0 %v2350
      %v2389 = vpop.f32.mrb[0].mxu0
      %v2390 = vadd.f32 0.0, %v2389
      %v2391 = vpop.f32.mrb[0].mxu0
      %v2392 = vpop.f32.mrb[0].mxu0
      %v2393 = vadd.f32 0.0, %v2392
      %v2394 = vpop.f32.mrb[0].mxu0
      %2395 = vmatprep.mubr.bf16.mxu0 0
      %2396 = vmatmul.mubr.bf16.gmra.mrb[0].mxu0 %v2353
      %v2397 = vpop.f32.mrb[0].mxu0
      %v2398 = vadd.f32 0.0, %v2397
      %v2399 = vpop.f32.mrb[0].mxu0
      %v2400 = vpop.f32.mrb[0].mxu0
      %v2401 = vadd.f32 0.0, %v2400
      %v2402 = vpop.f32.mrb[0].mxu0
      %2403 = vdwg.mxu0
      %2404 = vrot.lane.b32.xlu0 %v1112, 72
      %v2405 = vpop.permute.xlu0 %2404
      %2406 = vrot.lane.b32.xlu0 %v1113, 72
      %v2407 = vpop.permute.xlu0 %2406
      %2408 = vrot.lane.b32.xlu0 %v1114, 104
      %v2409 = vpop.permute.xlu0 %2408
      %2410 = vrot.lane.b32.xlu0 %v1115, 104
      %v2411 = vpop.permute.xlu0 %2410
      %v2413 = vsel %vm1124, %v2405, 0
      %v2416 = vsel %vm1124, %v2407, 0
      %v2419 = vsel %vm1124, %v2409, 0
      %v2422 = vsel %vm1124, %v2411, 0
      %2424 = vmatprep.subr.bf16.mxu0 0
      %2425 = vmatpush1.bf16.xpose.msra.mxu0 %v2419
      %2426 = vmatprep.subr.bf16.mxu0 0
      %2427 = vmatpush1.bf16.xpose.msra.mxu0 %v2422
      %2428 = vmatprep.subr.bf16.mxu0 0
      %2429 = vmatpush1.bf16.xpose.msra.mxu0 0
      %2430 = vmatprep.subr.bf16.mxu0 0
      %2431 = vmatpush1.bf16.xpose.msra.mxu0 0
      %2432 = vmatprep.subr.bf16.mxu0 0
      %2433 = vmatpush1.bf16.xpose.msra.mxu0 0
      %2434 = vmatprep.subr.bf16.mxu0 0
      %2435 = vmatpush1.bf16.xpose.msra.mxu0 0
      %2436 = vmatprep.subr.bf16.mxu0 0
      %2437 = vmatpush1.bf16.xpose.msra.mxu0 0
      %2438 = vmatprep.subr.bf16.mxu0 0
      %2439 = vmatpush1.bf16.xpose.msra.mxu0 0
      %2440 = vmatprep.subr.bf16.mxu0 0
      %2441 = vmatpush1.bf16.xpose.msra.mxu0 0
      %2442 = vmatprep.subr.bf16.mxu0 0
      %2443 = vmatpush1.bf16.xpose.msra.mxu0 0
      %2444 = vmatprep.subr.bf16.mxu0 0
      %2445 = vmatpush1.bf16.xpose.msra.mxu0 0
      %2446 = vmatprep.subr.bf16.mxu0 0
      %2447 = vmatpush1.bf16.xpose.msra.mxu0 0
      %2448 = vmatprep.subr.bf16.mxu0 0
      %2449 = vmatpush1.bf16.xpose.msra.mxu0 0
      %2450 = vmatprep.subr.bf16.mxu0 0
      %2451 = vmatpush1.bf16.xpose.msra.mxu0 0
      %2452 = vmatprep.subr.bf16.mxu0 0
      %2453 = vmatpush1.bf16.xpose.msra.mxu0 0
      %2454 = vmatprep.subr.bf16.mxu0 0
      %2455 = vmatpush1.bf16.xpose.msra.mxu0 0
      %2456 = vmatprep.mubr.bf16.mxu0 0
      %2457 = vmatmul.mubr.bf16.gmra.mrb[0].mxu0 %v2413
      %v2458 = vpop.f32.mrb[0].mxu0
      %v2459 = vadd.f32 0.0, %v2458
      %v2460 = vpop.f32.mrb[0].mxu0
      %v2461 = vpop.f32.mrb[0].mxu0
      %v2462 = vadd.f32 0.0, %v2461
      %v2463 = vpop.f32.mrb[0].mxu0
      %2464 = vmatprep.mubr.bf16.mxu0 0
      %2465 = vmatmul.mubr.bf16.gmra.mrb[0].mxu0 %v2416
      %v2466 = vpop.f32.mrb[0].mxu0
      %v2467 = vadd.f32 0.0, %v2466
      %v2468 = vpop.f32.mrb[0].mxu0
      %v2469 = vpop.f32.mrb[0].mxu0
      %v2470 = vadd.f32 0.0, %v2469
      %v2471 = vpop.f32.mrb[0].mxu0
      %2472 = vdwg.mxu0
      %v2473 = vmul.f32 %v2459, 0.35355338
      %v2474 = vmul.f32 %v2462, 0.35355338
      %v2475 = vmul.f32 %v2467, 0.35355338
      %v2476 = vmul.f32 %v2470, 0.35355338
      %v2477 = vadd.f32 %v2473, %v785
      %v2478 = vadd.f32 %v2474, %v786
      %v2479 = vadd.f32 %v2475, %v787
      %v2480 = vadd.f32 %v2476, %v788
      %v2481 = vsel %vm1194, %v2477, -inf
      %2482 = vmax.xlane.f32.xlu0 %v2481
      %v2483 = vpop.xlane.xlu0 %2482
      %v2484 = vsel %vm1194, %v2478, -inf
      %2485 = vmax.xlane.f32.xlu0 %v2484
      %v2486 = vpop.xlane.xlu0 %2485
      %v2487 = vsel %vm1194, %v2479, -inf
      %2488 = vmax.xlane.f32.xlu0 %v2487
      %v2489 = vpop.xlane.xlu0 %2488
      %v2490 = vsel %vm1194, %v2480, -inf
      %2491 = vmax.xlane.f32.xlu0 %v2490
      %v2492 = vpop.xlane.xlu0 %2491
      %v2493 = vsub.f32 %v2477, %v2483
      %v2494 = vsub.f32 %v2478, %v2486
      %v2495 = vsub.f32 %v2479, %v2489
      %v2496 = vsub.f32 %v2480, %v2492
      %v2497 = vmul.f32 %v2493, 1.442695
      %v2498 = vpow.pop %v2497
      %v2499 = vmul.f32 %v2494, 1.442695
      %v2500 = vpow.pop %v2499
      %v2501 = vmul.f32 %v2495, 1.442695
      %v2502 = vpow.pop %v2501
      %v2503 = vmul.f32 %v2496, 1.442695
      %v2504 = vpow.pop %v2503
      %v2505 = vsel %vm1194, %v2498, 0.0
      %2506 = vadd.xlane.f32.xlu0 %v2505
      %v2507 = vpop.xlane.xlu0 %2506
      %v2508 = vsel %vm1194, %v2500, 0.0
      %2509 = vadd.xlane.f32.xlu0 %v2508
      %v2510 = vpop.xlane.xlu0 %2509
      %v2511 = vsel %vm1194, %v2502, 0.0
      %2512 = vadd.xlane.f32.xlu0 %v2511
      %v2513 = vpop.xlane.xlu0 %2512
      %v2514 = vsel %vm1194, %v2504, 0.0
      %2515 = vadd.xlane.f32.xlu0 %v2514
      %v2516 = vpop.xlane.xlu0 %2515
      %v2517 = vrcp.pop %v2507
      %v2518 = vrcp.pop %v2510
      %v2519 = vrcp.pop %v2513
      %v2520 = vrcp.pop %v2516
      %v2521 = vmul.f32 %v2498, %v2517
      %v2522 = vmul.f32 %v2500, %v2518
      %v2523 = vmul.f32 %v2502, %v2519
      %v2524 = vmul.f32 %v2504, %v2520
      %v2525 = vpack.c.bf16 %v2522, %v2521
      %v2526 = vpack.c.bf16 %v2524, %v2523
      %2527 = vrot.lane.b32.xlu0 %v1114, 8
      %v2528 = vpop.permute.xlu0 %2527
      %2529 = vrot.lane.b32.xlu0 %v1115, 8
      %v2530 = vpop.permute.xlu0 %2529
      %v2534 = vsel %vm1194, %v2525, 0
      %v2537 = vsel %vm1194, %v2526, 0
      %2539 = vmatprep.subr.bf16.mxu0 0
      %2540 = vmatpush1.bf16.msra.mxu0 %v2528
      %2541 = vmatprep.subr.bf16.mxu0 0
      %2542 = vmatpush1.bf16.msra.mxu0 %v2530
      %2543 = vmatprep.subr.bf16.mxu0 0
      %2544 = vmatpush1.bf16.msra.mxu0 0
      %2545 = vmatprep.subr.bf16.mxu0 0
      %2546 = vmatpush1.bf16.msra.mxu0 0
      %2547 = vmatprep.subr.bf16.mxu0 0
      %2548 = vmatpush1.bf16.msra.mxu0 0
      %2549 = vmatprep.subr.bf16.mxu0 0
      %2550 = vmatpush1.bf16.msra.mxu0 0
      %2551 = vmatprep.subr.bf16.mxu0 0
      %2552 = vmatpush1.bf16.msra.mxu0 0
      %2553 = vmatprep.subr.bf16.mxu0 0
      %2554 = vmatpush1.bf16.msra.mxu0 0
      %2555 = vmatprep.subr.bf16.mxu0 0
      %2556 = vmatpush1.bf16.msra.mxu0 0
      %2557 = vmatprep.subr.bf16.mxu0 0
      %2558 = vmatpush1.bf16.msra.mxu0 0
      %2559 = vmatprep.subr.bf16.mxu0 0
      %2560 = vmatpush1.bf16.msra.mxu0 0
      %2561 = vmatprep.subr.bf16.mxu0 0
      %2562 = vmatpush1.bf16.msra.mxu0 0
      %2563 = vmatprep.subr.bf16.mxu0 0
      %2564 = vmatpush1.bf16.msra.mxu0 0
      %2565 = vmatprep.subr.bf16.mxu0 0
      %2566 = vmatpush1.bf16.msra.mxu0 0
      %2567 = vmatprep.subr.bf16.mxu0 0
      %2568 = vmatpush1.bf16.msra.mxu0 0
      %2569 = vmatprep.subr.bf16.mxu0 0
      %2570 = vmatpush1.bf16.msra.mxu0 0
      %2571 = vmatprep.mubr.bf16.mxu0 0
      %2572 = vmatmul.mubr.bf16.gmra.mrb[0].mxu0 %v2534
      %v2573 = vpop.f32.mrb[0].mxu0
      %v2574 = vadd.f32 0.0, %v2573
      %v2575 = vpop.f32.mrb[0].mxu0
      %v2576 = vpop.f32.mrb[0].mxu0
      %v2577 = vadd.f32 0.0, %v2576
      %v2578 = vpop.f32.mrb[0].mxu0
      %2579 = vmatprep.mubr.bf16.mxu0 0
      %2580 = vmatmul.mubr.bf16.gmra.mrb[0].mxu0 %v2537
      %v2581 = vpop.f32.mrb[0].mxu0
      %v2582 = vadd.f32 0.0, %v2581
      %v2583 = vpop.f32.mrb[0].mxu0
      %v2584 = vpop.f32.mrb[0].mxu0
      %v2585 = vadd.f32 0.0, %v2584
      %v2586 = vpop.f32.mrb[0].mxu0
      %2587 = vdwg.mxu0
      %2588 = vrot.lane.b32.xlu0 %v1112, 64
      %v2589 = vpop.permute.xlu0 %2588
      %2590 = vrot.lane.b32.xlu0 %v1113, 64
      %v2591 = vpop.permute.xlu0 %2590
      %2592 = vrot.lane.b32.xlu0 %v1114, 96
      %v2593 = vpop.permute.xlu0 %2592
      %2594 = vrot.lane.b32.xlu0 %v1115, 96
      %v2595 = vpop.permute.xlu0 %2594
      %v2597 = vsel %vm1124, %v2589, 0
      %v2600 = vsel %vm1124, %v2591, 0
      %v2603 = vsel %vm1124, %v2593, 0
      %v2606 = vsel %vm1124, %v2595, 0
      %2608 = vmatprep.subr.bf16.mxu0 0
      %2609 = vmatpush1.bf16.xpose.msra.mxu0 %v2603
      %2610 = vmatprep.subr.bf16.mxu0 0
      %2611 = vmatpush1.bf16.xpose.msra.mxu0 %v2606
      %2612 = vmatprep.subr.bf16.mxu0 0
      %2613 = vmatpush1.bf16.xpose.msra.mxu0 0
      %2614 = vmatprep.subr.bf16.mxu0 0
      %2615 = vmatpush1.bf16.xpose.msra.mxu0 0
      %2616 = vmatprep.subr.bf16.mxu0 0
      %2617 = vmatpush1.bf16.xpose.msra.mxu0 0
      %2618 = vmatprep.subr.bf16.mxu0 0
      %2619 = vmatpush1.bf16.xpose.msra.mxu0 0
      %2620 = vmatprep.subr.bf16.mxu0 0
      %2621 = vmatpush1.bf16.xpose.msra.mxu0 0
      %2622 = vmatprep.subr.bf16.mxu0 0
      %2623 = vmatpush1.bf16.xpose.msra.mxu0 0
      %2624 = vmatprep.subr.bf16.mxu0 0
      %2625 = vmatpush1.bf16.xpose.msra.mxu0 0
      %2626 = vmatprep.subr.bf16.mxu0 0
      %2627 = vmatpush1.bf16.xpose.msra.mxu0 0
      %2628 = vmatprep.subr.bf16.mxu0 0
      %2629 = vmatpush1.bf16.xpose.msra.mxu0 0
      %2630 = vmatprep.subr.bf16.mxu0 0
      %2631 = vmatpush1.bf16.xpose.msra.mxu0 0
      %2632 = vmatprep.subr.bf16.mxu0 0
      %2633 = vmatpush1.bf16.xpose.msra.mxu0 0
      %2634 = vmatprep.subr.bf16.mxu0 0
      %2635 = vmatpush1.bf16.xpose.msra.mxu0 0
      %2636 = vmatprep.subr.bf16.mxu0 0
      %2637 = vmatpush1.bf16.xpose.msra.mxu0 0
      %2638 = vmatprep.subr.bf16.mxu0 0
      %2639 = vmatpush1.bf16.xpose.msra.mxu0 0
      %2640 = vmatprep.mubr.bf16.mxu0 0
      %2641 = vmatmul.mubr.bf16.gmra.mrb[0].mxu0 %v2597
      %v2642 = vpop.f32.mrb[0].mxu0
      %v2643 = vadd.f32 0.0, %v2642
      %v2644 = vpop.f32.mrb[0].mxu0
      %v2645 = vpop.f32.mrb[0].mxu0
      %v2646 = vadd.f32 0.0, %v2645
      %v2647 = vpop.f32.mrb[0].mxu0
      %2648 = vmatprep.mubr.bf16.mxu0 0
      %2649 = vmatmul.mubr.bf16.gmra.mrb[0].mxu0 %v2600
      %v2650 = vpop.f32.mrb[0].mxu0
      %v2651 = vadd.f32 0.0, %v2650
      %v2652 = vpop.f32.mrb[0].mxu0
      %v2653 = vpop.f32.mrb[0].mxu0
      %v2654 = vadd.f32 0.0, %v2653
      %v2655 = vpop.f32.mrb[0].mxu0
      %2656 = vdwg.mxu0
      %v2657 = vmul.f32 %v2643, 0.35355338
      %v2658 = vmul.f32 %v2646, 0.35355338
      %v2659 = vmul.f32 %v2651, 0.35355338
      %v2660 = vmul.f32 %v2654, 0.35355338
      %v2661 = vadd.f32 %v2657, %v785
      %v2662 = vadd.f32 %v2658, %v786
      %v2663 = vadd.f32 %v2659, %v787
      %v2664 = vadd.f32 %v2660, %v788
      %v2665 = vsel %vm1194, %v2661, -inf
      %2666 = vmax.xlane.f32.xlu0 %v2665
      %v2667 = vpop.xlane.xlu0 %2666
      %v2668 = vsel %vm1194, %v2662, -inf
      %2669 = vmax.xlane.f32.xlu0 %v2668
      %v2670 = vpop.xlane.xlu0 %2669
      %v2671 = vsel %vm1194, %v2663, -inf
      %2672 = vmax.xlane.f32.xlu0 %v2671
      %v2673 = vpop.xlane.xlu0 %2672
      %v2674 = vsel %vm1194, %v2664, -inf
      %2675 = vmax.xlane.f32.xlu0 %v2674
      %v2676 = vpop.xlane.xlu0 %2675
      %v2677 = vsub.f32 %v2661, %v2667
      %v2678 = vsub.f32 %v2662, %v2670
      %v2679 = vsub.f32 %v2663, %v2673
      %v2680 = vsub.f32 %v2664, %v2676
      %v2681 = vmul.f32 %v2677, 1.442695
      %v2682 = vpow.pop %v2681
      %v2683 = vmul.f32 %v2678, 1.442695
      %v2684 = vpow.pop %v2683
      %v2685 = vmul.f32 %v2679, 1.442695
      %v2686 = vpow.pop %v2685
      %v2687 = vmul.f32 %v2680, 1.442695
      %v2688 = vpow.pop %v2687
      %v2689 = vsel %vm1194, %v2682, 0.0
      %2690 = vadd.xlane.f32.xlu0 %v2689
      %v2691 = vpop.xlane.xlu0 %2690
      %v2692 = vsel %vm1194, %v2684, 0.0
      %2693 = vadd.xlane.f32.xlu0 %v2692
      %v2694 = vpop.xlane.xlu0 %2693
      %v2695 = vsel %vm1194, %v2686, 0.0
      %2696 = vadd.xlane.f32.xlu0 %v2695
      %v2697 = vpop.xlane.xlu0 %2696
      %v2698 = vsel %vm1194, %v2688, 0.0
      %2699 = vadd.xlane.f32.xlu0 %v2698
      %v2700 = vpop.xlane.xlu0 %2699
      %v2701 = vrcp.pop %v2691
      %v2702 = vrcp.pop %v2694
      %v2703 = vrcp.pop %v2697
      %v2704 = vrcp.pop %v2700
      %v2705 = vmul.f32 %v2682, %v2701
      %v2706 = vmul.f32 %v2684, %v2702
      %v2707 = vmul.f32 %v2686, %v2703
      %v2708 = vmul.f32 %v2688, %v2704
      %v2709 = vpack.c.bf16 %v2706, %v2705
      %v2710 = vpack.c.bf16 %v2708, %v2707
      %v2712 = vsel %vm1194, %v2709, 0
      %v2715 = vsel %vm1194, %v2710, 0
      %2717 = vmatprep.subr.bf16.mxu0 0
      %2718 = vmatpush1.bf16.msra.mxu0 %v1116
      %2719 = vmatprep.subr.bf16.mxu0 0
      %2720 = vmatpush1.bf16.msra.mxu0 %v1117
      %2721 = vmatprep.subr.bf16.mxu0 0
      %2722 = vmatpush1.bf16.msra.mxu0 0
      %2723 = vmatprep.subr.bf16.mxu0 0
      %2724 = vmatpush1.bf16.msra.mxu0 0
      %2725 = vmatprep.subr.bf16.mxu0 0
      %2726 = vmatpush1.bf16.msra.mxu0 0
      %2727 = vmatprep.subr.bf16.mxu0 0
      %2728 = vmatpush1.bf16.msra.mxu0 0
      %2729 = vmatprep.subr.bf16.mxu0 0
      %2730 = vmatpush1.bf16.msra.mxu0 0
      %2731 = vmatprep.subr.bf16.mxu0 0
      %2732 = vmatpush1.bf16.msra.mxu0 0
      %2733 = vmatprep.subr.bf16.mxu0 0
      %2734 = vmatpush1.bf16.msra.mxu0 0
      %2735 = vmatprep.subr.bf16.mxu0 0
      %2736 = vmatpush1.bf16.msra.mxu0 0
      %2737 = vmatprep.subr.bf16.mxu0 0
      %2738 = vmatpush1.bf16.msra.mxu0 0
      %2739 = vmatprep.subr.bf16.mxu0 0
      %2740 = vmatpush1.bf16.msra.mxu0 0
      %2741 = vmatprep.subr.bf16.mxu0 0
      %2742 = vmatpush1.bf16.msra.mxu0 0
      %2743 = vmatprep.subr.bf16.mxu0 0
      %2744 = vmatpush1.bf16.msra.mxu0 0
      %2745 = vmatprep.subr.bf16.mxu0 0
      %2746 = vmatpush1.bf16.msra.mxu0 0
      %2747 = vmatprep.subr.bf16.mxu0 0
      %2748 = vmatpush1.bf16.msra.mxu0 0
      %2749 = vmatprep.mubr.bf16.mxu0 0
      %2750 = vmatmul.mubr.bf16.gmra.mrb[0].mxu0 %v2712
      %v2751 = vpop.f32.mrb[0].mxu0
      %v2752 = vadd.f32 0.0, %v2751
      %v2753 = vpop.f32.mrb[0].mxu0
      %v2754 = vpop.f32.mrb[0].mxu0
      %v2755 = vadd.f32 0.0, %v2754
      %v2756 = vpop.f32.mrb[0].mxu0
      %2757 = vmatprep.mubr.bf16.mxu0 0
      %2758 = vmatmul.mubr.bf16.gmra.mrb[0].mxu0 %v2715
      %v2759 = vpop.f32.mrb[0].mxu0
      %v2760 = vadd.f32 0.0, %v2759
      %v2761 = vpop.f32.mrb[0].mxu0
      %v2762 = vpop.f32.mrb[0].mxu0
      %v2763 = vadd.f32 0.0, %v2762
      %v2764 = vpop.f32.mrb[0].mxu0
      %2765 = vdwg.mxu0
      %2766 = vrot.lane.b32.xlu0 %v1112, 56
      %v2767 = vpop.permute.xlu0 %2766
      %2768 = vrot.lane.b32.xlu0 %v1113, 56
      %v2769 = vpop.permute.xlu0 %2768
      %2770 = vrot.lane.b32.xlu0 %v1114, 88
      %v2771 = vpop.permute.xlu0 %2770
      %2772 = vrot.lane.b32.xlu0 %v1115, 88
      %v2773 = vpop.permute.xlu0 %2772
      %v2775 = vsel %vm1124, %v2767, 0
      %v2778 = vsel %vm1124, %v2769, 0
      %v2781 = vsel %vm1124, %v2771, 0
      %v2784 = vsel %vm1124, %v2773, 0
      %2786 = vmatprep.subr.bf16.mxu0 0
      %2787 = vmatpush1.bf16.xpose.msra.mxu0 %v2781
      %2788 = vmatprep.subr.bf16.mxu0 0
      %2789 = vmatpush1.bf16.xpose.msra.mxu0 %v2784
      %2790 = vmatprep.subr.bf16.mxu0 0
      %2791 = vmatpush1.bf16.xpose.msra.mxu0 0
      %2792 = vmatprep.subr.bf16.mxu0 0
      %2793 = vmatpush1.bf16.xpose.msra.mxu0 0
      %2794 = vmatprep.subr.bf16.mxu0 0
      %2795 = vmatpush1.bf16.xpose.msra.mxu0 0
      %2796 = vmatprep.subr.bf16.mxu0 0
      %2797 = vmatpush1.bf16.xpose.msra.mxu0 0
      %2798 = vmatprep.subr.bf16.mxu0 0
      %2799 = vmatpush1.bf16.xpose.msra.mxu0 0
      %2800 = vmatprep.subr.bf16.mxu0 0
      %2801 = vmatpush1.bf16.xpose.msra.mxu0 0
      %2802 = vmatprep.subr.bf16.mxu0 0
      %2803 = vmatpush1.bf16.xpose.msra.mxu0 0
      %2804 = vmatprep.subr.bf16.mxu0 0
      %2805 = vmatpush1.bf16.xpose.msra.mxu0 0
      %2806 = vmatprep.subr.bf16.mxu0 0
      %2807 = vmatpush1.bf16.xpose.msra.mxu0 0
      %2808 = vmatprep.subr.bf16.mxu0 0
      %2809 = vmatpush1.bf16.xpose.msra.mxu0 0
      %2810 = vmatprep.subr.bf16.mxu0 0
      %2811 = vmatpush1.bf16.xpose.msra.mxu0 0
      %2812 = vmatprep.subr.bf16.mxu0 0
      %2813 = vmatpush1.bf16.xpose.msra.mxu0 0
      %2814 = vmatprep.subr.bf16.mxu0 0
      %2815 = vmatpush1.bf16.xpose.msra.mxu0 0
      %2816 = vmatprep.subr.bf16.mxu0 0
      %2817 = vmatpush1.bf16.xpose.msra.mxu0 0
      %2818 = vmatprep.mubr.bf16.mxu0 0
      %2819 = vmatmul.mubr.bf16.gmra.mrb[0].mxu0 %v2775
      %v2820 = vpop.f32.mrb[0].mxu0
      %v2821 = vadd.f32 0.0, %v2820
      %v2822 = vpop.f32.mrb[0].mxu0
      %v2823 = vpop.f32.mrb[0].mxu0
      %v2824 = vadd.f32 0.0, %v2823
      %v2825 = vpop.f32.mrb[0].mxu0
      %2826 = vmatprep.mubr.bf16.mxu0 0
      %2827 = vmatmul.mubr.bf16.gmra.mrb[0].mxu0 %v2778
      %v2828 = vpop.f32.mrb[0].mxu0
      %v2829 = vadd.f32 0.0, %v2828
      %v2830 = vpop.f32.mrb[0].mxu0
      %v2831 = vpop.f32.mrb[0].mxu0
      %v2832 = vadd.f32 0.0, %v2831
      %v2833 = vpop.f32.mrb[0].mxu0
      %2834 = vdwg.mxu0
      %v2835 = vmul.f32 %v2821, 0.35355338
      %v2836 = vmul.f32 %v2824, 0.35355338
      %v2837 = vmul.f32 %v2829, 0.35355338
      %v2838 = vmul.f32 %v2832, 0.35355338
      %v2839 = vadd.f32 %v2835, %v785
      %v2840 = vadd.f32 %v2836, %v786
      %v2841 = vadd.f32 %v2837, %v787
      %v2842 = vadd.f32 %v2838, %v788
      %v2843 = vsel %vm1194, %v2839, -inf
      %2844 = vmax.xlane.f32.xlu0 %v2843
      %v2845 = vpop.xlane.xlu0 %2844
      %v2846 = vsel %vm1194, %v2840, -inf
      %2847 = vmax.xlane.f32.xlu0 %v2846
      %v2848 = vpop.xlane.xlu0 %2847
      %v2849 = vsel %vm1194, %v2841, -inf
      %2850 = vmax.xlane.f32.xlu0 %v2849
      %v2851 = vpop.xlane.xlu0 %2850
      %v2852 = vsel %vm1194, %v2842, -inf
      %2853 = vmax.xlane.f32.xlu0 %v2852
      %v2854 = vpop.xlane.xlu0 %2853
      %v2855 = vsub.f32 %v2839, %v2845
      %v2856 = vsub.f32 %v2840, %v2848
      %v2857 = vsub.f32 %v2841, %v2851
      %v2858 = vsub.f32 %v2842, %v2854
      %v2859 = vmul.f32 %v2855, 1.442695
      %v2860 = vpow.pop %v2859
      %v2861 = vmul.f32 %v2856, 1.442695
      %v2862 = vpow.pop %v2861
      %v2863 = vmul.f32 %v2857, 1.442695
      %v2864 = vpow.pop %v2863
      %v2865 = vmul.f32 %v2858, 1.442695
      %v2866 = vpow.pop %v2865
      %v2867 = vsel %vm1194, %v2860, 0.0
      %2868 = vadd.xlane.f32.xlu0 %v2867
      %v2869 = vpop.xlane.xlu0 %2868
      %v2870 = vsel %vm1194, %v2862, 0.0
      %2871 = vadd.xlane.f32.xlu0 %v2870
      %v2872 = vpop.xlane.xlu0 %2871
      %v2873 = vsel %vm1194, %v2864, 0.0
      %2874 = vadd.xlane.f32.xlu0 %v2873
      %v2875 = vpop.xlane.xlu0 %2874
      %v2876 = vsel %vm1194, %v2866, 0.0
      %2877 = vadd.xlane.f32.xlu0 %v2876
      %v2878 = vpop.xlane.xlu0 %2877
      %v2879 = vrcp.pop %v2869
      %v2880 = vrcp.pop %v2872
      %v2881 = vrcp.pop %v2875
      %v2882 = vrcp.pop %v2878
      %v2883 = vmul.f32 %v2860, %v2879
      %v2884 = vmul.f32 %v2862, %v2880
      %v2885 = vmul.f32 %v2864, %v2881
      %v2886 = vmul.f32 %v2866, %v2882
      %v2887 = vpack.c.bf16 %v2884, %v2883
      %v2888 = vpack.c.bf16 %v2886, %v2885
      %2891 = vrot.lane.b32.xlu0 %v1116, 120
      %v2892 = vpop.permute.xlu0 %2891
      %2893 = vrot.lane.b32.xlu0 %v1117, 120
      %v2894 = vpop.permute.xlu0 %2893
      %v2898 = vsel %vm1194, %v2887, 0
      %v2901 = vsel %vm1194, %v2888, 0
      %2903 = vmatprep.subr.bf16.mxu0 0
      %2904 = vmatpush1.bf16.msra.mxu0 %v2892
      %2905 = vmatprep.subr.bf16.mxu0 0
      %2906 = vmatpush1.bf16.msra.mxu0 %v2894
      %2907 = vmatprep.subr.bf16.mxu0 0
      %2908 = vmatpush1.bf16.msra.mxu0 0
      %2909 = vmatprep.subr.bf16.mxu0 0
      %2910 = vmatpush1.bf16.msra.mxu0 0
      %2911 = vmatprep.subr.bf16.mxu0 0
      %2912 = vmatpush1.bf16.msra.mxu0 0
      %2913 = vmatprep.subr.bf16.mxu0 0
      %2914 = vmatpush1.bf16.msra.mxu0 0
      %2915 = vmatprep.subr.bf16.mxu0 0
      %2916 = vmatpush1.bf16.msra.mxu0 0
      %2917 = vmatprep.subr.bf16.mxu0 0
      %2918 = vmatpush1.bf16.msra.mxu0 0
      %2919 = vmatprep.subr.bf16.mxu0 0
      %2920 = vmatpush1.bf16.msra.mxu0 0
      %2921 = vmatprep.subr.bf16.mxu0 0
      %2922 = vmatpush1.bf16.msra.mxu0 0
      %2923 = vmatprep.subr.bf16.mxu0 0
      %2924 = vmatpush1.bf16.msra.mxu0 0
      %2925 = vmatprep.subr.bf16.mxu0 0
      %2926 = vmatpush1.bf16.msra.mxu0 0
      %2927 = vmatprep.subr.bf16.mxu0 0
      %2928 = vmatpush1.bf16.msra.mxu0 0
      %2929 = vmatprep.subr.bf16.mxu0 0
      %2930 = vmatpush1.bf16.msra.mxu0 0
      %2931 = vmatprep.subr.bf16.mxu0 0
      %2932 = vmatpush1.bf16.msra.mxu0 0
      %2933 = vmatprep.subr.bf16.mxu0 0
      %2934 = vmatpush1.bf16.msra.mxu0 0
      %2935 = vmatprep.mubr.bf16.mxu0 0
      %2936 = vmatmul.mubr.bf16.gmra.mrb[0].mxu0 %v2898
      %v2937 = vpop.f32.mrb[0].mxu0
      %v2938 = vadd.f32 0.0, %v2937
      %v2939 = vpop.f32.mrb[0].mxu0
      %v2940 = vpop.f32.mrb[0].mxu0
      %v2941 = vadd.f32 0.0, %v2940
      %v2942 = vpop.f32.mrb[0].mxu0
      %2943 = vmatprep.mubr.bf16.mxu0 0
      %2944 = vmatmul.mubr.bf16.gmra.mrb[0].mxu0 %v2901
      %v2945 = vpop.f32.mrb[0].mxu0
      %v2946 = vadd.f32 0.0, %v2945
      %v2947 = vpop.f32.mrb[0].mxu0
      %v2948 = vpop.f32.mrb[0].mxu0
      %v2949 = vadd.f32 0.0, %v2948
      %v2950 = vpop.f32.mrb[0].mxu0
      %2951 = vdwg.mxu0
      %2952 = vrot.lane.b32.xlu0 %v1112, 48
      %v2953 = vpop.permute.xlu0 %2952
      %2954 = vrot.lane.b32.xlu0 %v1113, 48
      %v2955 = vpop.permute.xlu0 %2954
      %2956 = vrot.lane.b32.xlu0 %v1114, 80
      %v2957 = vpop.permute.xlu0 %2956
      %2958 = vrot.lane.b32.xlu0 %v1115, 80
      %v2959 = vpop.permute.xlu0 %2958
      %v2961 = vsel %vm1124, %v2953, 0
      %v2964 = vsel %vm1124, %v2955, 0
      %v2967 = vsel %vm1124, %v2957, 0
      %v2970 = vsel %vm1124, %v2959, 0
      %2972 = vmatprep.subr.bf16.mxu0 0
      %2973 = vmatpush1.bf16.xpose.msra.mxu0 %v2967
      %2974 = vmatprep.subr.bf16.mxu0 0
      %2975 = vmatpush1.bf16.xpose.msra.mxu0 %v2970
      %2976 = vmatprep.subr.bf16.mxu0 0
      %2977 = vmatpush1.bf16.xpose.msra.mxu0 0
      %2978 = vmatprep.subr.bf16.mxu0 0
      %2979 = vmatpush1.bf16.xpose.msra.mxu0 0
      %2980 = vmatprep.subr.bf16.mxu0 0
      %2981 = vmatpush1.bf16.xpose.msra.mxu0 0
      %2982 = vmatprep.subr.bf16.mxu0 0
      %2983 = vmatpush1.bf16.xpose.msra.mxu0 0
      %2984 = vmatprep.subr.bf16.mxu0 0
      %2985 = vmatpush1.bf16.xpose.msra.mxu0 0
      %2986 = vmatprep.subr.bf16.mxu0 0
      %2987 = vmatpush1.bf16.xpose.msra.mxu0 0
      %2988 = vmatprep.subr.bf16.mxu0 0
      %2989 = vmatpush1.bf16.xpose.msra.mxu0 0
      %2990 = vmatprep.subr.bf16.mxu0 0
      %2991 = vmatpush1.bf16.xpose.msra.mxu0 0
      %2992 = vmatprep.subr.bf16.mxu0 0
      %2993 = vmatpush1.bf16.xpose.msra.mxu0 0
      %2994 = vmatprep.subr.bf16.mxu0 0
      %2995 = vmatpush1.bf16.xpose.msra.mxu0 0
      %2996 = vmatprep.subr.bf16.mxu0 0
      %2997 = vmatpush1.bf16.xpose.msra.mxu0 0
      %2998 = vmatprep.subr.bf16.mxu0 0
      %2999 = vmatpush1.bf16.xpose.msra.mxu0 0
      %3000 = vmatprep.subr.bf16.mxu0 0
      %3001 = vmatpush1.bf16.xpose.msra.mxu0 0
      %3002 = vmatprep.subr.bf16.mxu0 0
      %3003 = vmatpush1.bf16.xpose.msra.mxu0 0
      %3004 = vmatprep.mubr.bf16.mxu0 0
      %3005 = vmatmul.mubr.bf16.gmra.mrb[0].mxu0 %v2961
      %v3006 = vpop.f32.mrb[0].mxu0
      %v3007 = vadd.f32 0.0, %v3006
      %v3008 = vpop.f32.mrb[0].mxu0
      %v3009 = vpop.f32.mrb[0].mxu0
      %v3010 = vadd.f32 0.0, %v3009
      %v3011 = vpop.f32.mrb[0].mxu0
      %3012 = vmatprep.mubr.bf16.mxu0 0
      %3013 = vmatmul.mubr.bf16.gmra.mrb[0].mxu0 %v2964
      %v3014 = vpop.f32.mrb[0].mxu0
      %v3015 = vadd.f32 0.0, %v3014
      %v3016 = vpop.f32.mrb[0].mxu0
      %v3017 = vpop.f32.mrb[0].mxu0
      %v3018 = vadd.f32 0.0, %v3017
      %v3019 = vpop.f32.mrb[0].mxu0
      %3020 = vdwg.mxu0
      %v3021 = vmul.f32 %v3007, 0.35355338
      %v3022 = vmul.f32 %v3010, 0.35355338
      %v3023 = vmul.f32 %v3015, 0.35355338
      %v3024 = vmul.f32 %v3018, 0.35355338
      %v3025 = vadd.f32 %v3021, %v785
      %v3026 = vadd.f32 %v3022, %v786
      %v3027 = vadd.f32 %v3023, %v787
      %v3028 = vadd.f32 %v3024, %v788
      %v3029 = vsel %vm1194, %v3025, -inf
      %3030 = vmax.xlane.f32.xlu0 %v3029
      %v3031 = vpop.xlane.xlu0 %3030
      %v3032 = vsel %vm1194, %v3026, -inf
      %3033 = vmax.xlane.f32.xlu0 %v3032
      %v3034 = vpop.xlane.xlu0 %3033
      %v3035 = vsel %vm1194, %v3027, -inf
      %3036 = vmax.xlane.f32.xlu0 %v3035
      %v3037 = vpop.xlane.xlu0 %3036
      %v3038 = vsel %vm1194, %v3028, -inf
      %3039 = vmax.xlane.f32.xlu0 %v3038
      %v3040 = vpop.xlane.xlu0 %3039
      %v3041 = vsub.f32 %v3025, %v3031
      %v3042 = vsub.f32 %v3026, %v3034
      %v3043 = vsub.f32 %v3027, %v3037
      %v3044 = vsub.f32 %v3028, %v3040
      %v3045 = vmul.f32 %v3041, 1.442695
      %v3046 = vpow.pop %v3045
      %v3047 = vmul.f32 %v3042, 1.442695
      %v3048 = vpow.pop %v3047
      %v3049 = vmul.f32 %v3043, 1.442695
      %v3050 = vpow.pop %v3049
      %v3051 = vmul.f32 %v3044, 1.442695
      %v3052 = vpow.pop %v3051
      %v3053 = vsel %vm1194, %v3046, 0.0
      %3054 = vadd.xlane.f32.xlu0 %v3053
      %v3055 = vpop.xlane.xlu0 %3054
      %v3056 = vsel %vm1194, %v3048, 0.0
      %3057 = vadd.xlane.f32.xlu0 %v3056
      %v3058 = vpop.xlane.xlu0 %3057
      %v3059 = vsel %vm1194, %v3050, 0.0
      %3060 = vadd.xlane.f32.xlu0 %v3059
      %v3061 = vpop.xlane.xlu0 %3060
      %v3062 = vsel %vm1194, %v3052, 0.0
      %3063 = vadd.xlane.f32.xlu0 %v3062
      %v3064 = vpop.xlane.xlu0 %3063
      %v3065 = vrcp.pop %v3055
      %v3066 = vrcp.pop %v3058
      %v3067 = vrcp.pop %v3061
      %v3068 = vrcp.pop %v3064
      %v3069 = vmul.f32 %v3046, %v3065
      %v3070 = vmul.f32 %v3048, %v3066
      %v3071 = vmul.f32 %v3050, %v3067
      %v3072 = vmul.f32 %v3052, %v3068
      %v3073 = vpack.c.bf16 %v3070, %v3069
      %v3074 = vpack.c.bf16 %v3072, %v3071
      %3075 = vrot.lane.b32.xlu0 %v1116, 112
      %v3076 = vpop.permute.xlu0 %3075
      %3077 = vrot.lane.b32.xlu0 %v1117, 112
      %v3078 = vpop.permute.xlu0 %3077
      %v3082 = vsel %vm1194, %v3073, 0
      %v3085 = vsel %vm1194, %v3074, 0
      %3087 = vmatprep.subr.bf16.mxu0 0
      %3088 = vmatpush1.bf16.msra.mxu0 %v3076
      %3089 = vmatprep.subr.bf16.mxu0 0
      %3090 = vmatpush1.bf16.msra.mxu0 %v3078
      %3091 = vmatprep.subr.bf16.mxu0 0
      %3092 = vmatpush1.bf16.msra.mxu0 0
      %3093 = vmatprep.subr.bf16.mxu0 0
      %3094 = vmatpush1.bf16.msra.mxu0 0
      %3095 = vmatprep.subr.bf16.mxu0 0
      %3096 = vmatpush1.bf16.msra.mxu0 0
      %3097 = vmatprep.subr.bf16.mxu0 0
      %3098 = vmatpush1.bf16.msra.mxu0 0
      %3099 = vmatprep.subr.bf16.mxu0 0
      %3100 = vmatpush1.bf16.msra.mxu0 0
      %3101 = vmatprep.subr.bf16.mxu0 0
      %3102 = vmatpush1.bf16.msra.mxu0 0
      %3103 = vmatprep.subr.bf16.mxu0 0
      %3104 = vmatpush1.bf16.msra.mxu0 0
      %3105 = vmatprep.subr.bf16.mxu0 0
      %3106 = vmatpush1.bf16.msra.mxu0 0
      %3107 = vmatprep.subr.bf16.mxu0 0
      %3108 = vmatpush1.bf16.msra.mxu0 0
      %3109 = vmatprep.subr.bf16.mxu0 0
      %3110 = vmatpush1.bf16.msra.mxu0 0
      %3111 = vmatprep.subr.bf16.mxu0 0
      %3112 = vmatpush1.bf16.msra.mxu0 0
      %3113 = vmatprep.subr.bf16.mxu0 0
      %3114 = vmatpush1.bf16.msra.mxu0 0
      %3115 = vmatprep.subr.bf16.mxu0 0
      %3116 = vmatpush1.bf16.msra.mxu0 0
      %3117 = vmatprep.subr.bf16.mxu0 0
      %3118 = vmatpush1.bf16.msra.mxu0 0
      %3119 = vmatprep.mubr.bf16.mxu0 0
      %3120 = vmatmul.mubr.bf16.gmra.mrb[0].mxu0 %v3082
      %v3121 = vpop.f32.mrb[0].mxu0
      %v3122 = vadd.f32 0.0, %v3121
      %v3123 = vpop.f32.mrb[0].mxu0
      %v3124 = vpop.f32.mrb[0].mxu0
      %v3125 = vadd.f32 0.0, %v3124
      %v3126 = vpop.f32.mrb[0].mxu0
      %3127 = vmatprep.mubr.bf16.mxu0 0
      %3128 = vmatmul.mubr.bf16.gmra.mrb[0].mxu0 %v3085
      %v3129 = vpop.f32.mrb[0].mxu0
      %v3130 = vadd.f32 0.0, %v3129
      %v3131 = vpop.f32.mrb[0].mxu0
      %v3132 = vpop.f32.mrb[0].mxu0
      %v3133 = vadd.f32 0.0, %v3132
      %v3134 = vpop.f32.mrb[0].mxu0
      %3135 = vdwg.mxu0
      %3136 = vrot.lane.b32.xlu0 %v1112, 40
      %v3137 = vpop.permute.xlu0 %3136
      %3138 = vrot.lane.b32.xlu0 %v1113, 40
      %v3139 = vpop.permute.xlu0 %3138
      %3140 = vrot.lane.b32.xlu0 %v1114, 72
      %v3141 = vpop.permute.xlu0 %3140
      %3142 = vrot.lane.b32.xlu0 %v1115, 72
      %v3143 = vpop.permute.xlu0 %3142
      %v3145 = vsel %vm1124, %v3137, 0
      %v3148 = vsel %vm1124, %v3139, 0
      %v3151 = vsel %vm1124, %v3141, 0
      %v3154 = vsel %vm1124, %v3143, 0
      %3156 = vmatprep.subr.bf16.mxu0 0
      %3157 = vmatpush1.bf16.xpose.msra.mxu0 %v3151
      %3158 = vmatprep.subr.bf16.mxu0 0
      %3159 = vmatpush1.bf16.xpose.msra.mxu0 %v3154
      %3160 = vmatprep.subr.bf16.mxu0 0
      %3161 = vmatpush1.bf16.xpose.msra.mxu0 0
      %3162 = vmatprep.subr.bf16.mxu0 0
      %3163 = vmatpush1.bf16.xpose.msra.mxu0 0
      %3164 = vmatprep.subr.bf16.mxu0 0
      %3165 = vmatpush1.bf16.xpose.msra.mxu0 0
      %3166 = vmatprep.subr.bf16.mxu0 0
      %3167 = vmatpush1.bf16.xpose.msra.mxu0 0
      %3168 = vmatprep.subr.bf16.mxu0 0
      %3169 = vmatpush1.bf16.xpose.msra.mxu0 0
      %3170 = vmatprep.subr.bf16.mxu0 0
      %3171 = vmatpush1.bf16.xpose.msra.mxu0 0
      %3172 = vmatprep.subr.bf16.mxu0 0
      %3173 = vmatpush1.bf16.xpose.msra.mxu0 0
      %3174 = vmatprep.subr.bf16.mxu0 0
      %3175 = vmatpush1.bf16.xpose.msra.mxu0 0
      %3176 = vmatprep.subr.bf16.mxu0 0
      %3177 = vmatpush1.bf16.xpose.msra.mxu0 0
      %3178 = vmatprep.subr.bf16.mxu0 0
      %3179 = vmatpush1.bf16.xpose.msra.mxu0 0
      %3180 = vmatprep.subr.bf16.mxu0 0
      %3181 = vmatpush1.bf16.xpose.msra.mxu0 0
      %3182 = vmatprep.subr.bf16.mxu0 0
      %3183 = vmatpush1.bf16.xpose.msra.mxu0 0
      %3184 = vmatprep.subr.bf16.mxu0 0
      %3185 = vmatpush1.bf16.xpose.msra.mxu0 0
      %3186 = vmatprep.subr.bf16.mxu0 0
      %3187 = vmatpush1.bf16.xpose.msra.mxu0 0
      %3188 = vmatprep.mubr.bf16.mxu0 0
      %3189 = vmatmul.mubr.bf16.gmra.mrb[0].mxu0 %v3145
      %v3190 = vpop.f32.mrb[0].mxu0
      %v3191 = vadd.f32 0.0, %v3190
      %v3192 = vpop.f32.mrb[0].mxu0
      %v3193 = vpop.f32.mrb[0].mxu0
      %v3194 = vadd.f32 0.0, %v3193
      %v3195 = vpop.f32.mrb[0].mxu0
      %3196 = vmatprep.mubr.bf16.mxu0 0
      %3197 = vmatmul.mubr.bf16.gmra.mrb[0].mxu0 %v3148
      %v3198 = vpop.f32.mrb[0].mxu0
      %v3199 = vadd.f32 0.0, %v3198
      %v3200 = vpop.f32.mrb[0].mxu0
      %v3201 = vpop.f32.mrb[0].mxu0
      %v3202 = vadd.f32 0.0, %v3201
      %v3203 = vpop.f32.mrb[0].mxu0
      %3204 = vdwg.mxu0
      %v3205 = vmul.f32 %v3191, 0.35355338
      %v3206 = vmul.f32 %v3194, 0.35355338
      %v3207 = vmul.f32 %v3199, 0.35355338
      %v3208 = vmul.f32 %v3202, 0.35355338
      %v3209 = vadd.f32 %v3205, %v785
      %v3210 = vadd.f32 %v3206, %v786
      %v3211 = vadd.f32 %v3207, %v787
      %v3212 = vadd.f32 %v3208, %v788
      %v3213 = vsel %vm1194, %v3209, -inf
      %3214 = vmax.xlane.f32.xlu0 %v3213
      %v3215 = vpop.xlane.xlu0 %3214
      %v3216 = vsel %vm1194, %v3210, -inf
      %3217 = vmax.xlane.f32.xlu0 %v3216
      %v3218 = vpop.xlane.xlu0 %3217
      %v3219 = vsel %vm1194, %v3211, -inf
      %3220 = vmax.xlane.f32.xlu0 %v3219
      %v3221 = vpop.xlane.xlu0 %3220
      %v3222 = vsel %vm1194, %v3212, -inf
      %3223 = vmax.xlane.f32.xlu0 %v3222
      %v3224 = vpop.xlane.xlu0 %3223
      %v3225 = vsub.f32 %v3209, %v3215
      %v3226 = vsub.f32 %v3210, %v3218
      %v3227 = vsub.f32 %v3211, %v3221
      %v3228 = vsub.f32 %v3212, %v3224
      %v3229 = vmul.f32 %v3225, 1.442695
      %v3230 = vpow.pop %v3229
      %v3231 = vmul.f32 %v3226, 1.442695
      %v3232 = vpow.pop %v3231
      %v3233 = vmul.f32 %v3227, 1.442695
      %v3234 = vpow.pop %v3233
      %v3235 = vmul.f32 %v3228, 1.442695
      %v3236 = vpow.pop %v3235
      %v3237 = vsel %vm1194, %v3230, 0.0
      %3238 = vadd.xlane.f32.xlu0 %v3237
      %v3239 = vpop.xlane.xlu0 %3238
      %v3240 = vsel %vm1194, %v3232, 0.0
      %3241 = vadd.xlane.f32.xlu0 %v3240
      %v3242 = vpop.xlane.xlu0 %3241
      %v3243 = vsel %vm1194, %v3234, 0.0
      %3244 = vadd.xlane.f32.xlu0 %v3243
      %v3245 = vpop.xlane.xlu0 %3244
      %v3246 = vsel %vm1194, %v3236, 0.0
      %3247 = vadd.xlane.f32.xlu0 %v3246
      %v3248 = vpop.xlane.xlu0 %3247
      %v3249 = vrcp.pop %v3239
      %v3250 = vrcp.pop %v3242
      %v3251 = vrcp.pop %v3245
      %v3252 = vrcp.pop %v3248
      %v3253 = vmul.f32 %v3230, %v3249
      %v3254 = vmul.f32 %v3232, %v3250
      %v3255 = vmul.f32 %v3234, %v3251
      %v3256 = vmul.f32 %v3236, %v3252
      %v3257 = vpack.c.bf16 %v3254, %v3253
      %v3258 = vpack.c.bf16 %v3256, %v3255
      %3259 = vrot.lane.b32.xlu0 %v1116, 104
      %v3260 = vpop.permute.xlu0 %3259
      %3261 = vrot.lane.b32.xlu0 %v1117, 104
      %v3262 = vpop.permute.xlu0 %3261
      %v3266 = vsel %vm1194, %v3257, 0
      %v3269 = vsel %vm1194, %v3258, 0
      %3271 = vmatprep.subr.bf16.mxu0 0
      %3272 = vmatpush1.bf16.msra.mxu0 %v3260
      %3273 = vmatprep.subr.bf16.mxu0 0
      %3274 = vmatpush1.bf16.msra.mxu0 %v3262
      %3275 = vmatprep.subr.bf16.mxu0 0
      %3276 = vmatpush1.bf16.msra.mxu0 0
      %3277 = vmatprep.subr.bf16.mxu0 0
      %3278 = vmatpush1.bf16.msra.mxu0 0
      %3279 = vmatprep.subr.bf16.mxu0 0
      %3280 = vmatpush1.bf16.msra.mxu0 0
      %3281 = vmatprep.subr.bf16.mxu0 0
      %3282 = vmatpush1.bf16.msra.mxu0 0
      %3283 = vmatprep.subr.bf16.mxu0 0
      %3284 = vmatpush1.bf16.msra.mxu0 0
      %3285 = vmatprep.subr.bf16.mxu0 0
      %3286 = vmatpush1.bf16.msra.mxu0 0
      %3287 = vmatprep.subr.bf16.mxu0 0
      %3288 = vmatpush1.bf16.msra.mxu0 0
      %3289 = vmatprep.subr.bf16.mxu0 0
      %3290 = vmatpush1.bf16.msra.mxu0 0
      %3291 = vmatprep.subr.bf16.mxu0 0
      %3292 = vmatpush1.bf16.msra.mxu0 0
      %3293 = vmatprep.subr.bf16.mxu0 0
      %3294 = vmatpush1.bf16.msra.mxu0 0
      %3295 = vmatprep.subr.bf16.mxu0 0
      %3296 = vmatpush1.bf16.msra.mxu0 0
      %3297 = vmatprep.subr.bf16.mxu0 0
      %3298 = vmatpush1.bf16.msra.mxu0 0
      %3299 = vmatprep.subr.bf16.mxu0 0
      %3300 = vmatpush1.bf16.msra.mxu0 0
      %3301 = vmatprep.subr.bf16.mxu0 0
      %3302 = vmatpush1.bf16.msra.mxu0 0
      %3303 = vmatprep.mubr.bf16.mxu0 0
      %3304 = vmatmul.mubr.bf16.gmra.mrb[0].mxu0 %v3266
      %v3305 = vpop.f32.mrb[0].mxu0
      %v3306 = vadd.f32 0.0, %v3305
      %v3307 = vpop.f32.mrb[0].mxu0
      %v3308 = vpop.f32.mrb[0].mxu0
      %v3309 = vadd.f32 0.0, %v3308
      %v3310 = vpop.f32.mrb[0].mxu0
      %3311 = vmatprep.mubr.bf16.mxu0 0
      %3312 = vmatmul.mubr.bf16.gmra.mrb[0].mxu0 %v3269
      %v3313 = vpop.f32.mrb[0].mxu0
      %v3314 = vadd.f32 0.0, %v3313
      %v3315 = vpop.f32.mrb[0].mxu0
      %v3316 = vpop.f32.mrb[0].mxu0
      %v3317 = vadd.f32 0.0, %v3316
      %v3318 = vpop.f32.mrb[0].mxu0
      %3319 = vdwg.mxu0
      %3324 = vrot.lane.b32.xlu0 %v1474, 8
      %v3325 = vpop.permute.xlu0 %3324
      %3326 = vrot.lane.b32.xlu0 %v1477, 8
      %v3327 = vpop.permute.xlu0 %3326
      %3328 = vrot.lane.b32.xlu0 %v1482, 8
      %v3329 = vpop.permute.xlu0 %3328
      %3330 = vrot.lane.b32.xlu0 %v1485, 8
      %v3331 = vpop.permute.xlu0 %3330
      %3340 = vrot.lane.b32.xlu0 %v1658, 16
      %v3341 = vpop.permute.xlu0 %3340
      %3342 = vrot.lane.b32.xlu0 %v1661, 16
      %v3343 = vpop.permute.xlu0 %3342
      %3344 = vrot.lane.b32.xlu0 %v1666, 16
      %v3345 = vpop.permute.xlu0 %3344
      %3346 = vrot.lane.b32.xlu0 %v1669, 16
      %v3347 = vpop.permute.xlu0 %3346
      %3356 = vrot.lane.b32.xlu0 %v1842, 24
      %v3357 = vpop.permute.xlu0 %3356
      %3358 = vrot.lane.b32.xlu0 %v1845, 24
      %v3359 = vpop.permute.xlu0 %3358
      %3360 = vrot.lane.b32.xlu0 %v1850, 24
      %v3361 = vpop.permute.xlu0 %3360
      %3362 = vrot.lane.b32.xlu0 %v1853, 24
      %v3363 = vpop.permute.xlu0 %3362
      %3372 = vrot.lane.b32.xlu0 %v2022, 32
      %v3373 = vpop.permute.xlu0 %3372
      %3374 = vrot.lane.b32.xlu0 %v2025, 32
      %v3375 = vpop.permute.xlu0 %3374
      %3376 = vrot.lane.b32.xlu0 %v2030, 32
      %v3377 = vpop.permute.xlu0 %3376
      %3378 = vrot.lane.b32.xlu0 %v2033, 32
      %v3379 = vpop.permute.xlu0 %3378
      %3388 = vrot.lane.b32.xlu0 %v2206, 40
      %v3389 = vpop.permute.xlu0 %3388
      %3390 = vrot.lane.b32.xlu0 %v2209, 40
      %v3391 = vpop.permute.xlu0 %3390
      %3392 = vrot.lane.b32.xlu0 %v2214, 40
      %v3393 = vpop.permute.xlu0 %3392
      %3394 = vrot.lane.b32.xlu0 %v2217, 40
      %v3395 = vpop.permute.xlu0 %3394
      %3404 = vrot.lane.b32.xlu0 %v2390, 48
      %v3405 = vpop.permute.xlu0 %3404
      %3406 = vrot.lane.b32.xlu0 %v2393, 48
      %v3407 = vpop.permute.xlu0 %3406
      %3408 = vrot.lane.b32.xlu0 %v2398, 48
      %v3409 = vpop.permute.xlu0 %3408
      %3410 = vrot.lane.b32.xlu0 %v2401, 48
      %v3411 = vpop.permute.xlu0 %3410
      %3420 = vrot.lane.b32.xlu0 %v2574, 56
      %v3421 = vpop.permute.xlu0 %3420
      %3422 = vrot.lane.b32.xlu0 %v2577, 56
      %v3423 = vpop.permute.xlu0 %3422
      %3424 = vrot.lane.b32.xlu0 %v2582, 56
      %v3425 = vpop.permute.xlu0 %3424
      %3426 = vrot.lane.b32.xlu0 %v2585, 56
      %v3427 = vpop.permute.xlu0 %3426
      %3436 = vrot.lane.b32.xlu0 %v2752, 64
      %v3437 = vpop.permute.xlu0 %3436
      %3438 = vrot.lane.b32.xlu0 %v2755, 64
      %v3439 = vpop.permute.xlu0 %3438
      %3440 = vrot.lane.b32.xlu0 %v2760, 64
      %v3441 = vpop.permute.xlu0 %3440
      %3442 = vrot.lane.b32.xlu0 %v2763, 64
      %v3443 = vpop.permute.xlu0 %3442
      %3452 = vrot.lane.b32.xlu0 %v2938, 72
      %v3453 = vpop.permute.xlu0 %3452
      %3454 = vrot.lane.b32.xlu0 %v2941, 72
      %v3455 = vpop.permute.xlu0 %3454
      %3456 = vrot.lane.b32.xlu0 %v2946, 72
      %v3457 = vpop.permute.xlu0 %3456
      %3458 = vrot.lane.b32.xlu0 %v2949, 72
      %v3459 = vpop.permute.xlu0 %3458
      %3468 = vrot.lane.b32.xlu0 %v3122, 80
      %v3469 = vpop.permute.xlu0 %3468
      %3470 = vrot.lane.b32.xlu0 %v3125, 80
      %v3471 = vpop.permute.xlu0 %3470
      %3472 = vrot.lane.b32.xlu0 %v3130, 80
      %v3473 = vpop.permute.xlu0 %3472
      %3474 = vrot.lane.b32.xlu0 %v3133, 80
      %v3475 = vpop.permute.xlu0 %3474
      %3484 = vrot.lane.b32.xlu0 %v3306, 88
      %v3485 = vpop.permute.xlu0 %3484
      %3486 = vrot.lane.b32.xlu0 %v3309, 88
      %v3487 = vpop.permute.xlu0 %3486
      %3488 = vrot.lane.b32.xlu0 %v3314, 88
      %v3489 = vpop.permute.xlu0 %3488
      %3490 = vrot.lane.b32.xlu0 %v3317, 88
      %v3491 = vpop.permute.xlu0 %3490
      %v3496 = vsel %vm1124, %v1290, %v3325
      %v3497 = vsel %vm1124, %v1293, %v3327
      %v3498 = vsel %vm1124, %v1298, %v3329
      %v3499 = vsel %vm1124, %v1301, %v3331
      %vm3500 = vcmask 130048
      %v3501 = vsel %vm3500, %v3496, %v3341
      %v3502 = vsel %vm3500, %v3497, %v3343
      %v3503 = vsel %vm3500, %v3498, %v3345
      %v3504 = vsel %vm3500, %v3499, %v3347
      %vm3505 = vcmask 195584
      %v3506 = vsel %vm3505, %v3501, %v3357
      %v3507 = vsel %vm3505, %v3502, %v3359
      %v3508 = vsel %vm3505, %v3503, %v3361
      %v3509 = vsel %vm3505, %v3504, %v3363
      %v3510 = vsel %vm1194, %v3506, %v3373
      %v3511 = vsel %vm1194, %v3507, %v3375
      %v3512 = vsel %vm1194, %v3508, %v3377
      %v3513 = vsel %vm1194, %v3509, %v3379
      %vm3514 = vcmask 326656
      %v3515 = vsel %vm3514, %v3510, %v3389
      %v3516 = vsel %vm3514, %v3511, %v3391
      %v3517 = vsel %vm3514, %v3512, %v3393
      %v3518 = vsel %vm3514, %v3513, %v3395
      %vm3519 = vcmask 392192
      %v3520 = vsel %vm3519, %v3515, %v3405
      %v3521 = vsel %vm3519, %v3516, %v3407
      %v3522 = vsel %vm3519, %v3517, %v3409
      %v3523 = vsel %vm3519, %v3518, %v3411
      %vm3524 = vcmask 457728
      %v3525 = vsel %vm3524, %v3520, %v3421
      %v3526 = vsel %vm3524, %v3521, %v3423
      %v3527 = vsel %vm3524, %v3522, %v3425
      %v3528 = vsel %vm3524, %v3523, %v3427
      %vm3529 = vcmask 523264
      %v3530 = vsel %vm3529, %v3525, %v3437
      %v3531 = vsel %vm3529, %v3526, %v3439
      %v3532 = vsel %vm3529, %v3527, %v3441
      %v3533 = vsel %vm3529, %v3528, %v3443
      %vm3534 = vcmask 588800
      %v3535 = vsel %vm3534, %v3530, %v3453
      %v3536 = vsel %vm3534, %v3531, %v3455
      %v3537 = vsel %vm3534, %v3532, %v3457
      %v3538 = vsel %vm3534, %v3533, %v3459
      %vm3539 = vcmask 654336
      %v3540 = vsel %vm3539, %v3535, %v3469
      %v3541 = vsel %vm3539, %v3536, %v3471
      %v3542 = vsel %vm3539, %v3537, %v3473
      %v3543 = vsel %vm3539, %v3538, %v3475
      %vm3544 = vcmask 719872
      %v3545 = vsel %vm3544, %v3540, %v3485
      %v3546 = vsel %vm3544, %v3541, %v3487
      %v3547 = vsel %vm3544, %v3542, %v3489
      %v3548 = vsel %vm3544, %v3543, %v3491
      %v3549 = vpack.c.bf16 %v3546, %v3545
      %v3550 = vpack.c.bf16 %v3548, %v3547
      %v3551 = vld [vmem:[%s638] sm:$0xf]
      %v3552 = vld [vmem:[%s638 + $0x4] sm:$0xf]
      %v3553 = vld [vmem:[%s638 + $0x8] sm:$0xf]
      %v3554 = vld [vmem:[%s638 + $0xc] sm:$0xf]
      %v3555 = vld [vmem:[%s638 + $0x10] sm:$0xf]
      %v3556 = vld [vmem:[%s638 + $0x14] sm:$0xf]
      %v3557 = vld [vmem:[%s638 + $0x18] sm:$0xf]
      %v3558 = vld [vmem:[%s638 + $0x1c] sm:$0xf]
      %v3559 = vld [vmem:[%s638 + $0x20] sm:$0xf]
      %v3560 = vld [vmem:[%s638 + $0x24] sm:$0xf]
      %v3561 = vld [vmem:[%s638 + $0x28] sm:$0xf]
      %v3562 = vld [vmem:[%s638 + $0x2c] sm:$0xf]
      %v3563 = vld [vmem:[%s641] sm:$0x1]
      %v3565 = vlaneseq
      %v3566 = vshrl.u32 %v3565, 7
      %v3567 = vsub.s32 0, %v3566
      %v3568 = vrot.slane %v3563, %v3567
      %v3582 = vunpack.c.l.b16 %v3551
      %v3583 = vunpack.c.l.b16 %v3552
      %v3584 = vunpack.c.l.b16 %v3553
      %v3585 = vunpack.c.l.b16 %v3554
      %v3586 = vunpack.c.l.b16 %v3555
      %v3587 = vunpack.c.l.b16 %v3556
      %v3588 = vunpack.c.l.b16 %v3557
      %v3589 = vunpack.c.l.b16 %v3558
      %v3590 = vunpack.c.l.b16 %v3559
      %v3591 = vunpack.c.l.b16 %v3560
      %v3592 = vunpack.c.l.b16 %v3561
      %v3593 = vunpack.c.l.b16 %v3562
      %v3594 = vpack.c.b16 %v3583, %v3582
      %v3595 = vpack.c.b16 %v3585, %v3584
      %v3596 = vpack.c.b16 %v3587, %v3586
      %v3597 = vpack.c.b16 %v3589, %v3588
      %v3598 = vpack.c.b16 %v3591, %v3590
      %v3599 = vpack.c.b16 %v3593, %v3592
      %v3607 = vsel %vm791, %v3549, 0
      %v3610 = vsel %vm791, %v3550, 0
      %3612 = vmatprep.subr.bf16.mxu0 0
      %3613 = vmatpush1.bf16.msra.mxu0 %v3594
      %3614 = vmatprep.subr.bf16.mxu0 0
      %3615 = vmatpush1.bf16.msra.mxu0 %v3595
      %3616 = vmatprep.subr.bf16.mxu0 0
      %3617 = vmatpush1.bf16.msra.mxu0 %v3596
      %3618 = vmatprep.subr.bf16.mxu0 0
      %3619 = vmatpush1.bf16.msra.mxu0 %v3597
      %3620 = vmatprep.subr.bf16.mxu0 0
      %3621 = vmatpush1.bf16.msra.mxu0 %v3598
      %3622 = vmatprep.subr.bf16.mxu0 0
      %3623 = vmatpush1.bf16.msra.mxu0 %v3599
      %3624 = vmatprep.subr.bf16.mxu0 0
      %3625 = vmatpush1.bf16.msra.mxu0 0
      %3626 = vmatprep.subr.bf16.mxu0 0
      %3627 = vmatpush1.bf16.msra.mxu0 0
      %3628 = vmatprep.subr.bf16.mxu0 0
      %3629 = vmatpush1.bf16.msra.mxu0 0
      %3630 = vmatprep.subr.bf16.mxu0 0
      %3631 = vmatpush1.bf16.msra.mxu0 0
      %3632 = vmatprep.subr.bf16.mxu0 0
      %3633 = vmatpush1.bf16.msra.mxu0 0
      %3634 = vmatprep.subr.bf16.mxu0 0
      %3635 = vmatpush1.bf16.msra.mxu0 0
      %3636 = vmatprep.subr.bf16.mxu0 0
      %3637 = vmatpush1.bf16.msra.mxu0 0
      %3638 = vmatprep.subr.bf16.mxu0 0
      %3639 = vmatpush1.bf16.msra.mxu0 0
      %3640 = vmatprep.subr.bf16.mxu0 0
      %3641 = vmatpush1.bf16.msra.mxu0 0
      %3642 = vmatprep.subr.bf16.mxu0 0
      %3643 = vmatpush1.bf16.msra.mxu0 0
      %3644 = vmatprep.mubr.bf16.mxu0 0
      %3645 = vmatmul.mubr.bf16.gmra.mrb[0].mxu0 %v3607
      %v3646 = vpop.f32.mrb[0].mxu0
      %v3647 = vadd.f32 %v3568, %v3646
      %v3648 = vpop.f32.mrb[0].mxu0
      %v3649 = vpop.f32.mrb[0].mxu0
      %v3650 = vadd.f32 %v3568, %v3649
      %v3651 = vpop.f32.mrb[0].mxu0
      %3652 = vmatprep.mubr.bf16.mxu0 0
      %3653 = vmatmul.mubr.bf16.gmra.mrb[0].mxu0 %v3610
      %v3654 = vpop.f32.mrb[0].mxu0
      %v3655 = vadd.f32 %v3568, %v3654
      %v3656 = vpop.f32.mrb[0].mxu0
      %v3657 = vpop.f32.mrb[0].mxu0
      %v3658 = vadd.f32 %v3568, %v3657
      %v3659 = vpop.f32.mrb[0].mxu0
      %3660 = vdwg.mxu0
      %v3661 = vadd.f32 %v679, %v3647
      %v3662 = vadd.f32 %v680, %v3650
      %v3663 = vadd.f32 %v681, %v3655
      %v3664 = vadd.f32 %v682, %v3658
      %v3665 = vld [vmem:[%s644] sm:$0x1]
      %v3666 = vld [vmem:[%s647] sm:$0x1]
      %v3667 = vsel %vm791, %v3661, 0.0
      %3668 = vadd.xlane.f32.xlu0 %v3667
      %v3669 = vpop.xlane.xlu0 %3668
      %v3670 = vsel %vm791, %v3662, 0.0
      %3671 = vadd.xlane.f32.xlu0 %v3670
      %v3672 = vpop.xlane.xlu0 %3671
      %v3673 = vsel %vm791, %v3663, 0.0
      %3674 = vadd.xlane.f32.xlu0 %v3673
      %v3675 = vpop.xlane.xlu0 %3674
      %v3676 = vsel %vm791, %v3664, 0.0
      %3677 = vadd.xlane.f32.xlu0 %v3676
      %v3678 = vpop.xlane.xlu0 %3677
      %v3679 = vmul.f32 %v3669, %v804
      %v3680 = vmul.f32 %v3672, %v804
      %v3681 = vmul.f32 %v3675, %v804
      %v3682 = vmul.f32 %v3678, %v804
      %v3683 = vsub.f32 %v3661, %v3679
      %v3684 = vsub.f32 %v3662, %v3680
      %v3685 = vsub.f32 %v3663, %v3681
      %v3686 = vsub.f32 %v3664, %v3682
      %v3687 = vmul.f32 %v3683, %v3683
      %v3688 = vmul.f32 %v3684, %v3684
      %v3689 = vmul.f32 %v3685, %v3685
      %v3690 = vmul.f32 %v3686, %v3686
      %v3691 = vsel %vm791, %v3687, 0.0
      %3692 = vadd.xlane.f32.xlu0 %v3691
      %v3693 = vpop.xlane.xlu0 %3692
      %v3694 = vsel %vm791, %v3688, 0.0
      %3695 = vadd.xlane.f32.xlu0 %v3694
      %v3696 = vpop.xlane.xlu0 %3695
      %v3697 = vsel %vm791, %v3689, 0.0
      %3698 = vadd.xlane.f32.xlu0 %v3697
      %v3699 = vpop.xlane.xlu0 %3698
      %v3700 = vsel %vm791, %v3690, 0.0
      %3701 = vadd.xlane.f32.xlu0 %v3700
      %v3702 = vpop.xlane.xlu0 %3701
      %v3703 = vmul.f32 %v3693, %v804
      %v3704 = vmul.f32 %v3696, %v804
      %v3705 = vmul.f32 %v3699, %v804
      %v3706 = vmul.f32 %v3702, %v804
      %v3707 = vadd.f32 %v3703, 1e-05
      %v3708 = vadd.f32 %v3704, 1e-05
      %v3709 = vadd.f32 %v3705, 1e-05
      %v3710 = vadd.f32 %v3706, 1e-05
      %v3711 = vrsqrt.pop %v3707
      %v3712 = vrsqrt.pop %v3708
      %v3713 = vrsqrt.pop %v3709
      %v3714 = vrsqrt.pop %v3710
      %v3715 = vmul.f32 %v3683, %v3711
      %v3716 = vmul.f32 %v3684, %v3712
      %v3717 = vmul.f32 %v3685, %v3713
      %v3718 = vmul.f32 %v3686, %v3714
      %v3720 = vlaneseq
      %v3721 = vshrl.u32 %v3720, 7
      %v3722 = vsub.s32 0, %v3721
      %v3723 = vrot.slane %v3665, %v3722
      %v3725 = vmul.f32 %v3715, %v3723
      %v3726 = vmul.f32 %v3716, %v3723
      %v3727 = vmul.f32 %v3717, %v3723
      %v3728 = vmul.f32 %v3718, %v3723
      %v3730 = vlaneseq
      %v3731 = vshrl.u32 %v3730, 7
      %v3732 = vsub.s32 0, %v3731
      %v3733 = vrot.slane %v3666, %v3732
      %v3735 = vadd.f32 %v3725, %v3733
      %v3736 = vadd.f32 %v3726, %v3733
      %v3737 = vadd.f32 %v3727, %v3733
      %v3738 = vadd.f32 %v3728, %v3733
      %v3739 = vpack.c.bf16 %v3736, %v3735
      %v3740 = vpack.c.bf16 %v3738, %v3737
      %v3741 = vld [vmem:[%s652] sm:$0xff]
      %v3742 = vld [vmem:[%s652 + $0x8] sm:$0xff]
      %v3743 = vld [vmem:[%s652 + $0x10] sm:$0xff]
      %v3744 = vld [vmem:[%s652 + $0x18] sm:$0xff]
      %v3745 = vld [vmem:[%s652 + $0x20] sm:$0xff]
      %v3746 = vld [vmem:[%s652 + $0x28] sm:$0xff]
      %v3747 = vld [vmem:[%s652 + $0x30] sm:$0xff]
      %v3748 = vld [vmem:[%s652 + $0x38] sm:$0xff]
      %v3749 = vld [vmem:[%s652 + $0x40] sm:$0xff]
      %v3750 = vld [vmem:[%s652 + $0x48] sm:$0xff]
      %v3751 = vld [vmem:[%s652 + $0x50] sm:$0xff]
      %v3752 = vld [vmem:[%s652 + $0x58] sm:$0xff]
      %v3753 = vld [vmem:[%s652 + $0x60] sm:$0xff]
      %v3754 = vld [vmem:[%s652 + $0x68] sm:$0xff]
      %v3755 = vld [vmem:[%s652 + $0x70] sm:$0xff]
      %v3756 = vld [vmem:[%s652 + $0x78] sm:$0xff]
      %v3757 = vld [vmem:[%s652 + $0x80] sm:$0xff]
      %v3758 = vld [vmem:[%s652 + $0x88] sm:$0xff]
      %v3759 = vld [vmem:[%s652 + $0x90] sm:$0xff]
      %v3760 = vld [vmem:[%s652 + $0x98] sm:$0xff]
      %v3761 = vld [vmem:[%s652 + $0xa0] sm:$0xff]
      %v3762 = vld [vmem:[%s652 + $0xa8] sm:$0xff]
      %v3763 = vld [vmem:[%s652 + $0xb0] sm:$0xff]
      %v3764 = vld [vmem:[%s652 + $0xb8] sm:$0xff]
      %v3765 = vld [vmem:[%s652 + $0xc0] sm:$0xff]
      %v3766 = vld [vmem:[%s652 + $0xc8] sm:$0xff]
      %v3767 = vld [vmem:[%s652 + $0xd0] sm:$0xff]
      %v3768 = vld [vmem:[%s652 + $0xd8] sm:$0xff]
      %v3769 = vld [vmem:[%s652 + $0xe0] sm:$0xff]
      %v3770 = vld [vmem:[%s652 + $0xe8] sm:$0xff]
      %v3771 = vld [vmem:[%s652 + $0xf0] sm:$0xff]
      %v3772 = vld [vmem:[%s652 + $0xf8] sm:$0xff]
      %v3773 = vld [vmem:[%s652 + $0x100] sm:$0xff]
      %v3774 = vld [vmem:[%s652 + $0x108] sm:$0xff]
      %v3775 = vld [vmem:[%s652 + $0x110] sm:$0xff]
      %v3776 = vld [vmem:[%s652 + $0x118] sm:$0xff]
      %v3777 = vld [vmem:[%s652 + $0x120] sm:$0xff]
      %v3778 = vld [vmem:[%s652 + $0x128] sm:$0xff]
      %v3779 = vld [vmem:[%s652 + $0x130] sm:$0xff]
      %v3780 = vld [vmem:[%s652 + $0x138] sm:$0xff]
      %v3781 = vld [vmem:[%s652 + $0x140] sm:$0xff]
      %v3782 = vld [vmem:[%s652 + $0x148] sm:$0xff]
      %v3783 = vld [vmem:[%s652 + $0x150] sm:$0xff]
      %v3784 = vld [vmem:[%s652 + $0x158] sm:$0xff]
      %v3785 = vld [vmem:[%s652 + $0x160] sm:$0xff]
      %v3786 = vld [vmem:[%s652 + $0x168] sm:$0xff]
      %v3787 = vld [vmem:[%s652 + $0x170] sm:$0xff]
      %v3788 = vld [vmem:[%s652 + $0x178] sm:$0xff]
      %v3789 = vld [vmem:[%s652 + $0x180] sm:$0xff]
      %v3790 = vld [vmem:[%s652 + $0x188] sm:$0xff]
      %v3791 = vld [vmem:[%s652 + $0x190] sm:$0xff]
      %v3792 = vld [vmem:[%s652 + $0x198] sm:$0xff]
      %v3793 = vld [vmem:[%s652 + $0x1a0] sm:$0xff]
      %v3794 = vld [vmem:[%s652 + $0x1a8] sm:$0xff]
      %v3795 = vld [vmem:[%s652 + $0x1b0] sm:$0xff]
      %v3796 = vld [vmem:[%s652 + $0x1b8] sm:$0xff]
      %v3797 = vld [vmem:[%s652 + $0x1c0] sm:$0xff]
      %v3798 = vld [vmem:[%s652 + $0x1c8] sm:$0xff]
      %v3799 = vld [vmem:[%s652 + $0x1d0] sm:$0xff]
      %v3800 = vld [vmem:[%s652 + $0x1d8] sm:$0xff]
      %v3801 = vld [vmem:[%s652 + $0x1e0] sm:$0xff]
      %v3802 = vld [vmem:[%s652 + $0x1e8] sm:$0xff]
      %v3803 = vld [vmem:[%s652 + $0x1f0] sm:$0xff]
      %v3804 = vld [vmem:[%s652 + $0x1f8] sm:$0xff]
      %v3805 = vld [vmem:[%s652 + $0x200] sm:$0xff]
      %v3806 = vld [vmem:[%s652 + $0x208] sm:$0xff]
      %v3807 = vld [vmem:[%s652 + $0x210] sm:$0xff]
      %v3808 = vld [vmem:[%s652 + $0x218] sm:$0xff]
      %v3809 = vld [vmem:[%s652 + $0x220] sm:$0xff]
      %v3810 = vld [vmem:[%s652 + $0x228] sm:$0xff]
      %v3811 = vld [vmem:[%s652 + $0x230] sm:$0xff]
      %v3812 = vld [vmem:[%s652 + $0x238] sm:$0xff]
      %v3813 = vld [vmem:[%s652 + $0x240] sm:$0xff]
      %v3814 = vld [vmem:[%s652 + $0x248] sm:$0xff]
      %v3815 = vld [vmem:[%s652 + $0x250] sm:$0xff]
      %v3816 = vld [vmem:[%s652 + $0x258] sm:$0xff]
      %v3817 = vld [vmem:[%s652 + $0x260] sm:$0xff]
      %v3818 = vld [vmem:[%s652 + $0x268] sm:$0xff]
      %v3819 = vld [vmem:[%s652 + $0x270] sm:$0xff]
      %v3820 = vld [vmem:[%s652 + $0x278] sm:$0xff]
      %v3821 = vld [vmem:[%s652 + $0x280] sm:$0xff]
      %v3822 = vld [vmem:[%s652 + $0x288] sm:$0xff]
      %v3823 = vld [vmem:[%s652 + $0x290] sm:$0xff]
      %v3824 = vld [vmem:[%s652 + $0x298] sm:$0xff]
      %v3825 = vld [vmem:[%s652 + $0x2a0] sm:$0xff]
      %v3826 = vld [vmem:[%s652 + $0x2a8] sm:$0xff]
      %v3827 = vld [vmem:[%s652 + $0x2b0] sm:$0xff]
      %v3828 = vld [vmem:[%s652 + $0x2b8] sm:$0xff]
      %v3829 = vld [vmem:[%s652 + $0x2c0] sm:$0xff]
      %v3830 = vld [vmem:[%s652 + $0x2c8] sm:$0xff]
      %v3831 = vld [vmem:[%s652 + $0x2d0] sm:$0xff]
      %v3832 = vld [vmem:[%s652 + $0x2d8] sm:$0xff]
      %v3833 = vld [vmem:[%s652 + $0x2e0] sm:$0xff]
      %v3834 = vld [vmem:[%s652 + $0x2e8] sm:$0xff]
      %v3835 = vld [vmem:[%s652 + $0x2f0] sm:$0xff]
      %v3836 = vld [vmem:[%s652 + $0x2f8] sm:$0xff]
      %v3837 = vld [vmem:[%s656] sm:$0xff]
      %v3838 = vld [vmem:[%s656 + $0x8] sm:$0xff]
      %v3841 = vlaneseq
      %v3842 = vshrl.u32 %v3841, 7
      %v3843 = vsub.s32 0, %v3842
      %v3844 = vrot.slane %v3837, %v3843
      %v3845 = vlaneseq
      %v3846 = vshrl.u32 %v3845, 7
      %v3847 = vsub.s32 1, %v3846
      %v3848 = vrot.slane %v3837, %v3847
      %v3849 = vlaneseq
      %v3850 = vshrl.u32 %v3849, 7
      %v3851 = vsub.s32 2, %v3850
      %v3852 = vrot.slane %v3837, %v3851
      %v3853 = vlaneseq
      %v3854 = vshrl.u32 %v3853, 7
      %v3855 = vsub.s32 3, %v3854
      %v3856 = vrot.slane %v3837, %v3855
      %v3857 = vlaneseq
      %v3858 = vshrl.u32 %v3857, 7
      %v3859 = vsub.s32 4, %v3858
      %v3860 = vrot.slane %v3837, %v3859
      %v3861 = vlaneseq
      %v3862 = vshrl.u32 %v3861, 7
      %v3863 = vsub.s32 5, %v3862
      %v3864 = vrot.slane %v3837, %v3863
      %v3865 = vlaneseq
      %v3866 = vshrl.u32 %v3865, 7
      %v3867 = vsub.s32 6, %v3866
      %v3868 = vrot.slane %v3837, %v3867
      %v3869 = vlaneseq
      %v3870 = vshrl.u32 %v3869, 7
      %v3871 = vsub.s32 7, %v3870
      %v3872 = vrot.slane %v3837, %v3871
      %v3873 = vlaneseq
      %v3874 = vshrl.u32 %v3873, 7
      %v3875 = vsub.s32 0, %v3874
      %v3876 = vrot.slane %v3838, %v3875
      %v3877 = vlaneseq
      %v3878 = vshrl.u32 %v3877, 7
      %v3879 = vsub.s32 1, %v3878
      %v3880 = vrot.slane %v3838, %v3879
      %v3881 = vlaneseq
      %v3882 = vshrl.u32 %v3881, 7
      %v3883 = vsub.s32 2, %v3882
      %v3884 = vrot.slane %v3838, %v3883
      %v3885 = vlaneseq
      %v3886 = vshrl.u32 %v3885, 7
      %v3887 = vsub.s32 3, %v3886
      %v3888 = vrot.slane %v3838, %v3887
      %v3889 = vlaneseq
      %v3890 = vshrl.u32 %v3889, 7
      %v3891 = vsub.s32 4, %v3890
      %v3892 = vrot.slane %v3838, %v3891
      %v3893 = vlaneseq
      %v3894 = vshrl.u32 %v3893, 7
      %v3895 = vsub.s32 5, %v3894
      %v3896 = vrot.slane %v3838, %v3895
      %v3897 = vlaneseq
      %v3898 = vshrl.u32 %v3897, 7
      %v3899 = vsub.s32 6, %v3898
      %v3900 = vrot.slane %v3838, %v3899
      %v3901 = vlaneseq
      %v3902 = vshrl.u32 %v3901, 7
      %v3903 = vsub.s32 7, %v3902
      %v3904 = vrot.slane %v3838, %v3903
      %v4017 = vunpack.c.l.b16 %v3741
      %v4018 = vunpack.c.h.b16 %v3741
      %v4019 = vunpack.c.l.b16 %v3742
      %v4020 = vunpack.c.h.b16 %v3742
      %v4021 = vunpack.c.l.b16 %v3743
      %v4022 = vunpack.c.h.b16 %v3743
      %v4023 = vunpack.c.l.b16 %v3744
      %v4024 = vunpack.c.h.b16 %v3744
      %v4025 = vunpack.c.l.b16 %v3745
      %v4026 = vunpack.c.h.b16 %v3745
      %v4027 = vunpack.c.l.b16 %v3746
      %v4028 = vunpack.c.h.b16 %v3746
      %v4029 = vunpack.c.l.b16 %v3747
      %v4030 = vunpack.c.h.b16 %v3747
      %v4031 = vunpack.c.l.b16 %v3748
      %v4032 = vunpack.c.h.b16 %v3748
      %v4033 = vunpack.c.l.b16 %v3749
      %v4034 = vunpack.c.h.b16 %v3749
      %v4035 = vunpack.c.l.b16 %v3750
      %v4036 = vunpack.c.h.b16 %v3750
      %v4037 = vunpack.c.l.b16 %v3751
      %v4038 = vunpack.c.h.b16 %v3751
      %v4039 = vunpack.c.l.b16 %v3752
      %v4040 = vunpack.c.h.b16 %v3752
      %v4041 = vunpack.c.l.b16 %v3753
      %v4042 = vunpack.c.h.b16 %v3753
      %v4043 = vunpack.c.l.b16 %v3754
      %v4044 = vunpack.c.h.b16 %v3754
      %v4045 = vunpack.c.l.b16 %v3755
      %v4046 = vunpack.c.h.b16 %v3755
      %v4047 = vunpack.c.l.b16 %v3756
      %v4048 = vunpack.c.h.b16 %v3756
      %v4049 = vunpack.c.l.b16 %v3757
      %v4050 = vunpack.c.h.b16 %v3757
      %v4051 = vunpack.c.l.b16 %v3758
      %v4052 = vunpack.c.h.b16 %v3758
      %v4053 = vunpack.c.l.b16 %v3759
      %v4054 = vunpack.c.h.b16 %v3759
      %v4055 = vunpack.c.l.b16 %v3760
      %v4056 = vunpack.c.h.b16 %v3760
      %v4057 = vunpack.c.l.b16 %v3761
      %v4058 = vunpack.c.h.b16 %v3761
      %v4059 = vunpack.c.l.b16 %v3762
      %v4060 = vunpack.c.h.b16 %v3762
      %v4061 = vunpack.c.l.b16 %v3763
      %v4062 = vunpack.c.h.b16 %v3763
      %v4063 = vunpack.c.l.b16 %v3764
      %v4064 = vunpack.c.h.b16 %v3764
      %v4065 = vunpack.c.l.b16 %v3765
      %v4066 = vunpack.c.h.b16 %v3765
      %v4067 = vunpack.c.l.b16 %v3766
      %v4068 = vunpack.c.h.b16 %v3766
      %v4069 = vunpack.c.l.b16 %v3767
      %v4070 = vunpack.c.h.b16 %v3767
      %v4071 = vunpack.c.l.b16 %v3768
      %v4072 = vunpack.c.h.b16 %v3768
      %v4073 = vunpack.c.l.b16 %v3769
      %v4074 = vunpack.c.h.b16 %v3769
      %v4075 = vunpack.c.l.b16 %v3770
      %v4076 = vunpack.c.h.b16 %v3770
      %v4077 = vunpack.c.l.b16 %v3771
      %v4078 = vunpack.c.h.b16 %v3771
      %v4079 = vunpack.c.l.b16 %v3772
      %v4080 = vunpack.c.h.b16 %v3772
      %v4081 = vunpack.c.l.b16 %v3773
      %v4082 = vunpack.c.h.b16 %v3773
      %v4083 = vunpack.c.l.b16 %v3774
      %v4084 = vunpack.c.h.b16 %v3774
      %v4085 = vunpack.c.l.b16 %v3775
      %v4086 = vunpack.c.h.b16 %v3775
      %v4087 = vunpack.c.l.b16 %v3776
      %v4088 = vunpack.c.h.b16 %v3776
      %v4089 = vunpack.c.l.b16 %v3777
      %v4090 = vunpack.c.h.b16 %v3777
      %v4091 = vunpack.c.l.b16 %v3778
      %v4092 = vunpack.c.h.b16 %v3778
      %v4093 = vunpack.c.l.b16 %v3779
      %v4094 = vunpack.c.h.b16 %v3779
      %v4095 = vunpack.c.l.b16 %v3780
      %v4096 = vunpack.c.h.b16 %v3780
      %v4097 = vunpack.c.l.b16 %v3781
      %v4098 = vunpack.c.h.b16 %v3781
      %v4099 = vunpack.c.l.b16 %v3782
      %v4100 = vunpack.c.h.b16 %v3782
      %v4101 = vunpack.c.l.b16 %v3783
      %v4102 = vunpack.c.h.b16 %v3783
      %v4103 = vunpack.c.l.b16 %v3784
      %v4104 = vunpack.c.h.b16 %v3784
      %v4105 = vunpack.c.l.b16 %v3785
      %v4106 = vunpack.c.h.b16 %v3785
      %v4107 = vunpack.c.l.b16 %v3786
      %v4108 = vunpack.c.h.b16 %v3786
      %v4109 = vunpack.c.l.b16 %v3787
      %v4110 = vunpack.c.h.b16 %v3787
      %v4111 = vunpack.c.l.b16 %v3788
      %v4112 = vunpack.c.h.b16 %v3788
      %v4113 = vunpack.c.l.b16 %v3789
      %v4114 = vunpack.c.h.b16 %v3789
      %v4115 = vunpack.c.l.b16 %v3790
      %v4116 = vunpack.c.h.b16 %v3790
      %v4117 = vunpack.c.l.b16 %v3791
      %v4118 = vunpack.c.h.b16 %v3791
      %v4119 = vunpack.c.l.b16 %v3792
      %v4120 = vunpack.c.h.b16 %v3792
      %v4121 = vunpack.c.l.b16 %v3793
      %v4122 = vunpack.c.h.b16 %v3793
      %v4123 = vunpack.c.l.b16 %v3794
      %v4124 = vunpack.c.h.b16 %v3794
      %v4125 = vunpack.c.l.b16 %v3795
      %v4126 = vunpack.c.h.b16 %v3795
      %v4127 = vunpack.c.l.b16 %v3796
      %v4128 = vunpack.c.h.b16 %v3796
      %v4129 = vunpack.c.l.b16 %v3797
      %v4130 = vunpack.c.h.b16 %v3797
      %v4131 = vunpack.c.l.b16 %v3798
      %v4132 = vunpack.c.h.b16 %v3798
      %v4133 = vunpack.c.l.b16 %v3799
      %v4134 = vunpack.c.h.b16 %v3799
      %v4135 = vunpack.c.l.b16 %v3800
      %v4136 = vunpack.c.h.b16 %v3800
      %v4137 = vunpack.c.l.b16 %v3801
      %v4138 = vunpack.c.h.b16 %v3801
      %v4139 = vunpack.c.l.b16 %v3802
      %v4140 = vunpack.c.h.b16 %v3802
      %v4141 = vunpack.c.l.b16 %v3803
      %v4142 = vunpack.c.h.b16 %v3803
      %v4143 = vunpack.c.l.b16 %v3804
      %v4144 = vunpack.c.h.b16 %v3804
      %v4145 = vunpack.c.l.b16 %v3805
      %v4146 = vunpack.c.h.b16 %v3805
      %v4147 = vunpack.c.l.b16 %v3806
      %v4148 = vunpack.c.h.b16 %v3806
      %v4149 = vunpack.c.l.b16 %v3807
      %v4150 = vunpack.c.h.b16 %v3807
      %v4151 = vunpack.c.l.b16 %v3808
      %v4152 = vunpack.c.h.b16 %v3808
      %v4153 = vunpack.c.l.b16 %v3809
      %v4154 = vunpack.c.h.b16 %v3809
      %v4155 = vunpack.c.l.b16 %v3810
      %v4156 = vunpack.c.h.b16 %v3810
      %v4157 = vunpack.c.l.b16 %v3811
      %v4158 = vunpack.c.h.b16 %v3811
      %v4159 = vunpack.c.l.b16 %v3812
      %v4160 = vunpack.c.h.b16 %v3812
      %v4161 = vunpack.c.l.b16 %v3813
      %v4162 = vunpack.c.h.b16 %v3813
      %v4163 = vunpack.c.l.b16 %v3814
      %v4164 = vunpack.c.h.b16 %v3814
      %v4165 = vunpack.c.l.b16 %v3815
      %v4166 = vunpack.c.h.b16 %v3815
      %v4167 = vunpack.c.l.b16 %v3816
      %v4168 = vunpack.c.h.b16 %v3816
      %v4169 = vunpack.c.l.b16 %v3817
      %v4170 = vunpack.c.h.b16 %v3817
      %v4171 = vunpack.c.l.b16 %v3818
      %v4172 = vunpack.c.h.b16 %v3818
      %v4173 = vunpack.c.l.b16 %v3819
      %v4174 = vunpack.c.h.b16 %v3819
      %v4175 = vunpack.c.l.b16 %v3820
      %v4176 = vunpack.c.h.b16 %v3820
      %v4177 = vunpack.c.l.b16 %v3821
      %v4178 = vunpack.c.h.b16 %v3821
      %v4179 = vunpack.c.l.b16 %v3822
      %v4180 = vunpack.c.h.b16 %v3822
      %v4181 = vunpack.c.l.b16 %v3823
      %v4182 = vunpack.c.h.b16 %v3823
      %v4183 = vunpack.c.l.b16 %v3824
      %v4184 = vunpack.c.h.b16 %v3824
      %v4185 = vunpack.c.l.b16 %v3825
      %v4186 = vunpack.c.h.b16 %v3825
      %v4187 = vunpack.c.l.b16 %v3826
      %v4188 = vunpack.c.h.b16 %v3826
      %v4189 = vunpack.c.l.b16 %v3827
      %v4190 = vunpack.c.h.b16 %v3827
      %v4191 = vunpack.c.l.b16 %v3828
      %v4192 = vunpack.c.h.b16 %v3828
      %v4193 = vunpack.c.l.b16 %v3829
      %v4194 = vunpack.c.h.b16 %v3829
      %v4195 = vunpack.c.l.b16 %v3830
      %v4196 = vunpack.c.h.b16 %v3830
      %v4197 = vunpack.c.l.b16 %v3831
      %v4198 = vunpack.c.h.b16 %v3831
      %v4199 = vunpack.c.l.b16 %v3832
      %v4200 = vunpack.c.h.b16 %v3832
      %v4201 = vunpack.c.l.b16 %v3833
      %v4202 = vunpack.c.h.b16 %v3833
      %v4203 = vunpack.c.l.b16 %v3834
      %v4204 = vunpack.c.h.b16 %v3834
      %v4205 = vunpack.c.l.b16 %v3835
      %v4206 = vunpack.c.h.b16 %v3835
      %v4207 = vunpack.c.l.b16 %v3836
      %v4208 = vunpack.c.h.b16 %v3836
      %v4209 = vpack.c.b16 %v4033, %v4017
      %v4210 = vpack.c.b16 %v4034, %v4018
      %v4211 = vpack.c.b16 %v4035, %v4019
      %v4212 = vpack.c.b16 %v4036, %v4020
      %v4213 = vpack.c.b16 %v4037, %v4021
      %v4214 = vpack.c.b16 %v4038, %v4022
      %v4215 = vpack.c.b16 %v4039, %v4023
      %v4216 = vpack.c.b16 %v4040, %v4024
      %v4217 = vpack.c.b16 %v4041, %v4025
      %v4218 = vpack.c.b16 %v4042, %v4026
      %v4219 = vpack.c.b16 %v4043, %v4027
      %v4220 = vpack.c.b16 %v4044, %v4028
      %v4221 = vpack.c.b16 %v4045, %v4029
      %v4222 = vpack.c.b16 %v4046, %v4030
      %v4223 = vpack.c.b16 %v4047, %v4031
      %v4224 = vpack.c.b16 %v4048, %v4032
      %v4225 = vpack.c.b16 %v4065, %v4049
      %v4226 = vpack.c.b16 %v4066, %v4050
      %v4227 = vpack.c.b16 %v4067, %v4051
      %v4228 = vpack.c.b16 %v4068, %v4052
      %v4229 = vpack.c.b16 %v4069, %v4053
      %v4230 = vpack.c.b16 %v4070, %v4054
      %v4231 = vpack.c.b16 %v4071, %v4055
      %v4232 = vpack.c.b16 %v4072, %v4056
      %v4233 = vpack.c.b16 %v4073, %v4057
      %v4234 = vpack.c.b16 %v4074, %v4058
      %v4235 = vpack.c.b16 %v4075, %v4059
      %v4236 = vpack.c.b16 %v4076, %v4060
      %v4237 = vpack.c.b16 %v4077, %v4061
      %v4238 = vpack.c.b16 %v4078, %v4062
      %v4239 = vpack.c.b16 %v4079, %v4063
      %v4240 = vpack.c.b16 %v4080, %v4064
      %v4241 = vpack.c.b16 %v4097, %v4081
      %v4242 = vpack.c.b16 %v4098, %v4082
      %v4243 = vpack.c.b16 %v4099, %v4083
      %v4244 = vpack.c.b16 %v4100, %v4084
      %v4245 = vpack.c.b16 %v4101, %v4085
      %v4246 = vpack.c.b16 %v4102, %v4086
      %v4247 = vpack.c.b16 %v4103, %v4087
      %v4248 = vpack.c.b16 %v4104, %v4088
      %v4249 = vpack.c.b16 %v4105, %v4089
      %v4250 = vpack.c.b16 %v4106, %v4090
      %v4251 = vpack.c.b16 %v4107, %v4091
      %v4252 = vpack.c.b16 %v4108, %v4092
      %v4253 = vpack.c.b16 %v4109, %v4093
      %v4254 = vpack.c.b16 %v4110, %v4094
      %v4255 = vpack.c.b16 %v4111, %v4095
      %v4256 = vpack.c.b16 %v4112, %v4096
      %v4257 = vpack.c.b16 %v4129, %v4113
      %v4258 = vpack.c.b16 %v4130, %v4114
      %v4259 = vpack.c.b16 %v4131, %v4115
      %v4260 = vpack.c.b16 %v4132, %v4116
      %v4261 = vpack.c.b16 %v4133, %v4117
      %v4262 = vpack.c.b16 %v4134, %v4118
      %v4263 = vpack.c.b16 %v4135, %v4119
      %v4264 = vpack.c.b16 %v4136, %v4120
      %v4265 = vpack.c.b16 %v4137, %v4121
      %v4266 = vpack.c.b16 %v4138, %v4122
      %v4267 = vpack.c.b16 %v4139, %v4123
      %v4268 = vpack.c.b16 %v4140, %v4124
      %v4269 = vpack.c.b16 %v4141, %v4125
      %v4270 = vpack.c.b16 %v4142, %v4126
      %v4271 = vpack.c.b16 %v4143, %v4127
      %v4272 = vpack.c.b16 %v4144, %v4128
      %v4273 = vpack.c.b16 %v4161, %v4145
      %v4274 = vpack.c.b16 %v4162, %v4146
      %v4275 = vpack.c.b16 %v4163, %v4147
      %v4276 = vpack.c.b16 %v4164, %v4148
      %v4277 = vpack.c.b16 %v4165, %v4149
      %v4278 = vpack.c.b16 %v4166, %v4150
      %v4279 = vpack.c.b16 %v4167, %v4151
      %v4280 = vpack.c.b16 %v4168, %v4152
      %v4281 = vpack.c.b16 %v4169, %v4153
      %v4282 = vpack.c.b16 %v4170, %v4154
      %v4283 = vpack.c.b16 %v4171, %v4155
      %v4284 = vpack.c.b16 %v4172, %v4156
      %v4285 = vpack.c.b16 %v4173, %v4157
      %v4286 = vpack.c.b16 %v4174, %v4158
      %v4287 = vpack.c.b16 %v4175, %v4159
      %v4288 = vpack.c.b16 %v4176, %v4160
      %v4289 = vpack.c.b16 %v4193, %v4177
      %v4290 = vpack.c.b16 %v4194, %v4178
      %v4291 = vpack.c.b16 %v4195, %v4179
      %v4292 = vpack.c.b16 %v4196, %v4180
      %v4293 = vpack.c.b16 %v4197, %v4181
      %v4294 = vpack.c.b16 %v4198, %v4182
      %v4295 = vpack.c.b16 %v4199, %v4183
      %v4296 = vpack.c.b16 %v4200, %v4184
      %v4297 = vpack.c.b16 %v4201, %v4185
      %v4298 = vpack.c.b16 %v4202, %v4186
      %v4299 = vpack.c.b16 %v4203, %v4187
      %v4300 = vpack.c.b16 %v4204, %v4188
      %v4301 = vpack.c.b16 %v4205, %v4189
      %v4302 = vpack.c.b16 %v4206, %v4190
      %v4303 = vpack.c.b16 %v4207, %v4191
      %v4304 = vpack.c.b16 %v4208, %v4192
      %v4402 = vsel %vm791, %v3739, 0
      %v4405 = vsel %vm791, %v3740, 0
      %4407 = vmatprep.subr.bf16.mxu0 %v4210
      %4408 = vmatpush1.bf16.msra.mxu0 %v4209
      %4409 = vmatprep.subr.bf16.mxu0 %v4226
      %4410 = vmatpush1.bf16.msra.mxu0 %v4225
      %4411 = vmatprep.subr.bf16.mxu0 %v4242
      %4412 = vmatpush1.bf16.msra.mxu0 %v4241
      %4413 = vmatprep.subr.bf16.mxu0 %v4258
      %4414 = vmatpush1.bf16.msra.mxu0 %v4257
      %4415 = vmatprep.subr.bf16.mxu0 %v4274
      %4416 = vmatpush1.bf16.msra.mxu0 %v4273
      %4417 = vmatprep.subr.bf16.mxu0 %v4290
      %4418 = vmatpush1.bf16.msra.mxu0 %v4289
      %4419 = vmatprep.subr.bf16.mxu0 0
      %4420 = vmatpush1.bf16.msra.mxu0 0
      %4421 = vmatprep.subr.bf16.mxu0 0
      %4422 = vmatpush1.bf16.msra.mxu0 0
      %4423 = vmatprep.subr.bf16.mxu0 0
      %4424 = vmatpush1.bf16.msra.mxu0 0
      %4425 = vmatprep.subr.bf16.mxu0 0
      %4426 = vmatpush1.bf16.msra.mxu0 0
      %4427 = vmatprep.subr.bf16.mxu0 0
      %4428 = vmatpush1.bf16.msra.mxu0 0
      %4429 = vmatprep.subr.bf16.mxu0 0
      %4430 = vmatpush1.bf16.msra.mxu0 0
      %4431 = vmatprep.subr.bf16.mxu0 0
      %4432 = vmatpush1.bf16.msra.mxu0 0
      %4433 = vmatprep.subr.bf16.mxu0 0
      %4434 = vmatpush1.bf16.msra.mxu0 0
      %4435 = vmatprep.subr.bf16.mxu0 0
      %4436 = vmatpush1.bf16.msra.mxu0 0
      %4437 = vmatprep.subr.bf16.mxu0 0
      %4438 = vmatpush1.bf16.msra.mxu0 0
      %4439 = vmatprep.mubr.bf16.mxu0 0
      %4440 = vmatmul.mubr.bf16.gmra.mrb[0].mxu0 %v4402
      %v4441 = vpop.f32.mrb[0].mxu0
      %v4442 = vadd.f32 %v3844, %v4441
      %v4443 = vpop.f32.mrb[0].mxu0
      %v4444 = vadd.f32 %v3848, %v4443
      %v4445 = vpop.f32.mrb[0].mxu0
      %v4446 = vadd.f32 %v3844, %v4445
      %v4447 = vpop.f32.mrb[0].mxu0
      %v4448 = vadd.f32 %v3848, %v4447
      %4449 = vmatprep.mubr.bf16.mxu0 0
      %4450 = vmatmul.mubr.bf16.gmra.mrb[0].mxu0 %v4405
      %v4451 = vpop.f32.mrb[0].mxu0
      %v4452 = vadd.f32 %v3844, %v4451
      %v4453 = vpop.f32.mrb[0].mxu0
      %v4454 = vadd.f32 %v3848, %v4453
      %v4455 = vpop.f32.mrb[0].mxu0
      %v4456 = vadd.f32 %v3844, %v4455
      %v4457 = vpop.f32.mrb[0].mxu0
      %v4458 = vadd.f32 %v3848, %v4457
      %4459 = vdwg.mxu0
      %4460 = vmatprep.subr.bf16.mxu0 %v4212
      %4461 = vmatpush1.bf16.msra.mxu0 %v4211
      %4462 = vmatprep.subr.bf16.mxu0 %v4228
      %4463 = vmatpush1.bf16.msra.mxu0 %v4227
      %4464 = vmatprep.subr.bf16.mxu0 %v4244
      %4465 = vmatpush1.bf16.msra.mxu0 %v4243
      %4466 = vmatprep.subr.bf16.mxu0 %v4260
      %4467 = vmatpush1.bf16.msra.mxu0 %v4259
      %4468 = vmatprep.subr.bf16.mxu0 %v4276
      %4469 = vmatpush1.bf16.msra.mxu0 %v4275
      %4470 = vmatprep.subr.bf16.mxu0 %v4292
      %4471 = vmatpush1.bf16.msra.mxu0 %v4291
      %4472 = vmatprep.subr.bf16.mxu0 0
      %4473 = vmatpush1.bf16.msra.mxu0 0
      %4474 = vmatprep.subr.bf16.mxu0 0
      %4475 = vmatpush1.bf16.msra.mxu0 0
      %4476 = vmatprep.subr.bf16.mxu0 0
      %4477 = vmatpush1.bf16.msra.mxu0 0
      %4478 = vmatprep.subr.bf16.mxu0 0
      %4479 = vmatpush1.bf16.msra.mxu0 0
      %4480 = vmatprep.subr.bf16.mxu0 0
      %4481 = vmatpush1.bf16.msra.mxu0 0
      %4482 = vmatprep.subr.bf16.mxu0 0
      %4483 = vmatpush1.bf16.msra.mxu0 0
      %4484 = vmatprep.subr.bf16.mxu0 0
      %4485 = vmatpush1.bf16.msra.mxu0 0
      %4486 = vmatprep.subr.bf16.mxu0 0
      %4487 = vmatpush1.bf16.msra.mxu0 0
      %4488 = vmatprep.subr.bf16.mxu0 0
      %4489 = vmatpush1.bf16.msra.mxu0 0
      %4490 = vmatprep.subr.bf16.mxu0 0
      %4491 = vmatpush1.bf16.msra.mxu0 0
      %4492 = vmatprep.mubr.bf16.mxu0 0
      %4493 = vmatmul.mubr.bf16.gmra.mrb[0].mxu0 %v4402
      %v4494 = vpop.f32.mrb[0].mxu0
      %v4495 = vadd.f32 %v3852, %v4494
      %v4496 = vpop.f32.mrb[0].mxu0
      %v4497 = vadd.f32 %v3856, %v4496
      %v4498 = vpop.f32.mrb[0].mxu0
      %v4499 = vadd.f32 %v3852, %v4498
      %v4500 = vpop.f32.mrb[0].mxu0
      %v4501 = vadd.f32 %v3856, %v4500
      %4502 = vmatprep.mubr.bf16.mxu0 0
      %4503 = vmatmul.mubr.bf16.gmra.mrb[0].mxu0 %v4405
      %v4504 = vpop.f32.mrb[0].mxu0
      %v4505 = vadd.f32 %v3852, %v4504
      %v4506 = vpop.f32.mrb[0].mxu0
      %v4507 = vadd.f32 %v3856, %v4506
      %v4508 = vpop.f32.mrb[0].mxu0
      %v4509 = vadd.f32 %v3852, %v4508
      %v4510 = vpop.f32.mrb[0].mxu0
      %v4511 = vadd.f32 %v3856, %v4510
      %4512 = vdwg.mxu0
      %4513 = vmatprep.subr.bf16.mxu0 %v4214
      %4514 = vmatpush1.bf16.msra.mxu0 %v4213
      %4515 = vmatprep.subr.bf16.mxu0 %v4230
      %4516 = vmatpush1.bf16.msra.mxu0 %v4229
      %4517 = vmatprep.subr.bf16.mxu0 %v4246
      %4518 = vmatpush1.bf16.msra.mxu0 %v4245
      %4519 = vmatprep.subr.bf16.mxu0 %v4262
      %4520 = vmatpush1.bf16.msra.mxu0 %v4261
      %4521 = vmatprep.subr.bf16.mxu0 %v4278
      %4522 = vmatpush1.bf16.msra.mxu0 %v4277
      %4523 = vmatprep.subr.bf16.mxu0 %v4294
      %4524 = vmatpush1.bf16.msra.mxu0 %v4293
      %4525 = vmatprep.subr.bf16.mxu0 0
      %4526 = vmatpush1.bf16.msra.mxu0 0
      %4527 = vmatprep.subr.bf16.mxu0 0
      %4528 = vmatpush1.bf16.msra.mxu0 0
      %4529 = vmatprep.subr.bf16.mxu0 0
      %4530 = vmatpush1.bf16.msra.mxu0 0
      %4531 = vmatprep.subr.bf16.mxu0 0
      %4532 = vmatpush1.bf16.msra.mxu0 0
      %4533 = vmatprep.subr.bf16.mxu0 0
      %4534 = vmatpush1.bf16.msra.mxu0 0
      %4535 = vmatprep.subr.bf16.mxu0 0
      %4536 = vmatpush1.bf16.msra.mxu0 0
      %4537 = vmatprep.subr.bf16.mxu0 0
      %4538 = vmatpush1.bf16.msra.mxu0 0
      %4539 = vmatprep.subr.bf16.mxu0 0
      %4540 = vmatpush1.bf16.msra.mxu0 0
      %4541 = vmatprep.subr.bf16.mxu0 0
      %4542 = vmatpush1.bf16.msra.mxu0 0
      %4543 = vmatprep.subr.bf16.mxu0 0
      %4544 = vmatpush1.bf16.msra.mxu0 0
      %4545 = vmatprep.mubr.bf16.mxu0 0
      %4546 = vmatmul.mubr.bf16.gmra.mrb[0].mxu0 %v4402
      %v4547 = vpop.f32.mrb[0].mxu0
      %v4548 = vadd.f32 %v3860, %v4547
      %v4549 = vpop.f32.mrb[0].mxu0
      %v4550 = vadd.f32 %v3864, %v4549
      %v4551 = vpop.f32.mrb[0].mxu0
      %v4552 = vadd.f32 %v3860, %v4551
      %v4553 = vpop.f32.mrb[0].mxu0
      %v4554 = vadd.f32 %v3864, %v4553
      %4555 = vmatprep.mubr.bf16.mxu0 0
      %4556 = vmatmul.mubr.bf16.gmra.mrb[0].mxu0 %v4405
      %v4557 = vpop.f32.mrb[0].mxu0
      %v4558 = vadd.f32 %v3860, %v4557
      %v4559 = vpop.f32.mrb[0].mxu0
      %v4560 = vadd.f32 %v3864, %v4559
      %v4561 = vpop.f32.mrb[0].mxu0
      %v4562 = vadd.f32 %v3860, %v4561
      %v4563 = vpop.f32.mrb[0].mxu0
      %v4564 = vadd.f32 %v3864, %v4563
      %4565 = vdwg.mxu0
      %4566 = vmatprep.subr.bf16.mxu0 %v4216
      %4567 = vmatpush1.bf16.msra.mxu0 %v4215
      %4568 = vmatprep.subr.bf16.mxu0 %v4232
      %4569 = vmatpush1.bf16.msra.mxu0 %v4231
      %4570 = vmatprep.subr.bf16.mxu0 %v4248
      %4571 = vmatpush1.bf16.msra.mxu0 %v4247
      %4572 = vmatprep.subr.bf16.mxu0 %v4264
      %4573 = vmatpush1.bf16.msra.mxu0 %v4263
      %4574 = vmatprep.subr.bf16.mxu0 %v4280
      %4575 = vmatpush1.bf16.msra.mxu0 %v4279
      %4576 = vmatprep.subr.bf16.mxu0 %v4296
      %4577 = vmatpush1.bf16.msra.mxu0 %v4295
      %4578 = vmatprep.subr.bf16.mxu0 0
      %4579 = vmatpush1.bf16.msra.mxu0 0
      %4580 = vmatprep.subr.bf16.mxu0 0
      %4581 = vmatpush1.bf16.msra.mxu0 0
      %4582 = vmatprep.subr.bf16.mxu0 0
      %4583 = vmatpush1.bf16.msra.mxu0 0
      %4584 = vmatprep.subr.bf16.mxu0 0
      %4585 = vmatpush1.bf16.msra.mxu0 0
      %4586 = vmatprep.subr.bf16.mxu0 0
      %4587 = vmatpush1.bf16.msra.mxu0 0
      %4588 = vmatprep.subr.bf16.mxu0 0
      %4589 = vmatpush1.bf16.msra.mxu0 0
      %4590 = vmatprep.subr.bf16.mxu0 0
      %4591 = vmatpush1.bf16.msra.mxu0 0
      %4592 = vmatprep.subr.bf16.mxu0 0
      %4593 = vmatpush1.bf16.msra.mxu0 0
      %4594 = vmatprep.subr.bf16.mxu0 0
      %4595 = vmatpush1.bf16.msra.mxu0 0
      %4596 = vmatprep.subr.bf16.mxu0 0
      %4597 = vmatpush1.bf16.msra.mxu0 0
      %4598 = vmatprep.mubr.bf16.mxu0 0
      %4599 = vmatmul.mubr.bf16.gmra.mrb[0].mxu0 %v4402
      %v4600 = vpop.f32.mrb[0].mxu0
      %v4601 = vadd.f32 %v3868, %v4600
      %v4602 = vpop.f32.mrb[0].mxu0
      %v4603 = vadd.f32 %v3872, %v4602
      %v4604 = vpop.f32.mrb[0].mxu0
      %v4605 = vadd.f32 %v3868, %v4604
      %v4606 = vpop.f32.mrb[0].mxu0
      %v4607 = vadd.f32 %v3872, %v4606
      %4608 = vmatprep.mubr.bf16.mxu0 0
      %4609 = vmatmul.mubr.bf16.gmra.mrb[0].mxu0 %v4405
      %v4610 = vpop.f32.mrb[0].mxu0
      %v4611 = vadd.f32 %v3868, %v4610
      %v4612 = vpop.f32.mrb[0].mxu0
      %v4613 = vadd.f32 %v3872, %v4612
      %v4614 = vpop.f32.mrb[0].mxu0
      %v4615 = vadd.f32 %v3868, %v4614
      %v4616 = vpop.f32.mrb[0].mxu0
      %v4617 = vadd.f32 %v3872, %v4616
      %4618 = vdwg.mxu0
      %4619 = vmatprep.subr.bf16.mxu0 %v4218
      %4620 = vmatpush1.bf16.msra.mxu0 %v4217
      %4621 = vmatprep.subr.bf16.mxu0 %v4234
      %4622 = vmatpush1.bf16.msra.mxu0 %v4233
      %4623 = vmatprep.subr.bf16.mxu0 %v4250
      %4624 = vmatpush1.bf16.msra.mxu0 %v4249
      %4625 = vmatprep.subr.bf16.mxu0 %v4266
      %4626 = vmatpush1.bf16.msra.mxu0 %v4265
      %4627 = vmatprep.subr.bf16.mxu0 %v4282
      %4628 = vmatpush1.bf16.msra.mxu0 %v4281
      %4629 = vmatprep.subr.bf16.mxu0 %v4298
      %4630 = vmatpush1.bf16.msra.mxu0 %v4297
      %4631 = vmatprep.subr.bf16.mxu0 0
      %4632 = vmatpush1.bf16.msra.mxu0 0
      %4633 = vmatprep.subr.bf16.mxu0 0
      %4634 = vmatpush1.bf16.msra.mxu0 0
      %4635 = vmatprep.subr.bf16.mxu0 0
      %4636 = vmatpush1.bf16.msra.mxu0 0
      %4637 = vmatprep.subr.bf16.mxu0 0
      %4638 = vmatpush1.bf16.msra.mxu0 0
      %4639 = vmatprep.subr.bf16.mxu0 0
      %4640 = vmatpush1.bf16.msra.mxu0 0
      %4641 = vmatprep.subr.bf16.mxu0 0
      %4642 = vmatpush1.bf16.msra.mxu0 0
      %4643 = vmatprep.subr.bf16.mxu0 0
      %4644 = vmatpush1.bf16.msra.mxu0 0
      %4645 = vmatprep.subr.bf16.mxu0 0
      %4646 = vmatpush1.bf16.msra.mxu0 0
      %4647 = vmatprep.subr.bf16.mxu0 0
      %4648 = vmatpush1.bf16.msra.mxu0 0
      %4649 = vmatprep.subr.bf16.mxu0 0
      %4650 = vmatpush1.bf16.msra.mxu0 0
      %4651 = vmatprep.mubr.bf16.mxu0 0
      %4652 = vmatmul.mubr.bf16.gmra.mrb[0].mxu0 %v4402
      %v4653 = vpop.f32.mrb[0].mxu0
      %v4654 = vadd.f32 %v3876, %v4653
      %v4655 = vpop.f32.mrb[0].mxu0
      %v4656 = vadd.f32 %v3880, %v4655
      %v4657 = vpop.f32.mrb[0].mxu0
      %v4658 = vadd.f32 %v3876, %v4657
      %v4659 = vpop.f32.mrb[0].mxu0
      %v4660 = vadd.f32 %v3880, %v4659
      %4661 = vmatprep.mubr.bf16.mxu0 0
      %4662 = vmatmul.mubr.bf16.gmra.mrb[0].mxu0 %v4405
      %v4663 = vpop.f32.mrb[0].mxu0
      %v4664 = vadd.f32 %v3876, %v4663
      %v4665 = vpop.f32.mrb[0].mxu0
      %v4666 = vadd.f32 %v3880, %v4665
      %v4667 = vpop.f32.mrb[0].mxu0
      %v4668 = vadd.f32 %v3876, %v4667
      %v4669 = vpop.f32.mrb[0].mxu0
      %v4670 = vadd.f32 %v3880, %v4669
      %4671 = vdwg.mxu0
      %4672 = vmatprep.subr.bf16.mxu0 %v4220
      %4673 = vmatpush1.bf16.msra.mxu0 %v4219
      %4674 = vmatprep.subr.bf16.mxu0 %v4236
      %4675 = vmatpush1.bf16.msra.mxu0 %v4235
      %4676 = vmatprep.subr.bf16.mxu0 %v4252
      %4677 = vmatpush1.bf16.msra.mxu0 %v4251
      %4678 = vmatprep.subr.bf16.mxu0 %v4268
      %4679 = vmatpush1.bf16.msra.mxu0 %v4267
      %4680 = vmatprep.subr.bf16.mxu0 %v4284
      %4681 = vmatpush1.bf16.msra.mxu0 %v4283
      %4682 = vmatprep.subr.bf16.mxu0 %v4300
      %4683 = vmatpush1.bf16.msra.mxu0 %v4299
      %4684 = vmatprep.subr.bf16.mxu0 0
      %4685 = vmatpush1.bf16.msra.mxu0 0
      %4686 = vmatprep.subr.bf16.mxu0 0
      %4687 = vmatpush1.bf16.msra.mxu0 0
      %4688 = vmatprep.subr.bf16.mxu0 0
      %4689 = vmatpush1.bf16.msra.mxu0 0
      %4690 = vmatprep.subr.bf16.mxu0 0
      %4691 = vmatpush1.bf16.msra.mxu0 0
      %4692 = vmatprep.subr.bf16.mxu0 0
      %4693 = vmatpush1.bf16.msra.mxu0 0
      %4694 = vmatprep.subr.bf16.mxu0 0
      %4695 = vmatpush1.bf16.msra.mxu0 0
      %4696 = vmatprep.subr.bf16.mxu0 0
      %4697 = vmatpush1.bf16.msra.mxu0 0
      %4698 = vmatprep.subr.bf16.mxu0 0
      %4699 = vmatpush1.bf16.msra.mxu0 0
      %4700 = vmatprep.subr.bf16.mxu0 0
      %4701 = vmatpush1.bf16.msra.mxu0 0
      %4702 = vmatprep.subr.bf16.mxu0 0
      %4703 = vmatpush1.bf16.msra.mxu0 0
      %4704 = vmatprep.mubr.bf16.mxu0 0
      %4705 = vmatmul.mubr.bf16.gmra.mrb[0].mxu0 %v4402
      %v4706 = vpop.f32.mrb[0].mxu0
      %v4707 = vadd.f32 %v3884, %v4706
      %v4708 = vpop.f32.mrb[0].mxu0
      %v4709 = vadd.f32 %v3888, %v4708
      %v4710 = vpop.f32.mrb[0].mxu0
      %v4711 = vadd.f32 %v3884, %v4710
      %v4712 = vpop.f32.mrb[0].mxu0
      %v4713 = vadd.f32 %v3888, %v4712
      %4714 = vmatprep.mubr.bf16.mxu0 0
      %4715 = vmatmul.mubr.bf16.gmra.mrb[0].mxu0 %v4405
      %v4716 = vpop.f32.mrb[0].mxu0
      %v4717 = vadd.f32 %v3884, %v4716
      %v4718 = vpop.f32.mrb[0].mxu0
      %v4719 = vadd.f32 %v3888, %v4718
      %v4720 = vpop.f32.mrb[0].mxu0
      %v4721 = vadd.f32 %v3884, %v4720
      %v4722 = vpop.f32.mrb[0].mxu0
      %v4723 = vadd.f32 %v3888, %v4722
      %4724 = vdwg.mxu0
      %4725 = vmatprep.subr.bf16.mxu0 %v4222
      %4726 = vmatpush1.bf16.msra.mxu0 %v4221
      %4727 = vmatprep.subr.bf16.mxu0 %v4238
      %4728 = vmatpush1.bf16.msra.mxu0 %v4237
      %4729 = vmatprep.subr.bf16.mxu0 %v4254
      %4730 = vmatpush1.bf16.msra.mxu0 %v4253
      %4731 = vmatprep.subr.bf16.mxu0 %v4270
      %4732 = vmatpush1.bf16.msra.mxu0 %v4269
      %4733 = vmatprep.subr.bf16.mxu0 %v4286
      %4734 = vmatpush1.bf16.msra.mxu0 %v4285
      %4735 = vmatprep.subr.bf16.mxu0 %v4302
      %4736 = vmatpush1.bf16.msra.mxu0 %v4301
      %4737 = vmatprep.subr.bf16.mxu0 0
      %4738 = vmatpush1.bf16.msra.mxu0 0
      %4739 = vmatprep.subr.bf16.mxu0 0
      %4740 = vmatpush1.bf16.msra.mxu0 0
      %4741 = vmatprep.subr.bf16.mxu0 0
      %4742 = vmatpush1.bf16.msra.mxu0 0
      %4743 = vmatprep.subr.bf16.mxu0 0
      %4744 = vmatpush1.bf16.msra.mxu0 0
      %4745 = vmatprep.subr.bf16.mxu0 0
      %4746 = vmatpush1.bf16.msra.mxu0 0
      %4747 = vmatprep.subr.bf16.mxu0 0
      %4748 = vmatpush1.bf16.msra.mxu0 0
      %4749 = vmatprep.subr.bf16.mxu0 0
      %4750 = vmatpush1.bf16.msra.mxu0 0
      %4751 = vmatprep.subr.bf16.mxu0 0
      %4752 = vmatpush1.bf16.msra.mxu0 0
      %4753 = vmatprep.subr.bf16.mxu0 0
      %4754 = vmatpush1.bf16.msra.mxu0 0
      %4755 = vmatprep.subr.bf16.mxu0 0
      %4756 = vmatpush1.bf16.msra.mxu0 0
      %4757 = vmatprep.mubr.bf16.mxu0 0
      %4758 = vmatmul.mubr.bf16.gmra.mrb[0].mxu0 %v4402
      %v4759 = vpop.f32.mrb[0].mxu0
      %v4760 = vadd.f32 %v3892, %v4759
      %v4761 = vpop.f32.mrb[0].mxu0
      %v4762 = vadd.f32 %v3896, %v4761
      %v4763 = vpop.f32.mrb[0].mxu0
      %v4764 = vadd.f32 %v3892, %v4763
      %v4765 = vpop.f32.mrb[0].mxu0
      %v4766 = vadd.f32 %v3896, %v4765
      %4767 = vmatprep.mubr.bf16.mxu0 0
      %4768 = vmatmul.mubr.bf16.gmra.mrb[0].mxu0 %v4405
      %v4769 = vpop.f32.mrb[0].mxu0
      %v4770 = vadd.f32 %v3892, %v4769
      %v4771 = vpop.f32.mrb[0].mxu0
      %v4772 = vadd.f32 %v3896, %v4771
      %v4773 = vpop.f32.mrb[0].mxu0
      %v4774 = vadd.f32 %v3892, %v4773
      %v4775 = vpop.f32.mrb[0].mxu0
      %v4776 = vadd.f32 %v3896, %v4775
      %4777 = vdwg.mxu0
      %4778 = vmatprep.subr.bf16.mxu0 %v4224
      %4779 = vmatpush1.bf16.msra.mxu0 %v4223
      %4780 = vmatprep.subr.bf16.mxu0 %v4240
      %4781 = vmatpush1.bf16.msra.mxu0 %v4239
      %4782 = vmatprep.subr.bf16.mxu0 %v4256
      %4783 = vmatpush1.bf16.msra.mxu0 %v4255
      %4784 = vmatprep.subr.bf16.mxu0 %v4272
      %4785 = vmatpush1.bf16.msra.mxu0 %v4271
      %4786 = vmatprep.subr.bf16.mxu0 %v4288
      %4787 = vmatpush1.bf16.msra.mxu0 %v4287
      %4788 = vmatprep.subr.bf16.mxu0 %v4304
      %4789 = vmatpush1.bf16.msra.mxu0 %v4303
      %4790 = vmatprep.subr.bf16.mxu0 0
      %4791 = vmatpush1.bf16.msra.mxu0 0
      %4792 = vmatprep.subr.bf16.mxu0 0
      %4793 = vmatpush1.bf16.msra.mxu0 0
      %4794 = vmatprep.subr.bf16.mxu0 0
      %4795 = vmatpush1.bf16.msra.mxu0 0
      %4796 = vmatprep.subr.bf16.mxu0 0
      %4797 = vmatpush1.bf16.msra.mxu0 0
      %4798 = vmatprep.subr.bf16.mxu0 0
      %4799 = vmatpush1.bf16.msra.mxu0 0
      %4800 = vmatprep.subr.bf16.mxu0 0
      %4801 = vmatpush1.bf16.msra.mxu0 0
      %4802 = vmatprep.subr.bf16.mxu0 0
      %4803 = vmatpush1.bf16.msra.mxu0 0
      %4804 = vmatprep.subr.bf16.mxu0 0
      %4805 = vmatpush1.bf16.msra.mxu0 0
      %4806 = vmatprep.subr.bf16.mxu0 0
      %4807 = vmatpush1.bf16.msra.mxu0 0
      %4808 = vmatprep.subr.bf16.mxu0 0
      %4809 = vmatpush1.bf16.msra.mxu0 0
      %4810 = vmatprep.mubr.bf16.mxu0 0
      %4811 = vmatmul.mubr.bf16.gmra.mrb[0].mxu0 %v4402
      %v4812 = vpop.f32.mrb[0].mxu0
      %v4813 = vadd.f32 %v3900, %v4812
      %v4814 = vpop.f32.mrb[0].mxu0
      %v4815 = vadd.f32 %v3904, %v4814
      %v4816 = vpop.f32.mrb[0].mxu0
      %v4817 = vadd.f32 %v3900, %v4816
      %v4818 = vpop.f32.mrb[0].mxu0
      %v4819 = vadd.f32 %v3904, %v4818
      %4820 = vmatprep.mubr.bf16.mxu0 0
      %4821 = vmatmul.mubr.bf16.gmra.mrb[0].mxu0 %v4405
      %v4822 = vpop.f32.mrb[0].mxu0
      %v4823 = vadd.f32 %v3900, %v4822
      %v4824 = vpop.f32.mrb[0].mxu0
      %v4825 = vadd.f32 %v3904, %v4824
      %v4826 = vpop.f32.mrb[0].mxu0
      %v4827 = vadd.f32 %v3900, %v4826
      %v4828 = vpop.f32.mrb[0].mxu0
      %v4829 = vadd.f32 %v3904, %v4828
      %4830 = vdwg.mxu0
      %v4831 = vmul.f32 %v4442, 0.5
      %v4832 = vmul.f32 %v4444, 0.5
      %v4833 = vmul.f32 %v4495, 0.5
      %v4834 = vmul.f32 %v4497, 0.5
      %v4835 = vmul.f32 %v4548, 0.5
      %v4836 = vmul.f32 %v4550, 0.5
      %v4837 = vmul.f32 %v4601, 0.5
      %v4838 = vmul.f32 %v4603, 0.5
      %v4839 = vmul.f32 %v4654, 0.5
      %v4840 = vmul.f32 %v4656, 0.5
      %v4841 = vmul.f32 %v4707, 0.5
      %v4842 = vmul.f32 %v4709, 0.5
      %v4843 = vmul.f32 %v4760, 0.5
      %v4844 = vmul.f32 %v4762, 0.5
      %v4845 = vmul.f32 %v4813, 0.5
      %v4846 = vmul.f32 %v4815, 0.5
      %v4847 = vmul.f32 %v4446, 0.5
      %v4848 = vmul.f32 %v4448, 0.5
      %v4849 = vmul.f32 %v4499, 0.5
      %v4850 = vmul.f32 %v4501, 0.5
      %v4851 = vmul.f32 %v4552, 0.5
      %v4852 = vmul.f32 %v4554, 0.5
      %v4853 = vmul.f32 %v4605, 0.5
      %v4854 = vmul.f32 %v4607, 0.5
      %v4855 = vmul.f32 %v4658, 0.5
      %v4856 = vmul.f32 %v4660, 0.5
      %v4857 = vmul.f32 %v4711, 0.5
      %v4858 = vmul.f32 %v4713, 0.5
      %v4859 = vmul.f32 %v4764, 0.5
      %v4860 = vmul.f32 %v4766, 0.5
      %v4861 = vmul.f32 %v4817, 0.5
      %v4862 = vmul.f32 %v4819, 0.5
      %v4863 = vmul.f32 %v4452, 0.5
      %v4864 = vmul.f32 %v4454, 0.5
      %v4865 = vmul.f32 %v4505, 0.5
      %v4866 = vmul.f32 %v4507, 0.5
      %v4867 = vmul.f32 %v4558, 0.5
      %v4868 = vmul.f32 %v4560, 0.5
      %v4869 = vmul.f32 %v4611, 0.5
      %v4870 = vmul.f32 %v4613, 0.5
      %v4871 = vmul.f32 %v4664, 0.5
      %v4872 = vmul.f32 %v4666, 0.5
      %v4873 = vmul.f32 %v4717, 0.5
      %v4874 = vmul.f32 %v4719, 0.5
      %v4875 = vmul.f32 %v4770, 0.5
      %v4876 = vmul.f32 %v4772, 0.5
      %v4877 = vmul.f32 %v4823, 0.5
      %v4878 = vmul.f32 %v4825, 0.5
      %v4879 = vmul.f32 %v4456, 0.5
      %v4880 = vmul.f32 %v4458, 0.5
      %v4881 = vmul.f32 %v4509, 0.5
      %v4882 = vmul.f32 %v4511, 0.5
      %v4883 = vmul.f32 %v4562, 0.5
      %v4884 = vmul.f32 %v4564, 0.5
      %v4885 = vmul.f32 %v4615, 0.5
      %v4886 = vmul.f32 %v4617, 0.5
      %v4887 = vmul.f32 %v4668, 0.5
      %v4888 = vmul.f32 %v4670, 0.5
      %v4889 = vmul.f32 %v4721, 0.5
      %v4890 = vmul.f32 %v4723, 0.5
      %v4891 = vmul.f32 %v4774, 0.5
      %v4892 = vmul.f32 %v4776, 0.5
      %v4893 = vmul.f32 %v4827, 0.5
      %v4894 = vmul.f32 %v4829, 0.5
      %v4895 = vmul.f32 %v4442, 0.044715
      %v4896 = vmul.f32 %v4444, 0.044715
      %v4897 = vmul.f32 %v4495, 0.044715
      %v4898 = vmul.f32 %v4497, 0.044715
      %v4899 = vmul.f32 %v4548, 0.044715
      %v4900 = vmul.f32 %v4550, 0.044715
      %v4901 = vmul.f32 %v4601, 0.044715
      %v4902 = vmul.f32 %v4603, 0.044715
      %v4903 = vmul.f32 %v4654, 0.044715
      %v4904 = vmul.f32 %v4656, 0.044715
      %v4905 = vmul.f32 %v4707, 0.044715
      %v4906 = vmul.f32 %v4709, 0.044715
      %v4907 = vmul.f32 %v4760, 0.044715
      %v4908 = vmul.f32 %v4762, 0.044715
      %v4909 = vmul.f32 %v4813, 0.044715
      %v4910 = vmul.f32 %v4815, 0.044715
      %v4911 = vmul.f32 %v4446, 0.044715
      %v4912 = vmul.f32 %v4448, 0.044715
      %v4913 = vmul.f32 %v4499, 0.044715
      %v4914 = vmul.f32 %v4501, 0.044715
      %v4915 = vmul.f32 %v4552, 0.044715
      %v4916 = vmul.f32 %v4554, 0.044715
      %v4917 = vmul.f32 %v4605, 0.044715
      %v4918 = vmul.f32 %v4607, 0.044715
      %v4919 = vmul.f32 %v4658, 0.044715
      %v4920 = vmul.f32 %v4660, 0.044715
      %v4921 = vmul.f32 %v4711, 0.044715
      %v4922 = vmul.f32 %v4713, 0.044715
      %v4923 = vmul.f32 %v4764, 0.044715
      %v4924 = vmul.f32 %v4766, 0.044715
      %v4925 = vmul.f32 %v4817, 0.044715
      %v4926 = vmul.f32 %v4819, 0.044715
      %v4927 = vmul.f32 %v4452, 0.044715
      %v4928 = vmul.f32 %v4454, 0.044715
      %v4929 = vmul.f32 %v4505, 0.044715
      %v4930 = vmul.f32 %v4507, 0.044715
      %v4931 = vmul.f32 %v4558, 0.044715
      %v4932 = vmul.f32 %v4560, 0.044715
      %v4933 = vmul.f32 %v4611, 0.044715
      %v4934 = vmul.f32 %v4613, 0.044715
      %v4935 = vmul.f32 %v4664, 0.044715
      %v4936 = vmul.f32 %v4666, 0.044715
      %v4937 = vmul.f32 %v4717, 0.044715
      %v4938 = vmul.f32 %v4719, 0.044715
      %v4939 = vmul.f32 %v4770, 0.044715
      %v4940 = vmul.f32 %v4772, 0.044715
      %v4941 = vmul.f32 %v4823, 0.044715
      %v4942 = vmul.f32 %v4825, 0.044715
      %v4943 = vmul.f32 %v4456, 0.044715
      %v4944 = vmul.f32 %v4458, 0.044715
      %v4945 = vmul.f32 %v4509, 0.044715
      %v4946 = vmul.f32 %v4511, 0.044715
      %v4947 = vmul.f32 %v4562, 0.044715
      %v4948 = vmul.f32 %v4564, 0.044715
      %v4949 = vmul.f32 %v4615, 0.044715
      %v4950 = vmul.f32 %v4617, 0.044715
      %v4951 = vmul.f32 %v4668, 0.044715
      %v4952 = vmul.f32 %v4670, 0.044715
      %v4953 = vmul.f32 %v4721, 0.044715
      %v4954 = vmul.f32 %v4723, 0.044715
      %v4955 = vmul.f32 %v4774, 0.044715
      %v4956 = vmul.f32 %v4776, 0.044715
      %v4957 = vmul.f32 %v4827, 0.044715
      %v4958 = vmul.f32 %v4829, 0.044715
      %v4959 = vmul.f32 %v4895, %v4442
      %v4960 = vmul.f32 %v4896, %v4444
      %v4961 = vmul.f32 %v4897, %v4495
      %v4962 = vmul.f32 %v4898, %v4497
      %v4963 = vmul.f32 %v4899, %v4548
      %v4964 = vmul.f32 %v4900, %v4550
      %v4965 = vmul.f32 %v4901, %v4601
      %v4966 = vmul.f32 %v4902, %v4603
      %v4967 = vmul.f32 %v4903, %v4654
      %v4968 = vmul.f32 %v4904, %v4656
      %v4969 = vmul.f32 %v4905, %v4707
      %v4970 = vmul.f32 %v4906, %v4709
      %v4971 = vmul.f32 %v4907, %v4760
      %v4972 = vmul.f32 %v4908, %v4762
      %v4973 = vmul.f32 %v4909, %v4813
      %v4974 = vmul.f32 %v4910, %v4815
      %v4975 = vmul.f32 %v4911, %v4446
      %v4976 = vmul.f32 %v4912, %v4448
      %v4977 = vmul.f32 %v4913, %v4499
      %v4978 = vmul.f32 %v4914, %v4501
      %v4979 = vmul.f32 %v4915, %v4552
      %v4980 = vmul.f32 %v4916, %v4554
      %v4981 = vmul.f32 %v4917, %v4605
      %v4982 = vmul.f32 %v4918, %v4607
      %v4983 = vmul.f32 %v4919, %v4658
      %v4984 = vmul.f32 %v4920, %v4660
      %v4985 = vmul.f32 %v4921, %v4711
      %v4986 = vmul.f32 %v4922, %v4713
      %v4987 = vmul.f32 %v4923, %v4764
      %v4988 = vmul.f32 %v4924, %v4766
      %v4989 = vmul.f32 %v4925, %v4817
      %v4990 = vmul.f32 %v4926, %v4819
      %v4991 = vmul.f32 %v4927, %v4452
      %v4992 = vmul.f32 %v4928, %v4454
      %v4993 = vmul.f32 %v4929, %v4505
      %v4994 = vmul.f32 %v4930, %v4507
      %v4995 = vmul.f32 %v4931, %v4558
      %v4996 = vmul.f32 %v4932, %v4560
      %v4997 = vmul.f32 %v4933, %v4611
      %v4998 = vmul.f32 %v4934, %v4613
      %v4999 = vmul.f32 %v4935, %v4664
      %v5000 = vmul.f32 %v4936, %v4666
      %v5001 = vmul.f32 %v4937, %v4717
      %v5002 = vmul.f32 %v4938, %v4719
      %v5003 = vmul.f32 %v4939, %v4770
      %v5004 = vmul.f32 %v4940, %v4772
      %v5005 = vmul.f32 %v4941, %v4823
      %v5006 = vmul.f32 %v4942, %v4825
      %v5007 = vmul.f32 %v4943, %v4456
      %v5008 = vmul.f32 %v4944, %v4458
      %v5009 = vmul.f32 %v4945, %v4509
      %v5010 = vmul.f32 %v4946, %v4511
      %v5011 = vmul.f32 %v4947, %v4562
      %v5012 = vmul.f32 %v4948, %v4564
      %v5013 = vmul.f32 %v4949, %v4615
      %v5014 = vmul.f32 %v4950, %v4617
      %v5015 = vmul.f32 %v4951, %v4668
      %v5016 = vmul.f32 %v4952, %v4670
      %v5017 = vmul.f32 %v4953, %v4721
      %v5018 = vmul.f32 %v4954, %v4723
      %v5019 = vmul.f32 %v4955, %v4774
      %v5020 = vmul.f32 %v4956, %v4776
      %v5021 = vmul.f32 %v4957, %v4827
      %v5022 = vmul.f32 %v4958, %v4829
      %v5023 = vmul.f32 %v4959, %v4442
      %v5024 = vmul.f32 %v4960, %v4444
      %v5025 = vmul.f32 %v4961, %v4495
      %v5026 = vmul.f32 %v4962, %v4497
      %v5027 = vmul.f32 %v4963, %v4548
      %v5028 = vmul.f32 %v4964, %v4550
      %v5029 = vmul.f32 %v4965, %v4601
      %v5030 = vmul.f32 %v4966, %v4603
      %v5031 = vmul.f32 %v4967, %v4654
      %v5032 = vmul.f32 %v4968, %v4656
      %v5033 = vmul.f32 %v4969, %v4707
      %v5034 = vmul.f32 %v4970, %v4709
      %v5035 = vmul.f32 %v4971, %v4760
      %v5036 = vmul.f32 %v4972, %v4762
      %v5037 = vmul.f32 %v4973, %v4813
      %v5038 = vmul.f32 %v4974, %v4815
      %v5039 = vmul.f32 %v4975, %v4446
      %v5040 = vmul.f32 %v4976, %v4448
      %v5041 = vmul.f32 %v4977, %v4499
      %v5042 = vmul.f32 %v4978, %v4501
      %v5043 = vmul.f32 %v4979, %v4552
      %v5044 = vmul.f32 %v4980, %v4554
      %v5045 = vmul.f32 %v4981, %v4605
      %v5046 = vmul.f32 %v4982, %v4607
      %v5047 = vmul.f32 %v4983, %v4658
      %v5048 = vmul.f32 %v4984, %v4660
      %v5049 = vmul.f32 %v4985, %v4711
      %v5050 = vmul.f32 %v4986, %v4713
      %v5051 = vmul.f32 %v4987, %v4764
      %v5052 = vmul.f32 %v4988, %v4766
      %v5053 = vmul.f32 %v4989, %v4817
      %v5054 = vmul.f32 %v4990, %v4819
      %v5055 = vmul.f32 %v4991, %v4452
      %v5056 = vmul.f32 %v4992, %v4454
      %v5057 = vmul.f32 %v4993, %v4505
      %v5058 = vmul.f32 %v4994, %v4507
      %v5059 = vmul.f32 %v4995, %v4558
      %v5060 = vmul.f32 %v4996, %v4560
      %v5061 = vmul.f32 %v4997, %v4611
      %v5062 = vmul.f32 %v4998, %v4613
      %v5063 = vmul.f32 %v4999, %v4664
      %v5064 = vmul.f32 %v5000, %v4666
      %v5065 = vmul.f32 %v5001, %v4717
      %v5066 = vmul.f32 %v5002, %v4719
      %v5067 = vmul.f32 %v5003, %v4770
      %v5068 = vmul.f32 %v5004, %v4772
      %v5069 = vmul.f32 %v5005, %v4823
      %v5070 = vmul.f32 %v5006, %v4825
      %v5071 = vmul.f32 %v5007, %v4456
      %v5072 = vmul.f32 %v5008, %v4458
      %v5073 = vmul.f32 %v5009, %v4509
      %v5074 = vmul.f32 %v5010, %v4511
      %v5075 = vmul.f32 %v5011, %v4562
      %v5076 = vmul.f32 %v5012, %v4564
      %v5077 = vmul.f32 %v5013, %v4615
      %v5078 = vmul.f32 %v5014, %v4617
      %v5079 = vmul.f32 %v5015, %v4668
      %v5080 = vmul.f32 %v5016, %v4670
      %v5081 = vmul.f32 %v5017, %v4721
      %v5082 = vmul.f32 %v5018, %v4723
      %v5083 = vmul.f32 %v5019, %v4774
      %v5084 = vmul.f32 %v5020, %v4776
      %v5085 = vmul.f32 %v5021, %v4827
      %v5086 = vmul.f32 %v5022, %v4829
      %v5087 = vadd.f32 %v4442, %v5023
      %v5088 = vadd.f32 %v4444, %v5024
      %v5089 = vadd.f32 %v4495, %v5025
      %v5090 = vadd.f32 %v4497, %v5026
      %v5091 = vadd.f32 %v4548, %v5027
      %v5092 = vadd.f32 %v4550, %v5028
      %v5093 = vadd.f32 %v4601, %v5029
      %v5094 = vadd.f32 %v4603, %v5030
      %v5095 = vadd.f32 %v4654, %v5031
      %v5096 = vadd.f32 %v4656, %v5032
      %v5097 = vadd.f32 %v4707, %v5033
      %v5098 = vadd.f32 %v4709, %v5034
      %v5099 = vadd.f32 %v4760, %v5035
      %v5100 = vadd.f32 %v4762, %v5036
      %v5101 = vadd.f32 %v4813, %v5037
      %v5102 = vadd.f32 %v4815, %v5038
      %v5103 = vadd.f32 %v4446, %v5039
      %v5104 = vadd.f32 %v4448, %v5040
      %v5105 = vadd.f32 %v4499, %v5041
      %v5106 = vadd.f32 %v4501, %v5042
      %v5107 = vadd.f32 %v4552, %v5043
      %v5108 = vadd.f32 %v4554, %v5044
      %v5109 = vadd.f32 %v4605, %v5045
      %v5110 = vadd.f32 %v4607, %v5046
      %v5111 = vadd.f32 %v4658, %v5047
      %v5112 = vadd.f32 %v4660, %v5048
      %v5113 = vadd.f32 %v4711, %v5049
      %v5114 = vadd.f32 %v4713, %v5050
      %v5115 = vadd.f32 %v4764, %v5051
      %v5116 = vadd.f32 %v4766, %v5052
      %v5117 = vadd.f32 %v4817, %v5053
      %v5118 = vadd.f32 %v4819, %v5054
      %v5119 = vadd.f32 %v4452, %v5055
      %v5120 = vadd.f32 %v4454, %v5056
      %v5121 = vadd.f32 %v4505, %v5057
      %v5122 = vadd.f32 %v4507, %v5058
      %v5123 = vadd.f32 %v4558, %v5059
      %v5124 = vadd.f32 %v4560, %v5060
      %v5125 = vadd.f32 %v4611, %v5061
      %v5126 = vadd.f32 %v4613, %v5062
      %v5127 = vadd.f32 %v4664, %v5063
      %v5128 = vadd.f32 %v4666, %v5064
      %v5129 = vadd.f32 %v4717, %v5065
      %v5130 = vadd.f32 %v4719, %v5066
      %v5131 = vadd.f32 %v4770, %v5067
      %v5132 = vadd.f32 %v4772, %v5068
      %v5133 = vadd.f32 %v4823, %v5069
      %v5134 = vadd.f32 %v4825, %v5070
      %v5135 = vadd.f32 %v4456, %v5071
      %v5136 = vadd.f32 %v4458, %v5072
      %v5137 = vadd.f32 %v4509, %v5073
      %v5138 = vadd.f32 %v4511, %v5074
      %v5139 = vadd.f32 %v4562, %v5075
      %v5140 = vadd.f32 %v4564, %v5076
      %v5141 = vadd.f32 %v4615, %v5077
      %v5142 = vadd.f32 %v4617, %v5078
      %v5143 = vadd.f32 %v4668, %v5079
      %v5144 = vadd.f32 %v4670, %v5080
      %v5145 = vadd.f32 %v4721, %v5081
      %v5146 = vadd.f32 %v4723, %v5082
      %v5147 = vadd.f32 %v4774, %v5083
      %v5148 = vadd.f32 %v4776, %v5084
      %v5149 = vadd.f32 %v4827, %v5085
      %v5150 = vadd.f32 %v4829, %v5086
      %v5151 = vmul.f32 %v5087, 0.7978846
      %v5152 = vmul.f32 %v5088, 0.7978846
      %v5153 = vmul.f32 %v5089, 0.7978846
      %v5154 = vmul.f32 %v5090, 0.7978846
      %v5155 = vmul.f32 %v5091, 0.7978846
      %v5156 = vmul.f32 %v5092, 0.7978846
      %v5157 = vmul.f32 %v5093, 0.7978846
      %v5158 = vmul.f32 %v5094, 0.7978846
      %v5159 = vmul.f32 %v5095, 0.7978846
      %v5160 = vmul.f32 %v5096, 0.7978846
      %v5161 = vmul.f32 %v5097, 0.7978846
      %v5162 = vmul.f32 %v5098, 0.7978846
      %v5163 = vmul.f32 %v5099, 0.7978846
      %v5164 = vmul.f32 %v5100, 0.7978846
      %v5165 = vmul.f32 %v5101, 0.7978846
      %v5166 = vmul.f32 %v5102, 0.7978846
      %v5167 = vmul.f32 %v5103, 0.7978846
      %v5168 = vmul.f32 %v5104, 0.7978846
      %v5169 = vmul.f32 %v5105, 0.7978846
      %v5170 = vmul.f32 %v5106, 0.7978846
      %v5171 = vmul.f32 %v5107, 0.7978846
      %v5172 = vmul.f32 %v5108, 0.7978846
      %v5173 = vmul.f32 %v5109, 0.7978846
      %v5174 = vmul.f32 %v5110, 0.7978846
      %v5175 = vmul.f32 %v5111, 0.7978846
      %v5176 = vmul.f32 %v5112, 0.7978846
      %v5177 = vmul.f32 %v5113, 0.7978846
      %v5178 = vmul.f32 %v5114, 0.7978846
      %v5179 = vmul.f32 %v5115, 0.7978846
      %v5180 = vmul.f32 %v5116, 0.7978846
      %v5181 = vmul.f32 %v5117, 0.7978846
      %v5182 = vmul.f32 %v5118, 0.7978846
      %v5183 = vmul.f32 %v5119, 0.7978846
      %v5184 = vmul.f32 %v5120, 0.7978846
      %v5185 = vmul.f32 %v5121, 0.7978846
      %v5186 = vmul.f32 %v5122, 0.7978846
      %v5187 = vmul.f32 %v5123, 0.7978846
      %v5188 = vmul.f32 %v5124, 0.7978846
      %v5189 = vmul.f32 %v5125, 0.7978846
      %v5190 = vmul.f32 %v5126, 0.7978846
      %v5191 = vmul.f32 %v5127, 0.7978846
      %v5192 = vmul.f32 %v5128, 0.7978846
      %v5193 = vmul.f32 %v5129, 0.7978846
      %v5194 = vmul.f32 %v5130, 0.7978846
      %v5195 = vmul.f32 %v5131, 0.7978846
      %v5196 = vmul.f32 %v5132, 0.7978846
      %v5197 = vmul.f32 %v5133, 0.7978846
      %v5198 = vmul.f32 %v5134, 0.7978846
      %v5199 = vmul.f32 %v5135, 0.7978846
      %v5200 = vmul.f32 %v5136, 0.7978846
      %v5201 = vmul.f32 %v5137, 0.7978846
      %v5202 = vmul.f32 %v5138, 0.7978846
      %v5203 = vmul.f32 %v5139, 0.7978846
      %v5204 = vmul.f32 %v5140, 0.7978846
      %v5205 = vmul.f32 %v5141, 0.7978846
      %v5206 = vmul.f32 %v5142, 0.7978846
      %v5207 = vmul.f32 %v5143, 0.7978846
      %v5208 = vmul.f32 %v5144, 0.7978846
      %v5209 = vmul.f32 %v5145, 0.7978846
      %v5210 = vmul.f32 %v5146, 0.7978846
      %v5211 = vmul.f32 %v5147, 0.7978846
      %v5212 = vmul.f32 %v5148, 0.7978846
      %v5213 = vmul.f32 %v5149, 0.7978846
      %v5214 = vmul.f32 %v5150, 0.7978846
      %v5215 = vtanh.pop %v5151
      %v5216 = vtanh.pop %v5152
      %v5217 = vtanh.pop %v5153
      %v5218 = vtanh.pop %v5154
      %v5219 = vtanh.pop %v5155
      %v5220 = vtanh.pop %v5156
      %v5221 = vtanh.pop %v5157
      %v5222 = vtanh.pop %v5158
      %v5223 = vtanh.pop %v5159
      %v5224 = vtanh.pop %v5160
      %v5225 = vtanh.pop %v5161
      %v5226 = vtanh.pop %v5162
      %v5227 = vtanh.pop %v5163
      %v5228 = vtanh.pop %v5164
      %v5229 = vtanh.pop %v5165
      %v5230 = vtanh.pop %v5166
      %v5231 = vtanh.pop %v5167
      %v5232 = vtanh.pop %v5168
      %v5233 = vtanh.pop %v5169
      %v5234 = vtanh.pop %v5170
      %v5235 = vtanh.pop %v5171
      %v5236 = vtanh.pop %v5172
      %v5237 = vtanh.pop %v5173
      %v5238 = vtanh.pop %v5174
      %v5239 = vtanh.pop %v5175
      %v5240 = vtanh.pop %v5176
      %v5241 = vtanh.pop %v5177
      %v5242 = vtanh.pop %v5178
      %v5243 = vtanh.pop %v5179
      %v5244 = vtanh.pop %v5180
      %v5245 = vtanh.pop %v5181
      %v5246 = vtanh.pop %v5182
      %v5247 = vtanh.pop %v5183
      %v5248 = vtanh.pop %v5184
      %v5249 = vtanh.pop %v5185
      %v5250 = vtanh.pop %v5186
      %v5251 = vtanh.pop %v5187
      %v5252 = vtanh.pop %v5188
      %v5253 = vtanh.pop %v5189
      %v5254 = vtanh.pop %v5190
      %v5255 = vtanh.pop %v5191
      %v5256 = vtanh.pop %v5192
      %v5257 = vtanh.pop %v5193
      %v5258 = vtanh.pop %v5194
      %v5259 = vtanh.pop %v5195
      %v5260 = vtanh.pop %v5196
      %v5261 = vtanh.pop %v5197
      %v5262 = vtanh.pop %v5198
      %v5263 = vtanh.pop %v5199
      %v5264 = vtanh.pop %v5200
      %v5265 = vtanh.pop %v5201
      %v5266 = vtanh.pop %v5202
      %v5267 = vtanh.pop %v5203
      %v5268 = vtanh.pop %v5204
      %v5269 = vtanh.pop %v5205
      %v5270 = vtanh.pop %v5206
      %v5271 = vtanh.pop %v5207
      %v5272 = vtanh.pop %v5208
      %v5273 = vtanh.pop %v5209
      %v5274 = vtanh.pop %v5210
      %v5275 = vtanh.pop %v5211
      %v5276 = vtanh.pop %v5212
      %v5277 = vtanh.pop %v5213
      %v5278 = vtanh.pop %v5214
      %v5279 = vadd.f32 %v5215, 1.0
      %v5280 = vadd.f32 %v5216, 1.0
      %v5281 = vadd.f32 %v5217, 1.0
      %v5282 = vadd.f32 %v5218, 1.0
      %v5283 = vadd.f32 %v5219, 1.0
      %v5284 = vadd.f32 %v5220, 1.0
      %v5285 = vadd.f32 %v5221, 1.0
      %v5286 = vadd.f32 %v5222, 1.0
      %v5287 = vadd.f32 %v5223, 1.0
      %v5288 = vadd.f32 %v5224, 1.0
      %v5289 = vadd.f32 %v5225, 1.0
      %v5290 = vadd.f32 %v5226, 1.0
      %v5291 = vadd.f32 %v5227, 1.0
      %v5292 = vadd.f32 %v5228, 1.0
      %v5293 = vadd.f32 %v5229, 1.0
      %v5294 = vadd.f32 %v5230, 1.0
      %v5295 = vadd.f32 %v5231, 1.0
      %v5296 = vadd.f32 %v5232, 1.0
      %v5297 = vadd.f32 %v5233, 1.0
      %v5298 = vadd.f32 %v5234, 1.0
      %v5299 = vadd.f32 %v5235, 1.0
      %v5300 = vadd.f32 %v5236, 1.0
      %v5301 = vadd.f32 %v5237, 1.0
      %v5302 = vadd.f32 %v5238, 1.0
      %v5303 = vadd.f32 %v5239, 1.0
      %v5304 = vadd.f32 %v5240, 1.0
      %v5305 = vadd.f32 %v5241, 1.0
      %v5306 = vadd.f32 %v5242, 1.0
      %v5307 = vadd.f32 %v5243, 1.0
      %v5308 = vadd.f32 %v5244, 1.0
      %v5309 = vadd.f32 %v5245, 1.0
      %v5310 = vadd.f32 %v5246, 1.0
      %v5311 = vadd.f32 %v5247, 1.0
      %v5312 = vadd.f32 %v5248, 1.0
      %v5313 = vadd.f32 %v5249, 1.0
      %v5314 = vadd.f32 %v5250, 1.0
      %v5315 = vadd.f32 %v5251, 1.0
      %v5316 = vadd.f32 %v5252, 1.0
      %v5317 = vadd.f32 %v5253, 1.0
      %v5318 = vadd.f32 %v5254, 1.0
      %v5319 = vadd.f32 %v5255, 1.0
      %v5320 = vadd.f32 %v5256, 1.0
      %v5321 = vadd.f32 %v5257, 1.0
      %v5322 = vadd.f32 %v5258, 1.0
      %v5323 = vadd.f32 %v5259, 1.0
      %v5324 = vadd.f32 %v5260, 1.0
      %v5325 = vadd.f32 %v5261, 1.0
      %v5326 = vadd.f32 %v5262, 1.0
      %v5327 = vadd.f32 %v5263, 1.0
      %v5328 = vadd.f32 %v5264, 1.0
      %v5329 = vadd.f32 %v5265, 1.0
      %v5330 = vadd.f32 %v5266, 1.0
      %v5331 = vadd.f32 %v5267, 1.0
      %v5332 = vadd.f32 %v5268, 1.0
      %v5333 = vadd.f32 %v5269, 1.0
      %v5334 = vadd.f32 %v5270, 1.0
      %v5335 = vadd.f32 %v5271, 1.0
      %v5336 = vadd.f32 %v5272, 1.0
      %v5337 = vadd.f32 %v5273, 1.0
      %v5338 = vadd.f32 %v5274, 1.0
      %v5339 = vadd.f32 %v5275, 1.0
      %v5340 = vadd.f32 %v5276, 1.0
      %v5341 = vadd.f32 %v5277, 1.0
      %v5342 = vadd.f32 %v5278, 1.0
      %v5343 = vmul.f32 %v4831, %v5279
      %v5344 = vmul.f32 %v4832, %v5280
      %v5345 = vmul.f32 %v4833, %v5281
      %v5346 = vmul.f32 %v4834, %v5282
      %v5347 = vmul.f32 %v4835, %v5283
      %v5348 = vmul.f32 %v4836, %v5284
      %v5349 = vmul.f32 %v4837, %v5285
      %v5350 = vmul.f32 %v4838, %v5286
      %v5351 = vmul.f32 %v4839, %v5287
      %v5352 = vmul.f32 %v4840, %v5288
      %v5353 = vmul.f32 %v4841, %v5289
      %v5354 = vmul.f32 %v4842, %v5290
      %v5355 = vmul.f32 %v4843, %v5291
      %v5356 = vmul.f32 %v4844, %v5292
      %v5357 = vmul.f32 %v4845, %v5293
      %v5358 = vmul.f32 %v4846, %v5294
      %v5359 = vmul.f32 %v4847, %v5295
      %v5360 = vmul.f32 %v4848, %v5296
      %v5361 = vmul.f32 %v4849, %v5297
      %v5362 = vmul.f32 %v4850, %v5298
      %v5363 = vmul.f32 %v4851, %v5299
      %v5364 = vmul.f32 %v4852, %v5300
      %v5365 = vmul.f32 %v4853, %v5301
      %v5366 = vmul.f32 %v4854, %v5302
      %v5367 = vmul.f32 %v4855, %v5303
      %v5368 = vmul.f32 %v4856, %v5304
      %v5369 = vmul.f32 %v4857, %v5305
      %v5370 = vmul.f32 %v4858, %v5306
      %v5371 = vmul.f32 %v4859, %v5307
      %v5372 = vmul.f32 %v4860, %v5308
      %v5373 = vmul.f32 %v4861, %v5309
      %v5374 = vmul.f32 %v4862, %v5310
      %v5375 = vmul.f32 %v4863, %v5311
      %v5376 = vmul.f32 %v4864, %v5312
      %v5377 = vmul.f32 %v4865, %v5313
      %v5378 = vmul.f32 %v4866, %v5314
      %v5379 = vmul.f32 %v4867, %v5315
      %v5380 = vmul.f32 %v4868, %v5316
      %v5381 = vmul.f32 %v4869, %v5317
      %v5382 = vmul.f32 %v4870, %v5318
      %v5383 = vmul.f32 %v4871, %v5319
      %v5384 = vmul.f32 %v4872, %v5320
      %v5385 = vmul.f32 %v4873, %v5321
      %v5386 = vmul.f32 %v4874, %v5322
      %v5387 = vmul.f32 %v4875, %v5323
      %v5388 = vmul.f32 %v4876, %v5324
      %v5389 = vmul.f32 %v4877, %v5325
      %v5390 = vmul.f32 %v4878, %v5326
      %v5391 = vmul.f32 %v4879, %v5327
      %v5392 = vmul.f32 %v4880, %v5328
      %v5393 = vmul.f32 %v4881, %v5329
      %v5394 = vmul.f32 %v4882, %v5330
      %v5395 = vmul.f32 %v4883, %v5331
      %v5396 = vmul.f32 %v4884, %v5332
      %v5397 = vmul.f32 %v4885, %v5333
      %v5398 = vmul.f32 %v4886, %v5334
      %v5399 = vmul.f32 %v4887, %v5335
      %v5400 = vmul.f32 %v4888, %v5336
      %v5401 = vmul.f32 %v4889, %v5337
      %v5402 = vmul.f32 %v4890, %v5338
      %v5403 = vmul.f32 %v4891, %v5339
      %v5404 = vmul.f32 %v4892, %v5340
      %v5405 = vmul.f32 %v4893, %v5341
      %v5406 = vmul.f32 %v4894, %v5342
      %v5407 = vpack.c.bf16 %v5359, %v5343
      %v5408 = vpack.c.bf16 %v5360, %v5344
      %v5409 = vpack.c.bf16 %v5361, %v5345
      %v5410 = vpack.c.bf16 %v5362, %v5346
      %v5411 = vpack.c.bf16 %v5363, %v5347
      %v5412 = vpack.c.bf16 %v5364, %v5348
      %v5413 = vpack.c.bf16 %v5365, %v5349
      %v5414 = vpack.c.bf16 %v5366, %v5350
      %v5415 = vpack.c.bf16 %v5367, %v5351
      %v5416 = vpack.c.bf16 %v5368, %v5352
      %v5417 = vpack.c.bf16 %v5369, %v5353
      %v5418 = vpack.c.bf16 %v5370, %v5354
      %v5419 = vpack.c.bf16 %v5371, %v5355
      %v5420 = vpack.c.bf16 %v5372, %v5356
      %v5421 = vpack.c.bf16 %v5373, %v5357
      %v5422 = vpack.c.bf16 %v5374, %v5358
      %v5423 = vpack.c.bf16 %v5391, %v5375
      %v5424 = vpack.c.bf16 %v5392, %v5376
      %v5425 = vpack.c.bf16 %v5393, %v5377
      %v5426 = vpack.c.bf16 %v5394, %v5378
      %v5427 = vpack.c.bf16 %v5395, %v5379
      %v5428 = vpack.c.bf16 %v5396, %v5380
      %v5429 = vpack.c.bf16 %v5397, %v5381
      %v5430 = vpack.c.bf16 %v5398, %v5382
      %v5431 = vpack.c.bf16 %v5399, %v5383
      %v5432 = vpack.c.bf16 %v5400, %v5384
      %v5433 = vpack.c.bf16 %v5401, %v5385
      %v5434 = vpack.c.bf16 %v5402, %v5386
      %v5435 = vpack.c.bf16 %v5403, %v5387
      %v5436 = vpack.c.bf16 %v5404, %v5388
      %v5437 = vpack.c.bf16 %v5405, %v5389
      %v5438 = vpack.c.bf16 %v5406, %v5390
      %v5439 = vld [vmem:[%s661] sm:$0xf]
      %v5440 = vld [vmem:[%s661 + $0x4] sm:$0xf]
      %v5441 = vld [vmem:[%s661 + $0x8] sm:$0xf]
      %v5442 = vld [vmem:[%s661 + $0xc] sm:$0xf]
      %v5443 = vld [vmem:[%s661 + $0x10] sm:$0xf]
      %v5444 = vld [vmem:[%s661 + $0x14] sm:$0xf]
      %v5445 = vld [vmem:[%s661 + $0x18] sm:$0xf]
      %v5446 = vld [vmem:[%s661 + $0x1c] sm:$0xf]
      %v5447 = vld [vmem:[%s661 + $0x20] sm:$0xf]
      %v5448 = vld [vmem:[%s661 + $0x24] sm:$0xf]
      %v5449 = vld [vmem:[%s661 + $0x28] sm:$0xf]
      %v5450 = vld [vmem:[%s661 + $0x2c] sm:$0xf]
      %v5451 = vld [vmem:[%s661 + $0x30] sm:$0xf]
      %v5452 = vld [vmem:[%s661 + $0x34] sm:$0xf]
      %v5453 = vld [vmem:[%s661 + $0x38] sm:$0xf]
      %v5454 = vld [vmem:[%s661 + $0x3c] sm:$0xf]
      %v5455 = vld [vmem:[%s661 + $0x40] sm:$0xf]
      %v5456 = vld [vmem:[%s661 + $0x44] sm:$0xf]
      %v5457 = vld [vmem:[%s661 + $0x48] sm:$0xf]
      %v5458 = vld [vmem:[%s661 + $0x4c] sm:$0xf]
      %v5459 = vld [vmem:[%s661 + $0x50] sm:$0xf]
      %v5460 = vld [vmem:[%s661 + $0x54] sm:$0xf]
      %v5461 = vld [vmem:[%s661 + $0x58] sm:$0xf]
      %v5462 = vld [vmem:[%s661 + $0x5c] sm:$0xf]
      %v5463 = vld [vmem:[%s661 + $0x60] sm:$0xf]
      %v5464 = vld [vmem:[%s661 + $0x64] sm:$0xf]
      %v5465 = vld [vmem:[%s661 + $0x68] sm:$0xf]
      %v5466 = vld [vmem:[%s661 + $0x6c] sm:$0xf]
      %v5467 = vld [vmem:[%s661 + $0x70] sm:$0xf]
      %v5468 = vld [vmem:[%s661 + $0x74] sm:$0xf]
      %v5469 = vld [vmem:[%s661 + $0x78] sm:$0xf]
      %v5470 = vld [vmem:[%s661 + $0x7c] sm:$0xf]
      %v5471 = vld [vmem:[%s661 + $0x80] sm:$0xf]
      %v5472 = vld [vmem:[%s661 + $0x84] sm:$0xf]
      %v5473 = vld [vmem:[%s661 + $0x88] sm:$0xf]
      %v5474 = vld [vmem:[%s661 + $0x8c] sm:$0xf]
      %v5475 = vld [vmem:[%s661 + $0x90] sm:$0xf]
      %v5476 = vld [vmem:[%s661 + $0x94] sm:$0xf]
      %v5477 = vld [vmem:[%s661 + $0x98] sm:$0xf]
      %v5478 = vld [vmem:[%s661 + $0x9c] sm:$0xf]
      %v5479 = vld [vmem:[%s661 + $0xa0] sm:$0xf]
      %v5480 = vld [vmem:[%s661 + $0xa4] sm:$0xf]
      %v5481 = vld [vmem:[%s661 + $0xa8] sm:$0xf]
      %v5482 = vld [vmem:[%s661 + $0xac] sm:$0xf]
      %v5483 = vld [vmem:[%s661 + $0xb0] sm:$0xf]
      %v5484 = vld [vmem:[%s661 + $0xb4] sm:$0xf]
      %v5485 = vld [vmem:[%s661 + $0xb8] sm:$0xf]
      %v5486 = vld [vmem:[%s661 + $0xbc] sm:$0xf]
      %v5487 = vld [vmem:[%s661 + $0xc0] sm:$0xf]
      %v5488 = vld [vmem:[%s661 + $0xc4] sm:$0xf]
      %v5489 = vld [vmem:[%s661 + $0xc8] sm:$0xf]
      %v5490 = vld [vmem:[%s661 + $0xcc] sm:$0xf]
      %v5491 = vld [vmem:[%s661 + $0xd0] sm:$0xf]
      %v5492 = vld [vmem:[%s661 + $0xd4] sm:$0xf]
      %v5493 = vld [vmem:[%s661 + $0xd8] sm:$0xf]
      %v5494 = vld [vmem:[%s661 + $0xdc] sm:$0xf]
      %v5495 = vld [vmem:[%s661 + $0xe0] sm:$0xf]
      %v5496 = vld [vmem:[%s661 + $0xe4] sm:$0xf]
      %v5497 = vld [vmem:[%s661 + $0xe8] sm:$0xf]
      %v5498 = vld [vmem:[%s661 + $0xec] sm:$0xf]
      %v5499 = vld [vmem:[%s661 + $0xf0] sm:$0xf]
      %v5500 = vld [vmem:[%s661 + $0xf4] sm:$0xf]
      %v5501 = vld [vmem:[%s661 + $0xf8] sm:$0xf]
      %v5502 = vld [vmem:[%s661 + $0xfc] sm:$0xf]
      %v5503 = vld [vmem:[%s661 + $0x100] sm:$0xf]
      %v5504 = vld [vmem:[%s661 + $0x104] sm:$0xf]
      %v5505 = vld [vmem:[%s661 + $0x108] sm:$0xf]
      %v5506 = vld [vmem:[%s661 + $0x10c] sm:$0xf]
      %v5507 = vld [vmem:[%s661 + $0x110] sm:$0xf]
      %v5508 = vld [vmem:[%s661 + $0x114] sm:$0xf]
      %v5509 = vld [vmem:[%s661 + $0x118] sm:$0xf]
      %v5510 = vld [vmem:[%s661 + $0x11c] sm:$0xf]
      %v5511 = vld [vmem:[%s661 + $0x120] sm:$0xf]
      %v5512 = vld [vmem:[%s661 + $0x124] sm:$0xf]
      %v5513 = vld [vmem:[%s661 + $0x128] sm:$0xf]
      %v5514 = vld [vmem:[%s661 + $0x12c] sm:$0xf]
      %v5515 = vld [vmem:[%s661 + $0x130] sm:$0xf]
      %v5516 = vld [vmem:[%s661 + $0x134] sm:$0xf]
      %v5517 = vld [vmem:[%s661 + $0x138] sm:$0xf]
      %v5518 = vld [vmem:[%s661 + $0x13c] sm:$0xf]
      %v5519 = vld [vmem:[%s661 + $0x140] sm:$0xf]
      %v5520 = vld [vmem:[%s661 + $0x144] sm:$0xf]
      %v5521 = vld [vmem:[%s661 + $0x148] sm:$0xf]
      %v5522 = vld [vmem:[%s661 + $0x14c] sm:$0xf]
      %v5523 = vld [vmem:[%s661 + $0x150] sm:$0xf]
      %v5524 = vld [vmem:[%s661 + $0x154] sm:$0xf]
      %v5525 = vld [vmem:[%s661 + $0x158] sm:$0xf]
      %v5526 = vld [vmem:[%s661 + $0x15c] sm:$0xf]
      %v5527 = vld [vmem:[%s661 + $0x160] sm:$0xf]
      %v5528 = vld [vmem:[%s661 + $0x164] sm:$0xf]
      %v5529 = vld [vmem:[%s661 + $0x168] sm:$0xf]
      %v5530 = vld [vmem:[%s661 + $0x16c] sm:$0xf]
      %v5531 = vld [vmem:[%s661 + $0x170] sm:$0xf]
      %v5532 = vld [vmem:[%s661 + $0x174] sm:$0xf]
      %v5533 = vld [vmem:[%s661 + $0x178] sm:$0xf]
      %v5534 = vld [vmem:[%s661 + $0x17c] sm:$0xf]
      %v5535 = vld [vmem:[%s661 + $0x180] sm:$0xf]
      %v5536 = vld [vmem:[%s661 + $0x184] sm:$0xf]
      %v5537 = vld [vmem:[%s661 + $0x188] sm:$0xf]
      %v5538 = vld [vmem:[%s661 + $0x18c] sm:$0xf]
      %v5539 = vld [vmem:[%s661 + $0x190] sm:$0xf]
      %v5540 = vld [vmem:[%s661 + $0x194] sm:$0xf]
      %v5541 = vld [vmem:[%s661 + $0x198] sm:$0xf]
      %v5542 = vld [vmem:[%s661 + $0x19c] sm:$0xf]
      %v5543 = vld [vmem:[%s661 + $0x1a0] sm:$0xf]
      %v5544 = vld [vmem:[%s661 + $0x1a4] sm:$0xf]
      %v5545 = vld [vmem:[%s661 + $0x1a8] sm:$0xf]
      %v5546 = vld [vmem:[%s661 + $0x1ac] sm:$0xf]
      %v5547 = vld [vmem:[%s661 + $0x1b0] sm:$0xf]
      %v5548 = vld [vmem:[%s661 + $0x1b4] sm:$0xf]
      %v5549 = vld [vmem:[%s661 + $0x1b8] sm:$0xf]
      %v5550 = vld [vmem:[%s661 + $0x1bc] sm:$0xf]
      %v5551 = vld [vmem:[%s661 + $0x1c0] sm:$0xf]
      %v5552 = vld [vmem:[%s661 + $0x1c4] sm:$0xf]
      %v5553 = vld [vmem:[%s661 + $0x1c8] sm:$0xf]
      %v5554 = vld [vmem:[%s661 + $0x1cc] sm:$0xf]
      %v5555 = vld [vmem:[%s661 + $0x1d0] sm:$0xf]
      %v5556 = vld [vmem:[%s661 + $0x1d4] sm:$0xf]
      %v5557 = vld [vmem:[%s661 + $0x1d8] sm:$0xf]
      %v5558 = vld [vmem:[%s661 + $0x1dc] sm:$0xf]
      %v5559 = vld [vmem:[%s661 + $0x1e0] sm:$0xf]
      %v5560 = vld [vmem:[%s661 + $0x1e4] sm:$0xf]
      %v5561 = vld [vmem:[%s661 + $0x1e8] sm:$0xf]
      %v5562 = vld [vmem:[%s661 + $0x1ec] sm:$0xf]
      %v5563 = vld [vmem:[%s661 + $0x1f0] sm:$0xf]
      %v5564 = vld [vmem:[%s661 + $0x1f4] sm:$0xf]
      %v5565 = vld [vmem:[%s661 + $0x1f8] sm:$0xf]
      %v5566 = vld [vmem:[%s661 + $0x1fc] sm:$0xf]
      %v5567 = vld [vmem:[%s661 + $0x200] sm:$0xf]
      %v5568 = vld [vmem:[%s661 + $0x204] sm:$0xf]
      %v5569 = vld [vmem:[%s661 + $0x208] sm:$0xf]
      %v5570 = vld [vmem:[%s661 + $0x20c] sm:$0xf]
      %v5571 = vld [vmem:[%s661 + $0x210] sm:$0xf]
      %v5572 = vld [vmem:[%s661 + $0x214] sm:$0xf]
      %v5573 = vld [vmem:[%s661 + $0x218] sm:$0xf]
      %v5574 = vld [vmem:[%s661 + $0x21c] sm:$0xf]
      %v5575 = vld [vmem:[%s661 + $0x220] sm:$0xf]
      %v5576 = vld [vmem:[%s661 + $0x224] sm:$0xf]
      %v5577 = vld [vmem:[%s661 + $0x228] sm:$0xf]
      %v5578 = vld [vmem:[%s661 + $0x22c] sm:$0xf]
      %v5579 = vld [vmem:[%s661 + $0x230] sm:$0xf]
      %v5580 = vld [vmem:[%s661 + $0x234] sm:$0xf]
      %v5581 = vld [vmem:[%s661 + $0x238] sm:$0xf]
      %v5582 = vld [vmem:[%s661 + $0x23c] sm:$0xf]
      %v5583 = vld [vmem:[%s661 + $0x240] sm:$0xf]
      %v5584 = vld [vmem:[%s661 + $0x244] sm:$0xf]
      %v5585 = vld [vmem:[%s661 + $0x248] sm:$0xf]
      %v5586 = vld [vmem:[%s661 + $0x24c] sm:$0xf]
      %v5587 = vld [vmem:[%s661 + $0x250] sm:$0xf]
      %v5588 = vld [vmem:[%s661 + $0x254] sm:$0xf]
      %v5589 = vld [vmem:[%s661 + $0x258] sm:$0xf]
      %v5590 = vld [vmem:[%s661 + $0x25c] sm:$0xf]
      %v5591 = vld [vmem:[%s661 + $0x260] sm:$0xf]
      %v5592 = vld [vmem:[%s661 + $0x264] sm:$0xf]
      %v5593 = vld [vmem:[%s661 + $0x268] sm:$0xf]
      %v5594 = vld [vmem:[%s661 + $0x26c] sm:$0xf]
      %v5595 = vld [vmem:[%s661 + $0x270] sm:$0xf]
      %v5596 = vld [vmem:[%s661 + $0x274] sm:$0xf]
      %v5597 = vld [vmem:[%s661 + $0x278] sm:$0xf]
      %v5598 = vld [vmem:[%s661 + $0x27c] sm:$0xf]
      %v5599 = vld [vmem:[%s661 + $0x280] sm:$0xf]
      %v5600 = vld [vmem:[%s661 + $0x284] sm:$0xf]
      %v5601 = vld [vmem:[%s661 + $0x288] sm:$0xf]
      %v5602 = vld [vmem:[%s661 + $0x28c] sm:$0xf]
      %v5603 = vld [vmem:[%s661 + $0x290] sm:$0xf]
      %v5604 = vld [vmem:[%s661 + $0x294] sm:$0xf]
      %v5605 = vld [vmem:[%s661 + $0x298] sm:$0xf]
      %v5606 = vld [vmem:[%s661 + $0x29c] sm:$0xf]
      %v5607 = vld [vmem:[%s661 + $0x2a0] sm:$0xf]
      %v5608 = vld [vmem:[%s661 + $0x2a4] sm:$0xf]
      %v5609 = vld [vmem:[%s661 + $0x2a8] sm:$0xf]
      %v5610 = vld [vmem:[%s661 + $0x2ac] sm:$0xf]
      %v5611 = vld [vmem:[%s661 + $0x2b0] sm:$0xf]
      %v5612 = vld [vmem:[%s661 + $0x2b4] sm:$0xf]
      %v5613 = vld [vmem:[%s661 + $0x2b8] sm:$0xf]
      %v5614 = vld [vmem:[%s661 + $0x2bc] sm:$0xf]
      %v5615 = vld [vmem:[%s661 + $0x2c0] sm:$0xf]
      %v5616 = vld [vmem:[%s661 + $0x2c4] sm:$0xf]
      %v5617 = vld [vmem:[%s661 + $0x2c8] sm:$0xf]
      %v5618 = vld [vmem:[%s661 + $0x2cc] sm:$0xf]
      %v5619 = vld [vmem:[%s661 + $0x2d0] sm:$0xf]
      %v5620 = vld [vmem:[%s661 + $0x2d4] sm:$0xf]
      %v5621 = vld [vmem:[%s661 + $0x2d8] sm:$0xf]
      %v5622 = vld [vmem:[%s661 + $0x2dc] sm:$0xf]
      %v5623 = vld [vmem:[%s661 + $0x2e0] sm:$0xf]
      %v5624 = vld [vmem:[%s661 + $0x2e4] sm:$0xf]
      %v5625 = vld [vmem:[%s661 + $0x2e8] sm:$0xf]
      %v5626 = vld [vmem:[%s661 + $0x2ec] sm:$0xf]
      %v5627 = vld [vmem:[%s661 + $0x2f0] sm:$0xf]
      %v5628 = vld [vmem:[%s661 + $0x2f4] sm:$0xf]
      %v5629 = vld [vmem:[%s661 + $0x2f8] sm:$0xf]
      %v5630 = vld [vmem:[%s661 + $0x2fc] sm:$0xf]
      %v5631 = vld [vmem:[%s661 + $0x300] sm:$0xf]
      %v5632 = vld [vmem:[%s661 + $0x304] sm:$0xf]
      %v5633 = vld [vmem:[%s661 + $0x308] sm:$0xf]
      %v5634 = vld [vmem:[%s661 + $0x30c] sm:$0xf]
      %v5635 = vld [vmem:[%s661 + $0x310] sm:$0xf]
      %v5636 = vld [vmem:[%s661 + $0x314] sm:$0xf]
      %v5637 = vld [vmem:[%s661 + $0x318] sm:$0xf]
      %v5638 = vld [vmem:[%s661 + $0x31c] sm:$0xf]
      %v5639 = vld [vmem:[%s661 + $0x320] sm:$0xf]
      %v5640 = vld [vmem:[%s661 + $0x324] sm:$0xf]
      %v5641 = vld [vmem:[%s661 + $0x328] sm:$0xf]
      %v5642 = vld [vmem:[%s661 + $0x32c] sm:$0xf]
      %v5643 = vld [vmem:[%s661 + $0x330] sm:$0xf]
      %v5644 = vld [vmem:[%s661 + $0x334] sm:$0xf]
      %v5645 = vld [vmem:[%s661 + $0x338] sm:$0xf]
      %v5646 = vld [vmem:[%s661 + $0x33c] sm:$0xf]
      %v5647 = vld [vmem:[%s661 + $0x340] sm:$0xf]
      %v5648 = vld [vmem:[%s661 + $0x344] sm:$0xf]
      %v5649 = vld [vmem:[%s661 + $0x348] sm:$0xf]
      %v5650 = vld [vmem:[%s661 + $0x34c] sm:$0xf]
      %v5651 = vld [vmem:[%s661 + $0x350] sm:$0xf]
      %v5652 = vld [vmem:[%s661 + $0x354] sm:$0xf]
      %v5653 = vld [vmem:[%s661 + $0x358] sm:$0xf]
      %v5654 = vld [vmem:[%s661 + $0x35c] sm:$0xf]
      %v5655 = vld [vmem:[%s661 + $0x360] sm:$0xf]
      %v5656 = vld [vmem:[%s661 + $0x364] sm:$0xf]
      %v5657 = vld [vmem:[%s661 + $0x368] sm:$0xf]
      %v5658 = vld [vmem:[%s661 + $0x36c] sm:$0xf]
      %v5659 = vld [vmem:[%s661 + $0x370] sm:$0xf]
      %v5660 = vld [vmem:[%s661 + $0x374] sm:$0xf]
      %v5661 = vld [vmem:[%s661 + $0x378] sm:$0xf]
      %v5662 = vld [vmem:[%s661 + $0x37c] sm:$0xf]
      %v5663 = vld [vmem:[%s661 + $0x380] sm:$0xf]
      %v5664 = vld [vmem:[%s661 + $0x384] sm:$0xf]
      %v5665 = vld [vmem:[%s661 + $0x388] sm:$0xf]
      %v5666 = vld [vmem:[%s661 + $0x38c] sm:$0xf]
      %v5667 = vld [vmem:[%s661 + $0x390] sm:$0xf]
      %v5668 = vld [vmem:[%s661 + $0x394] sm:$0xf]
      %v5669 = vld [vmem:[%s661 + $0x398] sm:$0xf]
      %v5670 = vld [vmem:[%s661 + $0x39c] sm:$0xf]
      %v5671 = vld [vmem:[%s661 + $0x3a0] sm:$0xf]
      %v5672 = vld [vmem:[%s661 + $0x3a4] sm:$0xf]
      %v5673 = vld [vmem:[%s661 + $0x3a8] sm:$0xf]
      %v5674 = vld [vmem:[%s661 + $0x3ac] sm:$0xf]
      %v5675 = vld [vmem:[%s661 + $0x3b0] sm:$0xf]
      %v5676 = vld [vmem:[%s661 + $0x3b4] sm:$0xf]
      %v5677 = vld [vmem:[%s661 + $0x3b8] sm:$0xf]
      %v5678 = vld [vmem:[%s661 + $0x3bc] sm:$0xf]
      %v5679 = vld [vmem:[%s661 + $0x3c0] sm:$0xf]
      %v5680 = vld [vmem:[%s661 + $0x3c4] sm:$0xf]
      %v5681 = vld [vmem:[%s661 + $0x3c8] sm:$0xf]
      %v5682 = vld [vmem:[%s661 + $0x3cc] sm:$0xf]
      %v5683 = vld [vmem:[%s661 + $0x3d0] sm:$0xf]
      %v5684 = vld [vmem:[%s661 + $0x3d4] sm:$0xf]
      %v5685 = vld [vmem:[%s661 + $0x3d8] sm:$0xf]
      %v5686 = vld [vmem:[%s661 + $0x3dc] sm:$0xf]
      %v5687 = vld [vmem:[%s661 + $0x3e0] sm:$0xf]
      %v5688 = vld [vmem:[%s661 + $0x3e4] sm:$0xf]
      %v5689 = vld [vmem:[%s661 + $0x3e8] sm:$0xf]
      %v5690 = vld [vmem:[%s661 + $0x3ec] sm:$0xf]
      %v5691 = vld [vmem:[%s661 + $0x3f0] sm:$0xf]
      %v5692 = vld [vmem:[%s661 + $0x3f4] sm:$0xf]
      %v5693 = vld [vmem:[%s661 + $0x3f8] sm:$0xf]
      %v5694 = vld [vmem:[%s661 + $0x3fc] sm:$0xf]
      %v5695 = vld [vmem:[%s664] sm:$0x1]
      %v5697 = vlaneseq
      %v5698 = vshrl.u32 %v5697, 7
      %v5699 = vsub.s32 0, %v5698
      %v5700 = vrot.slane %v5695, %v5699
      %v5958 = vunpack.c.l.b16 %v5439
      %v5959 = vunpack.c.l.b16 %v5440
      %v5960 = vunpack.c.l.b16 %v5441
      %v5961 = vunpack.c.l.b16 %v5442
      %v5962 = vunpack.c.l.b16 %v5443
      %v5963 = vunpack.c.l.b16 %v5444
      %v5964 = vunpack.c.l.b16 %v5445
      %v5965 = vunpack.c.l.b16 %v5446
      %v5966 = vunpack.c.l.b16 %v5447
      %v5967 = vunpack.c.l.b16 %v5448
      %v5968 = vunpack.c.l.b16 %v5449
      %v5969 = vunpack.c.l.b16 %v5450
      %v5970 = vunpack.c.l.b16 %v5451
      %v5971 = vunpack.c.l.b16 %v5452
      %v5972 = vunpack.c.l.b16 %v5453
      %v5973 = vunpack.c.l.b16 %v5454
      %v5974 = vunpack.c.l.b16 %v5455
      %v5975 = vunpack.c.l.b16 %v5456
      %v5976 = vunpack.c.l.b16 %v5457
      %v5977 = vunpack.c.l.b16 %v5458
      %v5978 = vunpack.c.l.b16 %v5459
      %v5979 = vunpack.c.l.b16 %v5460
      %v5980 = vunpack.c.l.b16 %v5461
      %v5981 = vunpack.c.l.b16 %v5462
      %v5982 = vunpack.c.l.b16 %v5463
      %v5983 = vunpack.c.l.b16 %v5464
      %v5984 = vunpack.c.l.b16 %v5465
      %v5985 = vunpack.c.l.b16 %v5466
      %v5986 = vunpack.c.l.b16 %v5467
      %v5987 = vunpack.c.l.b16 %v5468
      %v5988 = vunpack.c.l.b16 %v5469
      %v5989 = vunpack.c.l.b16 %v5470
      %v5990 = vunpack.c.l.b16 %v5471
      %v5991 = vunpack.c.l.b16 %v5472
      %v5992 = vunpack.c.l.b16 %v5473
      %v5993 = vunpack.c.l.b16 %v5474
      %v5994 = vunpack.c.l.b16 %v5475
      %v5995 = vunpack.c.l.b16 %v5476
      %v5996 = vunpack.c.l.b16 %v5477
      %v5997 = vunpack.c.l.b16 %v5478
      %v5998 = vunpack.c.l.b16 %v5479
      %v5999 = vunpack.c.l.b16 %v5480
      %v6000 = vunpack.c.l.b16 %v5481
      %v6001 = vunpack.c.l.b16 %v5482
      %v6002 = vunpack.c.l.b16 %v5483
      %v6003 = vunpack.c.l.b16 %v5484
      %v6004 = vunpack.c.l.b16 %v5485
      %v6005 = vunpack.c.l.b16 %v5486
      %v6006 = vunpack.c.l.b16 %v5487
      %v6007 = vunpack.c.l.b16 %v5488
      %v6008 = vunpack.c.l.b16 %v5489
      %v6009 = vunpack.c.l.b16 %v5490
      %v6010 = vunpack.c.l.b16 %v5491
      %v6011 = vunpack.c.l.b16 %v5492
      %v6012 = vunpack.c.l.b16 %v5493
      %v6013 = vunpack.c.l.b16 %v5494
      %v6014 = vunpack.c.l.b16 %v5495
      %v6015 = vunpack.c.l.b16 %v5496
      %v6016 = vunpack.c.l.b16 %v5497
      %v6017 = vunpack.c.l.b16 %v5498
      %v6018 = vunpack.c.l.b16 %v5499
      %v6019 = vunpack.c.l.b16 %v5500
      %v6020 = vunpack.c.l.b16 %v5501
      %v6021 = vunpack.c.l.b16 %v5502
      %v6022 = vunpack.c.l.b16 %v5503
      %v6023 = vunpack.c.l.b16 %v5504
      %v6024 = vunpack.c.l.b16 %v5505
      %v6025 = vunpack.c.l.b16 %v5506
      %v6026 = vunpack.c.l.b16 %v5507
      %v6027 = vunpack.c.l.b16 %v5508
      %v6028 = vunpack.c.l.b16 %v5509
      %v6029 = vunpack.c.l.b16 %v5510
      %v6030 = vunpack.c.l.b16 %v5511
      %v6031 = vunpack.c.l.b16 %v5512
      %v6032 = vunpack.c.l.b16 %v5513
      %v6033 = vunpack.c.l.b16 %v5514
      %v6034 = vunpack.c.l.b16 %v5515
      %v6035 = vunpack.c.l.b16 %v5516
      %v6036 = vunpack.c.l.b16 %v5517
      %v6037 = vunpack.c.l.b16 %v5518
      %v6038 = vunpack.c.l.b16 %v5519
      %v6039 = vunpack.c.l.b16 %v5520
      %v6040 = vunpack.c.l.b16 %v5521
      %v6041 = vunpack.c.l.b16 %v5522
      %v6042 = vunpack.c.l.b16 %v5523
      %v6043 = vunpack.c.l.b16 %v5524
      %v6044 = vunpack.c.l.b16 %v5525
      %v6045 = vunpack.c.l.b16 %v5526
      %v6046 = vunpack.c.l.b16 %v5527
      %v6047 = vunpack.c.l.b16 %v5528
      %v6048 = vunpack.c.l.b16 %v5529
      %v6049 = vunpack.c.l.b16 %v5530
      %v6050 = vunpack.c.l.b16 %v5531
      %v6051 = vunpack.c.l.b16 %v5532
      %v6052 = vunpack.c.l.b16 %v5533
      %v6053 = vunpack.c.l.b16 %v5534
      %v6054 = vunpack.c.l.b16 %v5535
      %v6055 = vunpack.c.l.b16 %v5536
      %v6056 = vunpack.c.l.b16 %v5537
      %v6057 = vunpack.c.l.b16 %v5538
      %v6058 = vunpack.c.l.b16 %v5539
      %v6059 = vunpack.c.l.b16 %v5540
      %v6060 = vunpack.c.l.b16 %v5541
      %v6061 = vunpack.c.l.b16 %v5542
      %v6062 = vunpack.c.l.b16 %v5543
      %v6063 = vunpack.c.l.b16 %v5544
      %v6064 = vunpack.c.l.b16 %v5545
      %v6065 = vunpack.c.l.b16 %v5546
      %v6066 = vunpack.c.l.b16 %v5547
      %v6067 = vunpack.c.l.b16 %v5548
      %v6068 = vunpack.c.l.b16 %v5549
      %v6069 = vunpack.c.l.b16 %v5550
      %v6070 = vunpack.c.l.b16 %v5551
      %v6071 = vunpack.c.l.b16 %v5552
      %v6072 = vunpack.c.l.b16 %v5553
      %v6073 = vunpack.c.l.b16 %v5554
      %v6074 = vunpack.c.l.b16 %v5555
      %v6075 = vunpack.c.l.b16 %v5556
      %v6076 = vunpack.c.l.b16 %v5557
      %v6077 = vunpack.c.l.b16 %v5558
      %v6078 = vunpack.c.l.b16 %v5559
      %v6079 = vunpack.c.l.b16 %v5560
      %v6080 = vunpack.c.l.b16 %v5561
      %v6081 = vunpack.c.l.b16 %v5562
      %v6082 = vunpack.c.l.b16 %v5563
      %v6083 = vunpack.c.l.b16 %v5564
      %v6084 = vunpack.c.l.b16 %v5565
      %v6085 = vunpack.c.l.b16 %v5566
      %v6086 = vunpack.c.l.b16 %v5567
      %v6087 = vunpack.c.l.b16 %v5568
      %v6088 = vunpack.c.l.b16 %v5569
      %v6089 = vunpack.c.l.b16 %v5570
      %v6090 = vunpack.c.l.b16 %v5571
      %v6091 = vunpack.c.l.b16 %v5572
      %v6092 = vunpack.c.l.b16 %v5573
      %v6093 = vunpack.c.l.b16 %v5574
      %v6094 = vunpack.c.l.b16 %v5575
      %v6095 = vunpack.c.l.b16 %v5576
      %v6096 = vunpack.c.l.b16 %v5577
      %v6097 = vunpack.c.l.b16 %v5578
      %v6098 = vunpack.c.l.b16 %v5579
      %v6099 = vunpack.c.l.b16 %v5580
      %v6100 = vunpack.c.l.b16 %v5581
      %v6101 = vunpack.c.l.b16 %v5582
      %v6102 = vunpack.c.l.b16 %v5583
      %v6103 = vunpack.c.l.b16 %v5584
      %v6104 = vunpack.c.l.b16 %v5585
      %v6105 = vunpack.c.l.b16 %v5586
      %v6106 = vunpack.c.l.b16 %v5587
      %v6107 = vunpack.c.l.b16 %v5588
      %v6108 = vunpack.c.l.b16 %v5589
      %v6109 = vunpack.c.l.b16 %v5590
      %v6110 = vunpack.c.l.b16 %v5591
      %v6111 = vunpack.c.l.b16 %v5592
      %v6112 = vunpack.c.l.b16 %v5593
      %v6113 = vunpack.c.l.b16 %v5594
      %v6114 = vunpack.c.l.b16 %v5595
      %v6115 = vunpack.c.l.b16 %v5596
      %v6116 = vunpack.c.l.b16 %v5597
      %v6117 = vunpack.c.l.b16 %v5598
      %v6118 = vunpack.c.l.b16 %v5599
      %v6119 = vunpack.c.l.b16 %v5600
      %v6120 = vunpack.c.l.b16 %v5601
      %v6121 = vunpack.c.l.b16 %v5602
      %v6122 = vunpack.c.l.b16 %v5603
      %v6123 = vunpack.c.l.b16 %v5604
      %v6124 = vunpack.c.l.b16 %v5605
      %v6125 = vunpack.c.l.b16 %v5606
      %v6126 = vunpack.c.l.b16 %v5607
      %v6127 = vunpack.c.l.b16 %v5608
      %v6128 = vunpack.c.l.b16 %v5609
      %v6129 = vunpack.c.l.b16 %v5610
      %v6130 = vunpack.c.l.b16 %v5611
      %v6131 = vunpack.c.l.b16 %v5612
      %v6132 = vunpack.c.l.b16 %v5613
      %v6133 = vunpack.c.l.b16 %v5614
      %v6134 = vunpack.c.l.b16 %v5615
      %v6135 = vunpack.c.l.b16 %v5616
      %v6136 = vunpack.c.l.b16 %v5617
      %v6137 = vunpack.c.l.b16 %v5618
      %v6138 = vunpack.c.l.b16 %v5619
      %v6139 = vunpack.c.l.b16 %v5620
      %v6140 = vunpack.c.l.b16 %v5621
      %v6141 = vunpack.c.l.b16 %v5622
      %v6142 = vunpack.c.l.b16 %v5623
      %v6143 = vunpack.c.l.b16 %v5624
      %v6144 = vunpack.c.l.b16 %v5625
      %v6145 = vunpack.c.l.b16 %v5626
      %v6146 = vunpack.c.l.b16 %v5627
      %v6147 = vunpack.c.l.b16 %v5628
      %v6148 = vunpack.c.l.b16 %v5629
      %v6149 = vunpack.c.l.b16 %v5630
      %v6150 = vunpack.c.l.b16 %v5631
      %v6151 = vunpack.c.l.b16 %v5632
      %v6152 = vunpack.c.l.b16 %v5633
      %v6153 = vunpack.c.l.b16 %v5634
      %v6154 = vunpack.c.l.b16 %v5635
      %v6155 = vunpack.c.l.b16 %v5636
      %v6156 = vunpack.c.l.b16 %v5637
      %v6157 = vunpack.c.l.b16 %v5638
      %v6158 = vunpack.c.l.b16 %v5639
      %v6159 = vunpack.c.l.b16 %v5640
      %v6160 = vunpack.c.l.b16 %v5641
      %v6161 = vunpack.c.l.b16 %v5642
      %v6162 = vunpack.c.l.b16 %v5643
      %v6163 = vunpack.c.l.b16 %v5644
      %v6164 = vunpack.c.l.b16 %v5645
      %v6165 = vunpack.c.l.b16 %v5646
      %v6166 = vunpack.c.l.b16 %v5647
      %v6167 = vunpack.c.l.b16 %v5648
      %v6168 = vunpack.c.l.b16 %v5649
      %v6169 = vunpack.c.l.b16 %v5650
      %v6170 = vunpack.c.l.b16 %v5651
      %v6171 = vunpack.c.l.b16 %v5652
      %v6172 = vunpack.c.l.b16 %v5653
      %v6173 = vunpack.c.l.b16 %v5654
      %v6174 = vunpack.c.l.b16 %v5655
      %v6175 = vunpack.c.l.b16 %v5656
      %v6176 = vunpack.c.l.b16 %v5657
      %v6177 = vunpack.c.l.b16 %v5658
      %v6178 = vunpack.c.l.b16 %v5659
      %v6179 = vunpack.c.l.b16 %v5660
      %v6180 = vunpack.c.l.b16 %v5661
      %v6181 = vunpack.c.l.b16 %v5662
      %v6182 = vunpack.c.l.b16 %v5663
      %v6183 = vunpack.c.l.b16 %v5664
      %v6184 = vunpack.c.l.b16 %v5665
      %v6185 = vunpack.c.l.b16 %v5666
      %v6186 = vunpack.c.l.b16 %v5667
      %v6187 = vunpack.c.l.b16 %v5668
      %v6188 = vunpack.c.l.b16 %v5669
      %v6189 = vunpack.c.l.b16 %v5670
      %v6190 = vunpack.c.l.b16 %v5671
      %v6191 = vunpack.c.l.b16 %v5672
      %v6192 = vunpack.c.l.b16 %v5673
      %v6193 = vunpack.c.l.b16 %v5674
      %v6194 = vunpack.c.l.b16 %v5675
      %v6195 = vunpack.c.l.b16 %v5676
      %v6196 = vunpack.c.l.b16 %v5677
      %v6197 = vunpack.c.l.b16 %v5678
      %v6198 = vunpack.c.l.b16 %v5679
      %v6199 = vunpack.c.l.b16 %v5680
      %v6200 = vunpack.c.l.b16 %v5681
      %v6201 = vunpack.c.l.b16 %v5682
      %v6202 = vunpack.c.l.b16 %v5683
      %v6203 = vunpack.c.l.b16 %v5684
      %v6204 = vunpack.c.l.b16 %v5685
      %v6205 = vunpack.c.l.b16 %v5686
      %v6206 = vunpack.c.l.b16 %v5687
      %v6207 = vunpack.c.l.b16 %v5688
      %v6208 = vunpack.c.l.b16 %v5689
      %v6209 = vunpack.c.l.b16 %v5690
      %v6210 = vunpack.c.l.b16 %v5691
      %v6211 = vunpack.c.l.b16 %v5692
      %v6212 = vunpack.c.l.b16 %v5693
      %v6213 = vunpack.c.l.b16 %v5694
      %v6214 = vpack.c.b16 %v5959, %v5958
      %v6215 = vpack.c.b16 %v5961, %v5960
      %v6216 = vpack.c.b16 %v5963, %v5962
      %v6217 = vpack.c.b16 %v5965, %v5964
      %v6218 = vpack.c.b16 %v5967, %v5966
      %v6219 = vpack.c.b16 %v5969, %v5968
      %v6220 = vpack.c.b16 %v5971, %v5970
      %v6221 = vpack.c.b16 %v5973, %v5972
      %v6222 = vpack.c.b16 %v5975, %v5974
      %v6223 = vpack.c.b16 %v5977, %v5976
      %v6224 = vpack.c.b16 %v5979, %v5978
      %v6225 = vpack.c.b16 %v5981, %v5980
      %v6226 = vpack.c.b16 %v5983, %v5982
      %v6227 = vpack.c.b16 %v5985, %v5984
      %v6228 = vpack.c.b16 %v5987, %v5986
      %v6229 = vpack.c.b16 %v5989, %v5988
      %v6230 = vpack.c.b16 %v5991, %v5990
      %v6231 = vpack.c.b16 %v5993, %v5992
      %v6232 = vpack.c.b16 %v5995, %v5994
      %v6233 = vpack.c.b16 %v5997, %v5996
      %v6234 = vpack.c.b16 %v5999, %v5998
      %v6235 = vpack.c.b16 %v6001, %v6000
      %v6236 = vpack.c.b16 %v6003, %v6002
      %v6237 = vpack.c.b16 %v6005, %v6004
      %v6238 = vpack.c.b16 %v6007, %v6006
      %v6239 = vpack.c.b16 %v6009, %v6008
      %v6240 = vpack.c.b16 %v6011, %v6010
      %v6241 = vpack.c.b16 %v6013, %v6012
      %v6242 = vpack.c.b16 %v6015, %v6014
      %v6243 = vpack.c.b16 %v6017, %v6016
      %v6244 = vpack.c.b16 %v6019, %v6018
      %v6245 = vpack.c.b16 %v6021, %v6020
      %v6246 = vpack.c.b16 %v6023, %v6022
      %v6247 = vpack.c.b16 %v6025, %v6024
      %v6248 = vpack.c.b16 %v6027, %v6026
      %v6249 = vpack.c.b16 %v6029, %v6028
      %v6250 = vpack.c.b16 %v6031, %v6030
      %v6251 = vpack.c.b16 %v6033, %v6032
      %v6252 = vpack.c.b16 %v6035, %v6034
      %v6253 = vpack.c.b16 %v6037, %v6036
      %v6254 = vpack.c.b16 %v6039, %v6038
      %v6255 = vpack.c.b16 %v6041, %v6040
      %v6256 = vpack.c.b16 %v6043, %v6042
      %v6257 = vpack.c.b16 %v6045, %v6044
      %v6258 = vpack.c.b16 %v6047, %v6046
      %v6259 = vpack.c.b16 %v6049, %v6048
      %v6260 = vpack.c.b16 %v6051, %v6050
      %v6261 = vpack.c.b16 %v6053, %v6052
      %v6262 = vpack.c.b16 %v6055, %v6054
      %v6263 = vpack.c.b16 %v6057, %v6056
      %v6264 = vpack.c.b16 %v6059, %v6058
      %v6265 = vpack.c.b16 %v6061, %v6060
      %v6266 = vpack.c.b16 %v6063, %v6062
      %v6267 = vpack.c.b16 %v6065, %v6064
      %v6268 = vpack.c.b16 %v6067, %v6066
      %v6269 = vpack.c.b16 %v6069, %v6068
      %v6270 = vpack.c.b16 %v6071, %v6070
      %v6271 = vpack.c.b16 %v6073, %v6072
      %v6272 = vpack.c.b16 %v6075, %v6074
      %v6273 = vpack.c.b16 %v6077, %v6076
      %v6274 = vpack.c.b16 %v6079, %v6078
      %v6275 = vpack.c.b16 %v6081, %v6080
      %v6276 = vpack.c.b16 %v6083, %v6082
      %v6277 = vpack.c.b16 %v6085, %v6084
      %v6278 = vpack.c.b16 %v6087, %v6086
      %v6279 = vpack.c.b16 %v6089, %v6088
      %v6280 = vpack.c.b16 %v6091, %v6090
      %v6281 = vpack.c.b16 %v6093, %v6092
      %v6282 = vpack.c.b16 %v6095, %v6094
      %v6283 = vpack.c.b16 %v6097, %v6096
      %v6284 = vpack.c.b16 %v6099, %v6098
      %v6285 = vpack.c.b16 %v6101, %v6100
      %v6286 = vpack.c.b16 %v6103, %v6102
      %v6287 = vpack.c.b16 %v6105, %v6104
      %v6288 = vpack.c.b16 %v6107, %v6106
      %v6289 = vpack.c.b16 %v6109, %v6108
      %v6290 = vpack.c.b16 %v6111, %v6110
      %v6291 = vpack.c.b16 %v6113, %v6112
      %v6292 = vpack.c.b16 %v6115, %v6114
      %v6293 = vpack.c.b16 %v6117, %v6116
      %v6294 = vpack.c.b16 %v6119, %v6118
      %v6295 = vpack.c.b16 %v6121, %v6120
      %v6296 = vpack.c.b16 %v6123, %v6122
      %v6297 = vpack.c.b16 %v6125, %v6124
      %v6298 = vpack.c.b16 %v6127, %v6126
      %v6299 = vpack.c.b16 %v6129, %v6128
      %v6300 = vpack.c.b16 %v6131, %v6130
      %v6301 = vpack.c.b16 %v6133, %v6132
      %v6302 = vpack.c.b16 %v6135, %v6134
      %v6303 = vpack.c.b16 %v6137, %v6136
      %v6304 = vpack.c.b16 %v6139, %v6138
      %v6305 = vpack.c.b16 %v6141, %v6140
      %v6306 = vpack.c.b16 %v6143, %v6142
      %v6307 = vpack.c.b16 %v6145, %v6144
      %v6308 = vpack.c.b16 %v6147, %v6146
      %v6309 = vpack.c.b16 %v6149, %v6148
      %v6310 = vpack.c.b16 %v6151, %v6150
      %v6311 = vpack.c.b16 %v6153, %v6152
      %v6312 = vpack.c.b16 %v6155, %v6154
      %v6313 = vpack.c.b16 %v6157, %v6156
      %v6314 = vpack.c.b16 %v6159, %v6158
      %v6315 = vpack.c.b16 %v6161, %v6160
      %v6316 = vpack.c.b16 %v6163, %v6162
      %v6317 = vpack.c.b16 %v6165, %v6164
      %v6318 = vpack.c.b16 %v6167, %v6166
      %v6319 = vpack.c.b16 %v6169, %v6168
      %v6320 = vpack.c.b16 %v6171, %v6170
      %v6321 = vpack.c.b16 %v6173, %v6172
      %v6322 = vpack.c.b16 %v6175, %v6174
      %v6323 = vpack.c.b16 %v6177, %v6176
      %v6324 = vpack.c.b16 %v6179, %v6178
      %v6325 = vpack.c.b16 %v6181, %v6180
      %v6326 = vpack.c.b16 %v6183, %v6182
      %v6327 = vpack.c.b16 %v6185, %v6184
      %v6328 = vpack.c.b16 %v6187, %v6186
      %v6329 = vpack.c.b16 %v6189, %v6188
      %v6330 = vpack.c.b16 %v6191, %v6190
      %v6331 = vpack.c.b16 %v6193, %v6192
      %v6332 = vpack.c.b16 %v6195, %v6194
      %v6333 = vpack.c.b16 %v6197, %v6196
      %v6334 = vpack.c.b16 %v6199, %v6198
      %v6335 = vpack.c.b16 %v6201, %v6200
      %v6336 = vpack.c.b16 %v6203, %v6202
      %v6337 = vpack.c.b16 %v6205, %v6204
      %v6338 = vpack.c.b16 %v6207, %v6206
      %v6339 = vpack.c.b16 %v6209, %v6208
      %v6340 = vpack.c.b16 %v6211, %v6210
      %v6341 = vpack.c.b16 %v6213, %v6212
      %6470 = vmatprep.subr.bf16.mxu0 0
      %6471 = vmatpush1.bf16.msra.mxu0 %v6214
      %6472 = vmatprep.subr.bf16.mxu0 0
      %6473 = vmatpush1.bf16.msra.mxu0 %v6215
      %6474 = vmatprep.subr.bf16.mxu0 0
      %6475 = vmatpush1.bf16.msra.mxu0 %v6216
      %6476 = vmatprep.subr.bf16.mxu0 0
      %6477 = vmatpush1.bf16.msra.mxu0 %v6217
      %6478 = vmatprep.subr.bf16.mxu0 0
      %6479 = vmatpush1.bf16.msra.mxu0 %v6218
      %6480 = vmatprep.subr.bf16.mxu0 0
      %6481 = vmatpush1.bf16.msra.mxu0 %v6219
      %6482 = vmatprep.subr.bf16.mxu0 0
      %6483 = vmatpush1.bf16.msra.mxu0 %v6220
      %6484 = vmatprep.subr.bf16.mxu0 0
      %6485 = vmatpush1.bf16.msra.mxu0 %v6221
      %6486 = vmatprep.subr.bf16.mxu0 0
      %6487 = vmatpush1.bf16.msra.mxu0 %v6222
      %6488 = vmatprep.subr.bf16.mxu0 0
      %6489 = vmatpush1.bf16.msra.mxu0 %v6223
      %6490 = vmatprep.subr.bf16.mxu0 0
      %6491 = vmatpush1.bf16.msra.mxu0 %v6224
      %6492 = vmatprep.subr.bf16.mxu0 0
      %6493 = vmatpush1.bf16.msra.mxu0 %v6225
      %6494 = vmatprep.subr.bf16.mxu0 0
      %6495 = vmatpush1.bf16.msra.mxu0 %v6226
      %6496 = vmatprep.subr.bf16.mxu0 0
      %6497 = vmatpush1.bf16.msra.mxu0 %v6227
      %6498 = vmatprep.subr.bf16.mxu0 0
      %6499 = vmatpush1.bf16.msra.mxu0 %v6228
      %6500 = vmatprep.subr.bf16.mxu0 0
      %6501 = vmatpush1.bf16.msra.mxu0 %v6229
      %6502 = vmatprep.mubr.bf16.mxu0 %v5408
      %6503 = vmatmul.mubr.bf16.gmra.mrb[0].mxu0 %v5407
      %v6504 = vpop.f32.mrb[0].mxu0
      %v6505 = vadd.f32 %v5700, %v6504
      %v6506 = vpop.f32.mrb[0].mxu0
      %v6507 = vpop.f32.mrb[0].mxu0
      %v6508 = vadd.f32 %v5700, %v6507
      %v6509 = vpop.f32.mrb[0].mxu0
      %6510 = vmatprep.mubr.bf16.mxu0 %v5424
      %6511 = vmatmul.mubr.bf16.gmra.mrb[0].mxu0 %v5423
      %v6512 = vpop.f32.mrb[0].mxu0
      %v6513 = vadd.f32 %v5700, %v6512
      %v6514 = vpop.f32.mrb[0].mxu0
      %v6515 = vpop.f32.mrb[0].mxu0
      %v6516 = vadd.f32 %v5700, %v6515
      %v6517 = vpop.f32.mrb[0].mxu0
      %6518 = vdwg.mxu0
      %6519 = vmatprep.subr.bf16.mxu0 0
      %6520 = vmatpush1.bf16.msra.mxu0 %v6230
      %6521 = vmatprep.subr.bf16.mxu0 0
      %6522 = vmatpush1.bf16.msra.mxu0 %v6231
      %6523 = vmatprep.subr.bf16.mxu0 0
      %6524 = vmatpush1.bf16.msra.mxu0 %v6232
      %6525 = vmatprep.subr.bf16.mxu0 0
      %6526 = vmatpush1.bf16.msra.mxu0 %v6233
      %6527 = vmatprep.subr.bf16.mxu0 0
      %6528 = vmatpush1.bf16.msra.mxu0 %v6234
      %6529 = vmatprep.subr.bf16.mxu0 0
      %6530 = vmatpush1.bf16.msra.mxu0 %v6235
      %6531 = vmatprep.subr.bf16.mxu0 0
      %6532 = vmatpush1.bf16.msra.mxu0 %v6236
      %6533 = vmatprep.subr.bf16.mxu0 0
      %6534 = vmatpush1.bf16.msra.mxu0 %v6237
      %6535 = vmatprep.subr.bf16.mxu0 0
      %6536 = vmatpush1.bf16.msra.mxu0 %v6238
      %6537 = vmatprep.subr.bf16.mxu0 0
      %6538 = vmatpush1.bf16.msra.mxu0 %v6239
      %6539 = vmatprep.subr.bf16.mxu0 0
      %6540 = vmatpush1.bf16.msra.mxu0 %v6240
      %6541 = vmatprep.subr.bf16.mxu0 0
      %6542 = vmatpush1.bf16.msra.mxu0 %v6241
      %6543 = vmatprep.subr.bf16.mxu0 0
      %6544 = vmatpush1.bf16.msra.mxu0 %v6242
      %6545 = vmatprep.subr.bf16.mxu0 0
      %6546 = vmatpush1.bf16.msra.mxu0 %v6243
      %6547 = vmatprep.subr.bf16.mxu0 0
      %6548 = vmatpush1.bf16.msra.mxu0 %v6244
      %6549 = vmatprep.subr.bf16.mxu0 0
      %6550 = vmatpush1.bf16.msra.mxu0 %v6245
      %6551 = vmatprep.mubr.bf16.mxu0 %v5410
      %6552 = vmatmul.mubr.bf16.gmra.mrb[0].mxu0 %v5409
      %v6553 = vpop.f32.mrb[0].mxu0
      %v6554 = vadd.f32 %v6505, %v6553
      %v6555 = vpop.f32.mrb[0].mxu0
      %v6556 = vpop.f32.mrb[0].mxu0
      %v6557 = vadd.f32 %v6508, %v6556
      %v6558 = vpop.f32.mrb[0].mxu0
      %6559 = vmatprep.mubr.bf16.mxu0 %v5426
      %6560 = vmatmul.mubr.bf16.gmra.mrb[0].mxu0 %v5425
      %v6561 = vpop.f32.mrb[0].mxu0
      %v6562 = vadd.f32 %v6513, %v6561
      %v6563 = vpop.f32.mrb[0].mxu0
      %v6564 = vpop.f32.mrb[0].mxu0
      %v6565 = vadd.f32 %v6516, %v6564
      %v6566 = vpop.f32.mrb[0].mxu0
      %6567 = vdwg.mxu0
      %6568 = vmatprep.subr.bf16.mxu0 0
      %6569 = vmatpush1.bf16.msra.mxu0 %v6246
      %6570 = vmatprep.subr.bf16.mxu0 0
      %6571 = vmatpush1.bf16.msra.mxu0 %v6247
      %6572 = vmatprep.subr.bf16.mxu0 0
      %6573 = vmatpush1.bf16.msra.mxu0 %v6248
      %6574 = vmatprep.subr.bf16.mxu0 0
      %6575 = vmatpush1.bf16.msra.mxu0 %v6249
      %6576 = vmatprep.subr.bf16.mxu0 0
      %6577 = vmatpush1.bf16.msra.mxu0 %v6250
      %6578 = vmatprep.subr.bf16.mxu0 0
      %6579 = vmatpush1.bf16.msra.mxu0 %v6251
      %6580 = vmatprep.subr.bf16.mxu0 0
      %6581 = vmatpush1.bf16.msra.mxu0 %v6252
      %6582 = vmatprep.subr.bf16.mxu0 0
      %6583 = vmatpush1.bf16.msra.mxu0 %v6253
      %6584 = vmatprep.subr.bf16.mxu0 0
      %6585 = vmatpush1.bf16.msra.mxu0 %v6254
      %6586 = vmatprep.subr.bf16.mxu0 0
      %6587 = vmatpush1.bf16.msra.mxu0 %v6255
      %6588 = vmatprep.subr.bf16.mxu0 0
      %6589 = vmatpush1.bf16.msra.mxu0 %v6256
      %6590 = vmatprep.subr.bf16.mxu0 0
      %6591 = vmatpush1.bf16.msra.mxu0 %v6257
      %6592 = vmatprep.subr.bf16.mxu0 0
      %6593 = vmatpush1.bf16.msra.mxu0 %v6258
      %6594 = vmatprep.subr.bf16.mxu0 0
      %6595 = vmatpush1.bf16.msra.mxu0 %v6259
      %6596 = vmatprep.subr.bf16.mxu0 0
      %6597 = vmatpush1.bf16.msra.mxu0 %v6260
      %6598 = vmatprep.subr.bf16.mxu0 0
      %6599 = vmatpush1.bf16.msra.mxu0 %v6261
      %6600 = vmatprep.mubr.bf16.mxu0 %v5412
      %6601 = vmatmul.mubr.bf16.gmra.mrb[0].mxu0 %v5411
      %v6602 = vpop.f32.mrb[0].mxu0
      %v6603 = vadd.f32 %v6554, %v6602
      %v6604 = vpop.f32.mrb[0].mxu0
      %v6605 = vpop.f32.mrb[0].mxu0
      %v6606 = vadd.f32 %v6557, %v6605
      %v6607 = vpop.f32.mrb[0].mxu0
      %6608 = vmatprep.mubr.bf16.mxu0 %v5428
      %6609 = vmatmul.mubr.bf16.gmra.mrb[0].mxu0 %v5427
      %v6610 = vpop.f32.mrb[0].mxu0
      %v6611 = vadd.f32 %v6562, %v6610
      %v6612 = vpop.f32.mrb[0].mxu0
      %v6613 = vpop.f32.mrb[0].mxu0
      %v6614 = vadd.f32 %v6565, %v6613
      %v6615 = vpop.f32.mrb[0].mxu0
      %6616 = vdwg.mxu0
      %6617 = vmatprep.subr.bf16.mxu0 0
      %6618 = vmatpush1.bf16.msra.mxu0 %v6262
      %6619 = vmatprep.subr.bf16.mxu0 0
      %6620 = vmatpush1.bf16.msra.mxu0 %v6263
      %6621 = vmatprep.subr.bf16.mxu0 0
      %6622 = vmatpush1.bf16.msra.mxu0 %v6264
      %6623 = vmatprep.subr.bf16.mxu0 0
      %6624 = vmatpush1.bf16.msra.mxu0 %v6265
      %6625 = vmatprep.subr.bf16.mxu0 0
      %6626 = vmatpush1.bf16.msra.mxu0 %v6266
      %6627 = vmatprep.subr.bf16.mxu0 0
      %6628 = vmatpush1.bf16.msra.mxu0 %v6267
      %6629 = vmatprep.subr.bf16.mxu0 0
      %6630 = vmatpush1.bf16.msra.mxu0 %v6268
      %6631 = vmatprep.subr.bf16.mxu0 0
      %6632 = vmatpush1.bf16.msra.mxu0 %v6269
      %6633 = vmatprep.subr.bf16.mxu0 0
      %6634 = vmatpush1.bf16.msra.mxu0 %v6270
      %6635 = vmatprep.subr.bf16.mxu0 0
      %6636 = vmatpush1.bf16.msra.mxu0 %v6271
      %6637 = vmatprep.subr.bf16.mxu0 0
      %6638 = vmatpush1.bf16.msra.mxu0 %v6272
      %6639 = vmatprep.subr.bf16.mxu0 0
      %6640 = vmatpush1.bf16.msra.mxu0 %v6273
      %6641 = vmatprep.subr.bf16.mxu0 0
      %6642 = vmatpush1.bf16.msra.mxu0 %v6274
      %6643 = vmatprep.subr.bf16.mxu0 0
      %6644 = vmatpush1.bf16.msra.mxu0 %v6275
      %6645 = vmatprep.subr.bf16.mxu0 0
      %6646 = vmatpush1.bf16.msra.mxu0 %v6276
      %6647 = vmatprep.subr.bf16.mxu0 0
      %6648 = vmatpush1.bf16.msra.mxu0 %v6277
      %6649 = vmatprep.mubr.bf16.mxu0 %v5414
      %6650 = vmatmul.mubr.bf16.gmra.mrb[0].mxu0 %v5413
      %v6651 = vpop.f32.mrb[0].mxu0
      %v6652 = vadd.f32 %v6603, %v6651
      %v6653 = vpop.f32.mrb[0].mxu0
      %v6654 = vpop.f32.mrb[0].mxu0
      %v6655 = vadd.f32 %v6606, %v6654
      %v6656 = vpop.f32.mrb[0].mxu0
      %6657 = vmatprep.mubr.bf16.mxu0 %v5430
      %6658 = vmatmul.mubr.bf16.gmra.mrb[0].mxu0 %v5429
      %v6659 = vpop.f32.mrb[0].mxu0
      %v6660 = vadd.f32 %v6611, %v6659
      %v6661 = vpop.f32.mrb[0].mxu0
      %v6662 = vpop.f32.mrb[0].mxu0
      %v6663 = vadd.f32 %v6614, %v6662
      %v6664 = vpop.f32.mrb[0].mxu0
      %6665 = vdwg.mxu0
      %6666 = vmatprep.subr.bf16.mxu0 0
      %6667 = vmatpush1.bf16.msra.mxu0 %v6278
      %6668 = vmatprep.subr.bf16.mxu0 0
      %6669 = vmatpush1.bf16.msra.mxu0 %v6279
      %6670 = vmatprep.subr.bf16.mxu0 0
      %6671 = vmatpush1.bf16.msra.mxu0 %v6280
      %6672 = vmatprep.subr.bf16.mxu0 0
      %6673 = vmatpush1.bf16.msra.mxu0 %v6281
      %6674 = vmatprep.subr.bf16.mxu0 0
      %6675 = vmatpush1.bf16.msra.mxu0 %v6282
      %6676 = vmatprep.subr.bf16.mxu0 0
      %6677 = vmatpush1.bf16.msra.mxu0 %v6283
      %6678 = vmatprep.subr.bf16.mxu0 0
      %6679 = vmatpush1.bf16.msra.mxu0 %v6284
      %6680 = vmatprep.subr.bf16.mxu0 0
      %6681 = vmatpush1.bf16.msra.mxu0 %v6285
      %6682 = vmatprep.subr.bf16.mxu0 0
      %6683 = vmatpush1.bf16.msra.mxu0 %v6286
      %6684 = vmatprep.subr.bf16.mxu0 0
      %6685 = vmatpush1.bf16.msra.mxu0 %v6287
      %6686 = vmatprep.subr.bf16.mxu0 0
      %6687 = vmatpush1.bf16.msra.mxu0 %v6288
      %6688 = vmatprep.subr.bf16.mxu0 0
      %6689 = vmatpush1.bf16.msra.mxu0 %v6289
      %6690 = vmatprep.subr.bf16.mxu0 0
      %6691 = vmatpush1.bf16.msra.mxu0 %v6290
      %6692 = vmatprep.subr.bf16.mxu0 0
      %6693 = vmatpush1.bf16.msra.mxu0 %v6291
      %6694 = vmatprep.subr.bf16.mxu0 0
      %6695 = vmatpush1.bf16.msra.mxu0 %v6292
      %6696 = vmatprep.subr.bf16.mxu0 0
      %6697 = vmatpush1.bf16.msra.mxu0 %v6293
      %6698 = vmatprep.mubr.bf16.mxu0 %v5416
      %6699 = vmatmul.mubr.bf16.gmra.mrb[0].mxu0 %v5415
      %v6700 = vpop.f32.mrb[0].mxu0
      %v6701 = vadd.f32 %v6652, %v6700
      %v6702 = vpop.f32.mrb[0].mxu0
      %v6703 = vpop.f32.mrb[0].mxu0
      %v6704 = vadd.f32 %v6655, %v6703
      %v6705 = vpop.f32.mrb[0].mxu0
      %6706 = vmatprep.mubr.bf16.mxu0 %v5432
      %6707 = vmatmul.mubr.bf16.gmra.mrb[0].mxu0 %v5431
      %v6708 = vpop.f32.mrb[0].mxu0
      %v6709 = vadd.f32 %v6660, %v6708
      %v6710 = vpop.f32.mrb[0].mxu0
      %v6711 = vpop.f32.mrb[0].mxu0
      %v6712 = vadd.f32 %v6663, %v6711
      %v6713 = vpop.f32.mrb[0].mxu0
      %6714 = vdwg.mxu0
      %6715 = vmatprep.subr.bf16.mxu0 0
      %6716 = vmatpush1.bf16.msra.mxu0 %v6294
      %6717 = vmatprep.subr.bf16.mxu0 0
      %6718 = vmatpush1.bf16.msra.mxu0 %v6295
      %6719 = vmatprep.subr.bf16.mxu0 0
      %6720 = vmatpush1.bf16.msra.mxu0 %v6296
      %6721 = vmatprep.subr.bf16.mxu0 0
      %6722 = vmatpush1.bf16.msra.mxu0 %v6297
      %6723 = vmatprep.subr.bf16.mxu0 0
      %6724 = vmatpush1.bf16.msra.mxu0 %v6298
      %6725 = vmatprep.subr.bf16.mxu0 0
      %6726 = vmatpush1.bf16.msra.mxu0 %v6299
      %6727 = vmatprep.subr.bf16.mxu0 0
      %6728 = vmatpush1.bf16.msra.mxu0 %v6300
      %6729 = vmatprep.subr.bf16.mxu0 0
      %6730 = vmatpush1.bf16.msra.mxu0 %v6301
      %6731 = vmatprep.subr.bf16.mxu0 0
      %6732 = vmatpush1.bf16.msra.mxu0 %v6302
      %6733 = vmatprep.subr.bf16.mxu0 0
      %6734 = vmatpush1.bf16.msra.mxu0 %v6303
      %6735 = vmatprep.subr.bf16.mxu0 0
      %6736 = vmatpush1.bf16.msra.mxu0 %v6304
      %6737 = vmatprep.subr.bf16.mxu0 0
      %6738 = vmatpush1.bf16.msra.mxu0 %v6305
      %6739 = vmatprep.subr.bf16.mxu0 0
      %6740 = vmatpush1.bf16.msra.mxu0 %v6306
      %6741 = vmatprep.subr.bf16.mxu0 0
      %6742 = vmatpush1.bf16.msra.mxu0 %v6307
      %6743 = vmatprep.subr.bf16.mxu0 0
      %6744 = vmatpush1.bf16.msra.mxu0 %v6308
      %6745 = vmatprep.subr.bf16.mxu0 0
      %6746 = vmatpush1.bf16.msra.mxu0 %v6309
      %6747 = vmatprep.mubr.bf16.mxu0 %v5418
      %6748 = vmatmul.mubr.bf16.gmra.mrb[0].mxu0 %v5417
      %v6749 = vpop.f32.mrb[0].mxu0
      %v6750 = vadd.f32 %v6701, %v6749
      %v6751 = vpop.f32.mrb[0].mxu0
      %v6752 = vpop.f32.mrb[0].mxu0
      %v6753 = vadd.f32 %v6704, %v6752
      %v6754 = vpop.f32.mrb[0].mxu0
      %6755 = vmatprep.mubr.bf16.mxu0 %v5434
      %6756 = vmatmul.mubr.bf16.gmra.mrb[0].mxu0 %v5433
      %v6757 = vpop.f32.mrb[0].mxu0
      %v6758 = vadd.f32 %v6709, %v6757
      %v6759 = vpop.f32.mrb[0].mxu0
      %v6760 = vpop.f32.mrb[0].mxu0
      %v6761 = vadd.f32 %v6712, %v6760
      %v6762 = vpop.f32.mrb[0].mxu0
      %6763 = vdwg.mxu0
      %6764 = vmatprep.subr.bf16.mxu0 0
      %6765 = vmatpush1.bf16.msra.mxu0 %v6310
      %6766 = vmatprep.subr.bf16.mxu0 0
      %6767 = vmatpush1.bf16.msra.mxu0 %v6311
      %6768 = vmatprep.subr.bf16.mxu0 0
      %6769 = vmatpush1.bf16.msra.mxu0 %v6312
      %6770 = vmatprep.subr.bf16.mxu0 0
      %6771 = vmatpush1.bf16.msra.mxu0 %v6313
      %6772 = vmatprep.subr.bf16.mxu0 0
      %6773 = vmatpush1.bf16.msra.mxu0 %v6314
      %6774 = vmatprep.subr.bf16.mxu0 0
      %6775 = vmatpush1.bf16.msra.mxu0 %v6315
      %6776 = vmatprep.subr.bf16.mxu0 0
      %6777 = vmatpush1.bf16.msra.mxu0 %v6316
      %6778 = vmatprep.subr.bf16.mxu0 0
      %6779 = vmatpush1.bf16.msra.mxu0 %v6317
      %6780 = vmatprep.subr.bf16.mxu0 0
      %6781 = vmatpush1.bf16.msra.mxu0 %v6318
      %6782 = vmatprep.subr.bf16.mxu0 0
      %6783 = vmatpush1.bf16.msra.mxu0 %v6319
      %6784 = vmatprep.subr.bf16.mxu0 0
      %6785 = vmatpush1.bf16.msra.mxu0 %v6320
      %6786 = vmatprep.subr.bf16.mxu0 0
      %6787 = vmatpush1.bf16.msra.mxu0 %v6321
      %6788 = vmatprep.subr.bf16.mxu0 0
      %6789 = vmatpush1.bf16.msra.mxu0 %v6322
      %6790 = vmatprep.subr.bf16.mxu0 0
      %6791 = vmatpush1.bf16.msra.mxu0 %v6323
      %6792 = vmatprep.subr.bf16.mxu0 0
      %6793 = vmatpush1.bf16.msra.mxu0 %v6324
      %6794 = vmatprep.subr.bf16.mxu0 0
      %6795 = vmatpush1.bf16.msra.mxu0 %v6325
      %6796 = vmatprep.mubr.bf16.mxu0 %v5420
      %6797 = vmatmul.mubr.bf16.gmra.mrb[0].mxu0 %v5419
      %v6798 = vpop.f32.mrb[0].mxu0
      %v6799 = vadd.f32 %v6750, %v6798
      %v6800 = vpop.f32.mrb[0].mxu0
      %v6801 = vpop.f32.mrb[0].mxu0
      %v6802 = vadd.f32 %v6753, %v6801
      %v6803 = vpop.f32.mrb[0].mxu0
      %6804 = vmatprep.mubr.bf16.mxu0 %v5436
      %6805 = vmatmul.mubr.bf16.gmra.mrb[0].mxu0 %v5435
      %v6806 = vpop.f32.mrb[0].mxu0
      %v6807 = vadd.f32 %v6758, %v6806
      %v6808 = vpop.f32.mrb[0].mxu0
      %v6809 = vpop.f32.mrb[0].mxu0
      %v6810 = vadd.f32 %v6761, %v6809
      %v6811 = vpop.f32.mrb[0].mxu0
      %6812 = vdwg.mxu0
      %6813 = vmatprep.subr.bf16.mxu0 0
      %6814 = vmatpush1.bf16.msra.mxu0 %v6326
      %6815 = vmatprep.subr.bf16.mxu0 0
      %6816 = vmatpush1.bf16.msra.mxu0 %v6327
      %6817 = vmatprep.subr.bf16.mxu0 0
      %6818 = vmatpush1.bf16.msra.mxu0 %v6328
      %6819 = vmatprep.subr.bf16.mxu0 0
      %6820 = vmatpush1.bf16.msra.mxu0 %v6329
      %6821 = vmatprep.subr.bf16.mxu0 0
      %6822 = vmatpush1.bf16.msra.mxu0 %v6330
      %6823 = vmatprep.subr.bf16.mxu0 0
      %6824 = vmatpush1.bf16.msra.mxu0 %v6331
      %6825 = vmatprep.subr.bf16.mxu0 0
      %6826 = vmatpush1.bf16.msra.mxu0 %v6332
      %6827 = vmatprep.subr.bf16.mxu0 0
      %6828 = vmatpush1.bf16.msra.mxu0 %v6333
      %6829 = vmatprep.subr.bf16.mxu0 0
      %6830 = vmatpush1.bf16.msra.mxu0 %v6334
      %6831 = vmatprep.subr.bf16.mxu0 0
      %6832 = vmatpush1.bf16.msra.mxu0 %v6335
      %6833 = vmatprep.subr.bf16.mxu0 0
      %6834 = vmatpush1.bf16.msra.mxu0 %v6336
      %6835 = vmatprep.subr.bf16.mxu0 0
      %6836 = vmatpush1.bf16.msra.mxu0 %v6337
      %6837 = vmatprep.subr.bf16.mxu0 0
      %6838 = vmatpush1.bf16.msra.mxu0 %v6338
      %6839 = vmatprep.subr.bf16.mxu0 0
      %6840 = vmatpush1.bf16.msra.mxu0 %v6339
      %6841 = vmatprep.subr.bf16.mxu0 0
      %6842 = vmatpush1.bf16.msra.mxu0 %v6340
      %6843 = vmatprep.subr.bf16.mxu0 0
      %6844 = vmatpush1.bf16.msra.mxu0 %v6341
      %6845 = vmatprep.mubr.bf16.mxu0 %v5422
      %6846 = vmatmul.mubr.bf16.gmra.mrb[0].mxu0 %v5421
      %v6847 = vpop.f32.mrb[0].mxu0
      %v6848 = vadd.f32 %v6799, %v6847
      %v6849 = vpop.f32.mrb[0].mxu0
      %v6850 = vpop.f32.mrb[0].mxu0
      %v6851 = vadd.f32 %v6802, %v6850
      %v6852 = vpop.f32.mrb[0].mxu0
      %6853 = vmatprep.mubr.bf16.mxu0 %v5438
      %6854 = vmatmul.mubr.bf16.gmra.mrb[0].mxu0 %v5437
      %v6855 = vpop.f32.mrb[0].mxu0
      %v6856 = vadd.f32 %v6807, %v6855
      %v6857 = vpop.f32.mrb[0].mxu0
      %v6858 = vpop.f32.mrb[0].mxu0
      %v6859 = vadd.f32 %v6810, %v6858
      %v6860 = vpop.f32.mrb[0].mxu0
      %6861 = vdwg.mxu0
      %v6862 = vadd.f32 %v3661, %v6848
      %v6863 = vadd.f32 %v3662, %v6851
      %v6864 = vadd.f32 %v3663, %v6856
      %v6865 = vadd.f32 %v3664, %v6859
      %6866 = vst.msk [vmem:[#allocation2] sm:$0xff] %vm791, %v6862
      %6867 = vst.msk [vmem:[#allocation2 + $0x8] sm:$0xff] %vm791, %v6863
      %6868 = vst.msk [vmem:[#allocation2 + $0x10] sm:$0xff] %vm791, %v6864
      %6869 = vst.msk [vmem:[#allocation2 + $0x18] sm:$0xff] %vm791, %v6865
      %p6870 = scmp.eq.s32.totalorder %s33, 11
      // Predicated region
      $region85: #{gpt_large_forward.1} parent=79 // pred_check
        %p6871 = pneg %p6870
      $region86: #{gpt_large_forward.1} parent=79 // pred_check_branch
        %6873 = sbr.rel (%p6871) target = $region88
      $region87: #{gpt_large_forward.1} parent=79 // pred_region
        %v6874 = vld [vmem:[%s2] sm:$0x1]
        %v6875 = vld [vmem:[%s3] sm:$0x1]
        %v6876 = vsel %vm791, %v6862, 0.0
        %6877 = vadd.xlane.f32.xlu0 %v6876
        %v6878 = vpop.xlane.xlu0 %6877
        %v6879 = vsel %vm791, %v6863, 0.0
        %6880 = vadd.xlane.f32.xlu0 %v6879
        %v6881 = vpop.xlane.xlu0 %6880
        %v6882 = vsel %vm791, %v6864, 0.0
        %6883 = vadd.xlane.f32.xlu0 %v6882
        %v6884 = vpop.xlane.xlu0 %6883
        %v6885 = vsel %vm791, %v6865, 0.0
        %6886 = vadd.xlane.f32.xlu0 %v6885
        %v6887 = vpop.xlane.xlu0 %6886
        %v6888 = vmul.f32 %v6878, %v804
        %v6889 = vmul.f32 %v6881, %v804
        %v6890 = vmul.f32 %v6884, %v804
        %v6891 = vmul.f32 %v6887, %v804
        %v6892 = vsub.f32 %v6862, %v6888
        %v6893 = vsub.f32 %v6863, %v6889
        %v6894 = vsub.f32 %v6864, %v6890
        %v6895 = vsub.f32 %v6865, %v6891
        %v6896 = vmul.f32 %v6892, %v6892
        %v6897 = vmul.f32 %v6893, %v6893
        %v6898 = vmul.f32 %v6894, %v6894
        %v6899 = vmul.f32 %v6895, %v6895
        %v6900 = vsel %vm791, %v6896, 0.0
        %6901 = vadd.xlane.f32.xlu0 %v6900
        %v6902 = vpop.xlane.xlu0 %6901
        %v6903 = vsel %vm791, %v6897, 0.0
        %6904 = vadd.xlane.f32.xlu0 %v6903
        %v6905 = vpop.xlane.xlu0 %6904
        %v6906 = vsel %vm791, %v6898, 0.0
        %6907 = vadd.xlane.f32.xlu0 %v6906
        %v6908 = vpop.xlane.xlu0 %6907
        %v6909 = vsel %vm791, %v6899, 0.0
        %6910 = vadd.xlane.f32.xlu0 %v6909
        %v6911 = vpop.xlane.xlu0 %6910
        %v6912 = vmul.f32 %v6902, %v804
        %v6913 = vmul.f32 %v6905, %v804
        %v6914 = vmul.f32 %v6908, %v804
        %v6915 = vmul.f32 %v6911, %v804
        %v6916 = vadd.f32 %v6912, 1e-05
        %v6917 = vadd.f32 %v6913, 1e-05
        %v6918 = vadd.f32 %v6914, 1e-05
        %v6919 = vadd.f32 %v6915, 1e-05
        %v6920 = vrsqrt.pop %v6916
        %v6921 = vrsqrt.pop %v6917
        %v6922 = vrsqrt.pop %v6918
        %v6923 = vrsqrt.pop %v6919
        %v6924 = vmul.f32 %v6892, %v6920
        %v6925 = vmul.f32 %v6893, %v6921
        %v6926 = vmul.f32 %v6894, %v6922
        %v6927 = vmul.f32 %v6895, %v6923
        %v6929 = vlaneseq
        %v6930 = vshrl.u32 %v6929, 7
        %v6931 = vsub.s32 0, %v6930
        %v6932 = vrot.slane %v6874, %v6931
        %v6934 = vmul.f32 %v6924, %v6932
        %v6935 = vmul.f32 %v6925, %v6932
        %v6936 = vmul.f32 %v6926, %v6932
        %v6937 = vmul.f32 %v6927, %v6932
        %v6939 = vlaneseq
        %v6940 = vshrl.u32 %v6939, 7
        %v6941 = vsub.s32 0, %v6940
        %v6942 = vrot.slane %v6875, %v6941
        %v6944 = vadd.f32 %v6934, %v6942
        %v6945 = vadd.f32 %v6935, %v6942
        %v6946 = vadd.f32 %v6936, %v6942
        %v6947 = vadd.f32 %v6937, %v6942
        %6948 = vst.msk [vmem:[%s16] sm:$0xff] %vm791, %v6944
        %6949 = vst.msk [vmem:[%s16 + $0x8] sm:$0xff] %vm791, %v6945
        %6950 = vst.msk [vmem:[%s16 + $0x10] sm:$0xff] %vm791, %v6946
        %6951 = vst.msk [vmem:[%s16 + $0x18] sm:$0xff] %vm791, %v6947
      $region88: #{gpt_large_forward.1} parent=79 // pred_fallthru
        _
      // Predicated region
      $region89: #{gpt_large_forward.1} parent=79 // pred_check
        %p6952 = pneg %p421
      $region90: #{gpt_large_forward.1} parent=79 // pred_check_branch
        %6954 = sbr.rel (%p6952) target = $region92
      $region91: #{gpt_large_forward.1} parent=79 // pred_region
        _
      $region92: #{gpt_large_forward.1} parent=79 // pred_fallthru
        _
      // Predicated region
      $region93: #{gpt_large_forward.1} parent=79 // pred_check
        %p6955 = pneg %p421
      $region94: #{gpt_large_forward.1} parent=79 // pred_check_branch
        %6957 = sbr.rel (%p6955) target = $region96
      $region95: #{gpt_large_forward.1} parent=79 // pred_region
        _
      $region96: #{gpt_large_forward.1} parent=79 // pred_fallthru
        _
    $region80: #{gpt_large_forward.1} parent=5 // pred_fallthru
      _
    %p6958 = scmp.le.s32.totalorder 2, %s28
    // Predicated region
    $region97: #{gpt_large_forward.1} parent=5 // pred_check
      %p6959 = pneg %p6958
    $region98: #{gpt_large_forward.1} parent=5 // pred_check_branch
      %6961 = sbr.rel (%p6959) target = $region100
    $region99: #{gpt_large_forward.1} parent=5 // pred_region
      %s6962 = ssub.s32 %s28, 2
    $region100: #{gpt_large_forward.1} parent=5 // pred_fallthru
      _
  $region6: #{gpt_large_forward.1} parent=0 // loop_footer
    %s32 = sadd.s32 1, %s28
  $region7: #{gpt_large_forward.1} parent=0 // loop_footer_branch
    %27 = sbr.rel target = $region3
  $region8: #{gpt_large_forward.1} parent=0 // loop_exit
    _

</llo_original>
